<compile_context>
chip_gen: v7x
topology: tpu7x:2x2x1
jax: 0.10.0
libtpu: 0.0.40
codegen_flags: <defaults>
</compile_context>

<pallas_src>
import math
import jax
import jax.numpy as jnp
from jax.experimental import pallas as pl
from jax.experimental.pallas import tpu as pltpu


def _round_up(n, m):
    return ((n + m - 1) // m) * m


# ----------------------------------------------------------------------------
# Fused kernel: fwd GRU + rev GRU + last-visit select + FC + sigmoid
# ----------------------------------------------------------------------------
def fused_demb_kernel(xf_ref, xr_ref, idxf_ref, idxr_ref,
                      wih_f_ref, whh_f_ref, bgi_f_ref, bhn_f_ref,
                      wih_r_ref, whh_r_ref, bgi_r_ref, bhn_r_ref,
                      wfc_f_ref, wfc_r_ref, bfc_ref,
                      out_ref):
    # xf/xr:   (T, bt, E) bf16  time-major inputs (one batch tile)
    # idx*:    (bt, 1)    int32 index of last true visit per row
    # wih*:    (E, 3H)    bf16  input->hidden weights, gate order [r|z|n]
    # whh*:    (H, 3H)    f32   hidden->hidden weights
    # bgi*:    (1, 3H)    f32   b_ih with (b_hh_r, b_hh_z) folded into r|z cols
    # bhn*:    (1, H)     f32   b_hh_n (must stay inside r * (gh_n + b_hh_n))
    # wfc_f/r: (1, H)     f32   fc weight split per direction (replaces concat)
    # bfc:     (1, 1)     f32   fc bias
    # out:     (bt, 1)    f32   probabilities
    T, bt, E = xf_ref.shape
    H = whh_f_ref.shape[0]

    def gru_last(x_ref, idx_ref, wih_ref, whh_ref, bgi_ref, bhn_ref):
        # Hoisted input projection: one (T*bt, E) x (E, 3H) bf16 MXU matmul
        # with f32 accumulation.  Time-major: the leading-dim collapse is a
        # contiguous reshape, and gi[t] below is a contiguous leading-axis
        # slice (nothing sublane-strided on the serial recurrence path).
        x2d = x_ref[...].reshape(T * bt, E)
        gi = jnp.dot(x2d, wih_ref[...], preferred_element_type=jnp.float32)
        gi = (gi + bgi_ref[...]).reshape(T, bt, 3 * H)

        whh = whh_ref[...]
        # Loop-invariant broadcasts hoisted out of the unrolled T-loop.
        bhn_b = jnp.broadcast_to(bhn_ref[...], (bt, H))
        idx_b = jnp.broadcast_to(idx_ref[...], (bt, H))

        h = jnp.zeros((bt, H), jnp.float32)
        out = jnp.zeros((bt, H), jnp.float32)
        # Fully unrolled recurrence (T static & small): only the small
        # (bt,H)x(H,3H) f32 matmul + pointwise/EUP work remains per step.
        for t in range(T):
            gi_t = gi[t]                                        # (bt, 3H)
            gh = jnp.dot(h, whh, preferred_element_type=jnp.float32)
            r = jax.nn.sigmoid(gi_t[:, 0:H] + gh[:, 0:H])
            z = jax.nn.sigmoid(gi_t[:, H:2 * H] + gh[:, H:2 * H])
            n = jnp.tanh(gi_t[:, 2 * H:] + r * (gh[:, 2 * H:] + bhn_b))
            h = (1.0 - z) * n + z * h
            out = jnp.where(idx_b == t, h, out)                 # last-true visit
        return out

    h_f = gru_last(xf_ref, idxf_ref, wih_f_ref, whh_f_ref, bgi_f_ref, bhn_f_ref)
    h_r = gru_last(xr_ref, idxr_ref, wih_r_ref, whh_r_ref, bgi_r_ref, bhn_r_ref)

    # FC (2H -> 1) + sigmoid as a VPU-reduction epilogue (no concat, no MXU).
    logit = (jnp.sum(h_f * wfc_f_ref[...], axis=-1, keepdims=True)
             + jnp.sum(h_r * wfc_r_ref[...], axis=-1, keepdims=True)
             + bfc_ref[...])
    out_ref[...] = jax.nn.sigmoid(logit)


# ----------------------------------------------------------------------------
# Wrapper
# ----------------------------------------------------------------------------
def demb_rnn_forward(params, x, masks, rev_x, rev_masks, *,
                     batch_tile=256, vmem_limit_bytes=40 * 1024 * 1024):
    """Reproduces DembRNN.forward -> probabilities of shape (B,).

    batch_tile / vmem_limit_bytes tuning: defaults target v7x (64 MiB physical
    VMEM, 2 TCs).  On v5e/v6e (128 MiB VMEM) raise batch_tile to 384-512 and
    vmem_limit_bytes to ~96 MiB for better DMA/compute overlap.
    """
    B, T, E = x.shape
    w_ih_f, w_hh_f, b_ih_f, b_hh_f = params["rnn"]
    w_ih_r, w_hh_r, b_ih_r, b_hh_r = params["rev_rnn"]
    w_fc, b_fc = params["fc"]
    H = w_hh_f.shape[0]

    # Batch tiling: pad B up to a multiple of the tile (never a single giant
    # fallback block) and aim for >= 2 grid steps when the batch allows it.
    B8 = _round_up(B, 8)
    bt = min(batch_tile, max(8, _round_up(B8 // 2, 8)))
    B_pad = _round_up(B8, bt)
    grid = (B_pad // bt,)

    def fold_bias(b_ih, b_hh):
        # r|z columns: fold b_ih + b_hh into the hoisted gi matmul.
        # n column: only b_ih goes into gi; b_hh_n stays separate.
        bgi = jnp.concatenate([b_ih[:2 * H] + b_hh[:2 * H], b_ih[2 * H:]])
        return (bgi.reshape(1, 3 * H).astype(jnp.float32),
                b_hh[2 * H:].reshape(1, H).astype(jnp.float32))

    bgi_f, bhn_f = fold_bias(b_ih_f, b_hh_f)
    bgi_r, bhn_r = fold_bias(b_ih_r, b_hh_r)

    def last_idx(m):
        s = jnp.sum(m.astype(jnp.int32), axis=1)
        idx = jnp.maximum(s - 1, 0).astype(jnp.int32).reshape(B, 1)  # m[m>0]-=1
        return jnp.pad(idx, ((0, B_pad - B), (0, 0)))

    idx_f = last_idx(masks)
    idx_r = last_idx(rev_masks)

    def prep_x(xin):
        # bf16 operands for the HBM-dominant projection (f32 accumulation in
        # kernel); time-major (T, B, E).  Cast + transpose + pad happen once,
        # outside the kernel, and fuse in XLA.
        xt = jnp.transpose(xin.astype(jnp.bfloat16), (1, 0, 2))
        if B_pad != B:
            xt = jnp.pad(xt, ((0, 0), (0, B_pad - B), (0, 0)))
        return xt

    xf = prep_x(x)
    xr = prep_x(rev_x)
    # TODO(synk): if rev_x is guaranteed to be x flipped along time, drop the xr
    # stream entirely and read xf's projection in reverse order (halves HBM).

    wfc_f = w_fc[:H, 0].reshape(1, H).astype(jnp.float32)
    wfc_r = w_fc[H:, 0].reshape(1, H).astype(jnp.float32)
    bfc = b_fc.reshape(1, 1).astype(jnp.float32)

    row_spec = pl.BlockSpec((T, bt, E), lambda i: (0, i, 0))
    idx_spec = pl.BlockSpec((bt, 1), lambda i: (i, 0))

    def const_spec(shape):
        # Weights/biases: constant index_map, single buffer (double-buffering a
        # never-changing block is pure VMEM waste — matters inside v7x 64 MiB).
        return pl.BlockSpec(shape, lambda i: (0,) * len(shape),
                            pipeline_mode=pl.Buffered(1))

    # Advisory cost hint for XLA's scheduler around the custom call.
    flops = 4 * B_pad * T * (E + H) * 3 * H               # 2 dirs, 2 flops/MAC
    transcendentals = 6 * B_pad * T * H                   # 2 sigmoid + 1 tanh
    bytes_accessed = (2 * (T * B_pad * E) * 2             # xf, xr (bf16)
                      + 2 * (E * 3 * H * 2 + H * 3 * H * 4)
                      + 8 * B_pad + 4 * B_pad)

    probs = pl.pallas_call(
        fused_demb_kernel,
        out_shape=jax.ShapeDtypeStruct((B_pad, 1), jnp.float32),
        grid=grid,
        in_specs=[
            row_spec, row_spec, idx_spec, idx_spec,
            const_spec((E, 3 * H)), const_spec((H, 3 * H)),
            const_spec((1, 3 * H)), const_spec((1, H)),
            const_spec((E, 3 * H)), const_spec((H, 3 * H)),
            const_spec((1, 3 * H)), const_spec((1, H)),
            const_spec((1, H)), const_spec((1, H)), const_spec((1, 1)),
        ],
        out_specs=pl.BlockSpec((bt, 1), lambda i: (i, 0)),
        compiler_params=pltpu.CompilerParams(
            dimension_semantics=("parallel",),
            vmem_limit_bytes=vmem_limit_bytes),
        cost_estimate=pl.CostEstimate(
            flops=int(flops), transcendentals=int(transcendentals),
            bytes_accessed=int(bytes_accessed)),
    )(xf, xr, idx_f, idx_r,
      w_ih_f.astype(jnp.bfloat16), w_hh_f.astype(jnp.float32), bgi_f, bhn_f,
      w_ih_r.astype(jnp.bfloat16), w_hh_r.astype(jnp.float32), bgi_r, bhn_r,
      wfc_f, wfc_r, bfc)
    return probs[:B, 0]


# ----------------------------------------------------------------------------
# Pure-JAX reference (same math) for correctness checks.
# ----------------------------------------------------------------------------
def _gru_ref(x, w_ih, w_hh, b_ih, b_hh, *, bf16_proj=False):
    B, T, E = x.shape
    H = w_hh.shape[0]
    if bf16_proj:
        x = x.astype(jnp.bfloat16)
        w_ih = w_ih.astype(jnp.bfloat16)

    def step(h, xt):
        gi = jnp.dot(xt, w_ih, preferred_element_type=jnp.float32) + b_ih
        gh = h @ w_hh + b_hh
        r = jax.nn.sigmoid(gi[:, :H] + gh[:, :H])
        z = jax.nn.sigmoid(gi[:, H:2 * H] + gh[:, H:2 * H])
        n = jnp.tanh(gi[:, 2 * H:] + r * gh[:, 2 * H:])
        h_new = (1.0 - z) * n + z * h
        return h_new, h_new

    h0 = jnp.zeros((B, H), jnp.float32)
    _, hs = jax.lax.scan(step, h0, jnp.transpose(x, (1, 0, 2)))
    return jnp.transpose(hs, (1, 0, 2))                          # (B, T, H)


def _forward_ref(params, x, masks, rev_x, rev_masks, *, bf16_proj=False):
    def last(hs, m):
        s = jnp.sum(m.astype(jnp.int32), axis=1)
        idx = jnp.maximum(s - 1, 0)
        return jnp.take_along_axis(hs, idx[:, None, None], axis=1)[:, 0, :]

    hf = last(_gru_ref(x, *params["rnn"], bf16_proj=bf16_proj), masks)
    hr = last(_gru_ref(rev_x, *params["rev_rnn"], bf16_proj=bf16_proj), rev_masks)
    w_fc, b_fc = params["fc"]
    return jax.nn.sigmoid(jnp.concatenate([hf, hr], 1) @ w_fc + b_fc).reshape(-1)


# ----------------------------------------------------------------------------
# Deterministic parameter construction (shapes match nn.GRU / nn.Linear).
# ----------------------------------------------------------------------------
def _init_gru(key, E, H):
    k = 1.0 / math.sqrt(H)
    k0, k1, k2, k3 = jax.random.split(key, 4)
    w_ih = jax.random.uniform(k0, (E, 3 * H), jnp.float32, -k, k)
    w_hh = jax.random.uniform(k1, (H, 3 * H), jnp.float32, -k, k)
    b_ih = jax.random.uniform(k2, (3 * H,), jnp.float32, -k, k)
    b_hh = jax.random.uniform(k3, (3 * H,), jnp.float32, -k, k)
    return (w_ih, w_hh, b_ih, b_hh)


def _init_fc(key, fan_in, fan_out):
    k = 1.0 / math.sqrt(fan_in)
    k0, k1 = jax.random.split(key)
    w = jax.random.uniform(k0, (fan_in, fan_out), jnp.float32, -k, k)
    b = jax.random.uniform(k1, (fan_out,), jnp.float32, -k, k)
    return (w, b)


if __name__ == "__main__":
    B, T, E, H = 2, 8, 768, 128        # bert_emb_size=768, hidden=128 (hardcoded)

    key = jax.random.PRNGKey(0)
    k_rnn, k_rev, k_fc, k_x, k_rx = jax.random.split(key, 5)

    params = {
        "rnn": _init_gru(k_rnn, E, H),
        "rev_rnn": _init_gru(k_rev, E, H),
        "fc": _init_fc(k_fc, 2 * H, 1),
    }

    x = jax.random.normal(k_x, (B, T, E), jnp.float32)
    rev_x = jax.random.normal(k_rx, (B, T, E), jnp.float32)
    lengths = jnp.array([5, 8], dtype=jnp.int32)
    masks = (jnp.arange(T)[None, :] < lengths[:, None])          # (B, T) bool
    rev_masks = masks

    probs = demb_rnn_forward(params, x, masks, rev_x, rev_masks)
    probs = jax.block_until_ready(probs)

    # Tight check against a reference with matching bf16-projection numerics,
    # plus a looser check against the pure-f32 reference (bf16 operand
    # rounding in the hoisted projection is the only numerics difference).
    ref_match = _forward_ref(params, x, masks, rev_x, rev_masks, bf16_proj=True)
    ref_f32 = _forward_ref(params, x, masks, rev_x, rev_masks)

    assert probs.shape == (B,)
    assert bool(jnp.all(jnp.isfinite(probs)))
    assert bool(jnp.allclose(probs, ref_match, rtol=2e-3, atol=2e-3)), (probs, ref_match)
    assert bool(jnp.allclose(probs, ref_f32, rtol=2e-2, atol=2e-2)), (probs, ref_f32)

    print("KERNEL_OK")
</pallas_src>

<mosaic_0001>
module attributes {stable_mosaic.version = 11 : i64} {
  func.func @fused_demb_kernel(%arg0: i32, %arg1: memref<8x8x768xbf16, #tpu.memory_space<vmem>>, %arg2: memref<8x8x768xbf16, #tpu.memory_space<vmem>>, %arg3: memref<8x1xi32, #tpu.memory_space<vmem>>, %arg4: memref<8x1xi32, #tpu.memory_space<vmem>>, %arg5: memref<768x384xbf16, #tpu.memory_space<vmem>>, %arg6: memref<128x384xf32, #tpu.memory_space<vmem>>, %arg7: memref<1x384xf32, #tpu.memory_space<vmem>>, %arg8: memref<1x128xf32, #tpu.memory_space<vmem>>, %arg9: memref<768x384xbf16, #tpu.memory_space<vmem>>, %arg10: memref<128x384xf32, #tpu.memory_space<vmem>>, %arg11: memref<1x384xf32, #tpu.memory_space<vmem>>, %arg12: memref<1x128xf32, #tpu.memory_space<vmem>>, %arg13: memref<1x128xf32, #tpu.memory_space<vmem>>, %arg14: memref<1x128xf32, #tpu.memory_space<vmem>>, %arg15: memref<1x1xf32, #tpu.memory_space<vmem>>, %arg16: memref<8x1xf32, #tpu.memory_space<vmem>>) attributes {dimension_semantics = [#tpu.dimension_semantics<parallel>], iteration_bounds = array<i64: 1>, scalar_prefetch = 0 : i64, scratch_operands = 0 : i64, tpu.core_type = #tpu.core_type<tc>, window_params = [{transform_indices = @transform_0, window_bounds = array<i64: 8, 8, 768>}, {transform_indices = @transform_1, window_bounds = array<i64: 8, 8, 768>}, {transform_indices = @transform_2, window_bounds = array<i64: 8, 1>}, {transform_indices = @transform_3, window_bounds = array<i64: 8, 1>}, {pipeline_mode = #tpu.pipeline_mode<synchronous>, transform_indices = @transform_4, window_bounds = array<i64: 768, 384>}, {pipeline_mode = #tpu.pipeline_mode<synchronous>, transform_indices = @transform_5, window_bounds = array<i64: 128, 384>}, {pipeline_mode = #tpu.pipeline_mode<synchronous>, transform_indices = @transform_6, window_bounds = array<i64: 1, 384>}, {pipeline_mode = #tpu.pipeline_mode<synchronous>, transform_indices = @transform_7, window_bounds = array<i64: 1, 128>}, {pipeline_mode = #tpu.pipeline_mode<synchronous>, transform_indices = @transform_8, window_bounds = array<i64: 768, 384>}, {pipeline_mode = #tpu.pipeline_mode<synchronous>, transform_indices = @transform_9, window_bounds = array<i64: 128, 384>}, {pipeline_mode = #tpu.pipeline_mode<synchronous>, transform_indices = @transform_10, window_bounds = array<i64: 1, 384>}, {pipeline_mode = #tpu.pipeline_mode<synchronous>, transform_indices = @transform_11, window_bounds = array<i64: 1, 128>}, {pipeline_mode = #tpu.pipeline_mode<synchronous>, transform_indices = @transform_12, window_bounds = array<i64: 1, 128>}, {pipeline_mode = #tpu.pipeline_mode<synchronous>, transform_indices = @transform_13, window_bounds = array<i64: 1, 128>}, {pipeline_mode = #tpu.pipeline_mode<synchronous>, transform_indices = @transform_14, window_bounds = array<i64: 1, 1>}, {transform_indices = @transform_15, window_bounds = array<i64: 8, 1>}]} {
    %c0 = arith.constant 0 : index
    %c0_0 = arith.constant 0 : index
    %c0_1 = arith.constant 0 : index
    %0 = vector.load %arg1[%c0, %c0_0, %c0_1] : memref<8x8x768xbf16, #tpu.memory_space<vmem>>, vector<8x8x768xbf16>
    %1 = vector.shape_cast %0 : vector<8x8x768xbf16> to vector<64x768xbf16>
    %c0_2 = arith.constant 0 : index
    %c0_3 = arith.constant 0 : index
    %2 = vector.load %arg5[%c0_2, %c0_3] : memref<768x384xbf16, #tpu.memory_space<vmem>>, vector<768x384xbf16>
    %cst = arith.constant dense<0.000000e+00> : vector<64x384xf32>
    %3 = tpu.matmul %1, %2, %cst {dimension_numbers = #tpu.dot_dimension_numbers<[1], [0], [0], [1], [0, 0, 1, 1], [], []>} : vector<64x768xbf16>, vector<768x384xbf16>, vector<64x384xf32> -> vector<64x384xf32>
    %c0_4 = arith.constant 0 : index
    %c0_5 = arith.constant 0 : index
    %4 = vector.load %arg7[%c0_4, %c0_5] : memref<1x384xf32, #tpu.memory_space<vmem>>, vector<1x384xf32>
    %5 = vector.broadcast %4 : vector<1x384xf32> to vector<64x384xf32>
    %6 = arith.addf %3, %5 : vector<64x384xf32>
    %7 = vector.shape_cast %6 : vector<64x384xf32> to vector<8x8x384xf32>
    %c0_6 = arith.constant 0 : index
    %c0_7 = arith.constant 0 : index
    %8 = vector.load %arg6[%c0_6, %c0_7] : memref<128x384xf32, #tpu.memory_space<vmem>>, vector<128x384xf32>
    %c0_8 = arith.constant 0 : index
    %c0_9 = arith.constant 0 : index
    %9 = vector.load %arg8[%c0_8, %c0_9] : memref<1x128xf32, #tpu.memory_space<vmem>>, vector<1x128xf32>
    %10 = vector.shape_cast %9 : vector<1x128xf32> to vector<1x128xf32>
    %11 = vector.broadcast %10 : vector<1x128xf32> to vector<8x128xf32>
    %c0_10 = arith.constant 0 : index
    %c0_11 = arith.constant 0 : index
    %12 = vector.load %arg3[%c0_10, %c0_11] : memref<8x1xi32, #tpu.memory_space<vmem>>, vector<8x1xi32>
    %13 = vector.shape_cast %12 : vector<8x1xi32> to vector<8x1xi32>
    %14 = vector.broadcast %13 : vector<8x1xi32> to vector<8x128xi32>
    %cst_12 = arith.constant 0.000000e+00 : f32
    %15 = vector.broadcast %cst_12 : f32 to vector<8x128xf32>
    %cst_13 = arith.constant 0.000000e+00 : f32
    %16 = vector.broadcast %cst_13 : f32 to vector<8x128xf32>
    %17 = vector.extract_strided_slice %7 {offsets = [0, 0, 0], sizes = [1, 8, 384], strides = [1, 1, 1]} : vector<8x8x384xf32> to vector<1x8x384xf32>
    %18 = vector.shape_cast %17 : vector<1x8x384xf32> to vector<8x384xf32>
    %cst_14 = arith.constant dense<0.000000e+00> : vector<8x384xf32>
    %19 = tpu.matmul %15, %8, %cst_14 {dimension_numbers = #tpu.dot_dimension_numbers<[1], [0], [0], [1], [0, 0, 1, 1], [], []>} : vector<8x128xf32>, vector<128x384xf32>, vector<8x384xf32> -> vector<8x384xf32>
    %20 = vector.extract_strided_slice %18 {offsets = [0, 0], sizes = [8, 128], strides = [1, 1]} : vector<8x384xf32> to vector<8x128xf32>
    %21 = vector.extract_strided_slice %19 {offsets = [0, 0], sizes = [8, 128], strides = [1, 1]} : vector<8x384xf32> to vector<8x128xf32>
    %22 = arith.addf %20, %21 : vector<8x128xf32>
    %23 = arith.negf %22 : vector<8x128xf32>
    %24 = math.exp %23 : vector<8x128xf32>
    %cst_15 = arith.constant 1.000000e+00 : f32
    %25 = vector.broadcast %cst_15 : f32 to vector<8x128xf32>
    %26 = arith.addf %25, %24 : vector<8x128xf32>
    %27 = arith.divf %25, %26 : vector<8x128xf32>
    %28 = vector.extract_strided_slice %18 {offsets = [0, 128], sizes = [8, 128], strides = [1, 1]} : vector<8x384xf32> to vector<8x128xf32>
    %29 = vector.extract_strided_slice %19 {offsets = [0, 128], sizes = [8, 128], strides = [1, 1]} : vector<8x384xf32> to vector<8x128xf32>
    %30 = arith.addf %28, %29 : vector<8x128xf32>
    %31 = arith.negf %30 : vector<8x128xf32>
    %32 = math.exp %31 : vector<8x128xf32>
    %cst_16 = arith.constant 1.000000e+00 : f32
    %33 = vector.broadcast %cst_16 : f32 to vector<8x128xf32>
    %34 = arith.addf %33, %32 : vector<8x128xf32>
    %35 = arith.divf %33, %34 : vector<8x128xf32>
    %36 = vector.extract_strided_slice %18 {offsets = [0, 256], sizes = [8, 128], strides = [1, 1]} : vector<8x384xf32> to vector<8x128xf32>
    %37 = vector.extract_strided_slice %19 {offsets = [0, 256], sizes = [8, 128], strides = [1, 1]} : vector<8x384xf32> to vector<8x128xf32>
    %38 = arith.addf %37, %11 : vector<8x128xf32>
    %39 = arith.mulf %27, %38 : vector<8x128xf32>
    %40 = arith.addf %36, %39 : vector<8x128xf32>
    %41 = math.tanh %40 : vector<8x128xf32>
    %cst_17 = arith.constant 1.000000e+00 : f32
    %42 = vector.broadcast %cst_17 : f32 to vector<8x128xf32>
    %43 = arith.subf %42, %35 : vector<8x128xf32>
    %44 = arith.mulf %43, %41 : vector<8x128xf32>
    %45 = arith.mulf %35, %15 : vector<8x128xf32>
    %46 = arith.addf %44, %45 : vector<8x128xf32>
    %c0_i32 = arith.constant 0 : i32
    %47 = vector.broadcast %c0_i32 : i32 to vector<8x128xi32>
    %48 = arith.cmpi eq, %14, %47 : vector<8x128xi32>
    %49 = arith.select %48, %46, %16 : vector<8x128xi1>, vector<8x128xf32>
    %50 = vector.extract_strided_slice %7 {offsets = [1, 0, 0], sizes = [1, 8, 384], strides = [1, 1, 1]} : vector<8x8x384xf32> to vector<1x8x384xf32>
    %51 = vector.shape_cast %50 : vector<1x8x384xf32> to vector<8x384xf32>
    %cst_18 = arith.constant dense<0.000000e+00> : vector<8x384xf32>
    %52 = tpu.matmul %46, %8, %cst_18 {dimension_numbers = #tpu.dot_dimension_numbers<[1], [0], [0], [1], [0, 0, 1, 1], [], []>} : vector<8x128xf32>, vector<128x384xf32>, vector<8x384xf32> -> vector<8x384xf32>
    %53 = vector.extract_strided_slice %51 {offsets = [0, 0], sizes = [8, 128], strides = [1, 1]} : vector<8x384xf32> to vector<8x128xf32>
    %54 = vector.extract_strided_slice %52 {offsets = [0, 0], sizes = [8, 128], strides = [1, 1]} : vector<8x384xf32> to vector<8x128xf32>
    %55 = arith.addf %53, %54 : vector<8x128xf32>
    %56 = arith.negf %55 : vector<8x128xf32>
    %57 = math.exp %56 : vector<8x128xf32>
    %cst_19 = arith.constant 1.000000e+00 : f32
    %58 = vector.broadcast %cst_19 : f32 to vector<8x128xf32>
    %59 = arith.addf %58, %57 : vector<8x128xf32>
    %60 = arith.divf %58, %59 : vector<8x128xf32>
    %61 = vector.extract_strided_slice %51 {offsets = [0, 128], sizes = [8, 128], strides = [1, 1]} : vector<8x384xf32> to vector<8x128xf32>
    %62 = vector.extract_strided_slice %52 {offsets = [0, 128], sizes = [8, 128], strides = [1, 1]} : vector<8x384xf32> to vector<8x128xf32>
    %63 = arith.addf %61, %62 : vector<8x128xf32>
    %64 = arith.negf %63 : vector<8x128xf32>
    %65 = math.exp %64 : vector<8x128xf32>
    %cst_20 = arith.constant 1.000000e+00 : f32
    %66 = vector.broadcast %cst_20 : f32 to vector<8x128xf32>
    %67 = arith.addf %66, %65 : vector<8x128xf32>
    %68 = arith.divf %66, %67 : vector<8x128xf32>
    %69 = vector.extract_strided_slice %51 {offsets = [0, 256], sizes = [8, 128], strides = [1, 1]} : vector<8x384xf32> to vector<8x128xf32>
    %70 = vector.extract_strided_slice %52 {offsets = [0, 256], sizes = [8, 128], strides = [1, 1]} : vector<8x384xf32> to vector<8x128xf32>
    %71 = arith.addf %70, %11 : vector<8x128xf32>
    %72 = arith.mulf %60, %71 : vector<8x128xf32>
    %73 = arith.addf %69, %72 : vector<8x128xf32>
    %74 = math.tanh %73 : vector<8x128xf32>
    %cst_21 = arith.constant 1.000000e+00 : f32
    %75 = vector.broadcast %cst_21 : f32 to vector<8x128xf32>
    %76 = arith.subf %75, %68 : vector<8x128xf32>
    %77 = arith.mulf %76, %74 : vector<8x128xf32>
    %78 = arith.mulf %68, %46 : vector<8x128xf32>
    %79 = arith.addf %77, %78 : vector<8x128xf32>
    %c1_i32 = arith.constant 1 : i32
    %80 = vector.broadcast %c1_i32 : i32 to vector<8x128xi32>
    %81 = arith.cmpi eq, %14, %80 : vector<8x128xi32>
    %82 = arith.select %81, %79, %49 : vector<8x128xi1>, vector<8x128xf32>
    %83 = vector.extract_strided_slice %7 {offsets = [2, 0, 0], sizes = [1, 8, 384], strides = [1, 1, 1]} : vector<8x8x384xf32> to vector<1x8x384xf32>
    %84 = vector.shape_cast %83 : vector<1x8x384xf32> to vector<8x384xf32>
    %cst_22 = arith.constant dense<0.000000e+00> : vector<8x384xf32>
    %85 = tpu.matmul %79, %8, %cst_22 {dimension_numbers = #tpu.dot_dimension_numbers<[1], [0], [0], [1], [0, 0, 1, 1], [], []>} : vector<8x128xf32>, vector<128x384xf32>, vector<8x384xf32> -> vector<8x384xf32>
    %86 = vector.extract_strided_slice %84 {offsets = [0, 0], sizes = [8, 128], strides = [1, 1]} : vector<8x384xf32> to vector<8x128xf32>
    %87 = vector.extract_strided_slice %85 {offsets = [0, 0], sizes = [8, 128], strides = [1, 1]} : vector<8x384xf32> to vector<8x128xf32>
    %88 = arith.addf %86, %87 : vector<8x128xf32>
    %89 = arith.negf %88 : vector<8x128xf32>
    %90 = math.exp %89 : vector<8x128xf32>
    %cst_23 = arith.constant 1.000000e+00 : f32
    %91 = vector.broadcast %cst_23 : f32 to vector<8x128xf32>
    %92 = arith.addf %91, %90 : vector<8x128xf32>
    %93 = arith.divf %91, %92 : vector<8x128xf32>
    %94 = vector.extract_strided_slice %84 {offsets = [0, 128], sizes = [8, 128], strides = [1, 1]} : vector<8x384xf32> to vector<8x128xf32>
    %95 = vector.extract_strided_slice %85 {offsets = [0, 128], sizes = [8, 128], strides = [1, 1]} : vector<8x384xf32> to vector<8x128xf32>
    %96 = arith.addf %94, %95 : vector<8x128xf32>
    %97 = arith.negf %96 : vector<8x128xf32>
    %98 = math.exp %97 : vector<8x128xf32>
    %cst_24 = arith.constant 1.000000e+00 : f32
    %99 = vector.broadcast %cst_24 : f32 to vector<8x128xf32>
    %100 = arith.addf %99, %98 : vector<8x128xf32>
    %101 = arith.divf %99, %100 : vector<8x128xf32>
    %102 = vector.extract_strided_slice %84 {offsets = [0, 256], sizes = [8, 128], strides = [1, 1]} : vector<8x384xf32> to vector<8x128xf32>
    %103 = vector.extract_strided_slice %85 {offsets = [0, 256], sizes = [8, 128], strides = [1, 1]} : vector<8x384xf32> to vector<8x128xf32>
    %104 = arith.addf %103, %11 : vector<8x128xf32>
    %105 = arith.mulf %93, %104 : vector<8x128xf32>
    %106 = arith.addf %102, %105 : vector<8x128xf32>
    %107 = math.tanh %106 : vector<8x128xf32>
    %cst_25 = arith.constant 1.000000e+00 : f32
    %108 = vector.broadcast %cst_25 : f32 to vector<8x128xf32>
    %109 = arith.subf %108, %101 : vector<8x128xf32>
    %110 = arith.mulf %109, %107 : vector<8x128xf32>
    %111 = arith.mulf %101, %79 : vector<8x128xf32>
    %112 = arith.addf %110, %111 : vector<8x128xf32>
    %c2_i32 = arith.constant 2 : i32
    %113 = vector.broadcast %c2_i32 : i32 to vector<8x128xi32>
    %114 = arith.cmpi eq, %14, %113 : vector<8x128xi32>
    %115 = arith.select %114, %112, %82 : vector<8x128xi1>, vector<8x128xf32>
    %116 = vector.extract_strided_slice %7 {offsets = [3, 0, 0], sizes = [1, 8, 384], strides = [1, 1, 1]} : vector<8x8x384xf32> to vector<1x8x384xf32>
    %117 = vector.shape_cast %116 : vector<1x8x384xf32> to vector<8x384xf32>
    %cst_26 = arith.constant dense<0.000000e+00> : vector<8x384xf32>
    %118 = tpu.matmul %112, %8, %cst_26 {dimension_numbers = #tpu.dot_dimension_numbers<[1], [0], [0], [1], [0, 0, 1, 1], [], []>} : vector<8x128xf32>, vector<128x384xf32>, vector<8x384xf32> -> vector<8x384xf32>
    %119 = vector.extract_strided_slice %117 {offsets = [0, 0], sizes = [8, 128], strides = [1, 1]} : vector<8x384xf32> to vector<8x128xf32>
    %120 = vector.extract_strided_slice %118 {offsets = [0, 0], sizes = [8, 128], strides = [1, 1]} : vector<8x384xf32> to vector<8x128xf32>
    %121 = arith.addf %119, %120 : vector<8x128xf32>
    %122 = arith.negf %121 : vector<8x128xf32>
    %123 = math.exp %122 : vector<8x128xf32>
    %cst_27 = arith.constant 1.000000e+00 : f32
    %124 = vector.broadcast %cst_27 : f32 to vector<8x128xf32>
    %125 = arith.addf %124, %123 : vector<8x128xf32>
    %126 = arith.divf %124, %125 : vector<8x128xf32>
    %127 = vector.extract_strided_slice %117 {offsets = [0, 128], sizes = [8, 128], strides = [1, 1]} : vector<8x384xf32> to vector<8x128xf32>
    %128 = vector.extract_strided_slice %118 {offsets = [0, 128], sizes = [8, 128], strides = [1, 1]} : vector<8x384xf32> to vector<8x128xf32>
    %129 = arith.addf %127, %128 : vector<8x128xf32>
    %130 = arith.negf %129 : vector<8x128xf32>
    %131 = math.exp %130 : vector<8x128xf32>
    %cst_28 = arith.constant 1.000000e+00 : f32
    %132 = vector.broadcast %cst_28 : f32 to vector<8x128xf32>
    %133 = arith.addf %132, %131 : vector<8x128xf32>
    %134 = arith.divf %132, %133 : vector<8x128xf32>
    %135 = vector.extract_strided_slice %117 {offsets = [0, 256], sizes = [8, 128], strides = [1, 1]} : vector<8x384xf32> to vector<8x128xf32>
    %136 = vector.extract_strided_slice %118 {offsets = [0, 256], sizes = [8, 128], strides = [1, 1]} : vector<8x384xf32> to vector<8x128xf32>
    %137 = arith.addf %136, %11 : vector<8x128xf32>
    %138 = arith.mulf %126, %137 : vector<8x128xf32>
    %139 = arith.addf %135, %138 : vector<8x128xf32>
    %140 = math.tanh %139 : vector<8x128xf32>
    %cst_29 = arith.constant 1.000000e+00 : f32
    %141 = vector.broadcast %cst_29 : f32 to vector<8x128xf32>
    %142 = arith.subf %141, %134 : vector<8x128xf32>
    %143 = arith.mulf %142, %140 : vector<8x128xf32>
    %144 = arith.mulf %134, %112 : vector<8x128xf32>
    %145 = arith.addf %143, %144 : vector<8x128xf32>
    %c3_i32 = arith.constant 3 : i32
    %146 = vector.broadcast %c3_i32 : i32 to vector<8x128xi32>
    %147 = arith.cmpi eq, %14, %146 : vector<8x128xi32>
    %148 = arith.select %147, %145, %115 : vector<8x128xi1>, vector<8x128xf32>
    %149 = vector.extract_strided_slice %7 {offsets = [4, 0, 0], sizes = [1, 8, 384], strides = [1, 1, 1]} : vector<8x8x384xf32> to vector<1x8x384xf32>
    %150 = vector.shape_cast %149 : vector<1x8x384xf32> to vector<8x384xf32>
    %cst_30 = arith.constant dense<0.000000e+00> : vector<8x384xf32>
    %151 = tpu.matmul %145, %8, %cst_30 {dimension_numbers = #tpu.dot_dimension_numbers<[1], [0], [0], [1], [0, 0, 1, 1], [], []>} : vector<8x128xf32>, vector<128x384xf32>, vector<8x384xf32> -> vector<8x384xf32>
    %152 = vector.extract_strided_slice %150 {offsets = [0, 0], sizes = [8, 128], strides = [1, 1]} : vector<8x384xf32> to vector<8x128xf32>
    %153 = vector.extract_strided_slice %151 {offsets = [0, 0], sizes = [8, 128], strides = [1, 1]} : vector<8x384xf32> to vector<8x128xf32>
    %154 = arith.addf %152, %153 : vector<8x128xf32>
    %155 = arith.negf %154 : vector<8x128xf32>
    %156 = math.exp %155 : vector<8x128xf32>
    %cst_31 = arith.constant 1.000000e+00 : f32
    %157 = vector.broadcast %cst_31 : f32 to vector<8x128xf32>
    %158 = arith.addf %157, %156 : vector<8x128xf32>
    %159 = arith.divf %157, %158 : vector<8x128xf32>
    %160 = vector.extract_strided_slice %150 {offsets = [0, 128], sizes = [8, 128], strides = [1, 1]} : vector<8x384xf32> to vector<8x128xf32>
    %161 = vector.extract_strided_slice %151 {offsets = [0, 128], sizes = [8, 128], strides = [1, 1]} : vector<8x384xf32> to vector<8x128xf32>
    %162 = arith.addf %160, %161 : vector<8x128xf32>
    %163 = arith.negf %162 : vector<8x128xf32>
    %164 = math.exp %163 : vector<8x128xf32>
    %cst_32 = arith.constant 1.000000e+00 : f32
    %165 = vector.broadcast %cst_32 : f32 to vector<8x128xf32>
    %166 = arith.addf %165, %164 : vector<8x128xf32>
    %167 = arith.divf %165, %166 : vector<8x128xf32>
    %168 = vector.extract_strided_slice %150 {offsets = [0, 256], sizes = [8, 128], strides = [1, 1]} : vector<8x384xf32> to vector<8x128xf32>
    %169 = vector.extract_strided_slice %151 {offsets = [0, 256], sizes = [8, 128], strides = [1, 1]} : vector<8x384xf32> to vector<8x128xf32>
    %170 = arith.addf %169, %11 : vector<8x128xf32>
    %171 = arith.mulf %159, %170 : vector<8x128xf32>
    %172 = arith.addf %168, %171 : vector<8x128xf32>
    %173 = math.tanh %172 : vector<8x128xf32>
    %cst_33 = arith.constant 1.000000e+00 : f32
    %174 = vector.broadcast %cst_33 : f32 to vector<8x128xf32>
    %175 = arith.subf %174, %167 : vector<8x128xf32>
    %176 = arith.mulf %175, %173 : vector<8x128xf32>
    %177 = arith.mulf %167, %145 : vector<8x128xf32>
    %178 = arith.addf %176, %177 : vector<8x128xf32>
    %c4_i32 = arith.constant 4 : i32
    %179 = vector.broadcast %c4_i32 : i32 to vector<8x128xi32>
    %180 = arith.cmpi eq, %14, %179 : vector<8x128xi32>
    %181 = arith.select %180, %178, %148 : vector<8x128xi1>, vector<8x128xf32>
    %182 = vector.extract_strided_slice %7 {offsets = [5, 0, 0], sizes = [1, 8, 384], strides = [1, 1, 1]} : vector<8x8x384xf32> to vector<1x8x384xf32>
    %183 = vector.shape_cast %182 : vector<1x8x384xf32> to vector<8x384xf32>
    %cst_34 = arith.constant dense<0.000000e+00> : vector<8x384xf32>
    %184 = tpu.matmul %178, %8, %cst_34 {dimension_numbers = #tpu.dot_dimension_numbers<[1], [0], [0], [1], [0, 0, 1, 1], [], []>} : vector<8x128xf32>, vector<128x384xf32>, vector<8x384xf32> -> vector<8x384xf32>
    %185 = vector.extract_strided_slice %183 {offsets = [0, 0], sizes = [8, 128], strides = [1, 1]} : vector<8x384xf32> to vector<8x128xf32>
    %186 = vector.extract_strided_slice %184 {offsets = [0, 0], sizes = [8, 128], strides = [1, 1]} : vector<8x384xf32> to vector<8x128xf32>
    %187 = arith.addf %185, %186 : vector<8x128xf32>
    %188 = arith.negf %187 : vector<8x128xf32>
    %189 = math.exp %188 : vector<8x128xf32>
    %cst_35 = arith.constant 1.000000e+00 : f32
    %190 = vector.broadcast %cst_35 : f32 to vector<8x128xf32>
    %191 = arith.addf %190, %189 : vector<8x128xf32>
    %192 = arith.divf %190, %191 : vector<8x128xf32>
    %193 = vector.extract_strided_slice %183 {offsets = [0, 128], sizes = [8, 128], strides = [1, 1]} : vector<8x384xf32> to vector<8x128xf32>
    %194 = vector.extract_strided_slice %184 {offsets = [0, 128], sizes = [8, 128], strides = [1, 1]} : vector<8x384xf32> to vector<8x128xf32>
    %195 = arith.addf %193, %194 : vector<8x128xf32>
    %196 = arith.negf %195 : vector<8x128xf32>
    %197 = math.exp %196 : vector<8x128xf32>
    %cst_36 = arith.constant 1.000000e+00 : f32
    %198 = vector.broadcast %cst_36 : f32 to vector<8x128xf32>
    %199 = arith.addf %198, %197 : vector<8x128xf32>
    %200 = arith.divf %198, %199 : vector<8x128xf32>
    %201 = vector.extract_strided_slice %183 {offsets = [0, 256], sizes = [8, 128], strides = [1, 1]} : vector<8x384xf32> to vector<8x128xf32>
    %202 = vector.extract_strided_slice %184 {offsets = [0, 256], sizes = [8, 128], strides = [1, 1]} : vector<8x384xf32> to vector<8x128xf32>
    %203 = arith.addf %202, %11 : vector<8x128xf32>
    %204 = arith.mulf %192, %203 : vector<8x128xf32>
    %205 = arith.addf %201, %204 : vector<8x128xf32>
    %206 = math.tanh %205 : vector<8x128xf32>
    %cst_37 = arith.constant 1.000000e+00 : f32
    %207 = vector.broadcast %cst_37 : f32 to vector<8x128xf32>
    %208 = arith.subf %207, %200 : vector<8x128xf32>
    %209 = arith.mulf %208, %206 : vector<8x128xf32>
    %210 = arith.mulf %200, %178 : vector<8x128xf32>
    %211 = arith.addf %209, %210 : vector<8x128xf32>
    %c5_i32 = arith.constant 5 : i32
    %212 = vector.broadcast %c5_i32 : i32 to vector<8x128xi32>
    %213 = arith.cmpi eq, %14, %212 : vector<8x128xi32>
    %214 = arith.select %213, %211, %181 : vector<8x128xi1>, vector<8x128xf32>
    %215 = vector.extract_strided_slice %7 {offsets = [6, 0, 0], sizes = [1, 8, 384], strides = [1, 1, 1]} : vector<8x8x384xf32> to vector<1x8x384xf32>
    %216 = vector.shape_cast %215 : vector<1x8x384xf32> to vector<8x384xf32>
    %cst_38 = arith.constant dense<0.000000e+00> : vector<8x384xf32>
    %217 = tpu.matmul %211, %8, %cst_38 {dimension_numbers = #tpu.dot_dimension_numbers<[1], [0], [0], [1], [0, 0, 1, 1], [], []>} : vector<8x128xf32>, vector<128x384xf32>, vector<8x384xf32> -> vector<8x384xf32>
    %218 = vector.extract_strided_slice %216 {offsets = [0, 0], sizes = [8, 128], strides = [1, 1]} : vector<8x384xf32> to vector<8x128xf32>
    %219 = vector.extract_strided_slice %217 {offsets = [0, 0], sizes = [8, 128], strides = [1, 1]} : vector<8x384xf32> to vector<8x128xf32>
    %220 = arith.addf %218, %219 : vector<8x128xf32>
    %221 = arith.negf %220 : vector<8x128xf32>
    %222 = math.exp %221 : vector<8x128xf32>
    %cst_39 = arith.constant 1.000000e+00 : f32
    %223 = vector.broadcast %cst_39 : f32 to vector<8x128xf32>
    %224 = arith.addf %223, %222 : vector<8x128xf32>
    %225 = arith.divf %223, %224 : vector<8x128xf32>
    %226 = vector.extract_strided_slice %216 {offsets = [0, 128], sizes = [8, 128], strides = [1, 1]} : vector<8x384xf32> to vector<8x128xf32>
    %227 = vector.extract_strided_slice %217 {offsets = [0, 128], sizes = [8, 128], strides = [1, 1]} : vector<8x384xf32> to vector<8x128xf32>
    %228 = arith.addf %226, %227 : vector<8x128xf32>
    %229 = arith.negf %228 : vector<8x128xf32>
    %230 = math.exp %229 : vector<8x128xf32>
    %cst_40 = arith.constant 1.000000e+00 : f32
    %231 = vector.broadcast %cst_40 : f32 to vector<8x128xf32>
    %232 = arith.addf %231, %230 : vector<8x128xf32>
    %233 = arith.divf %231, %232 : vector<8x128xf32>
    %234 = vector.extract_strided_slice %216 {offsets = [0, 256], sizes = [8, 128], strides = [1, 1]} : vector<8x384xf32> to vector<8x128xf32>
    %235 = vector.extract_strided_slice %217 {offsets = [0, 256], sizes = [8, 128], strides = [1, 1]} : vector<8x384xf32> to vector<8x128xf32>
    %236 = arith.addf %235, %11 : vector<8x128xf32>
    %237 = arith.mulf %225, %236 : vector<8x128xf32>
    %238 = arith.addf %234, %237 : vector<8x128xf32>
    %239 = math.tanh %238 : vector<8x128xf32>
    %cst_41 = arith.constant 1.000000e+00 : f32
    %240 = vector.broadcast %cst_41 : f32 to vector<8x128xf32>
    %241 = arith.subf %240, %233 : vector<8x128xf32>
    %242 = arith.mulf %241, %239 : vector<8x128xf32>
    %243 = arith.mulf %233, %211 : vector<8x128xf32>
    %244 = arith.addf %242, %243 : vector<8x128xf32>
    %c6_i32 = arith.constant 6 : i32
    %245 = vector.broadcast %c6_i32 : i32 to vector<8x128xi32>
    %246 = arith.cmpi eq, %14, %245 : vector<8x128xi32>
    %247 = arith.select %246, %244, %214 : vector<8x128xi1>, vector<8x128xf32>
    %248 = vector.extract_strided_slice %7 {offsets = [7, 0, 0], sizes = [1, 8, 384], strides = [1, 1, 1]} : vector<8x8x384xf32> to vector<1x8x384xf32>
    %249 = vector.shape_cast %248 : vector<1x8x384xf32> to vector<8x384xf32>
    %cst_42 = arith.constant dense<0.000000e+00> : vector<8x384xf32>
    %250 = tpu.matmul %244, %8, %cst_42 {dimension_numbers = #tpu.dot_dimension_numbers<[1], [0], [0], [1], [0, 0, 1, 1], [], []>} : vector<8x128xf32>, vector<128x384xf32>, vector<8x384xf32> -> vector<8x384xf32>
    %251 = vector.extract_strided_slice %249 {offsets = [0, 0], sizes = [8, 128], strides = [1, 1]} : vector<8x384xf32> to vector<8x128xf32>
    %252 = vector.extract_strided_slice %250 {offsets = [0, 0], sizes = [8, 128], strides = [1, 1]} : vector<8x384xf32> to vector<8x128xf32>
    %253 = arith.addf %251, %252 : vector<8x128xf32>
    %254 = arith.negf %253 : vector<8x128xf32>
    %255 = math.exp %254 : vector<8x128xf32>
    %cst_43 = arith.constant 1.000000e+00 : f32
    %256 = vector.broadcast %cst_43 : f32 to vector<8x128xf32>
    %257 = arith.addf %256, %255 : vector<8x128xf32>
    %258 = arith.divf %256, %257 : vector<8x128xf32>
    %259 = vector.extract_strided_slice %249 {offsets = [0, 128], sizes = [8, 128], strides = [1, 1]} : vector<8x384xf32> to vector<8x128xf32>
    %260 = vector.extract_strided_slice %250 {offsets = [0, 128], sizes = [8, 128], strides = [1, 1]} : vector<8x384xf32> to vector<8x128xf32>
    %261 = arith.addf %259, %260 : vector<8x128xf32>
    %262 = arith.negf %261 : vector<8x128xf32>
    %263 = math.exp %262 : vector<8x128xf32>
    %cst_44 = arith.constant 1.000000e+00 : f32
    %264 = vector.broadcast %cst_44 : f32 to vector<8x128xf32>
    %265 = arith.addf %264, %263 : vector<8x128xf32>
    %266 = arith.divf %264, %265 : vector<8x128xf32>
    %267 = vector.extract_strided_slice %249 {offsets = [0, 256], sizes = [8, 128], strides = [1, 1]} : vector<8x384xf32> to vector<8x128xf32>
    %268 = vector.extract_strided_slice %250 {offsets = [0, 256], sizes = [8, 128], strides = [1, 1]} : vector<8x384xf32> to vector<8x128xf32>
    %269 = arith.addf %268, %11 : vector<8x128xf32>
    %270 = arith.mulf %258, %269 : vector<8x128xf32>
    %271 = arith.addf %267, %270 : vector<8x128xf32>
    %272 = math.tanh %271 : vector<8x128xf32>
    %cst_45 = arith.constant 1.000000e+00 : f32
    %273 = vector.broadcast %cst_45 : f32 to vector<8x128xf32>
    %274 = arith.subf %273, %266 : vector<8x128xf32>
    %275 = arith.mulf %274, %272 : vector<8x128xf32>
    %276 = arith.mulf %266, %244 : vector<8x128xf32>
    %277 = arith.addf %275, %276 : vector<8x128xf32>
    %c7_i32 = arith.constant 7 : i32
    %278 = vector.broadcast %c7_i32 : i32 to vector<8x128xi32>
    %279 = arith.cmpi eq, %14, %278 : vector<8x128xi32>
    %280 = arith.select %279, %277, %247 : vector<8x128xi1>, vector<8x128xf32>
    %c0_46 = arith.constant 0 : index
    %c0_47 = arith.constant 0 : index
    %c0_48 = arith.constant 0 : index
    %281 = vector.load %arg2[%c0_46, %c0_47, %c0_48] : memref<8x8x768xbf16, #tpu.memory_space<vmem>>, vector<8x8x768xbf16>
    %282 = vector.shape_cast %281 : vector<8x8x768xbf16> to vector<64x768xbf16>
    %c0_49 = arith.constant 0 : index
    %c0_50 = arith.constant 0 : index
    %283 = vector.load %arg9[%c0_49, %c0_50] : memref<768x384xbf16, #tpu.memory_space<vmem>>, vector<768x384xbf16>
    %cst_51 = arith.constant dense<0.000000e+00> : vector<64x384xf32>
    %284 = tpu.matmul %282, %283, %cst_51 {dimension_numbers = #tpu.dot_dimension_numbers<[1], [0], [0], [1], [0, 0, 1, 1], [], []>} : vector<64x768xbf16>, vector<768x384xbf16>, vector<64x384xf32> -> vector<64x384xf32>
    %c0_52 = arith.constant 0 : index
    %c0_53 = arith.constant 0 : index
    %285 = vector.load %arg11[%c0_52, %c0_53] : memref<1x384xf32, #tpu.memory_space<vmem>>, vector<1x384xf32>
    %286 = vector.broadcast %285 : vector<1x384xf32> to vector<64x384xf32>
    %287 = arith.addf %284, %286 : vector<64x384xf32>
    %288 = vector.shape_cast %287 : vector<64x384xf32> to vector<8x8x384xf32>
    %c0_54 = arith.constant 0 : index
    %c0_55 = arith.constant 0 : index
    %289 = vector.load %arg10[%c0_54, %c0_55] : memref<128x384xf32, #tpu.memory_space<vmem>>, vector<128x384xf32>
    %c0_56 = arith.constant 0 : index
    %c0_57 = arith.constant 0 : index
    %290 = vector.load %arg12[%c0_56, %c0_57] : memref<1x128xf32, #tpu.memory_space<vmem>>, vector<1x128xf32>
    %291 = vector.shape_cast %290 : vector<1x128xf32> to vector<1x128xf32>
    %292 = vector.broadcast %291 : vector<1x128xf32> to vector<8x128xf32>
    %c0_58 = arith.constant 0 : index
    %c0_59 = arith.constant 0 : index
    %293 = vector.load %arg4[%c0_58, %c0_59] : memref<8x1xi32, #tpu.memory_space<vmem>>, vector<8x1xi32>
    %294 = vector.shape_cast %293 : vector<8x1xi32> to vector<8x1xi32>
    %295 = vector.broadcast %294 : vector<8x1xi32> to vector<8x128xi32>
    %cst_60 = arith.constant 0.000000e+00 : f32
    %296 = vector.broadcast %cst_60 : f32 to vector<8x128xf32>
    %cst_61 = arith.constant 0.000000e+00 : f32
    %297 = vector.broadcast %cst_61 : f32 to vector<8x128xf32>
    %298 = vector.extract_strided_slice %288 {offsets = [0, 0, 0], sizes = [1, 8, 384], strides = [1, 1, 1]} : vector<8x8x384xf32> to vector<1x8x384xf32>
    %299 = vector.shape_cast %298 : vector<1x8x384xf32> to vector<8x384xf32>
    %cst_62 = arith.constant dense<0.000000e+00> : vector<8x384xf32>
    %300 = tpu.matmul %296, %289, %cst_62 {dimension_numbers = #tpu.dot_dimension_numbers<[1], [0], [0], [1], [0, 0, 1, 1], [], []>} : vector<8x128xf32>, vector<128x384xf32>, vector<8x384xf32> -> vector<8x384xf32>
    %301 = vector.extract_strided_slice %299 {offsets = [0, 0], sizes = [8, 128], strides = [1, 1]} : vector<8x384xf32> to vector<8x128xf32>
    %302 = vector.extract_strided_slice %300 {offsets = [0, 0], sizes = [8, 128], strides = [1, 1]} : vector<8x384xf32> to vector<8x128xf32>
    %303 = arith.addf %301, %302 : vector<8x128xf32>
    %304 = arith.negf %303 : vector<8x128xf32>
    %305 = math.exp %304 : vector<8x128xf32>
    %cst_63 = arith.constant 1.000000e+00 : f32
    %306 = vector.broadcast %cst_63 : f32 to vector<8x128xf32>
    %307 = arith.addf %306, %305 : vector<8x128xf32>
    %308 = arith.divf %306, %307 : vector<8x128xf32>
    %309 = vector.extract_strided_slice %299 {offsets = [0, 128], sizes = [8, 128], strides = [1, 1]} : vector<8x384xf32> to vector<8x128xf32>
    %310 = vector.extract_strided_slice %300 {offsets = [0, 128], sizes = [8, 128], strides = [1, 1]} : vector<8x384xf32> to vector<8x128xf32>
    %311 = arith.addf %309, %310 : vector<8x128xf32>
    %312 = arith.negf %311 : vector<8x128xf32>
    %313 = math.exp %312 : vector<8x128xf32>
    %cst_64 = arith.constant 1.000000e+00 : f32
    %314 = vector.broadcast %cst_64 : f32 to vector<8x128xf32>
    %315 = arith.addf %314, %313 : vector<8x128xf32>
    %316 = arith.divf %314, %315 : vector<8x128xf32>
    %317 = vector.extract_strided_slice %299 {offsets = [0, 256], sizes = [8, 128], strides = [1, 1]} : vector<8x384xf32> to vector<8x128xf32>
    %318 = vector.extract_strided_slice %300 {offsets = [0, 256], sizes = [8, 128], strides = [1, 1]} : vector<8x384xf32> to vector<8x128xf32>
    %319 = arith.addf %318, %292 : vector<8x128xf32>
    %320 = arith.mulf %308, %319 : vector<8x128xf32>
    %321 = arith.addf %317, %320 : vector<8x128xf32>
    %322 = math.tanh %321 : vector<8x128xf32>
    %cst_65 = arith.constant 1.000000e+00 : f32
    %323 = vector.broadcast %cst_65 : f32 to vector<8x128xf32>
    %324 = arith.subf %323, %316 : vector<8x128xf32>
    %325 = arith.mulf %324, %322 : vector<8x128xf32>
    %326 = arith.mulf %316, %296 : vector<8x128xf32>
    %327 = arith.addf %325, %326 : vector<8x128xf32>
    %c0_i32_66 = arith.constant 0 : i32
    %328 = vector.broadcast %c0_i32_66 : i32 to vector<8x128xi32>
    %329 = arith.cmpi eq, %295, %328 : vector<8x128xi32>
    %330 = arith.select %329, %327, %297 : vector<8x128xi1>, vector<8x128xf32>
    %331 = vector.extract_strided_slice %288 {offsets = [1, 0, 0], sizes = [1, 8, 384], strides = [1, 1, 1]} : vector<8x8x384xf32> to vector<1x8x384xf32>
    %332 = vector.shape_cast %331 : vector<1x8x384xf32> to vector<8x384xf32>
    %cst_67 = arith.constant dense<0.000000e+00> : vector<8x384xf32>
    %333 = tpu.matmul %327, %289, %cst_67 {dimension_numbers = #tpu.dot_dimension_numbers<[1], [0], [0], [1], [0, 0, 1, 1], [], []>} : vector<8x128xf32>, vector<128x384xf32>, vector<8x384xf32> -> vector<8x384xf32>
    %334 = vector.extract_strided_slice %332 {offsets = [0, 0], sizes = [8, 128], strides = [1, 1]} : vector<8x384xf32> to vector<8x128xf32>
    %335 = vector.extract_strided_slice %333 {offsets = [0, 0], sizes = [8, 128], strides = [1, 1]} : vector<8x384xf32> to vector<8x128xf32>
    %336 = arith.addf %334, %335 : vector<8x128xf32>
    %337 = arith.negf %336 : vector<8x128xf32>
    %338 = math.exp %337 : vector<8x128xf32>
    %cst_68 = arith.constant 1.000000e+00 : f32
    %339 = vector.broadcast %cst_68 : f32 to vector<8x128xf32>
    %340 = arith.addf %339, %338 : vector<8x128xf32>
    %341 = arith.divf %339, %340 : vector<8x128xf32>
    %342 = vector.extract_strided_slice %332 {offsets = [0, 128], sizes = [8, 128], strides = [1, 1]} : vector<8x384xf32> to vector<8x128xf32>
    %343 = vector.extract_strided_slice %333 {offsets = [0, 128], sizes = [8, 128], strides = [1, 1]} : vector<8x384xf32> to vector<8x128xf32>
    %344 = arith.addf %342, %343 : vector<8x128xf32>
    %345 = arith.negf %344 : vector<8x128xf32>
    %346 = math.exp %345 : vector<8x128xf32>
    %cst_69 = arith.constant 1.000000e+00 : f32
    %347 = vector.broadcast %cst_69 : f32 to vector<8x128xf32>
    %348 = arith.addf %347, %346 : vector<8x128xf32>
    %349 = arith.divf %347, %348 : vector<8x128xf32>
    %350 = vector.extract_strided_slice %332 {offsets = [0, 256], sizes = [8, 128], strides = [1, 1]} : vector<8x384xf32> to vector<8x128xf32>
    %351 = vector.extract_strided_slice %333 {offsets = [0, 256], sizes = [8, 128], strides = [1, 1]} : vector<8x384xf32> to vector<8x128xf32>
    %352 = arith.addf %351, %292 : vector<8x128xf32>
    %353 = arith.mulf %341, %352 : vector<8x128xf32>
    %354 = arith.addf %350, %353 : vector<8x128xf32>
    %355 = math.tanh %354 : vector<8x128xf32>
    %cst_70 = arith.constant 1.000000e+00 : f32
    %356 = vector.broadcast %cst_70 : f32 to vector<8x128xf32>
    %357 = arith.subf %356, %349 : vector<8x128xf32>
    %358 = arith.mulf %357, %355 : vector<8x128xf32>
    %359 = arith.mulf %349, %327 : vector<8x128xf32>
    %360 = arith.addf %358, %359 : vector<8x128xf32>
    %c1_i32_71 = arith.constant 1 : i32
    %361 = vector.broadcast %c1_i32_71 : i32 to vector<8x128xi32>
    %362 = arith.cmpi eq, %295, %361 : vector<8x128xi32>
    %363 = arith.select %362, %360, %330 : vector<8x128xi1>, vector<8x128xf32>
    %364 = vector.extract_strided_slice %288 {offsets = [2, 0, 0], sizes = [1, 8, 384], strides = [1, 1, 1]} : vector<8x8x384xf32> to vector<1x8x384xf32>
    %365 = vector.shape_cast %364 : vector<1x8x384xf32> to vector<8x384xf32>
    %cst_72 = arith.constant dense<0.000000e+00> : vector<8x384xf32>
    %366 = tpu.matmul %360, %289, %cst_72 {dimension_numbers = #tpu.dot_dimension_numbers<[1], [0], [0], [1], [0, 0, 1, 1], [], []>} : vector<8x128xf32>, vector<128x384xf32>, vector<8x384xf32> -> vector<8x384xf32>
    %367 = vector.extract_strided_slice %365 {offsets = [0, 0], sizes = [8, 128], strides = [1, 1]} : vector<8x384xf32> to vector<8x128xf32>
    %368 = vector.extract_strided_slice %366 {offsets = [0, 0], sizes = [8, 128], strides = [1, 1]} : vector<8x384xf32> to vector<8x128xf32>
    %369 = arith.addf %367, %368 : vector<8x128xf32>
    %370 = arith.negf %369 : vector<8x128xf32>
    %371 = math.exp %370 : vector<8x128xf32>
    %cst_73 = arith.constant 1.000000e+00 : f32
    %372 = vector.broadcast %cst_73 : f32 to vector<8x128xf32>
    %373 = arith.addf %372, %371 : vector<8x128xf32>
    %374 = arith.divf %372, %373 : vector<8x128xf32>
    %375 = vector.extract_strided_slice %365 {offsets = [0, 128], sizes = [8, 128], strides = [1, 1]} : vector<8x384xf32> to vector<8x128xf32>
    %376 = vector.extract_strided_slice %366 {offsets = [0, 128], sizes = [8, 128], strides = [1, 1]} : vector<8x384xf32> to vector<8x128xf32>
    %377 = arith.addf %375, %376 : vector<8x128xf32>
    %378 = arith.negf %377 : vector<8x128xf32>
    %379 = math.exp %378 : vector<8x128xf32>
    %cst_74 = arith.constant 1.000000e+00 : f32
    %380 = vector.broadcast %cst_74 : f32 to vector<8x128xf32>
    %381 = arith.addf %380, %379 : vector<8x128xf32>
    %382 = arith.divf %380, %381 : vector<8x128xf32>
    %383 = vector.extract_strided_slice %365 {offsets = [0, 256], sizes = [8, 128], strides = [1, 1]} : vector<8x384xf32> to vector<8x128xf32>
    %384 = vector.extract_strided_slice %366 {offsets = [0, 256], sizes = [8, 128], strides = [1, 1]} : vector<8x384xf32> to vector<8x128xf32>
    %385 = arith.addf %384, %292 : vector<8x128xf32>
    %386 = arith.mulf %374, %385 : vector<8x128xf32>
    %387 = arith.addf %383, %386 : vector<8x128xf32>
    %388 = math.tanh %387 : vector<8x128xf32>
    %cst_75 = arith.constant 1.000000e+00 : f32
    %389 = vector.broadcast %cst_75 : f32 to vector<8x128xf32>
    %390 = arith.subf %389, %382 : vector<8x128xf32>
    %391 = arith.mulf %390, %388 : vector<8x128xf32>
    %392 = arith.mulf %382, %360 : vector<8x128xf32>
    %393 = arith.addf %391, %392 : vector<8x128xf32>
    %c2_i32_76 = arith.constant 2 : i32
    %394 = vector.broadcast %c2_i32_76 : i32 to vector<8x128xi32>
    %395 = arith.cmpi eq, %295, %394 : vector<8x128xi32>
    %396 = arith.select %395, %393, %363 : vector<8x128xi1>, vector<8x128xf32>
    %397 = vector.extract_strided_slice %288 {offsets = [3, 0, 0], sizes = [1, 8, 384], strides = [1, 1, 1]} : vector<8x8x384xf32> to vector<1x8x384xf32>
    %398 = vector.shape_cast %397 : vector<1x8x384xf32> to vector<8x384xf32>
    %cst_77 = arith.constant dense<0.000000e+00> : vector<8x384xf32>
    %399 = tpu.matmul %393, %289, %cst_77 {dimension_numbers = #tpu.dot_dimension_numbers<[1], [0], [0], [1], [0, 0, 1, 1], [], []>} : vector<8x128xf32>, vector<128x384xf32>, vector<8x384xf32> -> vector<8x384xf32>
    %400 = vector.extract_strided_slice %398 {offsets = [0, 0], sizes = [8, 128], strides = [1, 1]} : vector<8x384xf32> to vector<8x128xf32>
    %401 = vector.extract_strided_slice %399 {offsets = [0, 0], sizes = [8, 128], strides = [1, 1]} : vector<8x384xf32> to vector<8x128xf32>
    %402 = arith.addf %400, %401 : vector<8x128xf32>
    %403 = arith.negf %402 : vector<8x128xf32>
    %404 = math.exp %403 : vector<8x128xf32>
    %cst_78 = arith.constant 1.000000e+00 : f32
    %405 = vector.broadcast %cst_78 : f32 to vector<8x128xf32>
    %406 = arith.addf %405, %404 : vector<8x128xf32>
    %407 = arith.divf %405, %406 : vector<8x128xf32>
    %408 = vector.extract_strided_slice %398 {offsets = [0, 128], sizes = [8, 128], strides = [1, 1]} : vector<8x384xf32> to vector<8x128xf32>
    %409 = vector.extract_strided_slice %399 {offsets = [0, 128], sizes = [8, 128], strides = [1, 1]} : vector<8x384xf32> to vector<8x128xf32>
    %410 = arith.addf %408, %409 : vector<8x128xf32>
    %411 = arith.negf %410 : vector<8x128xf32>
    %412 = math.exp %411 : vector<8x128xf32>
    %cst_79 = arith.constant 1.000000e+00 : f32
    %413 = vector.broadcast %cst_79 : f32 to vector<8x128xf32>
    %414 = arith.addf %413, %412 : vector<8x128xf32>
    %415 = arith.divf %413, %414 : vector<8x128xf32>
    %416 = vector.extract_strided_slice %398 {offsets = [0, 256], sizes = [8, 128], strides = [1, 1]} : vector<8x384xf32> to vector<8x128xf32>
    %417 = vector.extract_strided_slice %399 {offsets = [0, 256], sizes = [8, 128], strides = [1, 1]} : vector<8x384xf32> to vector<8x128xf32>
    %418 = arith.addf %417, %292 : vector<8x128xf32>
    %419 = arith.mulf %407, %418 : vector<8x128xf32>
    %420 = arith.addf %416, %419 : vector<8x128xf32>
    %421 = math.tanh %420 : vector<8x128xf32>
    %cst_80 = arith.constant 1.000000e+00 : f32
    %422 = vector.broadcast %cst_80 : f32 to vector<8x128xf32>
    %423 = arith.subf %422, %415 : vector<8x128xf32>
    %424 = arith.mulf %423, %421 : vector<8x128xf32>
    %425 = arith.mulf %415, %393 : vector<8x128xf32>
    %426 = arith.addf %424, %425 : vector<8x128xf32>
    %c3_i32_81 = arith.constant 3 : i32
    %427 = vector.broadcast %c3_i32_81 : i32 to vector<8x128xi32>
    %428 = arith.cmpi eq, %295, %427 : vector<8x128xi32>
    %429 = arith.select %428, %426, %396 : vector<8x128xi1>, vector<8x128xf32>
    %430 = vector.extract_strided_slice %288 {offsets = [4, 0, 0], sizes = [1, 8, 384], strides = [1, 1, 1]} : vector<8x8x384xf32> to vector<1x8x384xf32>
    %431 = vector.shape_cast %430 : vector<1x8x384xf32> to vector<8x384xf32>
    %cst_82 = arith.constant dense<0.000000e+00> : vector<8x384xf32>
    %432 = tpu.matmul %426, %289, %cst_82 {dimension_numbers = #tpu.dot_dimension_numbers<[1], [0], [0], [1], [0, 0, 1, 1], [], []>} : vector<8x128xf32>, vector<128x384xf32>, vector<8x384xf32> -> vector<8x384xf32>
    %433 = vector.extract_strided_slice %431 {offsets = [0, 0], sizes = [8, 128], strides = [1, 1]} : vector<8x384xf32> to vector<8x128xf32>
    %434 = vector.extract_strided_slice %432 {offsets = [0, 0], sizes = [8, 128], strides = [1, 1]} : vector<8x384xf32> to vector<8x128xf32>
    %435 = arith.addf %433, %434 : vector<8x128xf32>
    %436 = arith.negf %435 : vector<8x128xf32>
    %437 = math.exp %436 : vector<8x128xf32>
    %cst_83 = arith.constant 1.000000e+00 : f32
    %438 = vector.broadcast %cst_83 : f32 to vector<8x128xf32>
    %439 = arith.addf %438, %437 : vector<8x128xf32>
    %440 = arith.divf %438, %439 : vector<8x128xf32>
    %441 = vector.extract_strided_slice %431 {offsets = [0, 128], sizes = [8, 128], strides = [1, 1]} : vector<8x384xf32> to vector<8x128xf32>
    %442 = vector.extract_strided_slice %432 {offsets = [0, 128], sizes = [8, 128], strides = [1, 1]} : vector<8x384xf32> to vector<8x128xf32>
    %443 = arith.addf %441, %442 : vector<8x128xf32>
    %444 = arith.negf %443 : vector<8x128xf32>
    %445 = math.exp %444 : vector<8x128xf32>
    %cst_84 = arith.constant 1.000000e+00 : f32
    %446 = vector.broadcast %cst_84 : f32 to vector<8x128xf32>
    %447 = arith.addf %446, %445 : vector<8x128xf32>
    %448 = arith.divf %446, %447 : vector<8x128xf32>
    %449 = vector.extract_strided_slice %431 {offsets = [0, 256], sizes = [8, 128], strides = [1, 1]} : vector<8x384xf32> to vector<8x128xf32>
    %450 = vector.extract_strided_slice %432 {offsets = [0, 256], sizes = [8, 128], strides = [1, 1]} : vector<8x384xf32> to vector<8x128xf32>
    %451 = arith.addf %450, %292 : vector<8x128xf32>
    %452 = arith.mulf %440, %451 : vector<8x128xf32>
    %453 = arith.addf %449, %452 : vector<8x128xf32>
    %454 = math.tanh %453 : vector<8x128xf32>
    %cst_85 = arith.constant 1.000000e+00 : f32
    %455 = vector.broadcast %cst_85 : f32 to vector<8x128xf32>
    %456 = arith.subf %455, %448 : vector<8x128xf32>
    %457 = arith.mulf %456, %454 : vector<8x128xf32>
    %458 = arith.mulf %448, %426 : vector<8x128xf32>
    %459 = arith.addf %457, %458 : vector<8x128xf32>
    %c4_i32_86 = arith.constant 4 : i32
    %460 = vector.broadcast %c4_i32_86 : i32 to vector<8x128xi32>
    %461 = arith.cmpi eq, %295, %460 : vector<8x128xi32>
    %462 = arith.select %461, %459, %429 : vector<8x128xi1>, vector<8x128xf32>
    %463 = vector.extract_strided_slice %288 {offsets = [5, 0, 0], sizes = [1, 8, 384], strides = [1, 1, 1]} : vector<8x8x384xf32> to vector<1x8x384xf32>
    %464 = vector.shape_cast %463 : vector<1x8x384xf32> to vector<8x384xf32>
    %cst_87 = arith.constant dense<0.000000e+00> : vector<8x384xf32>
    %465 = tpu.matmul %459, %289, %cst_87 {dimension_numbers = #tpu.dot_dimension_numbers<[1], [0], [0], [1], [0, 0, 1, 1], [], []>} : vector<8x128xf32>, vector<128x384xf32>, vector<8x384xf32> -> vector<8x384xf32>
    %466 = vector.extract_strided_slice %464 {offsets = [0, 0], sizes = [8, 128], strides = [1, 1]} : vector<8x384xf32> to vector<8x128xf32>
    %467 = vector.extract_strided_slice %465 {offsets = [0, 0], sizes = [8, 128], strides = [1, 1]} : vector<8x384xf32> to vector<8x128xf32>
    %468 = arith.addf %466, %467 : vector<8x128xf32>
    %469 = arith.negf %468 : vector<8x128xf32>
    %470 = math.exp %469 : vector<8x128xf32>
    %cst_88 = arith.constant 1.000000e+00 : f32
    %471 = vector.broadcast %cst_88 : f32 to vector<8x128xf32>
    %472 = arith.addf %471, %470 : vector<8x128xf32>
    %473 = arith.divf %471, %472 : vector<8x128xf32>
    %474 = vector.extract_strided_slice %464 {offsets = [0, 128], sizes = [8, 128], strides = [1, 1]} : vector<8x384xf32> to vector<8x128xf32>
    %475 = vector.extract_strided_slice %465 {offsets = [0, 128], sizes = [8, 128], strides = [1, 1]} : vector<8x384xf32> to vector<8x128xf32>
    %476 = arith.addf %474, %475 : vector<8x128xf32>
    %477 = arith.negf %476 : vector<8x128xf32>
    %478 = math.exp %477 : vector<8x128xf32>
    %cst_89 = arith.constant 1.000000e+00 : f32
    %479 = vector.broadcast %cst_89 : f32 to vector<8x128xf32>
    %480 = arith.addf %479, %478 : vector<8x128xf32>
    %481 = arith.divf %479, %480 : vector<8x128xf32>
    %482 = vector.extract_strided_slice %464 {offsets = [0, 256], sizes = [8, 128], strides = [1, 1]} : vector<8x384xf32> to vector<8x128xf32>
    %483 = vector.extract_strided_slice %465 {offsets = [0, 256], sizes = [8, 128], strides = [1, 1]} : vector<8x384xf32> to vector<8x128xf32>
    %484 = arith.addf %483, %292 : vector<8x128xf32>
    %485 = arith.mulf %473, %484 : vector<8x128xf32>
    %486 = arith.addf %482, %485 : vector<8x128xf32>
    %487 = math.tanh %486 : vector<8x128xf32>
    %cst_90 = arith.constant 1.000000e+00 : f32
    %488 = vector.broadcast %cst_90 : f32 to vector<8x128xf32>
    %489 = arith.subf %488, %481 : vector<8x128xf32>
    %490 = arith.mulf %489, %487 : vector<8x128xf32>
    %491 = arith.mulf %481, %459 : vector<8x128xf32>
    %492 = arith.addf %490, %491 : vector<8x128xf32>
    %c5_i32_91 = arith.constant 5 : i32
    %493 = vector.broadcast %c5_i32_91 : i32 to vector<8x128xi32>
    %494 = arith.cmpi eq, %295, %493 : vector<8x128xi32>
    %495 = arith.select %494, %492, %462 : vector<8x128xi1>, vector<8x128xf32>
    %496 = vector.extract_strided_slice %288 {offsets = [6, 0, 0], sizes = [1, 8, 384], strides = [1, 1, 1]} : vector<8x8x384xf32> to vector<1x8x384xf32>
    %497 = vector.shape_cast %496 : vector<1x8x384xf32> to vector<8x384xf32>
    %cst_92 = arith.constant dense<0.000000e+00> : vector<8x384xf32>
    %498 = tpu.matmul %492, %289, %cst_92 {dimension_numbers = #tpu.dot_dimension_numbers<[1], [0], [0], [1], [0, 0, 1, 1], [], []>} : vector<8x128xf32>, vector<128x384xf32>, vector<8x384xf32> -> vector<8x384xf32>
    %499 = vector.extract_strided_slice %497 {offsets = [0, 0], sizes = [8, 128], strides = [1, 1]} : vector<8x384xf32> to vector<8x128xf32>
    %500 = vector.extract_strided_slice %498 {offsets = [0, 0], sizes = [8, 128], strides = [1, 1]} : vector<8x384xf32> to vector<8x128xf32>
    %501 = arith.addf %499, %500 : vector<8x128xf32>
    %502 = arith.negf %501 : vector<8x128xf32>
    %503 = math.exp %502 : vector<8x128xf32>
    %cst_93 = arith.constant 1.000000e+00 : f32
    %504 = vector.broadcast %cst_93 : f32 to vector<8x128xf32>
    %505 = arith.addf %504, %503 : vector<8x128xf32>
    %506 = arith.divf %504, %505 : vector<8x128xf32>
    %507 = vector.extract_strided_slice %497 {offsets = [0, 128], sizes = [8, 128], strides = [1, 1]} : vector<8x384xf32> to vector<8x128xf32>
    %508 = vector.extract_strided_slice %498 {offsets = [0, 128], sizes = [8, 128], strides = [1, 1]} : vector<8x384xf32> to vector<8x128xf32>
    %509 = arith.addf %507, %508 : vector<8x128xf32>
    %510 = arith.negf %509 : vector<8x128xf32>
    %511 = math.exp %510 : vector<8x128xf32>
    %cst_94 = arith.constant 1.000000e+00 : f32
    %512 = vector.broadcast %cst_94 : f32 to vector<8x128xf32>
    %513 = arith.addf %512, %511 : vector<8x128xf32>
    %514 = arith.divf %512, %513 : vector<8x128xf32>
    %515 = vector.extract_strided_slice %497 {offsets = [0, 256], sizes = [8, 128], strides = [1, 1]} : vector<8x384xf32> to vector<8x128xf32>
    %516 = vector.extract_strided_slice %498 {offsets = [0, 256], sizes = [8, 128], strides = [1, 1]} : vector<8x384xf32> to vector<8x128xf32>
    %517 = arith.addf %516, %292 : vector<8x128xf32>
    %518 = arith.mulf %506, %517 : vector<8x128xf32>
    %519 = arith.addf %515, %518 : vector<8x128xf32>
    %520 = math.tanh %519 : vector<8x128xf32>
    %cst_95 = arith.constant 1.000000e+00 : f32
    %521 = vector.broadcast %cst_95 : f32 to vector<8x128xf32>
    %522 = arith.subf %521, %514 : vector<8x128xf32>
    %523 = arith.mulf %522, %520 : vector<8x128xf32>
    %524 = arith.mulf %514, %492 : vector<8x128xf32>
    %525 = arith.addf %523, %524 : vector<8x128xf32>
    %c6_i32_96 = arith.constant 6 : i32
    %526 = vector.broadcast %c6_i32_96 : i32 to vector<8x128xi32>
    %527 = arith.cmpi eq, %295, %526 : vector<8x128xi32>
    %528 = arith.select %527, %525, %495 : vector<8x128xi1>, vector<8x128xf32>
    %529 = vector.extract_strided_slice %288 {offsets = [7, 0, 0], sizes = [1, 8, 384], strides = [1, 1, 1]} : vector<8x8x384xf32> to vector<1x8x384xf32>
    %530 = vector.shape_cast %529 : vector<1x8x384xf32> to vector<8x384xf32>
    %cst_97 = arith.constant dense<0.000000e+00> : vector<8x384xf32>
    %531 = tpu.matmul %525, %289, %cst_97 {dimension_numbers = #tpu.dot_dimension_numbers<[1], [0], [0], [1], [0, 0, 1, 1], [], []>} : vector<8x128xf32>, vector<128x384xf32>, vector<8x384xf32> -> vector<8x384xf32>
    %532 = vector.extract_strided_slice %530 {offsets = [0, 0], sizes = [8, 128], strides = [1, 1]} : vector<8x384xf32> to vector<8x128xf32>
    %533 = vector.extract_strided_slice %531 {offsets = [0, 0], sizes = [8, 128], strides = [1, 1]} : vector<8x384xf32> to vector<8x128xf32>
    %534 = arith.addf %532, %533 : vector<8x128xf32>
    %535 = arith.negf %534 : vector<8x128xf32>
    %536 = math.exp %535 : vector<8x128xf32>
    %cst_98 = arith.constant 1.000000e+00 : f32
    %537 = vector.broadcast %cst_98 : f32 to vector<8x128xf32>
    %538 = arith.addf %537, %536 : vector<8x128xf32>
    %539 = arith.divf %537, %538 : vector<8x128xf32>
    %540 = vector.extract_strided_slice %530 {offsets = [0, 128], sizes = [8, 128], strides = [1, 1]} : vector<8x384xf32> to vector<8x128xf32>
    %541 = vector.extract_strided_slice %531 {offsets = [0, 128], sizes = [8, 128], strides = [1, 1]} : vector<8x384xf32> to vector<8x128xf32>
    %542 = arith.addf %540, %541 : vector<8x128xf32>
    %543 = arith.negf %542 : vector<8x128xf32>
    %544 = math.exp %543 : vector<8x128xf32>
    %cst_99 = arith.constant 1.000000e+00 : f32
    %545 = vector.broadcast %cst_99 : f32 to vector<8x128xf32>
    %546 = arith.addf %545, %544 : vector<8x128xf32>
    %547 = arith.divf %545, %546 : vector<8x128xf32>
    %548 = vector.extract_strided_slice %530 {offsets = [0, 256], sizes = [8, 128], strides = [1, 1]} : vector<8x384xf32> to vector<8x128xf32>
    %549 = vector.extract_strided_slice %531 {offsets = [0, 256], sizes = [8, 128], strides = [1, 1]} : vector<8x384xf32> to vector<8x128xf32>
    %550 = arith.addf %549, %292 : vector<8x128xf32>
    %551 = arith.mulf %539, %550 : vector<8x128xf32>
    %552 = arith.addf %548, %551 : vector<8x128xf32>
    %553 = math.tanh %552 : vector<8x128xf32>
    %cst_100 = arith.constant 1.000000e+00 : f32
    %554 = vector.broadcast %cst_100 : f32 to vector<8x128xf32>
    %555 = arith.subf %554, %547 : vector<8x128xf32>
    %556 = arith.mulf %555, %553 : vector<8x128xf32>
    %557 = arith.mulf %547, %525 : vector<8x128xf32>
    %558 = arith.addf %556, %557 : vector<8x128xf32>
    %c7_i32_101 = arith.constant 7 : i32
    %559 = vector.broadcast %c7_i32_101 : i32 to vector<8x128xi32>
    %560 = arith.cmpi eq, %295, %559 : vector<8x128xi32>
    %561 = arith.select %560, %558, %528 : vector<8x128xi1>, vector<8x128xf32>
    %c0_102 = arith.constant 0 : index
    %c0_103 = arith.constant 0 : index
    %562 = vector.load %arg13[%c0_102, %c0_103] : memref<1x128xf32, #tpu.memory_space<vmem>>, vector<1x128xf32>
    %563 = vector.broadcast %562 : vector<1x128xf32> to vector<8x128xf32>
    %564 = arith.mulf %280, %563 : vector<8x128xf32>
    %cst_104 = arith.constant dense<0.000000e+00> : vector<8xf32>
    %565 = vector.multi_reduction <add>, %564, %cst_104 [1] : vector<8x128xf32> to vector<8xf32>
    %566 = vector.shape_cast %565 : vector<8xf32> to vector<8x1xf32>
    %c0_105 = arith.constant 0 : index
    %c0_106 = arith.constant 0 : index
    %567 = vector.load %arg14[%c0_105, %c0_106] : memref<1x128xf32, #tpu.memory_space<vmem>>, vector<1x128xf32>
    %568 = vector.broadcast %567 : vector<1x128xf32> to vector<8x128xf32>
    %569 = arith.mulf %561, %568 : vector<8x128xf32>
    %cst_107 = arith.constant dense<0.000000e+00> : vector<8xf32>
    %570 = vector.multi_reduction <add>, %569, %cst_107 [1] : vector<8x128xf32> to vector<8xf32>
    %571 = vector.shape_cast %570 : vector<8xf32> to vector<8x1xf32>
    %572 = arith.addf %566, %571 : vector<8x1xf32>
    %c0_108 = arith.constant 0 : index
    %c0_109 = arith.constant 0 : index
    %573 = vector.load %arg15[%c0_108, %c0_109] : memref<1x1xf32, #tpu.memory_space<vmem>>, vector<1x1xf32>
    %574 = vector.broadcast %573 : vector<1x1xf32> to vector<8x1xf32>
    %575 = arith.addf %572, %574 : vector<8x1xf32>
    %576 = arith.negf %575 : vector<8x1xf32>
    %577 = math.exp %576 : vector<8x1xf32>
    %cst_110 = arith.constant 1.000000e+00 : f32
    %578 = vector.broadcast %cst_110 : f32 to vector<8x1xf32>
    %579 = arith.addf %578, %577 : vector<8x1xf32>
    %580 = arith.divf %578, %579 : vector<8x1xf32>
    %c0_111 = arith.constant 0 : index
    %c0_112 = arith.constant 0 : index
    %581 = vector.load %arg16[%c0_111, %c0_112] : memref<8x1xf32, #tpu.memory_space<vmem>>, vector<8x1xf32>
    tpu.vector_store %arg16[%c0_111, %c0_112], %580 {strides = array<i32>} : memref<8x1xf32, #tpu.memory_space<vmem>>, vector<8x1xf32>,
    return
  }
  func.func @transform_0(%arg0: i32) -> (i32, i32, i32) {
    %c0_i32 = arith.constant 0 : i32
    %c0_i32_0 = arith.constant 0 : i32
    %c0_i32_1 = arith.constant 0 : i32
    return %c0_i32, %arg0, %c0_i32_0 : i32, i32, i32
  }
  func.func @transform_1(%arg0: i32) -> (i32, i32, i32) {
    %c0_i32 = arith.constant 0 : i32
    %c0_i32_0 = arith.constant 0 : i32
    %c0_i32_1 = arith.constant 0 : i32
    return %c0_i32, %arg0, %c0_i32_0 : i32, i32, i32
  }
  func.func @transform_2(%arg0: i32) -> (i32, i32) {
    %c0_i32 = arith.constant 0 : i32
    %c0_i32_0 = arith.constant 0 : i32
    return %arg0, %c0_i32 : i32, i32
  }
  func.func @transform_3(%arg0: i32) -> (i32, i32) {
    %c0_i32 = arith.constant 0 : i32
    %c0_i32_0 = arith.constant 0 : i32
    return %arg0, %c0_i32 : i32, i32
  }
  func.func @transform_4(%arg0: i32) -> (i32, i32) {
    %c0_i32 = arith.constant 0 : i32
    %c0_i32_0 = arith.constant 0 : i32
    %c0_i32_1 = arith.constant 0 : i32
    return %c0_i32, %c0_i32_0 : i32, i32
  }
  func.func @transform_5(%arg0: i32) -> (i32, i32) {
    %c0_i32 = arith.constant 0 : i32
    %c0_i32_0 = arith.constant 0 : i32
    %c0_i32_1 = arith.constant 0 : i32
    return %c0_i32, %c0_i32_0 : i32, i32
  }
  func.func @transform_6(%arg0: i32) -> (i32, i32) {
    %c0_i32 = arith.constant 0 : i32
    %c0_i32_0 = arith.constant 0 : i32
    %c0_i32_1 = arith.constant 0 : i32
    return %c0_i32, %c0_i32_0 : i32, i32
  }
  func.func @transform_7(%arg0: i32) -> (i32, i32) {
    %c0_i32 = arith.constant 0 : i32
    %c0_i32_0 = arith.constant 0 : i32
    %c0_i32_1 = arith.constant 0 : i32
    return %c0_i32, %c0_i32_0 : i32, i32
  }
  func.func @transform_8(%arg0: i32) -> (i32, i32) {
    %c0_i32 = arith.constant 0 : i32
    %c0_i32_0 = arith.constant 0 : i32
    %c0_i32_1 = arith.constant 0 : i32
    return %c0_i32, %c0_i32_0 : i32, i32
  }
  func.func @transform_9(%arg0: i32) -> (i32, i32) {
    %c0_i32 = arith.constant 0 : i32
    %c0_i32_0 = arith.constant 0 : i32
    %c0_i32_1 = arith.constant 0 : i32
    return %c0_i32, %c0_i32_0 : i32, i32
  }
  func.func @transform_10(%arg0: i32) -> (i32, i32) {
    %c0_i32 = arith.constant 0 : i32
    %c0_i32_0 = arith.constant 0 : i32
    %c0_i32_1 = arith.constant 0 : i32
    return %c0_i32, %c0_i32_0 : i32, i32
  }
  func.func @transform_11(%arg0: i32) -> (i32, i32) {
    %c0_i32 = arith.constant 0 : i32
    %c0_i32_0 = arith.constant 0 : i32
    %c0_i32_1 = arith.constant 0 : i32
    return %c0_i32, %c0_i32_0 : i32, i32
  }
  func.func @transform_12(%arg0: i32) -> (i32, i32) {
    %c0_i32 = arith.constant 0 : i32
    %c0_i32_0 = arith.constant 0 : i32
    %c0_i32_1 = arith.constant 0 : i32
    return %c0_i32, %c0_i32_0 : i32, i32
  }
  func.func @transform_13(%arg0: i32) -> (i32, i32) {
    %c0_i32 = arith.constant 0 : i32
    %c0_i32_0 = arith.constant 0 : i32
    %c0_i32_1 = arith.constant 0 : i32
    return %c0_i32, %c0_i32_0 : i32, i32
  }
  func.func @transform_14(%arg0: i32) -> (i32, i32) {
    %c0_i32 = arith.constant 0 : i32
    %c0_i32_0 = arith.constant 0 : i32
    %c0_i32_1 = arith.constant 0 : i32
    return %c0_i32, %c0_i32_0 : i32, i32
  }
  func.func @transform_15(%arg0: i32) -> (i32, i32) {
    %c0_i32 = arith.constant 0 : i32
    %c0_i32_0 = arith.constant 0 : i32
    return %arg0, %c0_i32 : i32, i32
  }
}

</mosaic_0001>

<llo_original>
// kernel: tpu_custom_call.1
$region0: #{tpu_custom_call.1}
  #allocation0 [shape = 'u32[]', space=smem, size = 0x4, offset = 0x4, fixed_abs, tag = 'smem constant byte address 0x4 - core index']
  #allocation1 [shape = 'u32[144,128]{1,0:T(1,128)}', space=vmem, size = 0x12000, scoped, tag = 'internal scratch']
  #allocation2 [shape = 'f32[1,1]{1,0:T(1,128)S(1)}', space=vmem, size = 0x200, scoped, tag = 'scoped memory for tpu_custom_call.1']
  %s0 = inlined_call_operand.hbm [shape: bf16[8,8,768], index: 0, kind: input, shape index: {}]
  %s1 = inlined_call_operand.hbm [shape: bf16[8,8,768], index: 1, kind: input, shape index: {}]
  %s2 = inlined_call_operand.vmem [shape: s32[8,1], index: 2, kind: input, shape index: {}]
  %s3 = inlined_call_operand.vmem [shape: s32[8,1], index: 3, kind: input, shape index: {}]
  %s4 = inlined_call_operand.hbm [shape: bf16[768,384], index: 4, kind: input, shape index: {}]
  %s5 = inlined_call_operand.hbm [shape: f32[128,384], index: 5, kind: input, shape index: {}]
  %s6 = inlined_call_operand.vmem [shape: f32[1,384], index: 6, kind: input, shape index: {}]
  %s7 = inlined_call_operand.vmem [shape: f32[1,128], index: 7, kind: input, shape index: {}]
  %s8 = inlined_call_operand.hbm [shape: bf16[768,384], index: 8, kind: input, shape index: {}]
  %s9 = inlined_call_operand.hbm [shape: f32[128,384], index: 9, kind: input, shape index: {}]
  %s10 = inlined_call_operand.vmem [shape: f32[1,384], index: 10, kind: input, shape index: {}]
  %s11 = inlined_call_operand.vmem [shape: f32[1,128], index: 11, kind: input, shape index: {}]
  %s12 = inlined_call_operand.vmem [shape: f32[1,128], index: 12, kind: input, shape index: {}]
  %s13 = inlined_call_operand.vmem [shape: f32[1,128], index: 13, kind: input, shape index: {}]
  %s14 = inlined_call_operand.<no memory space> [shape: f32[1,1], index: 14, kind: input, shape index: {}]
  %s15 = inlined_call_operand.vmem [shape: f32[8,1], index: 15, kind: output, shape index: {}]
  %s16 = sld [smem:[#allocation0]]
  $region94: #{tpu_custom_call.1} parent=0
    _
  %s18 = ssub.s32 1, %s16
  %s19 = scalar_select 0, %s18, %s16
  %v20 = vstv %s14
  %21 = vst [vmem:[#allocation2] sm:$0x1] %v20
  $region1: #{tpu_custom_call.1} parent=0
    #allocation3 [shape = 'u8[98304]{0}', space=vmem, size = 0x18000, scoped, tag = 'input window, operand 0, single buffered']
    #allocation4 [shape = 's32[1]{0}', space=sflag, size = 0x4, scoped, tag = 'scoped memory for tpu_custom_call.1']
    #allocation5 [shape = 'u8[98304]{0}', space=vmem, size = 0x18000, scoped, tag = 'input window, operand 1, single buffered']
    #allocation6 [shape = 's32[1]{0}', space=sflag, size = 0x4, scoped, tag = 'scoped memory for tpu_custom_call.1']
    #allocation7 [shape = 'u8[589824]{0}', space=vmem, size = 0x90000, scoped, tag = 'input window, operand 4, single buffered']
    #allocation8 [shape = 'u8[196608]{0}', space=vmem, size = 0x30000, scoped, tag = 'input window, operand 5, single buffered']
    #allocation9 [shape = 's32[1]{0}', space=sflag, size = 0x4, scoped, tag = 'scoped memory for tpu_custom_call.1']
    #allocation10 [shape = 'u8[589824]{0}', space=vmem, size = 0x90000, scoped, tag = 'input window, operand 8, single buffered']
    #allocation11 [shape = 'u8[196608]{0}', space=vmem, size = 0x30000, scoped, tag = 'input window, operand 9, single buffered']
    #allocation12 [shape = 's32[1]{0}', space=sflag, size = 0x4, scoped, tag = 'scoped memory for tpu_custom_call.1']
    %22 = vsyncpa [#allocation4], 0
    %23 = vsyncpa [#allocation6], 0
    %24 = vsyncpa [#allocation9], 0
    %25 = vsyncpa [#allocation12], 0
    // Predicated region
    $region2: #{tpu_custom_call.1} parent=1 // pred_check
      _
    $region3: #{tpu_custom_call.1} parent=1 // pred_check_branch
      %27 = sbr.rel (0) target = $region5
    $region4: #{tpu_custom_call.1} parent=1 // pred_region
      %s29 = ssub.s32 3072, 3072
      %30 = vsyncadd [#allocation4], %s29
      %s31 = sshll.u32 [#allocation3], 4
      %s32 = int_to_ptr.vmem [resolvable:$true] %s31
      %37 = dma.hbm_to_vmem [thread:$0]  %s0, 3072, %s32, [#allocation4], 384, 384, 24
    $region5: #{tpu_custom_call.1} parent=1 // pred_fallthru
      _
    // Predicated region
    $region6: #{tpu_custom_call.1} parent=1 // pred_check
      _
    $region7: #{tpu_custom_call.1} parent=1 // pred_check_branch
      %39 = sbr.rel (0) target = $region9
    $region8: #{tpu_custom_call.1} parent=1 // pred_region
      %s41 = ssub.s32 3072, 3072
      %42 = vsyncadd [#allocation6], %s41
      %s43 = sshll.u32 [#allocation5], 4
      %s44 = int_to_ptr.vmem [resolvable:$true] %s43
      %49 = dma.hbm_to_vmem [thread:$0]  %s1, 3072, %s44, [#allocation6], 384, 384, 24
    $region9: #{tpu_custom_call.1} parent=1 // pred_fallthru
      _
    // Predicated region
    $region10: #{tpu_custom_call.1} parent=1 // pred_check
      _
    $region11: #{tpu_custom_call.1} parent=1 // pred_check_branch
      %51 = sbr.rel (0) target = $region13
    $region12: #{tpu_custom_call.1} parent=1 // pred_region
      _
    $region13: #{tpu_custom_call.1} parent=1 // pred_fallthru
      _
    // Predicated region
    $region14: #{tpu_custom_call.1} parent=1 // pred_check
      _
    $region15: #{tpu_custom_call.1} parent=1 // pred_check_branch
      %53 = sbr.rel (0) target = $region17
    $region16: #{tpu_custom_call.1} parent=1 // pred_region
      _
    $region17: #{tpu_custom_call.1} parent=1 // pred_fallthru
      _
    // Predicated region
    $region18: #{tpu_custom_call.1} parent=1 // pred_check
      _
    $region19: #{tpu_custom_call.1} parent=1 // pred_check_branch
      %55 = sbr.rel (0) target = $region21
    $region20: #{tpu_custom_call.1} parent=1 // pred_region
      %s57 = ssub.s32 18432, 18432
      %58 = vsyncadd [#allocation6], %s57
      %s59 = sshll.u32 [#allocation7], 4
      %s60 = int_to_ptr.vmem [resolvable:$true] %s59
      %65 = dma.hbm_to_vmem [thread:$0]  %s4, 18432, %s60, [#allocation6], 192, 192, 12
    $region21: #{tpu_custom_call.1} parent=1 // pred_fallthru
      _
    // Predicated region
    $region22: #{tpu_custom_call.1} parent=1 // pred_check
      _
    $region23: #{tpu_custom_call.1} parent=1 // pred_check_branch
      %67 = sbr.rel (0) target = $region25
    $region24: #{tpu_custom_call.1} parent=1 // pred_region
      %s69 = ssub.s32 6144, 6144
      %70 = vsyncadd [#allocation9], %s69
      %s71 = sshll.u32 [#allocation8], 4
      %s72 = int_to_ptr.vmem [resolvable:$true] %s71
      %77 = dma.hbm_to_vmem [thread:$0]  %s5, 6144, %s72, [#allocation9], 384, 384, 24
    $region25: #{tpu_custom_call.1} parent=1 // pred_fallthru
      _
    // Predicated region
    $region26: #{tpu_custom_call.1} parent=1 // pred_check
      _
    $region27: #{tpu_custom_call.1} parent=1 // pred_check_branch
      %79 = sbr.rel (0) target = $region29
    $region28: #{tpu_custom_call.1} parent=1 // pred_region
      _
    $region29: #{tpu_custom_call.1} parent=1 // pred_fallthru
      _
    // Predicated region
    $region30: #{tpu_custom_call.1} parent=1 // pred_check
      _
    $region31: #{tpu_custom_call.1} parent=1 // pred_check_branch
      %81 = sbr.rel (0) target = $region33
    $region32: #{tpu_custom_call.1} parent=1 // pred_region
      _
    $region33: #{tpu_custom_call.1} parent=1 // pred_fallthru
      _
    // Predicated region
    $region34: #{tpu_custom_call.1} parent=1 // pred_check
      _
    $region35: #{tpu_custom_call.1} parent=1 // pred_check_branch
      %83 = sbr.rel (0) target = $region37
    $region36: #{tpu_custom_call.1} parent=1 // pred_region
      %s85 = ssub.s32 18432, 18432
      %86 = vsyncadd [#allocation9], %s85
      %s87 = sshll.u32 [#allocation10], 4
      %s88 = int_to_ptr.vmem [resolvable:$true] %s87
      %93 = dma.hbm_to_vmem [thread:$0]  %s8, 18432, %s88, [#allocation9], 192, 192, 12
    $region37: #{tpu_custom_call.1} parent=1 // pred_fallthru
      _
    // Predicated region
    $region38: #{tpu_custom_call.1} parent=1 // pred_check
      _
    $region39: #{tpu_custom_call.1} parent=1 // pred_check_branch
      %95 = sbr.rel (0) target = $region41
    $region40: #{tpu_custom_call.1} parent=1 // pred_region
      %s97 = ssub.s32 6144, 6144
      %98 = vsyncadd [#allocation12], %s97
      %s99 = sshll.u32 [#allocation11], 4
      %s100 = int_to_ptr.vmem [resolvable:$true] %s99
      %105 = dma.hbm_to_vmem [thread:$0]  %s9, 6144, %s100, [#allocation12], 384, 384, 24
    $region41: #{tpu_custom_call.1} parent=1 // pred_fallthru
      _
    // Predicated region
    $region42: #{tpu_custom_call.1} parent=1 // pred_check
      _
    $region43: #{tpu_custom_call.1} parent=1 // pred_check_branch
      %107 = sbr.rel (0) target = $region45
    $region44: #{tpu_custom_call.1} parent=1 // pred_region
      _
    $region45: #{tpu_custom_call.1} parent=1 // pred_fallthru
      _
    // Predicated region
    $region46: #{tpu_custom_call.1} parent=1 // pred_check
      _
    $region47: #{tpu_custom_call.1} parent=1 // pred_check_branch
      %109 = sbr.rel (0) target = $region49
    $region48: #{tpu_custom_call.1} parent=1 // pred_region
      _
    $region49: #{tpu_custom_call.1} parent=1 // pred_fallthru
      _
    // Predicated region
    $region50: #{tpu_custom_call.1} parent=1 // pred_check
      _
    $region51: #{tpu_custom_call.1} parent=1 // pred_check_branch
      %111 = sbr.rel (0) target = $region53
    $region52: #{tpu_custom_call.1} parent=1 // pred_region
      _
    $region53: #{tpu_custom_call.1} parent=1 // pred_fallthru
      _
    // Predicated region
    $region54: #{tpu_custom_call.1} parent=1 // pred_check
      _
    $region55: #{tpu_custom_call.1} parent=1 // pred_check_branch
      %113 = sbr.rel (0) target = $region57
    $region56: #{tpu_custom_call.1} parent=1 // pred_region
      _
    $region57: #{tpu_custom_call.1} parent=1 // pred_fallthru
      _
    // Predicated region
    $region58: #{tpu_custom_call.1} parent=1 // pred_check
      _
    $region59: #{tpu_custom_call.1} parent=1 // pred_check_branch
      %115 = sbr.rel (0) target = $region61
    $region60: #{tpu_custom_call.1} parent=1 // pred_region
      _
    $region61: #{tpu_custom_call.1} parent=1 // pred_fallthru
      _
    // Predicated region
    $region62: #{tpu_custom_call.1} parent=1 // pred_check
      _
    $region63: #{tpu_custom_call.1} parent=1 // pred_check_branch
      %117 = sbr.rel (0) target = $region65
    $region64: #{tpu_custom_call.1} parent=1 // pred_region
      %118 = dma.done [#allocation4], 3072
    $region65: #{tpu_custom_call.1} parent=1 // pred_fallthru
      _
    // Predicated region
    $region66: #{tpu_custom_call.1} parent=1 // pred_check
      _
    $region67: #{tpu_custom_call.1} parent=1 // pred_check_branch
      %120 = sbr.rel (0) target = $region69
    $region68: #{tpu_custom_call.1} parent=1 // pred_region
      %121 = dma.done [#allocation6], 3072
    $region69: #{tpu_custom_call.1} parent=1 // pred_fallthru
      _
    // Predicated region
    $region70: #{tpu_custom_call.1} parent=1 // pred_check
      _
    $region71: #{tpu_custom_call.1} parent=1 // pred_check_branch
      %123 = sbr.rel (0) target = $region73
    $region72: #{tpu_custom_call.1} parent=1 // pred_region
      %124 = dma.done [#allocation6], 18432
    $region73: #{tpu_custom_call.1} parent=1 // pred_fallthru
      _
    // Predicated region
    $region74: #{tpu_custom_call.1} parent=1 // pred_check
      _
    $region75: #{tpu_custom_call.1} parent=1 // pred_check_branch
      %126 = sbr.rel (0) target = $region77
    $region76: #{tpu_custom_call.1} parent=1 // pred_region
      %127 = dma.done [#allocation9], 6144
    $region77: #{tpu_custom_call.1} parent=1 // pred_fallthru
      _
    // Predicated region
    $region78: #{tpu_custom_call.1} parent=1 // pred_check
      _
    $region79: #{tpu_custom_call.1} parent=1 // pred_check_branch
      %129 = sbr.rel (0) target = $region81
    $region80: #{tpu_custom_call.1} parent=1 // pred_region
      %130 = dma.done [#allocation9], 18432
    $region81: #{tpu_custom_call.1} parent=1 // pred_fallthru
      _
    // Predicated region
    $region82: #{tpu_custom_call.1} parent=1 // pred_check
      _
    $region83: #{tpu_custom_call.1} parent=1 // pred_check_branch
      %132 = sbr.rel (0) target = $region85
    $region84: #{tpu_custom_call.1} parent=1 // pred_region
      %133 = dma.done [#allocation12], 6144
    $region85: #{tpu_custom_call.1} parent=1 // pred_fallthru
      _
    %v135 = vld [vmem:[#allocation3] sm:$0xff]
    %v136 = vld [vmem:[#allocation3 + $0x8] sm:$0xff]
    %v137 = vld [vmem:[#allocation3 + $0x10] sm:$0xff]
    %v138 = vld [vmem:[#allocation3 + $0x18] sm:$0xff]
    %v139 = vld [vmem:[#allocation3 + $0x20] sm:$0xff]
    %v140 = vld [vmem:[#allocation3 + $0x28] sm:$0xff]
    %v141 = vld [vmem:[#allocation3 + $0x30] sm:$0xff]
    %v142 = vld [vmem:[#allocation3 + $0x38] sm:$0xff]
    %v143 = vld [vmem:[#allocation3 + $0x40] sm:$0xff]
    %v144 = vld [vmem:[#allocation3 + $0x48] sm:$0xff]
    %v145 = vld [vmem:[#allocation3 + $0x50] sm:$0xff]
    %v146 = vld [vmem:[#allocation3 + $0x58] sm:$0xff]
    %v147 = vld [vmem:[#allocation3 + $0x60] sm:$0xff]
    %v148 = vld [vmem:[#allocation3 + $0x68] sm:$0xff]
    %v149 = vld [vmem:[#allocation3 + $0x70] sm:$0xff]
    %v150 = vld [vmem:[#allocation3 + $0x78] sm:$0xff]
    %v151 = vld [vmem:[#allocation3 + $0x80] sm:$0xff]
    %v152 = vld [vmem:[#allocation3 + $0x88] sm:$0xff]
    %v153 = vld [vmem:[#allocation3 + $0x90] sm:$0xff]
    %v154 = vld [vmem:[#allocation3 + $0x98] sm:$0xff]
    %v155 = vld [vmem:[#allocation3 + $0xa0] sm:$0xff]
    %v156 = vld [vmem:[#allocation3 + $0xa8] sm:$0xff]
    %v157 = vld [vmem:[#allocation3 + $0xb0] sm:$0xff]
    %v158 = vld [vmem:[#allocation3 + $0xb8] sm:$0xff]
    %v159 = vld [vmem:[#allocation7] sm:$0xff]
    %v160 = vld [vmem:[#allocation7 + $0x8] sm:$0xf]
    %v161 = vld [vmem:[#allocation7 + $0xc] sm:$0xff]
    %v162 = vld [vmem:[#allocation7 + $0x14] sm:$0xf]
    %v163 = vld [vmem:[#allocation7 + $0x18] sm:$0xff]
    %v164 = vld [vmem:[#allocation7 + $0x20] sm:$0xf]
    %v165 = vld [vmem:[#allocation7 + $0x24] sm:$0xff]
    %v166 = vld [vmem:[#allocation7 + $0x2c] sm:$0xf]
    %v167 = vld [vmem:[#allocation7 + $0x30] sm:$0xff]
    %v168 = vld [vmem:[#allocation7 + $0x38] sm:$0xf]
    %v169 = vld [vmem:[#allocation7 + $0x3c] sm:$0xff]
    %v170 = vld [vmem:[#allocation7 + $0x44] sm:$0xf]
    %v171 = vld [vmem:[#allocation7 + $0x48] sm:$0xff]
    %v172 = vld [vmem:[#allocation7 + $0x50] sm:$0xf]
    %v173 = vld [vmem:[#allocation7 + $0x54] sm:$0xff]
    %v174 = vld [vmem:[#allocation7 + $0x5c] sm:$0xf]
    %v175 = vld [vmem:[#allocation7 + $0x60] sm:$0xff]
    %v176 = vld [vmem:[#allocation7 + $0x68] sm:$0xf]
    %v177 = vld [vmem:[#allocation7 + $0x6c] sm:$0xff]
    %v178 = vld [vmem:[#allocation7 + $0x74] sm:$0xf]
    %v179 = vld [vmem:[#allocation7 + $0x78] sm:$0xff]
    %v180 = vld [vmem:[#allocation7 + $0x80] sm:$0xf]
    %v181 = vld [vmem:[#allocation7 + $0x84] sm:$0xff]
    %v182 = vld [vmem:[#allocation7 + $0x8c] sm:$0xf]
    %v183 = vld [vmem:[#allocation7 + $0x90] sm:$0xff]
    %v184 = vld [vmem:[#allocation7 + $0x98] sm:$0xf]
    %v185 = vld [vmem:[#allocation7 + $0x9c] sm:$0xff]
    %v186 = vld [vmem:[#allocation7 + $0xa4] sm:$0xf]
    %v187 = vld [vmem:[#allocation7 + $0xa8] sm:$0xff]
    %v188 = vld [vmem:[#allocation7 + $0xb0] sm:$0xf]
    %v189 = vld [vmem:[#allocation7 + $0xb4] sm:$0xff]
    %v190 = vld [vmem:[#allocation7 + $0xbc] sm:$0xf]
    %v191 = vld [vmem:[#allocation7 + $0xc0] sm:$0xff]
    %v192 = vld [vmem:[#allocation7 + $0xc8] sm:$0xf]
    %v193 = vld [vmem:[#allocation7 + $0xcc] sm:$0xff]
    %v194 = vld [vmem:[#allocation7 + $0xd4] sm:$0xf]
    %v195 = vld [vmem:[#allocation7 + $0xd8] sm:$0xff]
    %v196 = vld [vmem:[#allocation7 + $0xe0] sm:$0xf]
    %v197 = vld [vmem:[#allocation7 + $0xe4] sm:$0xff]
    %v198 = vld [vmem:[#allocation7 + $0xec] sm:$0xf]
    %v199 = vld [vmem:[#allocation7 + $0xf0] sm:$0xff]
    %v200 = vld [vmem:[#allocation7 + $0xf8] sm:$0xf]
    %v201 = vld [vmem:[#allocation7 + $0xfc] sm:$0xff]
    %v202 = vld [vmem:[#allocation7 + $0x104] sm:$0xf]
    %v203 = vld [vmem:[#allocation7 + $0x108] sm:$0xff]
    %v204 = vld [vmem:[#allocation7 + $0x110] sm:$0xf]
    %v205 = vld [vmem:[#allocation7 + $0x114] sm:$0xff]
    %v206 = vld [vmem:[#allocation7 + $0x11c] sm:$0xf]
    %v207 = vld [vmem:[#allocation7 + $0x120] sm:$0xff]
    %v208 = vld [vmem:[#allocation7 + $0x128] sm:$0xf]
    %v209 = vld [vmem:[#allocation7 + $0x12c] sm:$0xff]
    %v210 = vld [vmem:[#allocation7 + $0x134] sm:$0xf]
    %v211 = vld [vmem:[#allocation7 + $0x138] sm:$0xff]
    %v212 = vld [vmem:[#allocation7 + $0x140] sm:$0xf]
    %v213 = vld [vmem:[#allocation7 + $0x144] sm:$0xff]
    %v214 = vld [vmem:[#allocation7 + $0x14c] sm:$0xf]
    %v215 = vld [vmem:[#allocation7 + $0x150] sm:$0xff]
    %v216 = vld [vmem:[#allocation7 + $0x158] sm:$0xf]
    %v217 = vld [vmem:[#allocation7 + $0x15c] sm:$0xff]
    %v218 = vld [vmem:[#allocation7 + $0x164] sm:$0xf]
    %v219 = vld [vmem:[#allocation7 + $0x168] sm:$0xff]
    %v220 = vld [vmem:[#allocation7 + $0x170] sm:$0xf]
    %v221 = vld [vmem:[#allocation7 + $0x174] sm:$0xff]
    %v222 = vld [vmem:[#allocation7 + $0x17c] sm:$0xf]
    %v223 = vld [vmem:[#allocation7 + $0x180] sm:$0xff]
    %v224 = vld [vmem:[#allocation7 + $0x188] sm:$0xf]
    %v225 = vld [vmem:[#allocation7 + $0x18c] sm:$0xff]
    %v226 = vld [vmem:[#allocation7 + $0x194] sm:$0xf]
    %v227 = vld [vmem:[#allocation7 + $0x198] sm:$0xff]
    %v228 = vld [vmem:[#allocation7 + $0x1a0] sm:$0xf]
    %v229 = vld [vmem:[#allocation7 + $0x1a4] sm:$0xff]
    %v230 = vld [vmem:[#allocation7 + $0x1ac] sm:$0xf]
    %v231 = vld [vmem:[#allocation7 + $0x1b0] sm:$0xff]
    %v232 = vld [vmem:[#allocation7 + $0x1b8] sm:$0xf]
    %v233 = vld [vmem:[#allocation7 + $0x1bc] sm:$0xff]
    %v234 = vld [vmem:[#allocation7 + $0x1c4] sm:$0xf]
    %v235 = vld [vmem:[#allocation7 + $0x1c8] sm:$0xff]
    %v236 = vld [vmem:[#allocation7 + $0x1d0] sm:$0xf]
    %v237 = vld [vmem:[#allocation7 + $0x1d4] sm:$0xff]
    %v238 = vld [vmem:[#allocation7 + $0x1dc] sm:$0xf]
    %v239 = vld [vmem:[#allocation7 + $0x1e0] sm:$0xff]
    %v240 = vld [vmem:[#allocation7 + $0x1e8] sm:$0xf]
    %v241 = vld [vmem:[#allocation7 + $0x1ec] sm:$0xff]
    %v242 = vld [vmem:[#allocation7 + $0x1f4] sm:$0xf]
    %v243 = vld [vmem:[#allocation7 + $0x1f8] sm:$0xff]
    %v244 = vld [vmem:[#allocation7 + $0x200] sm:$0xf]
    %v245 = vld [vmem:[#allocation7 + $0x204] sm:$0xff]
    %v246 = vld [vmem:[#allocation7 + $0x20c] sm:$0xf]
    %v247 = vld [vmem:[#allocation7 + $0x210] sm:$0xff]
    %v248 = vld [vmem:[#allocation7 + $0x218] sm:$0xf]
    %v249 = vld [vmem:[#allocation7 + $0x21c] sm:$0xff]
    %v250 = vld [vmem:[#allocation7 + $0x224] sm:$0xf]
    %v251 = vld [vmem:[#allocation7 + $0x228] sm:$0xff]
    %v252 = vld [vmem:[#allocation7 + $0x230] sm:$0xf]
    %v253 = vld [vmem:[#allocation7 + $0x234] sm:$0xff]
    %v254 = vld [vmem:[#allocation7 + $0x23c] sm:$0xf]
    %v255 = vld [vmem:[#allocation7 + $0x240] sm:$0xff]
    %v256 = vld [vmem:[#allocation7 + $0x248] sm:$0xf]
    %v257 = vld [vmem:[#allocation7 + $0x24c] sm:$0xff]
    %v258 = vld [vmem:[#allocation7 + $0x254] sm:$0xf]
    %v259 = vld [vmem:[#allocation7 + $0x258] sm:$0xff]
    %v260 = vld [vmem:[#allocation7 + $0x260] sm:$0xf]
    %v261 = vld [vmem:[#allocation7 + $0x264] sm:$0xff]
    %v262 = vld [vmem:[#allocation7 + $0x26c] sm:$0xf]
    %v263 = vld [vmem:[#allocation7 + $0x270] sm:$0xff]
    %v264 = vld [vmem:[#allocation7 + $0x278] sm:$0xf]
    %v265 = vld [vmem:[#allocation7 + $0x27c] sm:$0xff]
    %v266 = vld [vmem:[#allocation7 + $0x284] sm:$0xf]
    %v267 = vld [vmem:[#allocation7 + $0x288] sm:$0xff]
    %v268 = vld [vmem:[#allocation7 + $0x290] sm:$0xf]
    %v269 = vld [vmem:[#allocation7 + $0x294] sm:$0xff]
    %v270 = vld [vmem:[#allocation7 + $0x29c] sm:$0xf]
    %v271 = vld [vmem:[#allocation7 + $0x2a0] sm:$0xff]
    %v272 = vld [vmem:[#allocation7 + $0x2a8] sm:$0xf]
    %v273 = vld [vmem:[#allocation7 + $0x2ac] sm:$0xff]
    %v274 = vld [vmem:[#allocation7 + $0x2b4] sm:$0xf]
    %v275 = vld [vmem:[#allocation7 + $0x2b8] sm:$0xff]
    %v276 = vld [vmem:[#allocation7 + $0x2c0] sm:$0xf]
    %v277 = vld [vmem:[#allocation7 + $0x2c4] sm:$0xff]
    %v278 = vld [vmem:[#allocation7 + $0x2cc] sm:$0xf]
    %v279 = vld [vmem:[#allocation7 + $0x2d0] sm:$0xff]
    %v280 = vld [vmem:[#allocation7 + $0x2d8] sm:$0xf]
    %v281 = vld [vmem:[#allocation7 + $0x2dc] sm:$0xff]
    %v282 = vld [vmem:[#allocation7 + $0x2e4] sm:$0xf]
    %v283 = vld [vmem:[#allocation7 + $0x2e8] sm:$0xff]
    %v284 = vld [vmem:[#allocation7 + $0x2f0] sm:$0xf]
    %v285 = vld [vmem:[#allocation7 + $0x2f4] sm:$0xff]
    %v286 = vld [vmem:[#allocation7 + $0x2fc] sm:$0xf]
    %v287 = vld [vmem:[#allocation7 + $0x300] sm:$0xff]
    %v288 = vld [vmem:[#allocation7 + $0x308] sm:$0xf]
    %v289 = vld [vmem:[#allocation7 + $0x30c] sm:$0xff]
    %v290 = vld [vmem:[#allocation7 + $0x314] sm:$0xf]
    %v291 = vld [vmem:[#allocation7 + $0x318] sm:$0xff]
    %v292 = vld [vmem:[#allocation7 + $0x320] sm:$0xf]
    %v293 = vld [vmem:[#allocation7 + $0x324] sm:$0xff]
    %v294 = vld [vmem:[#allocation7 + $0x32c] sm:$0xf]
    %v295 = vld [vmem:[#allocation7 + $0x330] sm:$0xff]
    %v296 = vld [vmem:[#allocation7 + $0x338] sm:$0xf]
    %v297 = vld [vmem:[#allocation7 + $0x33c] sm:$0xff]
    %v298 = vld [vmem:[#allocation7 + $0x344] sm:$0xf]
    %v299 = vld [vmem:[#allocation7 + $0x348] sm:$0xff]
    %v300 = vld [vmem:[#allocation7 + $0x350] sm:$0xf]
    %v301 = vld [vmem:[#allocation7 + $0x354] sm:$0xff]
    %v302 = vld [vmem:[#allocation7 + $0x35c] sm:$0xf]
    %v303 = vld [vmem:[#allocation7 + $0x360] sm:$0xff]
    %v304 = vld [vmem:[#allocation7 + $0x368] sm:$0xf]
    %v305 = vld [vmem:[#allocation7 + $0x36c] sm:$0xff]
    %v306 = vld [vmem:[#allocation7 + $0x374] sm:$0xf]
    %v307 = vld [vmem:[#allocation7 + $0x378] sm:$0xff]
    %v308 = vld [vmem:[#allocation7 + $0x380] sm:$0xf]
    %v309 = vld [vmem:[#allocation7 + $0x384] sm:$0xff]
    %v310 = vld [vmem:[#allocation7 + $0x38c] sm:$0xf]
    %v311 = vld [vmem:[#allocation7 + $0x390] sm:$0xff]
    %v312 = vld [vmem:[#allocation7 + $0x398] sm:$0xf]
    %v313 = vld [vmem:[#allocation7 + $0x39c] sm:$0xff]
    %v314 = vld [vmem:[#allocation7 + $0x3a4] sm:$0xf]
    %v315 = vld [vmem:[#allocation7 + $0x3a8] sm:$0xff]
    %v316 = vld [vmem:[#allocation7 + $0x3b0] sm:$0xf]
    %v317 = vld [vmem:[#allocation7 + $0x3b4] sm:$0xff]
    %v318 = vld [vmem:[#allocation7 + $0x3bc] sm:$0xf]
    %v319 = vld [vmem:[#allocation7 + $0x3c0] sm:$0xff]
    %v320 = vld [vmem:[#allocation7 + $0x3c8] sm:$0xf]
    %v321 = vld [vmem:[#allocation7 + $0x3cc] sm:$0xff]
    %v322 = vld [vmem:[#allocation7 + $0x3d4] sm:$0xf]
    %v323 = vld [vmem:[#allocation7 + $0x3d8] sm:$0xff]
    %v324 = vld [vmem:[#allocation7 + $0x3e0] sm:$0xf]
    %v325 = vld [vmem:[#allocation7 + $0x3e4] sm:$0xff]
    %v326 = vld [vmem:[#allocation7 + $0x3ec] sm:$0xf]
    %v327 = vld [vmem:[#allocation7 + $0x3f0] sm:$0xff]
    %v328 = vld [vmem:[#allocation7 + $0x3f8] sm:$0xf]
    %v329 = vld [vmem:[#allocation7 + $0x3fc] sm:$0xff]
    %v330 = vld [vmem:[#allocation7 + $0x404] sm:$0xf]
    %v331 = vld [vmem:[#allocation7 + $0x408] sm:$0xff]
    %v332 = vld [vmem:[#allocation7 + $0x410] sm:$0xf]
    %v333 = vld [vmem:[#allocation7 + $0x414] sm:$0xff]
    %v334 = vld [vmem:[#allocation7 + $0x41c] sm:$0xf]
    %v335 = vld [vmem:[#allocation7 + $0x420] sm:$0xff]
    %v336 = vld [vmem:[#allocation7 + $0x428] sm:$0xf]
    %v337 = vld [vmem:[#allocation7 + $0x42c] sm:$0xff]
    %v338 = vld [vmem:[#allocation7 + $0x434] sm:$0xf]
    %v339 = vld [vmem:[#allocation7 + $0x438] sm:$0xff]
    %v340 = vld [vmem:[#allocation7 + $0x440] sm:$0xf]
    %v341 = vld [vmem:[#allocation7 + $0x444] sm:$0xff]
    %v342 = vld [vmem:[#allocation7 + $0x44c] sm:$0xf]
    %v343 = vld [vmem:[#allocation7 + $0x450] sm:$0xff]
    %v344 = vld [vmem:[#allocation7 + $0x458] sm:$0xf]
    %v345 = vld [vmem:[#allocation7 + $0x45c] sm:$0xff]
    %v346 = vld [vmem:[#allocation7 + $0x464] sm:$0xf]
    %v347 = vld [vmem:[#allocation7 + $0x468] sm:$0xff]
    %v348 = vld [vmem:[#allocation7 + $0x470] sm:$0xf]
    %v349 = vld [vmem:[#allocation7 + $0x474] sm:$0xff]
    %v350 = vld [vmem:[#allocation7 + $0x47c] sm:$0xf]
    %v351 = vld [vmem:[%s6] sm:$0x7]
    %v353 = vlaneseq
    %v354 = vshrl.u32 %v353, 7
    %v355 = vsub.s32 0, %v354
    %v356 = vrot.slane %v351, %v355
    %v357 = vlaneseq
    %v358 = vshrl.u32 %v357, 7
    %v359 = vsub.s32 1, %v358
    %v360 = vrot.slane %v351, %v359
    %v361 = vlaneseq
    %v362 = vshrl.u32 %v361, 7
    %v363 = vsub.s32 2, %v362
    %v364 = vrot.slane %v351, %v363
    %v392 = vunpack.c.l.b16 %v135
    %v393 = vunpack.c.h.b16 %v135
    %v394 = vunpack.c.l.b16 %v136
    %v395 = vunpack.c.h.b16 %v136
    %v396 = vunpack.c.l.b16 %v137
    %v397 = vunpack.c.h.b16 %v137
    %v398 = vunpack.c.l.b16 %v138
    %v399 = vunpack.c.h.b16 %v138
    %v400 = vunpack.c.l.b16 %v139
    %v401 = vunpack.c.h.b16 %v139
    %v402 = vunpack.c.l.b16 %v140
    %v403 = vunpack.c.h.b16 %v140
    %v404 = vunpack.c.l.b16 %v141
    %v405 = vunpack.c.h.b16 %v141
    %v406 = vunpack.c.l.b16 %v142
    %v407 = vunpack.c.h.b16 %v142
    %v408 = vunpack.c.l.b16 %v143
    %v409 = vunpack.c.h.b16 %v143
    %v410 = vunpack.c.l.b16 %v144
    %v411 = vunpack.c.h.b16 %v144
    %v412 = vunpack.c.l.b16 %v145
    %v413 = vunpack.c.h.b16 %v145
    %v414 = vunpack.c.l.b16 %v146
    %v415 = vunpack.c.h.b16 %v146
    %v416 = vunpack.c.l.b16 %v147
    %v417 = vunpack.c.h.b16 %v147
    %v418 = vunpack.c.l.b16 %v148
    %v419 = vunpack.c.h.b16 %v148
    %v420 = vunpack.c.l.b16 %v149
    %v421 = vunpack.c.h.b16 %v149
    %v422 = vunpack.c.l.b16 %v150
    %v423 = vunpack.c.h.b16 %v150
    %v424 = vunpack.c.l.b16 %v151
    %v425 = vunpack.c.h.b16 %v151
    %v426 = vunpack.c.l.b16 %v152
    %v427 = vunpack.c.h.b16 %v152
    %v428 = vunpack.c.l.b16 %v153
    %v429 = vunpack.c.h.b16 %v153
    %v430 = vunpack.c.l.b16 %v154
    %v431 = vunpack.c.h.b16 %v154
    %v432 = vunpack.c.l.b16 %v155
    %v433 = vunpack.c.h.b16 %v155
    %v434 = vunpack.c.l.b16 %v156
    %v435 = vunpack.c.h.b16 %v156
    %v436 = vunpack.c.l.b16 %v157
    %v437 = vunpack.c.h.b16 %v157
    %v438 = vunpack.c.l.b16 %v158
    %v439 = vunpack.c.h.b16 %v158
    %v440 = vpack.c.b16 %v398, %v392
    %v441 = vpack.c.b16 %v399, %v393
    %v442 = vpack.c.b16 %v400, %v394
    %v443 = vpack.c.b16 %v401, %v395
    %v444 = vpack.c.b16 %v402, %v396
    %v445 = vpack.c.b16 %v403, %v397
    %v446 = vpack.c.b16 %v410, %v404
    %v447 = vpack.c.b16 %v411, %v405
    %v448 = vpack.c.b16 %v412, %v406
    %v449 = vpack.c.b16 %v413, %v407
    %v450 = vpack.c.b16 %v414, %v408
    %v451 = vpack.c.b16 %v415, %v409
    %v452 = vpack.c.b16 %v422, %v416
    %v453 = vpack.c.b16 %v423, %v417
    %v454 = vpack.c.b16 %v424, %v418
    %v455 = vpack.c.b16 %v425, %v419
    %v456 = vpack.c.b16 %v426, %v420
    %v457 = vpack.c.b16 %v427, %v421
    %v458 = vpack.c.b16 %v434, %v428
    %v459 = vpack.c.b16 %v435, %v429
    %v460 = vpack.c.b16 %v436, %v430
    %v461 = vpack.c.b16 %v437, %v431
    %v462 = vpack.c.b16 %v438, %v432
    %v463 = vpack.c.b16 %v439, %v433
    %v680 = vunpack.c.l.b16 %v159
    %v681 = vunpack.c.h.b16 %v159
    %v682 = vunpack.c.l.b16 %v160
    %v683 = vunpack.c.l.b16 %v161
    %v684 = vunpack.c.h.b16 %v161
    %v685 = vunpack.c.l.b16 %v162
    %v686 = vunpack.c.l.b16 %v163
    %v687 = vunpack.c.h.b16 %v163
    %v688 = vunpack.c.l.b16 %v164
    %v689 = vunpack.c.l.b16 %v165
    %v690 = vunpack.c.h.b16 %v165
    %v691 = vunpack.c.l.b16 %v166
    %v692 = vunpack.c.l.b16 %v167
    %v693 = vunpack.c.h.b16 %v167
    %v694 = vunpack.c.l.b16 %v168
    %v695 = vunpack.c.l.b16 %v169
    %v696 = vunpack.c.h.b16 %v169
    %v697 = vunpack.c.l.b16 %v170
    %v698 = vunpack.c.l.b16 %v171
    %v699 = vunpack.c.h.b16 %v171
    %v700 = vunpack.c.l.b16 %v172
    %v701 = vunpack.c.l.b16 %v173
    %v702 = vunpack.c.h.b16 %v173
    %v703 = vunpack.c.l.b16 %v174
    %v704 = vunpack.c.l.b16 %v175
    %v705 = vunpack.c.h.b16 %v175
    %v706 = vunpack.c.l.b16 %v176
    %v707 = vunpack.c.l.b16 %v177
    %v708 = vunpack.c.h.b16 %v177
    %v709 = vunpack.c.l.b16 %v178
    %v710 = vunpack.c.l.b16 %v179
    %v711 = vunpack.c.h.b16 %v179
    %v712 = vunpack.c.l.b16 %v180
    %v713 = vunpack.c.l.b16 %v181
    %v714 = vunpack.c.h.b16 %v181
    %v715 = vunpack.c.l.b16 %v182
    %v716 = vunpack.c.l.b16 %v183
    %v717 = vunpack.c.h.b16 %v183
    %v718 = vunpack.c.l.b16 %v184
    %v719 = vunpack.c.l.b16 %v185
    %v720 = vunpack.c.h.b16 %v185
    %v721 = vunpack.c.l.b16 %v186
    %v722 = vunpack.c.l.b16 %v187
    %v723 = vunpack.c.h.b16 %v187
    %v724 = vunpack.c.l.b16 %v188
    %v725 = vunpack.c.l.b16 %v189
    %v726 = vunpack.c.h.b16 %v189
    %v727 = vunpack.c.l.b16 %v190
    %v728 = vunpack.c.l.b16 %v191
    %v729 = vunpack.c.h.b16 %v191
    %v730 = vunpack.c.l.b16 %v192
    %v731 = vunpack.c.l.b16 %v193
    %v732 = vunpack.c.h.b16 %v193
    %v733 = vunpack.c.l.b16 %v194
    %v734 = vunpack.c.l.b16 %v195
    %v735 = vunpack.c.h.b16 %v195
    %v736 = vunpack.c.l.b16 %v196
    %v737 = vunpack.c.l.b16 %v197
    %v738 = vunpack.c.h.b16 %v197
    %v739 = vunpack.c.l.b16 %v198
    %v740 = vunpack.c.l.b16 %v199
    %v741 = vunpack.c.h.b16 %v199
    %v742 = vunpack.c.l.b16 %v200
    %v743 = vunpack.c.l.b16 %v201
    %v744 = vunpack.c.h.b16 %v201
    %v745 = vunpack.c.l.b16 %v202
    %v746 = vunpack.c.l.b16 %v203
    %v747 = vunpack.c.h.b16 %v203
    %v748 = vunpack.c.l.b16 %v204
    %v749 = vunpack.c.l.b16 %v205
    %v750 = vunpack.c.h.b16 %v205
    %v751 = vunpack.c.l.b16 %v206
    %v752 = vunpack.c.l.b16 %v207
    %v753 = vunpack.c.h.b16 %v207
    %v754 = vunpack.c.l.b16 %v208
    %v755 = vunpack.c.l.b16 %v209
    %v756 = vunpack.c.h.b16 %v209
    %v757 = vunpack.c.l.b16 %v210
    %v758 = vunpack.c.l.b16 %v211
    %v759 = vunpack.c.h.b16 %v211
    %v760 = vunpack.c.l.b16 %v212
    %v761 = vunpack.c.l.b16 %v213
    %v762 = vunpack.c.h.b16 %v213
    %v763 = vunpack.c.l.b16 %v214
    %v764 = vunpack.c.l.b16 %v215
    %v765 = vunpack.c.h.b16 %v215
    %v766 = vunpack.c.l.b16 %v216
    %v767 = vunpack.c.l.b16 %v217
    %v768 = vunpack.c.h.b16 %v217
    %v769 = vunpack.c.l.b16 %v218
    %v770 = vunpack.c.l.b16 %v219
    %v771 = vunpack.c.h.b16 %v219
    %v772 = vunpack.c.l.b16 %v220
    %v773 = vunpack.c.l.b16 %v221
    %v774 = vunpack.c.h.b16 %v221
    %v775 = vunpack.c.l.b16 %v222
    %v776 = vunpack.c.l.b16 %v223
    %v777 = vunpack.c.h.b16 %v223
    %v778 = vunpack.c.l.b16 %v224
    %v779 = vunpack.c.l.b16 %v225
    %v780 = vunpack.c.h.b16 %v225
    %v781 = vunpack.c.l.b16 %v226
    %v782 = vunpack.c.l.b16 %v227
    %v783 = vunpack.c.h.b16 %v227
    %v784 = vunpack.c.l.b16 %v228
    %v785 = vunpack.c.l.b16 %v229
    %v786 = vunpack.c.h.b16 %v229
    %v787 = vunpack.c.l.b16 %v230
    %v788 = vunpack.c.l.b16 %v231
    %v789 = vunpack.c.h.b16 %v231
    %v790 = vunpack.c.l.b16 %v232
    %v791 = vunpack.c.l.b16 %v233
    %v792 = vunpack.c.h.b16 %v233
    %v793 = vunpack.c.l.b16 %v234
    %v794 = vunpack.c.l.b16 %v235
    %v795 = vunpack.c.h.b16 %v235
    %v796 = vunpack.c.l.b16 %v236
    %v797 = vunpack.c.l.b16 %v237
    %v798 = vunpack.c.h.b16 %v237
    %v799 = vunpack.c.l.b16 %v238
    %v800 = vunpack.c.l.b16 %v239
    %v801 = vunpack.c.h.b16 %v239
    %v802 = vunpack.c.l.b16 %v240
    %v803 = vunpack.c.l.b16 %v241
    %v804 = vunpack.c.h.b16 %v241
    %v805 = vunpack.c.l.b16 %v242
    %v806 = vunpack.c.l.b16 %v243
    %v807 = vunpack.c.h.b16 %v243
    %v808 = vunpack.c.l.b16 %v244
    %v809 = vunpack.c.l.b16 %v245
    %v810 = vunpack.c.h.b16 %v245
    %v811 = vunpack.c.l.b16 %v246
    %v812 = vunpack.c.l.b16 %v247
    %v813 = vunpack.c.h.b16 %v247
    %v814 = vunpack.c.l.b16 %v248
    %v815 = vunpack.c.l.b16 %v249
    %v816 = vunpack.c.h.b16 %v249
    %v817 = vunpack.c.l.b16 %v250
    %v818 = vunpack.c.l.b16 %v251
    %v819 = vunpack.c.h.b16 %v251
    %v820 = vunpack.c.l.b16 %v252
    %v821 = vunpack.c.l.b16 %v253
    %v822 = vunpack.c.h.b16 %v253
    %v823 = vunpack.c.l.b16 %v254
    %v824 = vunpack.c.l.b16 %v255
    %v825 = vunpack.c.h.b16 %v255
    %v826 = vunpack.c.l.b16 %v256
    %v827 = vunpack.c.l.b16 %v257
    %v828 = vunpack.c.h.b16 %v257
    %v829 = vunpack.c.l.b16 %v258
    %v830 = vunpack.c.l.b16 %v259
    %v831 = vunpack.c.h.b16 %v259
    %v832 = vunpack.c.l.b16 %v260
    %v833 = vunpack.c.l.b16 %v261
    %v834 = vunpack.c.h.b16 %v261
    %v835 = vunpack.c.l.b16 %v262
    %v836 = vunpack.c.l.b16 %v263
    %v837 = vunpack.c.h.b16 %v263
    %v838 = vunpack.c.l.b16 %v264
    %v839 = vunpack.c.l.b16 %v265
    %v840 = vunpack.c.h.b16 %v265
    %v841 = vunpack.c.l.b16 %v266
    %v842 = vunpack.c.l.b16 %v267
    %v843 = vunpack.c.h.b16 %v267
    %v844 = vunpack.c.l.b16 %v268
    %v845 = vunpack.c.l.b16 %v269
    %v846 = vunpack.c.h.b16 %v269
    %v847 = vunpack.c.l.b16 %v270
    %v848 = vunpack.c.l.b16 %v271
    %v849 = vunpack.c.h.b16 %v271
    %v850 = vunpack.c.l.b16 %v272
    %v851 = vunpack.c.l.b16 %v273
    %v852 = vunpack.c.h.b16 %v273
    %v853 = vunpack.c.l.b16 %v274
    %v854 = vunpack.c.l.b16 %v275
    %v855 = vunpack.c.h.b16 %v275
    %v856 = vunpack.c.l.b16 %v276
    %v857 = vunpack.c.l.b16 %v277
    %v858 = vunpack.c.h.b16 %v277
    %v859 = vunpack.c.l.b16 %v278
    %v860 = vunpack.c.l.b16 %v279
    %v861 = vunpack.c.h.b16 %v279
    %v862 = vunpack.c.l.b16 %v280
    %v863 = vunpack.c.l.b16 %v281
    %v864 = vunpack.c.h.b16 %v281
    %v865 = vunpack.c.l.b16 %v282
    %v866 = vunpack.c.l.b16 %v283
    %v867 = vunpack.c.h.b16 %v283
    %v868 = vunpack.c.l.b16 %v284
    %v869 = vunpack.c.l.b16 %v285
    %v870 = vunpack.c.h.b16 %v285
    %v871 = vunpack.c.l.b16 %v286
    %v872 = vunpack.c.l.b16 %v287
    %v873 = vunpack.c.h.b16 %v287
    %v874 = vunpack.c.l.b16 %v288
    %v875 = vunpack.c.l.b16 %v289
    %v876 = vunpack.c.h.b16 %v289
    %v877 = vunpack.c.l.b16 %v290
    %v878 = vunpack.c.l.b16 %v291
    %v879 = vunpack.c.h.b16 %v291
    %v880 = vunpack.c.l.b16 %v292
    %v881 = vunpack.c.l.b16 %v293
    %v882 = vunpack.c.h.b16 %v293
    %v883 = vunpack.c.l.b16 %v294
    %v884 = vunpack.c.l.b16 %v295
    %v885 = vunpack.c.h.b16 %v295
    %v886 = vunpack.c.l.b16 %v296
    %v887 = vunpack.c.l.b16 %v297
    %v888 = vunpack.c.h.b16 %v297
    %v889 = vunpack.c.l.b16 %v298
    %v890 = vunpack.c.l.b16 %v299
    %v891 = vunpack.c.h.b16 %v299
    %v892 = vunpack.c.l.b16 %v300
    %v893 = vunpack.c.l.b16 %v301
    %v894 = vunpack.c.h.b16 %v301
    %v895 = vunpack.c.l.b16 %v302
    %v896 = vunpack.c.l.b16 %v303
    %v897 = vunpack.c.h.b16 %v303
    %v898 = vunpack.c.l.b16 %v304
    %v899 = vunpack.c.l.b16 %v305
    %v900 = vunpack.c.h.b16 %v305
    %v901 = vunpack.c.l.b16 %v306
    %v902 = vunpack.c.l.b16 %v307
    %v903 = vunpack.c.h.b16 %v307
    %v904 = vunpack.c.l.b16 %v308
    %v905 = vunpack.c.l.b16 %v309
    %v906 = vunpack.c.h.b16 %v309
    %v907 = vunpack.c.l.b16 %v310
    %v908 = vunpack.c.l.b16 %v311
    %v909 = vunpack.c.h.b16 %v311
    %v910 = vunpack.c.l.b16 %v312
    %v911 = vunpack.c.l.b16 %v313
    %v912 = vunpack.c.h.b16 %v313
    %v913 = vunpack.c.l.b16 %v314
    %v914 = vunpack.c.l.b16 %v315
    %v915 = vunpack.c.h.b16 %v315
    %v916 = vunpack.c.l.b16 %v316
    %v917 = vunpack.c.l.b16 %v317
    %v918 = vunpack.c.h.b16 %v317
    %v919 = vunpack.c.l.b16 %v318
    %v920 = vunpack.c.l.b16 %v319
    %v921 = vunpack.c.h.b16 %v319
    %v922 = vunpack.c.l.b16 %v320
    %v923 = vunpack.c.l.b16 %v321
    %v924 = vunpack.c.h.b16 %v321
    %v925 = vunpack.c.l.b16 %v322
    %v926 = vunpack.c.l.b16 %v323
    %v927 = vunpack.c.h.b16 %v323
    %v928 = vunpack.c.l.b16 %v324
    %v929 = vunpack.c.l.b16 %v325
    %v930 = vunpack.c.h.b16 %v325
    %v931 = vunpack.c.l.b16 %v326
    %v932 = vunpack.c.l.b16 %v327
    %v933 = vunpack.c.h.b16 %v327
    %v934 = vunpack.c.l.b16 %v328
    %v935 = vunpack.c.l.b16 %v329
    %v936 = vunpack.c.h.b16 %v329
    %v937 = vunpack.c.l.b16 %v330
    %v938 = vunpack.c.l.b16 %v331
    %v939 = vunpack.c.h.b16 %v331
    %v940 = vunpack.c.l.b16 %v332
    %v941 = vunpack.c.l.b16 %v333
    %v942 = vunpack.c.h.b16 %v333
    %v943 = vunpack.c.l.b16 %v334
    %v944 = vunpack.c.l.b16 %v335
    %v945 = vunpack.c.h.b16 %v335
    %v946 = vunpack.c.l.b16 %v336
    %v947 = vunpack.c.l.b16 %v337
    %v948 = vunpack.c.h.b16 %v337
    %v949 = vunpack.c.l.b16 %v338
    %v950 = vunpack.c.l.b16 %v339
    %v951 = vunpack.c.h.b16 %v339
    %v952 = vunpack.c.l.b16 %v340
    %v953 = vunpack.c.l.b16 %v341
    %v954 = vunpack.c.h.b16 %v341
    %v955 = vunpack.c.l.b16 %v342
    %v956 = vunpack.c.l.b16 %v343
    %v957 = vunpack.c.h.b16 %v343
    %v958 = vunpack.c.l.b16 %v344
    %v959 = vunpack.c.l.b16 %v345
    %v960 = vunpack.c.h.b16 %v345
    %v961 = vunpack.c.l.b16 %v346
    %v962 = vunpack.c.l.b16 %v347
    %v963 = vunpack.c.h.b16 %v347
    %v964 = vunpack.c.l.b16 %v348
    %v965 = vunpack.c.l.b16 %v349
    %v966 = vunpack.c.h.b16 %v349
    %v967 = vunpack.c.l.b16 %v350
    %v968 = vpack.c.b16 %v683, %v680
    %v969 = vpack.c.b16 %v684, %v681
    %v970 = vpack.c.b16 %v685, %v682
    %v971 = vpack.c.b16 %v689, %v686
    %v972 = vpack.c.b16 %v690, %v687
    %v973 = vpack.c.b16 %v691, %v688
    %v974 = vpack.c.b16 %v695, %v692
    %v975 = vpack.c.b16 %v696, %v693
    %v976 = vpack.c.b16 %v697, %v694
    %v977 = vpack.c.b16 %v701, %v698
    %v978 = vpack.c.b16 %v702, %v699
    %v979 = vpack.c.b16 %v703, %v700
    %v980 = vpack.c.b16 %v707, %v704
    %v981 = vpack.c.b16 %v708, %v705
    %v982 = vpack.c.b16 %v709, %v706
    %v983 = vpack.c.b16 %v713, %v710
    %v984 = vpack.c.b16 %v714, %v711
    %v985 = vpack.c.b16 %v715, %v712
    %v986 = vpack.c.b16 %v719, %v716
    %v987 = vpack.c.b16 %v720, %v717
    %v988 = vpack.c.b16 %v721, %v718
    %v989 = vpack.c.b16 %v725, %v722
    %v990 = vpack.c.b16 %v726, %v723
    %v991 = vpack.c.b16 %v727, %v724
    %v992 = vpack.c.b16 %v731, %v728
    %v993 = vpack.c.b16 %v732, %v729
    %v994 = vpack.c.b16 %v733, %v730
    %v995 = vpack.c.b16 %v737, %v734
    %v996 = vpack.c.b16 %v738, %v735
    %v997 = vpack.c.b16 %v739, %v736
    %v998 = vpack.c.b16 %v743, %v740
    %v999 = vpack.c.b16 %v744, %v741
    %v1000 = vpack.c.b16 %v745, %v742
    %v1001 = vpack.c.b16 %v749, %v746
    %v1002 = vpack.c.b16 %v750, %v747
    %v1003 = vpack.c.b16 %v751, %v748
    %v1004 = vpack.c.b16 %v755, %v752
    %v1005 = vpack.c.b16 %v756, %v753
    %v1006 = vpack.c.b16 %v757, %v754
    %v1007 = vpack.c.b16 %v761, %v758
    %v1008 = vpack.c.b16 %v762, %v759
    %v1009 = vpack.c.b16 %v763, %v760
    %v1010 = vpack.c.b16 %v767, %v764
    %v1011 = vpack.c.b16 %v768, %v765
    %v1012 = vpack.c.b16 %v769, %v766
    %v1013 = vpack.c.b16 %v773, %v770
    %v1014 = vpack.c.b16 %v774, %v771
    %v1015 = vpack.c.b16 %v775, %v772
    %v1016 = vpack.c.b16 %v779, %v776
    %v1017 = vpack.c.b16 %v780, %v777
    %v1018 = vpack.c.b16 %v781, %v778
    %v1019 = vpack.c.b16 %v785, %v782
    %v1020 = vpack.c.b16 %v786, %v783
    %v1021 = vpack.c.b16 %v787, %v784
    %v1022 = vpack.c.b16 %v791, %v788
    %v1023 = vpack.c.b16 %v792, %v789
    %v1024 = vpack.c.b16 %v793, %v790
    %v1025 = vpack.c.b16 %v797, %v794
    %v1026 = vpack.c.b16 %v798, %v795
    %v1027 = vpack.c.b16 %v799, %v796
    %v1028 = vpack.c.b16 %v803, %v800
    %v1029 = vpack.c.b16 %v804, %v801
    %v1030 = vpack.c.b16 %v805, %v802
    %v1031 = vpack.c.b16 %v809, %v806
    %v1032 = vpack.c.b16 %v810, %v807
    %v1033 = vpack.c.b16 %v811, %v808
    %v1034 = vpack.c.b16 %v815, %v812
    %v1035 = vpack.c.b16 %v816, %v813
    %v1036 = vpack.c.b16 %v817, %v814
    %v1037 = vpack.c.b16 %v821, %v818
    %v1038 = vpack.c.b16 %v822, %v819
    %v1039 = vpack.c.b16 %v823, %v820
    %v1040 = vpack.c.b16 %v827, %v824
    %v1041 = vpack.c.b16 %v828, %v825
    %v1042 = vpack.c.b16 %v829, %v826
    %v1043 = vpack.c.b16 %v833, %v830
    %v1044 = vpack.c.b16 %v834, %v831
    %v1045 = vpack.c.b16 %v835, %v832
    %v1046 = vpack.c.b16 %v839, %v836
    %v1047 = vpack.c.b16 %v840, %v837
    %v1048 = vpack.c.b16 %v841, %v838
    %v1049 = vpack.c.b16 %v845, %v842
    %v1050 = vpack.c.b16 %v846, %v843
    %v1051 = vpack.c.b16 %v847, %v844
    %v1052 = vpack.c.b16 %v851, %v848
    %v1053 = vpack.c.b16 %v852, %v849
    %v1054 = vpack.c.b16 %v853, %v850
    %v1055 = vpack.c.b16 %v857, %v854
    %v1056 = vpack.c.b16 %v858, %v855
    %v1057 = vpack.c.b16 %v859, %v856
    %v1058 = vpack.c.b16 %v863, %v860
    %v1059 = vpack.c.b16 %v864, %v861
    %v1060 = vpack.c.b16 %v865, %v862
    %v1061 = vpack.c.b16 %v869, %v866
    %v1062 = vpack.c.b16 %v870, %v867
    %v1063 = vpack.c.b16 %v871, %v868
    %v1064 = vpack.c.b16 %v875, %v872
    %v1065 = vpack.c.b16 %v876, %v873
    %v1066 = vpack.c.b16 %v877, %v874
    %v1067 = vpack.c.b16 %v881, %v878
    %v1068 = vpack.c.b16 %v882, %v879
    %v1069 = vpack.c.b16 %v883, %v880
    %v1070 = vpack.c.b16 %v887, %v884
    %v1071 = vpack.c.b16 %v888, %v885
    %v1072 = vpack.c.b16 %v889, %v886
    %v1073 = vpack.c.b16 %v893, %v890
    %v1074 = vpack.c.b16 %v894, %v891
    %v1075 = vpack.c.b16 %v895, %v892
    %v1076 = vpack.c.b16 %v899, %v896
    %v1077 = vpack.c.b16 %v900, %v897
    %v1078 = vpack.c.b16 %v901, %v898
    %v1079 = vpack.c.b16 %v905, %v902
    %v1080 = vpack.c.b16 %v906, %v903
    %v1081 = vpack.c.b16 %v907, %v904
    %v1082 = vpack.c.b16 %v911, %v908
    %v1083 = vpack.c.b16 %v912, %v909
    %v1084 = vpack.c.b16 %v913, %v910
    %v1085 = vpack.c.b16 %v917, %v914
    %v1086 = vpack.c.b16 %v918, %v915
    %v1087 = vpack.c.b16 %v919, %v916
    %v1088 = vpack.c.b16 %v923, %v920
    %v1089 = vpack.c.b16 %v924, %v921
    %v1090 = vpack.c.b16 %v925, %v922
    %v1091 = vpack.c.b16 %v929, %v926
    %v1092 = vpack.c.b16 %v930, %v927
    %v1093 = vpack.c.b16 %v931, %v928
    %v1094 = vpack.c.b16 %v935, %v932
    %v1095 = vpack.c.b16 %v936, %v933
    %v1096 = vpack.c.b16 %v937, %v934
    %v1097 = vpack.c.b16 %v941, %v938
    %v1098 = vpack.c.b16 %v942, %v939
    %v1099 = vpack.c.b16 %v943, %v940
    %v1100 = vpack.c.b16 %v947, %v944
    %v1101 = vpack.c.b16 %v948, %v945
    %v1102 = vpack.c.b16 %v949, %v946
    %v1103 = vpack.c.b16 %v953, %v950
    %v1104 = vpack.c.b16 %v954, %v951
    %v1105 = vpack.c.b16 %v955, %v952
    %v1106 = vpack.c.b16 %v959, %v956
    %v1107 = vpack.c.b16 %v960, %v957
    %v1108 = vpack.c.b16 %v961, %v958
    %v1109 = vpack.c.b16 %v965, %v962
    %v1110 = vpack.c.b16 %v966, %v963
    %v1111 = vpack.c.b16 %v967, %v964
    %1256 = vmatprep.subr.bf16.mxu0 %v969
    %1257 = vmatpush1.bf16.msra.mxu0 %v968
    %1258 = vmatprep.subr.bf16.mxu0 %v972
    %1259 = vmatpush1.bf16.msra.mxu0 %v971
    %1260 = vmatprep.subr.bf16.mxu0 %v975
    %1261 = vmatpush1.bf16.msra.mxu0 %v974
    %1262 = vmatprep.subr.bf16.mxu0 %v978
    %1263 = vmatpush1.bf16.msra.mxu0 %v977
    %1264 = vmatprep.subr.bf16.mxu0 %v981
    %1265 = vmatpush1.bf16.msra.mxu0 %v980
    %1266 = vmatprep.subr.bf16.mxu0 %v984
    %1267 = vmatpush1.bf16.msra.mxu0 %v983
    %1268 = vmatprep.subr.bf16.mxu0 %v987
    %1269 = vmatpush1.bf16.msra.mxu0 %v986
    %1270 = vmatprep.subr.bf16.mxu0 %v990
    %1271 = vmatpush1.bf16.msra.mxu0 %v989
    %1272 = vmatprep.subr.bf16.mxu0 %v993
    %1273 = vmatpush1.bf16.msra.mxu0 %v992
    %1274 = vmatprep.subr.bf16.mxu0 %v996
    %1275 = vmatpush1.bf16.msra.mxu0 %v995
    %1276 = vmatprep.subr.bf16.mxu0 %v999
    %1277 = vmatpush1.bf16.msra.mxu0 %v998
    %1278 = vmatprep.subr.bf16.mxu0 %v1002
    %1279 = vmatpush1.bf16.msra.mxu0 %v1001
    %1280 = vmatprep.subr.bf16.mxu0 %v1005
    %1281 = vmatpush1.bf16.msra.mxu0 %v1004
    %1282 = vmatprep.subr.bf16.mxu0 %v1008
    %1283 = vmatpush1.bf16.msra.mxu0 %v1007
    %1284 = vmatprep.subr.bf16.mxu0 %v1011
    %1285 = vmatpush1.bf16.msra.mxu0 %v1010
    %1286 = vmatprep.subr.bf16.mxu0 %v1014
    %1287 = vmatpush1.bf16.msra.mxu0 %v1013
    %1288 = vmatprep.mubr.bf16.mxu0 %v441
    %1289 = vmatmul.mubr.bf16.gmra.mrb[0].mxu0 %v440
    %v1290 = vpop.f32.mrb[0].mxu0
    %v1291 = vadd.f32 %v356, %v1290
    %v1292 = vpop.f32.mrb[0].mxu0
    %v1293 = vadd.f32 %v360, %v1292
    %v1294 = vpop.f32.mrb[0].mxu0
    %v1295 = vadd.f32 %v356, %v1294
    %v1296 = vpop.f32.mrb[0].mxu0
    %v1297 = vadd.f32 %v360, %v1296
    %1298 = vmatprep.mubr.bf16.mxu0 %v447
    %1299 = vmatmul.mubr.bf16.gmra.mrb[0].mxu0 %v446
    %v1300 = vpop.f32.mrb[0].mxu0
    %v1301 = vadd.f32 %v356, %v1300
    %v1302 = vpop.f32.mrb[0].mxu0
    %v1303 = vadd.f32 %v360, %v1302
    %v1304 = vpop.f32.mrb[0].mxu0
    %v1305 = vadd.f32 %v356, %v1304
    %v1306 = vpop.f32.mrb[0].mxu0
    %v1307 = vadd.f32 %v360, %v1306
    %1308 = vmatprep.mubr.bf16.mxu0 %v453
    %1309 = vmatmul.mubr.bf16.gmra.mrb[0].mxu0 %v452
    %v1310 = vpop.f32.mrb[0].mxu0
    %v1311 = vadd.f32 %v356, %v1310
    %v1312 = vpop.f32.mrb[0].mxu0
    %v1313 = vadd.f32 %v360, %v1312
    %v1314 = vpop.f32.mrb[0].mxu0
    %v1315 = vadd.f32 %v356, %v1314
    %v1316 = vpop.f32.mrb[0].mxu0
    %v1317 = vadd.f32 %v360, %v1316
    %1318 = vmatprep.mubr.bf16.mxu0 %v459
    %1319 = vmatmul.mubr.bf16.gmra.mrb[0].mxu0 %v458
    %v1320 = vpop.f32.mrb[0].mxu0
    %v1321 = vadd.f32 %v356, %v1320
    %v1322 = vpop.f32.mrb[0].mxu0
    %v1323 = vadd.f32 %v360, %v1322
    %v1324 = vpop.f32.mrb[0].mxu0
    %v1325 = vadd.f32 %v356, %v1324
    %v1326 = vpop.f32.mrb[0].mxu0
    %v1327 = vadd.f32 %v360, %v1326
    %1328 = vdwg.mxu0
    %1329 = vmatprep.subr.bf16.mxu0 %v1017
    %1330 = vmatpush1.bf16.msra.mxu0 %v1016
    %1331 = vmatprep.subr.bf16.mxu0 %v1020
    %1332 = vmatpush1.bf16.msra.mxu0 %v1019
    %1333 = vmatprep.subr.bf16.mxu0 %v1023
    %1334 = vmatpush1.bf16.msra.mxu0 %v1022
    %1335 = vmatprep.subr.bf16.mxu0 %v1026
    %1336 = vmatpush1.bf16.msra.mxu0 %v1025
    %1337 = vmatprep.subr.bf16.mxu0 %v1029
    %1338 = vmatpush1.bf16.msra.mxu0 %v1028
    %1339 = vmatprep.subr.bf16.mxu0 %v1032
    %1340 = vmatpush1.bf16.msra.mxu0 %v1031
    %1341 = vmatprep.subr.bf16.mxu0 %v1035
    %1342 = vmatpush1.bf16.msra.mxu0 %v1034
    %1343 = vmatprep.subr.bf16.mxu0 %v1038
    %1344 = vmatpush1.bf16.msra.mxu0 %v1037
    %1345 = vmatprep.subr.bf16.mxu0 %v1041
    %1346 = vmatpush1.bf16.msra.mxu0 %v1040
    %1347 = vmatprep.subr.bf16.mxu0 %v1044
    %1348 = vmatpush1.bf16.msra.mxu0 %v1043
    %1349 = vmatprep.subr.bf16.mxu0 %v1047
    %1350 = vmatpush1.bf16.msra.mxu0 %v1046
    %1351 = vmatprep.subr.bf16.mxu0 %v1050
    %1352 = vmatpush1.bf16.msra.mxu0 %v1049
    %1353 = vmatprep.subr.bf16.mxu0 %v1053
    %1354 = vmatpush1.bf16.msra.mxu0 %v1052
    %1355 = vmatprep.subr.bf16.mxu0 %v1056
    %1356 = vmatpush1.bf16.msra.mxu0 %v1055
    %1357 = vmatprep.subr.bf16.mxu0 %v1059
    %1358 = vmatpush1.bf16.msra.mxu0 %v1058
    %1359 = vmatprep.subr.bf16.mxu0 %v1062
    %1360 = vmatpush1.bf16.msra.mxu0 %v1061
    %1361 = vmatprep.mubr.bf16.mxu0 %v443
    %1362 = vmatmul.mubr.bf16.gmra.mrb[0].mxu0 %v442
    %v1363 = vpop.f32.mrb[0].mxu0
    %v1364 = vadd.f32 %v1291, %v1363
    %v1365 = vpop.f32.mrb[0].mxu0
    %v1366 = vadd.f32 %v1293, %v1365
    %v1367 = vpop.f32.mrb[0].mxu0
    %v1368 = vadd.f32 %v1295, %v1367
    %v1369 = vpop.f32.mrb[0].mxu0
    %v1370 = vadd.f32 %v1297, %v1369
    %1371 = vmatprep.mubr.bf16.mxu0 %v449
    %1372 = vmatmul.mubr.bf16.gmra.mrb[0].mxu0 %v448
    %v1373 = vpop.f32.mrb[0].mxu0
    %v1374 = vadd.f32 %v1301, %v1373
    %v1375 = vpop.f32.mrb[0].mxu0
    %v1376 = vadd.f32 %v1303, %v1375
    %v1377 = vpop.f32.mrb[0].mxu0
    %v1378 = vadd.f32 %v1305, %v1377
    %v1379 = vpop.f32.mrb[0].mxu0
    %v1380 = vadd.f32 %v1307, %v1379
    %1381 = vmatprep.mubr.bf16.mxu0 %v455
    %1382 = vmatmul.mubr.bf16.gmra.mrb[0].mxu0 %v454
    %v1383 = vpop.f32.mrb[0].mxu0
    %v1384 = vadd.f32 %v1311, %v1383
    %v1385 = vpop.f32.mrb[0].mxu0
    %v1386 = vadd.f32 %v1313, %v1385
    %v1387 = vpop.f32.mrb[0].mxu0
    %v1388 = vadd.f32 %v1315, %v1387
    %v1389 = vpop.f32.mrb[0].mxu0
    %v1390 = vadd.f32 %v1317, %v1389
    %1391 = vmatprep.mubr.bf16.mxu0 %v461
    %1392 = vmatmul.mubr.bf16.gmra.mrb[0].mxu0 %v460
    %v1393 = vpop.f32.mrb[0].mxu0
    %v1394 = vadd.f32 %v1321, %v1393
    %v1395 = vpop.f32.mrb[0].mxu0
    %v1396 = vadd.f32 %v1323, %v1395
    %v1397 = vpop.f32.mrb[0].mxu0
    %v1398 = vadd.f32 %v1325, %v1397
    %v1399 = vpop.f32.mrb[0].mxu0
    %v1400 = vadd.f32 %v1327, %v1399
    %1401 = vdwg.mxu0
    %1402 = vmatprep.subr.bf16.mxu0 %v1065
    %1403 = vmatpush1.bf16.msra.mxu0 %v1064
    %1404 = vmatprep.subr.bf16.mxu0 %v1068
    %1405 = vmatpush1.bf16.msra.mxu0 %v1067
    %1406 = vmatprep.subr.bf16.mxu0 %v1071
    %1407 = vmatpush1.bf16.msra.mxu0 %v1070
    %1408 = vmatprep.subr.bf16.mxu0 %v1074
    %1409 = vmatpush1.bf16.msra.mxu0 %v1073
    %1410 = vmatprep.subr.bf16.mxu0 %v1077
    %1411 = vmatpush1.bf16.msra.mxu0 %v1076
    %1412 = vmatprep.subr.bf16.mxu0 %v1080
    %1413 = vmatpush1.bf16.msra.mxu0 %v1079
    %1414 = vmatprep.subr.bf16.mxu0 %v1083
    %1415 = vmatpush1.bf16.msra.mxu0 %v1082
    %1416 = vmatprep.subr.bf16.mxu0 %v1086
    %1417 = vmatpush1.bf16.msra.mxu0 %v1085
    %1418 = vmatprep.subr.bf16.mxu0 %v1089
    %1419 = vmatpush1.bf16.msra.mxu0 %v1088
    %1420 = vmatprep.subr.bf16.mxu0 %v1092
    %1421 = vmatpush1.bf16.msra.mxu0 %v1091
    %1422 = vmatprep.subr.bf16.mxu0 %v1095
    %1423 = vmatpush1.bf16.msra.mxu0 %v1094
    %1424 = vmatprep.subr.bf16.mxu0 %v1098
    %1425 = vmatpush1.bf16.msra.mxu0 %v1097
    %1426 = vmatprep.subr.bf16.mxu0 %v1101
    %1427 = vmatpush1.bf16.msra.mxu0 %v1100
    %1428 = vmatprep.subr.bf16.mxu0 %v1104
    %1429 = vmatpush1.bf16.msra.mxu0 %v1103
    %1430 = vmatprep.subr.bf16.mxu0 %v1107
    %1431 = vmatpush1.bf16.msra.mxu0 %v1106
    %1432 = vmatprep.subr.bf16.mxu0 %v1110
    %1433 = vmatpush1.bf16.msra.mxu0 %v1109
    %1434 = vmatprep.mubr.bf16.mxu0 %v445
    %1435 = vmatmul.mubr.bf16.gmra.mrb[0].mxu0 %v444
    %v1436 = vpop.f32.mrb[0].mxu0
    %v1437 = vadd.f32 %v1364, %v1436
    %v1438 = vpop.f32.mrb[0].mxu0
    %v1439 = vadd.f32 %v1366, %v1438
    %v1440 = vpop.f32.mrb[0].mxu0
    %v1441 = vadd.f32 %v1368, %v1440
    %v1442 = vpop.f32.mrb[0].mxu0
    %v1443 = vadd.f32 %v1370, %v1442
    %1444 = vmatprep.mubr.bf16.mxu0 %v451
    %1445 = vmatmul.mubr.bf16.gmra.mrb[0].mxu0 %v450
    %v1446 = vpop.f32.mrb[0].mxu0
    %v1447 = vadd.f32 %v1374, %v1446
    %v1448 = vpop.f32.mrb[0].mxu0
    %v1449 = vadd.f32 %v1376, %v1448
    %v1450 = vpop.f32.mrb[0].mxu0
    %v1451 = vadd.f32 %v1378, %v1450
    %v1452 = vpop.f32.mrb[0].mxu0
    %v1453 = vadd.f32 %v1380, %v1452
    %1454 = vmatprep.mubr.bf16.mxu0 %v457
    %1455 = vmatmul.mubr.bf16.gmra.mrb[0].mxu0 %v456
    %v1456 = vpop.f32.mrb[0].mxu0
    %v1457 = vadd.f32 %v1384, %v1456
    %v1458 = vpop.f32.mrb[0].mxu0
    %v1459 = vadd.f32 %v1386, %v1458
    %v1460 = vpop.f32.mrb[0].mxu0
    %v1461 = vadd.f32 %v1388, %v1460
    %v1462 = vpop.f32.mrb[0].mxu0
    %v1463 = vadd.f32 %v1390, %v1462
    %1464 = vmatprep.mubr.bf16.mxu0 %v463
    %1465 = vmatmul.mubr.bf16.gmra.mrb[0].mxu0 %v462
    %v1466 = vpop.f32.mrb[0].mxu0
    %v1467 = vadd.f32 %v1394, %v1466
    %v1468 = vpop.f32.mrb[0].mxu0
    %v1469 = vadd.f32 %v1396, %v1468
    %v1470 = vpop.f32.mrb[0].mxu0
    %v1471 = vadd.f32 %v1398, %v1470
    %v1472 = vpop.f32.mrb[0].mxu0
    %v1473 = vadd.f32 %v1400, %v1472
    %1474 = vdwg.mxu0
    %1475 = vmatprep.subr.bf16.mxu0 0
    %1476 = vmatpush1.bf16.msra.mxu0 %v970
    %1477 = vmatprep.subr.bf16.mxu0 0
    %1478 = vmatpush1.bf16.msra.mxu0 %v973
    %1479 = vmatprep.subr.bf16.mxu0 0
    %1480 = vmatpush1.bf16.msra.mxu0 %v976
    %1481 = vmatprep.subr.bf16.mxu0 0
    %1482 = vmatpush1.bf16.msra.mxu0 %v979
    %1483 = vmatprep.subr.bf16.mxu0 0
    %1484 = vmatpush1.bf16.msra.mxu0 %v982
    %1485 = vmatprep.subr.bf16.mxu0 0
    %1486 = vmatpush1.bf16.msra.mxu0 %v985
    %1487 = vmatprep.subr.bf16.mxu0 0
    %1488 = vmatpush1.bf16.msra.mxu0 %v988
    %1489 = vmatprep.subr.bf16.mxu0 0
    %1490 = vmatpush1.bf16.msra.mxu0 %v991
    %1491 = vmatprep.subr.bf16.mxu0 0
    %1492 = vmatpush1.bf16.msra.mxu0 %v994
    %1493 = vmatprep.subr.bf16.mxu0 0
    %1494 = vmatpush1.bf16.msra.mxu0 %v997
    %1495 = vmatprep.subr.bf16.mxu0 0
    %1496 = vmatpush1.bf16.msra.mxu0 %v1000
    %1497 = vmatprep.subr.bf16.mxu0 0
    %1498 = vmatpush1.bf16.msra.mxu0 %v1003
    %1499 = vmatprep.subr.bf16.mxu0 0
    %1500 = vmatpush1.bf16.msra.mxu0 %v1006
    %1501 = vmatprep.subr.bf16.mxu0 0
    %1502 = vmatpush1.bf16.msra.mxu0 %v1009
    %1503 = vmatprep.subr.bf16.mxu0 0
    %1504 = vmatpush1.bf16.msra.mxu0 %v1012
    %1505 = vmatprep.subr.bf16.mxu0 0
    %1506 = vmatpush1.bf16.msra.mxu0 %v1015
    %1507 = vmatprep.mubr.bf16.mxu0 %v441
    %1508 = vmatmul.mubr.bf16.gmra.mrb[0].mxu0 %v440
    %v1509 = vpop.f32.mrb[0].mxu0
    %v1510 = vadd.f32 %v364, %v1509
    %v1511 = vpop.f32.mrb[0].mxu0
    %v1512 = vpop.f32.mrb[0].mxu0
    %v1513 = vadd.f32 %v364, %v1512
    %v1514 = vpop.f32.mrb[0].mxu0
    %1515 = vmatprep.mubr.bf16.mxu0 %v447
    %1516 = vmatmul.mubr.bf16.gmra.mrb[0].mxu0 %v446
    %v1517 = vpop.f32.mrb[0].mxu0
    %v1518 = vadd.f32 %v364, %v1517
    %v1519 = vpop.f32.mrb[0].mxu0
    %v1520 = vpop.f32.mrb[0].mxu0
    %v1521 = vadd.f32 %v364, %v1520
    %v1522 = vpop.f32.mrb[0].mxu0
    %1523 = vmatprep.mubr.bf16.mxu0 %v453
    %1524 = vmatmul.mubr.bf16.gmra.mrb[0].mxu0 %v452
    %v1525 = vpop.f32.mrb[0].mxu0
    %v1526 = vadd.f32 %v364, %v1525
    %v1527 = vpop.f32.mrb[0].mxu0
    %v1528 = vpop.f32.mrb[0].mxu0
    %v1529 = vadd.f32 %v364, %v1528
    %v1530 = vpop.f32.mrb[0].mxu0
    %1531 = vmatprep.mubr.bf16.mxu0 %v459
    %1532 = vmatmul.mubr.bf16.gmra.mrb[0].mxu0 %v458
    %v1533 = vpop.f32.mrb[0].mxu0
    %v1534 = vadd.f32 %v364, %v1533
    %v1535 = vpop.f32.mrb[0].mxu0
    %v1536 = vpop.f32.mrb[0].mxu0
    %v1537 = vadd.f32 %v364, %v1536
    %v1538 = vpop.f32.mrb[0].mxu0
    %1539 = vdwg.mxu0
    %1540 = vmatprep.subr.bf16.mxu0 0
    %1541 = vmatpush1.bf16.msra.mxu0 %v1018
    %1542 = vmatprep.subr.bf16.mxu0 0
    %1543 = vmatpush1.bf16.msra.mxu0 %v1021
    %1544 = vmatprep.subr.bf16.mxu0 0
    %1545 = vmatpush1.bf16.msra.mxu0 %v1024
    %1546 = vmatprep.subr.bf16.mxu0 0
    %1547 = vmatpush1.bf16.msra.mxu0 %v1027
    %1548 = vmatprep.subr.bf16.mxu0 0
    %1549 = vmatpush1.bf16.msra.mxu0 %v1030
    %1550 = vmatprep.subr.bf16.mxu0 0
    %1551 = vmatpush1.bf16.msra.mxu0 %v1033
    %1552 = vmatprep.subr.bf16.mxu0 0
    %1553 = vmatpush1.bf16.msra.mxu0 %v1036
    %1554 = vmatprep.subr.bf16.mxu0 0
    %1555 = vmatpush1.bf16.msra.mxu0 %v1039
    %1556 = vmatprep.subr.bf16.mxu0 0
    %1557 = vmatpush1.bf16.msra.mxu0 %v1042
    %1558 = vmatprep.subr.bf16.mxu0 0
    %1559 = vmatpush1.bf16.msra.mxu0 %v1045
    %1560 = vmatprep.subr.bf16.mxu0 0
    %1561 = vmatpush1.bf16.msra.mxu0 %v1048
    %1562 = vmatprep.subr.bf16.mxu0 0
    %1563 = vmatpush1.bf16.msra.mxu0 %v1051
    %1564 = vmatprep.subr.bf16.mxu0 0
    %1565 = vmatpush1.bf16.msra.mxu0 %v1054
    %1566 = vmatprep.subr.bf16.mxu0 0
    %1567 = vmatpush1.bf16.msra.mxu0 %v1057
    %1568 = vmatprep.subr.bf16.mxu0 0
    %1569 = vmatpush1.bf16.msra.mxu0 %v1060
    %1570 = vmatprep.subr.bf16.mxu0 0
    %1571 = vmatpush1.bf16.msra.mxu0 %v1063
    %1572 = vmatprep.mubr.bf16.mxu0 %v443
    %1573 = vmatmul.mubr.bf16.gmra.mrb[0].mxu0 %v442
    %v1574 = vpop.f32.mrb[0].mxu0
    %v1575 = vadd.f32 %v1510, %v1574
    %v1576 = vpop.f32.mrb[0].mxu0
    %v1577 = vpop.f32.mrb[0].mxu0
    %v1578 = vadd.f32 %v1513, %v1577
    %v1579 = vpop.f32.mrb[0].mxu0
    %1580 = vmatprep.mubr.bf16.mxu0 %v449
    %1581 = vmatmul.mubr.bf16.gmra.mrb[0].mxu0 %v448
    %v1582 = vpop.f32.mrb[0].mxu0
    %v1583 = vadd.f32 %v1518, %v1582
    %v1584 = vpop.f32.mrb[0].mxu0
    %v1585 = vpop.f32.mrb[0].mxu0
    %v1586 = vadd.f32 %v1521, %v1585
    %v1587 = vpop.f32.mrb[0].mxu0
    %1588 = vmatprep.mubr.bf16.mxu0 %v455
    %1589 = vmatmul.mubr.bf16.gmra.mrb[0].mxu0 %v454
    %v1590 = vpop.f32.mrb[0].mxu0
    %v1591 = vadd.f32 %v1526, %v1590
    %v1592 = vpop.f32.mrb[0].mxu0
    %v1593 = vpop.f32.mrb[0].mxu0
    %v1594 = vadd.f32 %v1529, %v1593
    %v1595 = vpop.f32.mrb[0].mxu0
    %1596 = vmatprep.mubr.bf16.mxu0 %v461
    %1597 = vmatmul.mubr.bf16.gmra.mrb[0].mxu0 %v460
    %v1598 = vpop.f32.mrb[0].mxu0
    %v1599 = vadd.f32 %v1534, %v1598
    %v1600 = vpop.f32.mrb[0].mxu0
    %v1601 = vpop.f32.mrb[0].mxu0
    %v1602 = vadd.f32 %v1537, %v1601
    %v1603 = vpop.f32.mrb[0].mxu0
    %1604 = vdwg.mxu0
    %1605 = vmatprep.subr.bf16.mxu0 0
    %1606 = vmatpush1.bf16.msra.mxu0 %v1066
    %1607 = vmatprep.subr.bf16.mxu0 0
    %1608 = vmatpush1.bf16.msra.mxu0 %v1069
    %1609 = vmatprep.subr.bf16.mxu0 0
    %1610 = vmatpush1.bf16.msra.mxu0 %v1072
    %1611 = vmatprep.subr.bf16.mxu0 0
    %1612 = vmatpush1.bf16.msra.mxu0 %v1075
    %1613 = vmatprep.subr.bf16.mxu0 0
    %1614 = vmatpush1.bf16.msra.mxu0 %v1078
    %1615 = vmatprep.subr.bf16.mxu0 0
    %1616 = vmatpush1.bf16.msra.mxu0 %v1081
    %1617 = vmatprep.subr.bf16.mxu0 0
    %1618 = vmatpush1.bf16.msra.mxu0 %v1084
    %1619 = vmatprep.subr.bf16.mxu0 0
    %1620 = vmatpush1.bf16.msra.mxu0 %v1087
    %1621 = vmatprep.subr.bf16.mxu0 0
    %1622 = vmatpush1.bf16.msra.mxu0 %v1090
    %1623 = vmatprep.subr.bf16.mxu0 0
    %1624 = vmatpush1.bf16.msra.mxu0 %v1093
    %1625 = vmatprep.subr.bf16.mxu0 0
    %1626 = vmatpush1.bf16.msra.mxu0 %v1096
    %1627 = vmatprep.subr.bf16.mxu0 0
    %1628 = vmatpush1.bf16.msra.mxu0 %v1099
    %1629 = vmatprep.subr.bf16.mxu0 0
    %1630 = vmatpush1.bf16.msra.mxu0 %v1102
    %1631 = vmatprep.subr.bf16.mxu0 0
    %1632 = vmatpush1.bf16.msra.mxu0 %v1105
    %1633 = vmatprep.subr.bf16.mxu0 0
    %1634 = vmatpush1.bf16.msra.mxu0 %v1108
    %1635 = vmatprep.subr.bf16.mxu0 0
    %1636 = vmatpush1.bf16.msra.mxu0 %v1111
    %1637 = vmatprep.mubr.bf16.mxu0 %v445
    %1638 = vmatmul.mubr.bf16.gmra.mrb[0].mxu0 %v444
    %v1639 = vpop.f32.mrb[0].mxu0
    %v1640 = vadd.f32 %v1575, %v1639
    %v1641 = vpop.f32.mrb[0].mxu0
    %v1642 = vpop.f32.mrb[0].mxu0
    %v1643 = vadd.f32 %v1578, %v1642
    %v1644 = vpop.f32.mrb[0].mxu0
    %1645 = vmatprep.mubr.bf16.mxu0 %v451
    %1646 = vmatmul.mubr.bf16.gmra.mrb[0].mxu0 %v450
    %v1647 = vpop.f32.mrb[0].mxu0
    %v1648 = vadd.f32 %v1583, %v1647
    %v1649 = vpop.f32.mrb[0].mxu0
    %v1650 = vpop.f32.mrb[0].mxu0
    %v1651 = vadd.f32 %v1586, %v1650
    %v1652 = vpop.f32.mrb[0].mxu0
    %1653 = vmatprep.mubr.bf16.mxu0 %v457
    %1654 = vmatmul.mubr.bf16.gmra.mrb[0].mxu0 %v456
    %v1655 = vpop.f32.mrb[0].mxu0
    %v1656 = vadd.f32 %v1591, %v1655
    %v1657 = vpop.f32.mrb[0].mxu0
    %v1658 = vpop.f32.mrb[0].mxu0
    %v1659 = vadd.f32 %v1594, %v1658
    %v1660 = vpop.f32.mrb[0].mxu0
    %1661 = vmatprep.mubr.bf16.mxu0 %v463
    %1662 = vmatmul.mubr.bf16.gmra.mrb[0].mxu0 %v462
    %v1663 = vpop.f32.mrb[0].mxu0
    %v1664 = vadd.f32 %v1599, %v1663
    %v1665 = vpop.f32.mrb[0].mxu0
    %v1666 = vpop.f32.mrb[0].mxu0
    %v1667 = vadd.f32 %v1602, %v1666
    %v1668 = vpop.f32.mrb[0].mxu0
    %1669 = vdwg.mxu0
    %v1670 = vld [vmem:[#allocation8] sm:$0xff]
    %v1671 = vld [vmem:[#allocation8 + $0x8] sm:$0xff]
    %v1672 = vld [vmem:[#allocation8 + $0x10] sm:$0xff]
    %v1673 = vld [vmem:[#allocation8 + $0x18] sm:$0xff]
    %v1674 = vld [vmem:[#allocation8 + $0x20] sm:$0xff]
    %v1675 = vld [vmem:[#allocation8 + $0x28] sm:$0xff]
    %v1676 = vld [vmem:[#allocation8 + $0x30] sm:$0xff]
    %v1677 = vld [vmem:[#allocation8 + $0x38] sm:$0xff]
    %v1678 = vld [vmem:[#allocation8 + $0x40] sm:$0xff]
    %v1679 = vld [vmem:[#allocation8 + $0x48] sm:$0xff]
    %v1680 = vld [vmem:[#allocation8 + $0x50] sm:$0xff]
    %v1681 = vld [vmem:[#allocation8 + $0x58] sm:$0xff]
    %v1682 = vld [vmem:[#allocation8 + $0x60] sm:$0xff]
    %v1683 = vld [vmem:[#allocation8 + $0x68] sm:$0xff]
    %v1684 = vld [vmem:[#allocation8 + $0x70] sm:$0xff]
    %v1685 = vld [vmem:[#allocation8 + $0x78] sm:$0xff]
    %v1686 = vld [vmem:[#allocation8 + $0x80] sm:$0xff]
    %v1687 = vld [vmem:[#allocation8 + $0x88] sm:$0xff]
    %v1688 = vld [vmem:[#allocation8 + $0x90] sm:$0xff]
    %v1689 = vld [vmem:[#allocation8 + $0x98] sm:$0xff]
    %v1690 = vld [vmem:[#allocation8 + $0xa0] sm:$0xff]
    %v1691 = vld [vmem:[#allocation8 + $0xa8] sm:$0xff]
    %v1692 = vld [vmem:[#allocation8 + $0xb0] sm:$0xff]
    %v1693 = vld [vmem:[#allocation8 + $0xb8] sm:$0xff]
    %v1694 = vld [vmem:[#allocation8 + $0xc0] sm:$0xff]
    %v1695 = vld [vmem:[#allocation8 + $0xc8] sm:$0xff]
    %v1696 = vld [vmem:[#allocation8 + $0xd0] sm:$0xff]
    %v1697 = vld [vmem:[#allocation8 + $0xd8] sm:$0xff]
    %v1698 = vld [vmem:[#allocation8 + $0xe0] sm:$0xff]
    %v1699 = vld [vmem:[#allocation8 + $0xe8] sm:$0xff]
    %v1700 = vld [vmem:[#allocation8 + $0xf0] sm:$0xff]
    %v1701 = vld [vmem:[#allocation8 + $0xf8] sm:$0xff]
    %v1702 = vld [vmem:[#allocation8 + $0x100] sm:$0xff]
    %v1703 = vld [vmem:[#allocation8 + $0x108] sm:$0xff]
    %v1704 = vld [vmem:[#allocation8 + $0x110] sm:$0xff]
    %v1705 = vld [vmem:[#allocation8 + $0x118] sm:$0xff]
    %v1706 = vld [vmem:[#allocation8 + $0x120] sm:$0xff]
    %v1707 = vld [vmem:[#allocation8 + $0x128] sm:$0xff]
    %v1708 = vld [vmem:[#allocation8 + $0x130] sm:$0xff]
    %v1709 = vld [vmem:[#allocation8 + $0x138] sm:$0xff]
    %v1710 = vld [vmem:[#allocation8 + $0x140] sm:$0xff]
    %v1711 = vld [vmem:[#allocation8 + $0x148] sm:$0xff]
    %v1712 = vld [vmem:[#allocation8 + $0x150] sm:$0xff]
    %v1713 = vld [vmem:[#allocation8 + $0x158] sm:$0xff]
    %v1714 = vld [vmem:[#allocation8 + $0x160] sm:$0xff]
    %v1715 = vld [vmem:[#allocation8 + $0x168] sm:$0xff]
    %v1716 = vld [vmem:[#allocation8 + $0x170] sm:$0xff]
    %v1717 = vld [vmem:[#allocation8 + $0x178] sm:$0xff]
    %v1718 = vld [vmem:[%s7] sm:$0x1]
    %v1720 = vlaneseq
    %v1721 = vshrl.u32 %v1720, 7
    %v1722 = vsub.s32 0, %v1721
    %v1723 = vrot.slane %v1718, %v1722
    %v1725 = vld [vmem:[%s2] sm:$0xff]
    %1726 = vset.pattern.permute.xlu0 0
    %1727 = vperm.xlu0 %1726, %v1725
    %v1728 = vpop.permute.xlu0 %1727
    %1729 = vmatprep.subr.mxu0 %v1671
    %1730 = vmatpush1.msra.mxu0 %v1670
    %1731 = vmatprep.subr.mxu0 %v1674
    %1732 = vmatpush1.msra.mxu0 %v1673
    %1733 = vmatprep.subr.mxu0 %v1677
    %1734 = vmatpush1.msra.mxu0 %v1676
    %1735 = vmatprep.subr.mxu0 %v1680
    %1736 = vmatpush1.msra.mxu0 %v1679
    %1737 = vmatprep.subr.mxu0 %v1683
    %1738 = vmatpush1.msra.mxu0 %v1682
    %1739 = vmatprep.subr.mxu0 %v1686
    %1740 = vmatpush1.msra.mxu0 %v1685
    %1741 = vmatprep.subr.mxu0 %v1689
    %1742 = vmatpush1.msra.mxu0 %v1688
    %1743 = vmatprep.subr.mxu0 %v1692
    %1744 = vmatpush1.msra.mxu0 %v1691
    %1745 = vmatprep.subr.mxu0 %v1695
    %1746 = vmatpush1.msra.mxu0 %v1694
    %1747 = vmatprep.subr.mxu0 %v1698
    %1748 = vmatpush1.msra.mxu0 %v1697
    %1749 = vmatprep.subr.mxu0 %v1701
    %1750 = vmatpush1.msra.mxu0 %v1700
    %1751 = vmatprep.subr.mxu0 %v1704
    %1752 = vmatpush1.msra.mxu0 %v1703
    %1753 = vmatprep.subr.mxu0 %v1707
    %1754 = vmatpush1.msra.mxu0 %v1706
    %1755 = vmatprep.subr.mxu0 %v1710
    %1756 = vmatpush1.msra.mxu0 %v1709
    %1757 = vmatprep.subr.mxu0 %v1713
    %1758 = vmatpush1.msra.mxu0 %v1712
    %1759 = vmatprep.subr.mxu0 %v1716
    %1760 = vmatpush1.msra.mxu0 %v1715
    %1761 = vmatprep.subr.mxu0 0.0
    %1762 = vmatpush1.msra.mxu0 0.0
    %1763 = vmatprep.subr.mxu0 0.0
    %1764 = vmatpush1.msra.mxu0 0.0
    %1765 = vmatprep.subr.mxu0 0.0
    %1766 = vmatpush1.msra.mxu0 0.0
    %1767 = vmatprep.subr.mxu0 0.0
    %1768 = vmatpush1.msra.mxu0 0.0
    %1769 = vmatprep.subr.mxu0 0.0
    %1770 = vmatpush1.msra.mxu0 0.0
    %1771 = vmatprep.subr.mxu0 0.0
    %1772 = vmatpush1.msra.mxu0 0.0
    %1773 = vmatprep.subr.mxu0 0.0
    %1774 = vmatpush1.msra.mxu0 0.0
    %1775 = vmatprep.subr.mxu0 0.0
    %1776 = vmatpush1.msra.mxu0 0.0
    %1777 = vmatprep.subr.mxu0 0.0
    %1778 = vmatpush1.msra.mxu0 0.0
    %1779 = vmatprep.subr.mxu0 0.0
    %1780 = vmatpush1.msra.mxu0 0.0
    %1781 = vmatprep.subr.mxu0 0.0
    %1782 = vmatpush1.msra.mxu0 0.0
    %1783 = vmatprep.subr.mxu0 0.0
    %1784 = vmatpush1.msra.mxu0 0.0
    %1785 = vmatprep.subr.mxu0 0.0
    %1786 = vmatpush1.msra.mxu0 0.0
    %1787 = vmatprep.subr.mxu0 0.0
    %1788 = vmatpush1.msra.mxu0 0.0
    %1789 = vmatprep.subr.mxu0 0.0
    %1790 = vmatpush1.msra.mxu0 0.0
    %1791 = vmatprep.subr.mxu0 0.0
    %1792 = vmatpush1.msra.mxu0 0.0
    %1793 = vmatprep.mubr.f32.mxu0 0.0
    %1794 = vmatmul.mubr.f32.gmra.mrb[0].mxu0 0.0
    %v1795 = vpop.f32.mrb[0].mxu0
    %v1796 = vadd.f32 0.0, %v1795
    %v1797 = vpop.f32.mrb[0].mxu0
    %v1798 = vadd.f32 0.0, %v1797
    %1799 = vdwg.mxu0
    %1800 = vmatprep.subr.mxu0 0.0
    %1801 = vmatpush1.msra.mxu0 %v1672
    %1802 = vmatprep.subr.mxu0 0.0
    %1803 = vmatpush1.msra.mxu0 %v1675
    %1804 = vmatprep.subr.mxu0 0.0
    %1805 = vmatpush1.msra.mxu0 %v1678
    %1806 = vmatprep.subr.mxu0 0.0
    %1807 = vmatpush1.msra.mxu0 %v1681
    %1808 = vmatprep.subr.mxu0 0.0
    %1809 = vmatpush1.msra.mxu0 %v1684
    %1810 = vmatprep.subr.mxu0 0.0
    %1811 = vmatpush1.msra.mxu0 %v1687
    %1812 = vmatprep.subr.mxu0 0.0
    %1813 = vmatpush1.msra.mxu0 %v1690
    %1814 = vmatprep.subr.mxu0 0.0
    %1815 = vmatpush1.msra.mxu0 %v1693
    %1816 = vmatprep.subr.mxu0 0.0
    %1817 = vmatpush1.msra.mxu0 %v1696
    %1818 = vmatprep.subr.mxu0 0.0
    %1819 = vmatpush1.msra.mxu0 %v1699
    %1820 = vmatprep.subr.mxu0 0.0
    %1821 = vmatpush1.msra.mxu0 %v1702
    %1822 = vmatprep.subr.mxu0 0.0
    %1823 = vmatpush1.msra.mxu0 %v1705
    %1824 = vmatprep.subr.mxu0 0.0
    %1825 = vmatpush1.msra.mxu0 %v1708
    %1826 = vmatprep.subr.mxu0 0.0
    %1827 = vmatpush1.msra.mxu0 %v1711
    %1828 = vmatprep.subr.mxu0 0.0
    %1829 = vmatpush1.msra.mxu0 %v1714
    %1830 = vmatprep.subr.mxu0 0.0
    %1831 = vmatpush1.msra.mxu0 %v1717
    %1832 = vmatprep.subr.mxu0 0.0
    %1833 = vmatpush1.msra.mxu0 0.0
    %1834 = vmatprep.subr.mxu0 0.0
    %1835 = vmatpush1.msra.mxu0 0.0
    %1836 = vmatprep.subr.mxu0 0.0
    %1837 = vmatpush1.msra.mxu0 0.0
    %1838 = vmatprep.subr.mxu0 0.0
    %1839 = vmatpush1.msra.mxu0 0.0
    %1840 = vmatprep.subr.mxu0 0.0
    %1841 = vmatpush1.msra.mxu0 0.0
    %1842 = vmatprep.subr.mxu0 0.0
    %1843 = vmatpush1.msra.mxu0 0.0
    %1844 = vmatprep.subr.mxu0 0.0
    %1845 = vmatpush1.msra.mxu0 0.0
    %1846 = vmatprep.subr.mxu0 0.0
    %1847 = vmatpush1.msra.mxu0 0.0
    %1848 = vmatprep.subr.mxu0 0.0
    %1849 = vmatpush1.msra.mxu0 0.0
    %1850 = vmatprep.subr.mxu0 0.0
    %1851 = vmatpush1.msra.mxu0 0.0
    %1852 = vmatprep.subr.mxu0 0.0
    %1853 = vmatpush1.msra.mxu0 0.0
    %1854 = vmatprep.subr.mxu0 0.0
    %1855 = vmatpush1.msra.mxu0 0.0
    %1856 = vmatprep.subr.mxu0 0.0
    %1857 = vmatpush1.msra.mxu0 0.0
    %1858 = vmatprep.subr.mxu0 0.0
    %1859 = vmatpush1.msra.mxu0 0.0
    %1860 = vmatprep.subr.mxu0 0.0
    %1861 = vmatpush1.msra.mxu0 0.0
    %1862 = vmatprep.subr.mxu0 0.0
    %1863 = vmatpush1.msra.mxu0 0.0
    %1864 = vmatprep.mubr.f32.mxu0 0.0
    %1865 = vmatmul.mubr.f32.gmra.mrb[0].mxu0 0.0
    %v1866 = vpop.f32.mrb[0].mxu0
    %v1867 = vadd.f32 0.0, %v1866
    %v1868 = vpop.f32.mrb[0].mxu0
    %1869 = vdwg.mxu0
    %v1870 = vadd.f32 %v1437, %v1796
    %v1871 = vxor.u32 %v1870, 2147483648
    %v1872 = vmul.f32 %v1871, 1.442695
    %v1873 = vpow.pop %v1872
    %v1874 = vadd.f32 %v1873, 1.0
    %v1875 = vrcp.pop %v1874
    %v1876 = vmul.f32 1.0, %v1875
    %v1877 = vadd.f32 %v1439, %v1798
    %v1878 = vxor.u32 %v1877, 2147483648
    %v1879 = vmul.f32 %v1878, 1.442695
    %v1880 = vpow.pop %v1879
    %v1881 = vadd.f32 %v1880, 1.0
    %v1882 = vrcp.pop %v1881
    %v1883 = vmul.f32 1.0, %v1882
    %v1884 = vadd.f32 %v1867, %v1723
    %v1885 = vmul.f32 %v1876, %v1884
    %v1886 = vadd.f32 %v1640, %v1885
    %v1887 = vtanh.pop %v1886
    %v1888 = vsub.f32 1.0, %v1883
    %v1889 = vmul.f32 %v1888, %v1887
    %v1890 = vmul.f32 %v1883, 0.0
    %v1891 = vadd.f32 %v1889, %v1890
    %vm1892 = vcmp.eq.s32.totalorder %v1728, 0
    %v1893 = vsel %vm1892, %v1891, 0.0
    %1894 = vmatprep.subr.mxu0 %v1671
    %1895 = vmatpush1.msra.mxu0 %v1670
    %1896 = vmatprep.subr.mxu0 %v1674
    %1897 = vmatpush1.msra.mxu0 %v1673
    %1898 = vmatprep.subr.mxu0 %v1677
    %1899 = vmatpush1.msra.mxu0 %v1676
    %1900 = vmatprep.subr.mxu0 %v1680
    %1901 = vmatpush1.msra.mxu0 %v1679
    %1902 = vmatprep.subr.mxu0 %v1683
    %1903 = vmatpush1.msra.mxu0 %v1682
    %1904 = vmatprep.subr.mxu0 %v1686
    %1905 = vmatpush1.msra.mxu0 %v1685
    %1906 = vmatprep.subr.mxu0 %v1689
    %1907 = vmatpush1.msra.mxu0 %v1688
    %1908 = vmatprep.subr.mxu0 %v1692
    %1909 = vmatpush1.msra.mxu0 %v1691
    %1910 = vmatprep.subr.mxu0 %v1695
    %1911 = vmatpush1.msra.mxu0 %v1694
    %1912 = vmatprep.subr.mxu0 %v1698
    %1913 = vmatpush1.msra.mxu0 %v1697
    %1914 = vmatprep.subr.mxu0 %v1701
    %1915 = vmatpush1.msra.mxu0 %v1700
    %1916 = vmatprep.subr.mxu0 %v1704
    %1917 = vmatpush1.msra.mxu0 %v1703
    %1918 = vmatprep.subr.mxu0 %v1707
    %1919 = vmatpush1.msra.mxu0 %v1706
    %1920 = vmatprep.subr.mxu0 %v1710
    %1921 = vmatpush1.msra.mxu0 %v1709
    %1922 = vmatprep.subr.mxu0 %v1713
    %1923 = vmatpush1.msra.mxu0 %v1712
    %1924 = vmatprep.subr.mxu0 %v1716
    %1925 = vmatpush1.msra.mxu0 %v1715
    %1926 = vmatprep.subr.mxu0 0.0
    %1927 = vmatpush1.msra.mxu0 0.0
    %1928 = vmatprep.subr.mxu0 0.0
    %1929 = vmatpush1.msra.mxu0 0.0
    %1930 = vmatprep.subr.mxu0 0.0
    %1931 = vmatpush1.msra.mxu0 0.0
    %1932 = vmatprep.subr.mxu0 0.0
    %1933 = vmatpush1.msra.mxu0 0.0
    %1934 = vmatprep.subr.mxu0 0.0
    %1935 = vmatpush1.msra.mxu0 0.0
    %1936 = vmatprep.subr.mxu0 0.0
    %1937 = vmatpush1.msra.mxu0 0.0
    %1938 = vmatprep.subr.mxu0 0.0
    %1939 = vmatpush1.msra.mxu0 0.0
    %1940 = vmatprep.subr.mxu0 0.0
    %1941 = vmatpush1.msra.mxu0 0.0
    %1942 = vmatprep.subr.mxu0 0.0
    %1943 = vmatpush1.msra.mxu0 0.0
    %1944 = vmatprep.subr.mxu0 0.0
    %1945 = vmatpush1.msra.mxu0 0.0
    %1946 = vmatprep.subr.mxu0 0.0
    %1947 = vmatpush1.msra.mxu0 0.0
    %1948 = vmatprep.subr.mxu0 0.0
    %1949 = vmatpush1.msra.mxu0 0.0
    %1950 = vmatprep.subr.mxu0 0.0
    %1951 = vmatpush1.msra.mxu0 0.0
    %1952 = vmatprep.subr.mxu0 0.0
    %1953 = vmatpush1.msra.mxu0 0.0
    %1954 = vmatprep.subr.mxu0 0.0
    %1955 = vmatpush1.msra.mxu0 0.0
    %1956 = vmatprep.subr.mxu0 0.0
    %1957 = vmatpush1.msra.mxu0 0.0
    %1958 = vmatprep.mubr.f32.mxu0 0.0
    %1959 = vmatmul.mubr.f32.gmra.mrb[0].mxu0 %v1891
    %v1960 = vpop.f32.mrb[0].mxu0
    %v1961 = vadd.f32 0.0, %v1960
    %v1962 = vpop.f32.mrb[0].mxu0
    %v1963 = vadd.f32 0.0, %v1962
    %1964 = vdwg.mxu0
    %1965 = vmatprep.subr.mxu0 0.0
    %1966 = vmatpush1.msra.mxu0 %v1672
    %1967 = vmatprep.subr.mxu0 0.0
    %1968 = vmatpush1.msra.mxu0 %v1675
    %1969 = vmatprep.subr.mxu0 0.0
    %1970 = vmatpush1.msra.mxu0 %v1678
    %1971 = vmatprep.subr.mxu0 0.0
    %1972 = vmatpush1.msra.mxu0 %v1681
    %1973 = vmatprep.subr.mxu0 0.0
    %1974 = vmatpush1.msra.mxu0 %v1684
    %1975 = vmatprep.subr.mxu0 0.0
    %1976 = vmatpush1.msra.mxu0 %v1687
    %1977 = vmatprep.subr.mxu0 0.0
    %1978 = vmatpush1.msra.mxu0 %v1690
    %1979 = vmatprep.subr.mxu0 0.0
    %1980 = vmatpush1.msra.mxu0 %v1693
    %1981 = vmatprep.subr.mxu0 0.0
    %1982 = vmatpush1.msra.mxu0 %v1696
    %1983 = vmatprep.subr.mxu0 0.0
    %1984 = vmatpush1.msra.mxu0 %v1699
    %1985 = vmatprep.subr.mxu0 0.0
    %1986 = vmatpush1.msra.mxu0 %v1702
    %1987 = vmatprep.subr.mxu0 0.0
    %1988 = vmatpush1.msra.mxu0 %v1705
    %1989 = vmatprep.subr.mxu0 0.0
    %1990 = vmatpush1.msra.mxu0 %v1708
    %1991 = vmatprep.subr.mxu0 0.0
    %1992 = vmatpush1.msra.mxu0 %v1711
    %1993 = vmatprep.subr.mxu0 0.0
    %1994 = vmatpush1.msra.mxu0 %v1714
    %1995 = vmatprep.subr.mxu0 0.0
    %1996 = vmatpush1.msra.mxu0 %v1717
    %1997 = vmatprep.subr.mxu0 0.0
    %1998 = vmatpush1.msra.mxu0 0.0
    %1999 = vmatprep.subr.mxu0 0.0
    %2000 = vmatpush1.msra.mxu0 0.0
    %2001 = vmatprep.subr.mxu0 0.0
    %2002 = vmatpush1.msra.mxu0 0.0
    %2003 = vmatprep.subr.mxu0 0.0
    %2004 = vmatpush1.msra.mxu0 0.0
    %2005 = vmatprep.subr.mxu0 0.0
    %2006 = vmatpush1.msra.mxu0 0.0
    %2007 = vmatprep.subr.mxu0 0.0
    %2008 = vmatpush1.msra.mxu0 0.0
    %2009 = vmatprep.subr.mxu0 0.0
    %2010 = vmatpush1.msra.mxu0 0.0
    %2011 = vmatprep.subr.mxu0 0.0
    %2012 = vmatpush1.msra.mxu0 0.0
    %2013 = vmatprep.subr.mxu0 0.0
    %2014 = vmatpush1.msra.mxu0 0.0
    %2015 = vmatprep.subr.mxu0 0.0
    %2016 = vmatpush1.msra.mxu0 0.0
    %2017 = vmatprep.subr.mxu0 0.0
    %2018 = vmatpush1.msra.mxu0 0.0
    %2019 = vmatprep.subr.mxu0 0.0
    %2020 = vmatpush1.msra.mxu0 0.0
    %2021 = vmatprep.subr.mxu0 0.0
    %2022 = vmatpush1.msra.mxu0 0.0
    %2023 = vmatprep.subr.mxu0 0.0
    %2024 = vmatpush1.msra.mxu0 0.0
    %2025 = vmatprep.subr.mxu0 0.0
    %2026 = vmatpush1.msra.mxu0 0.0
    %2027 = vmatprep.subr.mxu0 0.0
    %2028 = vmatpush1.msra.mxu0 0.0
    %2029 = vmatprep.mubr.f32.mxu0 0.0
    %2030 = vmatmul.mubr.f32.gmra.mrb[0].mxu0 %v1891
    %v2031 = vpop.f32.mrb[0].mxu0
    %v2032 = vadd.f32 0.0, %v2031
    %v2033 = vpop.f32.mrb[0].mxu0
    %2034 = vdwg.mxu0
    %v2035 = vadd.f32 %v1441, %v1961
    %v2036 = vxor.u32 %v2035, 2147483648
    %v2037 = vmul.f32 %v2036, 1.442695
    %v2038 = vpow.pop %v2037
    %v2039 = vadd.f32 %v2038, 1.0
    %v2040 = vrcp.pop %v2039
    %v2041 = vmul.f32 1.0, %v2040
    %v2042 = vadd.f32 %v1443, %v1963
    %v2043 = vxor.u32 %v2042, 2147483648
    %v2044 = vmul.f32 %v2043, 1.442695
    %v2045 = vpow.pop %v2044
    %v2046 = vadd.f32 %v2045, 1.0
    %v2047 = vrcp.pop %v2046
    %v2048 = vmul.f32 1.0, %v2047
    %v2049 = vadd.f32 %v2032, %v1723
    %v2050 = vmul.f32 %v2041, %v2049
    %v2051 = vadd.f32 %v1643, %v2050
    %v2052 = vtanh.pop %v2051
    %v2053 = vsub.f32 1.0, %v2048
    %v2054 = vmul.f32 %v2053, %v2052
    %v2055 = vmul.f32 %v2048, %v1891
    %v2056 = vadd.f32 %v2054, %v2055
    %vm2057 = vcmp.eq.s32.totalorder %v1728, 1
    %v2058 = vsel %vm2057, %v2056, %v1893
    %2059 = vmatprep.subr.mxu0 %v1671
    %2060 = vmatpush1.msra.mxu0 %v1670
    %2061 = vmatprep.subr.mxu0 %v1674
    %2062 = vmatpush1.msra.mxu0 %v1673
    %2063 = vmatprep.subr.mxu0 %v1677
    %2064 = vmatpush1.msra.mxu0 %v1676
    %2065 = vmatprep.subr.mxu0 %v1680
    %2066 = vmatpush1.msra.mxu0 %v1679
    %2067 = vmatprep.subr.mxu0 %v1683
    %2068 = vmatpush1.msra.mxu0 %v1682
    %2069 = vmatprep.subr.mxu0 %v1686
    %2070 = vmatpush1.msra.mxu0 %v1685
    %2071 = vmatprep.subr.mxu0 %v1689
    %2072 = vmatpush1.msra.mxu0 %v1688
    %2073 = vmatprep.subr.mxu0 %v1692
    %2074 = vmatpush1.msra.mxu0 %v1691
    %2075 = vmatprep.subr.mxu0 %v1695
    %2076 = vmatpush1.msra.mxu0 %v1694
    %2077 = vmatprep.subr.mxu0 %v1698
    %2078 = vmatpush1.msra.mxu0 %v1697
    %2079 = vmatprep.subr.mxu0 %v1701
    %2080 = vmatpush1.msra.mxu0 %v1700
    %2081 = vmatprep.subr.mxu0 %v1704
    %2082 = vmatpush1.msra.mxu0 %v1703
    %2083 = vmatprep.subr.mxu0 %v1707
    %2084 = vmatpush1.msra.mxu0 %v1706
    %2085 = vmatprep.subr.mxu0 %v1710
    %2086 = vmatpush1.msra.mxu0 %v1709
    %2087 = vmatprep.subr.mxu0 %v1713
    %2088 = vmatpush1.msra.mxu0 %v1712
    %2089 = vmatprep.subr.mxu0 %v1716
    %2090 = vmatpush1.msra.mxu0 %v1715
    %2091 = vmatprep.subr.mxu0 0.0
    %2092 = vmatpush1.msra.mxu0 0.0
    %2093 = vmatprep.subr.mxu0 0.0
    %2094 = vmatpush1.msra.mxu0 0.0
    %2095 = vmatprep.subr.mxu0 0.0
    %2096 = vmatpush1.msra.mxu0 0.0
    %2097 = vmatprep.subr.mxu0 0.0
    %2098 = vmatpush1.msra.mxu0 0.0
    %2099 = vmatprep.subr.mxu0 0.0
    %2100 = vmatpush1.msra.mxu0 0.0
    %2101 = vmatprep.subr.mxu0 0.0
    %2102 = vmatpush1.msra.mxu0 0.0
    %2103 = vmatprep.subr.mxu0 0.0
    %2104 = vmatpush1.msra.mxu0 0.0
    %2105 = vmatprep.subr.mxu0 0.0
    %2106 = vmatpush1.msra.mxu0 0.0
    %2107 = vmatprep.subr.mxu0 0.0
    %2108 = vmatpush1.msra.mxu0 0.0
    %2109 = vmatprep.subr.mxu0 0.0
    %2110 = vmatpush1.msra.mxu0 0.0
    %2111 = vmatprep.subr.mxu0 0.0
    %2112 = vmatpush1.msra.mxu0 0.0
    %2113 = vmatprep.subr.mxu0 0.0
    %2114 = vmatpush1.msra.mxu0 0.0
    %2115 = vmatprep.subr.mxu0 0.0
    %2116 = vmatpush1.msra.mxu0 0.0
    %2117 = vmatprep.subr.mxu0 0.0
    %2118 = vmatpush1.msra.mxu0 0.0
    %2119 = vmatprep.subr.mxu0 0.0
    %2120 = vmatpush1.msra.mxu0 0.0
    %2121 = vmatprep.subr.mxu0 0.0
    %2122 = vmatpush1.msra.mxu0 0.0
    %2123 = vmatprep.mubr.f32.mxu0 0.0
    %2124 = vmatmul.mubr.f32.gmra.mrb[0].mxu0 %v2056
    %v2125 = vpop.f32.mrb[0].mxu0
    %v2126 = vadd.f32 0.0, %v2125
    %v2127 = vpop.f32.mrb[0].mxu0
    %v2128 = vadd.f32 0.0, %v2127
    %2129 = vdwg.mxu0
    %2130 = vmatprep.subr.mxu0 0.0
    %2131 = vmatpush1.msra.mxu0 %v1672
    %2132 = vmatprep.subr.mxu0 0.0
    %2133 = vmatpush1.msra.mxu0 %v1675
    %2134 = vmatprep.subr.mxu0 0.0
    %2135 = vmatpush1.msra.mxu0 %v1678
    %2136 = vmatprep.subr.mxu0 0.0
    %2137 = vmatpush1.msra.mxu0 %v1681
    %2138 = vmatprep.subr.mxu0 0.0
    %2139 = vmatpush1.msra.mxu0 %v1684
    %2140 = vmatprep.subr.mxu0 0.0
    %2141 = vmatpush1.msra.mxu0 %v1687
    %2142 = vmatprep.subr.mxu0 0.0
    %2143 = vmatpush1.msra.mxu0 %v1690
    %2144 = vmatprep.subr.mxu0 0.0
    %2145 = vmatpush1.msra.mxu0 %v1693
    %2146 = vmatprep.subr.mxu0 0.0
    %2147 = vmatpush1.msra.mxu0 %v1696
    %2148 = vmatprep.subr.mxu0 0.0
    %2149 = vmatpush1.msra.mxu0 %v1699
    %2150 = vmatprep.subr.mxu0 0.0
    %2151 = vmatpush1.msra.mxu0 %v1702
    %2152 = vmatprep.subr.mxu0 0.0
    %2153 = vmatpush1.msra.mxu0 %v1705
    %2154 = vmatprep.subr.mxu0 0.0
    %2155 = vmatpush1.msra.mxu0 %v1708
    %2156 = vmatprep.subr.mxu0 0.0
    %2157 = vmatpush1.msra.mxu0 %v1711
    %2158 = vmatprep.subr.mxu0 0.0
    %2159 = vmatpush1.msra.mxu0 %v1714
    %2160 = vmatprep.subr.mxu0 0.0
    %2161 = vmatpush1.msra.mxu0 %v1717
    %2162 = vmatprep.subr.mxu0 0.0
    %2163 = vmatpush1.msra.mxu0 0.0
    %2164 = vmatprep.subr.mxu0 0.0
    %2165 = vmatpush1.msra.mxu0 0.0
    %2166 = vmatprep.subr.mxu0 0.0
    %2167 = vmatpush1.msra.mxu0 0.0
    %2168 = vmatprep.subr.mxu0 0.0
    %2169 = vmatpush1.msra.mxu0 0.0
    %2170 = vmatprep.subr.mxu0 0.0
    %2171 = vmatpush1.msra.mxu0 0.0
    %2172 = vmatprep.subr.mxu0 0.0
    %2173 = vmatpush1.msra.mxu0 0.0
    %2174 = vmatprep.subr.mxu0 0.0
    %2175 = vmatpush1.msra.mxu0 0.0
    %2176 = vmatprep.subr.mxu0 0.0
    %2177 = vmatpush1.msra.mxu0 0.0
    %2178 = vmatprep.subr.mxu0 0.0
    %2179 = vmatpush1.msra.mxu0 0.0
    %2180 = vmatprep.subr.mxu0 0.0
    %2181 = vmatpush1.msra.mxu0 0.0
    %2182 = vmatprep.subr.mxu0 0.0
    %2183 = vmatpush1.msra.mxu0 0.0
    %2184 = vmatprep.subr.mxu0 0.0
    %2185 = vmatpush1.msra.mxu0 0.0
    %2186 = vmatprep.subr.mxu0 0.0
    %2187 = vmatpush1.msra.mxu0 0.0
    %2188 = vmatprep.subr.mxu0 0.0
    %2189 = vmatpush1.msra.mxu0 0.0
    %2190 = vmatprep.subr.mxu0 0.0
    %2191 = vmatpush1.msra.mxu0 0.0
    %2192 = vmatprep.subr.mxu0 0.0
    %2193 = vmatpush1.msra.mxu0 0.0
    %2194 = vmatprep.mubr.f32.mxu0 0.0
    %2195 = vmatmul.mubr.f32.gmra.mrb[0].mxu0 %v2056
    %v2196 = vpop.f32.mrb[0].mxu0
    %v2197 = vadd.f32 0.0, %v2196
    %v2198 = vpop.f32.mrb[0].mxu0
    %2199 = vdwg.mxu0
    %v2200 = vadd.f32 %v1447, %v2126
    %v2201 = vxor.u32 %v2200, 2147483648
    %v2202 = vmul.f32 %v2201, 1.442695
    %v2203 = vpow.pop %v2202
    %v2204 = vadd.f32 %v2203, 1.0
    %v2205 = vrcp.pop %v2204
    %v2206 = vmul.f32 1.0, %v2205
    %v2207 = vadd.f32 %v1449, %v2128
    %v2208 = vxor.u32 %v2207, 2147483648
    %v2209 = vmul.f32 %v2208, 1.442695
    %v2210 = vpow.pop %v2209
    %v2211 = vadd.f32 %v2210, 1.0
    %v2212 = vrcp.pop %v2211
    %v2213 = vmul.f32 1.0, %v2212
    %v2214 = vadd.f32 %v2197, %v1723
    %v2215 = vmul.f32 %v2206, %v2214
    %v2216 = vadd.f32 %v1648, %v2215
    %v2217 = vtanh.pop %v2216
    %v2218 = vsub.f32 1.0, %v2213
    %v2219 = vmul.f32 %v2218, %v2217
    %v2220 = vmul.f32 %v2213, %v2056
    %v2221 = vadd.f32 %v2219, %v2220
    %vm2222 = vcmp.eq.s32.totalorder %v1728, 2
    %v2223 = vsel %vm2222, %v2221, %v2058
    %2224 = vmatprep.subr.mxu0 %v1671
    %2225 = vmatpush1.msra.mxu0 %v1670
    %2226 = vmatprep.subr.mxu0 %v1674
    %2227 = vmatpush1.msra.mxu0 %v1673
    %2228 = vmatprep.subr.mxu0 %v1677
    %2229 = vmatpush1.msra.mxu0 %v1676
    %2230 = vmatprep.subr.mxu0 %v1680
    %2231 = vmatpush1.msra.mxu0 %v1679
    %2232 = vmatprep.subr.mxu0 %v1683
    %2233 = vmatpush1.msra.mxu0 %v1682
    %2234 = vmatprep.subr.mxu0 %v1686
    %2235 = vmatpush1.msra.mxu0 %v1685
    %2236 = vmatprep.subr.mxu0 %v1689
    %2237 = vmatpush1.msra.mxu0 %v1688
    %2238 = vmatprep.subr.mxu0 %v1692
    %2239 = vmatpush1.msra.mxu0 %v1691
    %2240 = vmatprep.subr.mxu0 %v1695
    %2241 = vmatpush1.msra.mxu0 %v1694
    %2242 = vmatprep.subr.mxu0 %v1698
    %2243 = vmatpush1.msra.mxu0 %v1697
    %2244 = vmatprep.subr.mxu0 %v1701
    %2245 = vmatpush1.msra.mxu0 %v1700
    %2246 = vmatprep.subr.mxu0 %v1704
    %2247 = vmatpush1.msra.mxu0 %v1703
    %2248 = vmatprep.subr.mxu0 %v1707
    %2249 = vmatpush1.msra.mxu0 %v1706
    %2250 = vmatprep.subr.mxu0 %v1710
    %2251 = vmatpush1.msra.mxu0 %v1709
    %2252 = vmatprep.subr.mxu0 %v1713
    %2253 = vmatpush1.msra.mxu0 %v1712
    %2254 = vmatprep.subr.mxu0 %v1716
    %2255 = vmatpush1.msra.mxu0 %v1715
    %2256 = vmatprep.subr.mxu0 0.0
    %2257 = vmatpush1.msra.mxu0 0.0
    %2258 = vmatprep.subr.mxu0 0.0
    %2259 = vmatpush1.msra.mxu0 0.0
    %2260 = vmatprep.subr.mxu0 0.0
    %2261 = vmatpush1.msra.mxu0 0.0
    %2262 = vmatprep.subr.mxu0 0.0
    %2263 = vmatpush1.msra.mxu0 0.0
    %2264 = vmatprep.subr.mxu0 0.0
    %2265 = vmatpush1.msra.mxu0 0.0
    %2266 = vmatprep.subr.mxu0 0.0
    %2267 = vmatpush1.msra.mxu0 0.0
    %2268 = vmatprep.subr.mxu0 0.0
    %2269 = vmatpush1.msra.mxu0 0.0
    %2270 = vmatprep.subr.mxu0 0.0
    %2271 = vmatpush1.msra.mxu0 0.0
    %2272 = vmatprep.subr.mxu0 0.0
    %2273 = vmatpush1.msra.mxu0 0.0
    %2274 = vmatprep.subr.mxu0 0.0
    %2275 = vmatpush1.msra.mxu0 0.0
    %2276 = vmatprep.subr.mxu0 0.0
    %2277 = vmatpush1.msra.mxu0 0.0
    %2278 = vmatprep.subr.mxu0 0.0
    %2279 = vmatpush1.msra.mxu0 0.0
    %2280 = vmatprep.subr.mxu0 0.0
    %2281 = vmatpush1.msra.mxu0 0.0
    %2282 = vmatprep.subr.mxu0 0.0
    %2283 = vmatpush1.msra.mxu0 0.0
    %2284 = vmatprep.subr.mxu0 0.0
    %2285 = vmatpush1.msra.mxu0 0.0
    %2286 = vmatprep.subr.mxu0 0.0
    %2287 = vmatpush1.msra.mxu0 0.0
    %2288 = vmatprep.mubr.f32.mxu0 0.0
    %2289 = vmatmul.mubr.f32.gmra.mrb[0].mxu0 %v2221
    %v2290 = vpop.f32.mrb[0].mxu0
    %v2291 = vadd.f32 0.0, %v2290
    %v2292 = vpop.f32.mrb[0].mxu0
    %v2293 = vadd.f32 0.0, %v2292
    %2294 = vdwg.mxu0
    %2295 = vmatprep.subr.mxu0 0.0
    %2296 = vmatpush1.msra.mxu0 %v1672
    %2297 = vmatprep.subr.mxu0 0.0
    %2298 = vmatpush1.msra.mxu0 %v1675
    %2299 = vmatprep.subr.mxu0 0.0
    %2300 = vmatpush1.msra.mxu0 %v1678
    %2301 = vmatprep.subr.mxu0 0.0
    %2302 = vmatpush1.msra.mxu0 %v1681
    %2303 = vmatprep.subr.mxu0 0.0
    %2304 = vmatpush1.msra.mxu0 %v1684
    %2305 = vmatprep.subr.mxu0 0.0
    %2306 = vmatpush1.msra.mxu0 %v1687
    %2307 = vmatprep.subr.mxu0 0.0
    %2308 = vmatpush1.msra.mxu0 %v1690
    %2309 = vmatprep.subr.mxu0 0.0
    %2310 = vmatpush1.msra.mxu0 %v1693
    %2311 = vmatprep.subr.mxu0 0.0
    %2312 = vmatpush1.msra.mxu0 %v1696
    %2313 = vmatprep.subr.mxu0 0.0
    %2314 = vmatpush1.msra.mxu0 %v1699
    %2315 = vmatprep.subr.mxu0 0.0
    %2316 = vmatpush1.msra.mxu0 %v1702
    %2317 = vmatprep.subr.mxu0 0.0
    %2318 = vmatpush1.msra.mxu0 %v1705
    %2319 = vmatprep.subr.mxu0 0.0
    %2320 = vmatpush1.msra.mxu0 %v1708
    %2321 = vmatprep.subr.mxu0 0.0
    %2322 = vmatpush1.msra.mxu0 %v1711
    %2323 = vmatprep.subr.mxu0 0.0
    %2324 = vmatpush1.msra.mxu0 %v1714
    %2325 = vmatprep.subr.mxu0 0.0
    %2326 = vmatpush1.msra.mxu0 %v1717
    %2327 = vmatprep.subr.mxu0 0.0
    %2328 = vmatpush1.msra.mxu0 0.0
    %2329 = vmatprep.subr.mxu0 0.0
    %2330 = vmatpush1.msra.mxu0 0.0
    %2331 = vmatprep.subr.mxu0 0.0
    %2332 = vmatpush1.msra.mxu0 0.0
    %2333 = vmatprep.subr.mxu0 0.0
    %2334 = vmatpush1.msra.mxu0 0.0
    %2335 = vmatprep.subr.mxu0 0.0
    %2336 = vmatpush1.msra.mxu0 0.0
    %2337 = vmatprep.subr.mxu0 0.0
    %2338 = vmatpush1.msra.mxu0 0.0
    %2339 = vmatprep.subr.mxu0 0.0
    %2340 = vmatpush1.msra.mxu0 0.0
    %2341 = vmatprep.subr.mxu0 0.0
    %2342 = vmatpush1.msra.mxu0 0.0
    %2343 = vmatprep.subr.mxu0 0.0
    %2344 = vmatpush1.msra.mxu0 0.0
    %2345 = vmatprep.subr.mxu0 0.0
    %2346 = vmatpush1.msra.mxu0 0.0
    %2347 = vmatprep.subr.mxu0 0.0
    %2348 = vmatpush1.msra.mxu0 0.0
    %2349 = vmatprep.subr.mxu0 0.0
    %2350 = vmatpush1.msra.mxu0 0.0
    %2351 = vmatprep.subr.mxu0 0.0
    %2352 = vmatpush1.msra.mxu0 0.0
    %2353 = vmatprep.subr.mxu0 0.0
    %2354 = vmatpush1.msra.mxu0 0.0
    %2355 = vmatprep.subr.mxu0 0.0
    %2356 = vmatpush1.msra.mxu0 0.0
    %2357 = vmatprep.subr.mxu0 0.0
    %2358 = vmatpush1.msra.mxu0 0.0
    %2359 = vmatprep.mubr.f32.mxu0 0.0
    %2360 = vmatmul.mubr.f32.gmra.mrb[0].mxu0 %v2221
    %v2361 = vpop.f32.mrb[0].mxu0
    %v2362 = vadd.f32 0.0, %v2361
    %v2363 = vpop.f32.mrb[0].mxu0
    %2364 = vdwg.mxu0
    %v2365 = vadd.f32 %v1451, %v2291
    %v2366 = vxor.u32 %v2365, 2147483648
    %v2367 = vmul.f32 %v2366, 1.442695
    %v2368 = vpow.pop %v2367
    %v2369 = vadd.f32 %v2368, 1.0
    %v2370 = vrcp.pop %v2369
    %v2371 = vmul.f32 1.0, %v2370
    %v2372 = vadd.f32 %v1453, %v2293
    %v2373 = vxor.u32 %v2372, 2147483648
    %v2374 = vmul.f32 %v2373, 1.442695
    %v2375 = vpow.pop %v2374
    %v2376 = vadd.f32 %v2375, 1.0
    %v2377 = vrcp.pop %v2376
    %v2378 = vmul.f32 1.0, %v2377
    %v2379 = vadd.f32 %v2362, %v1723
    %v2380 = vmul.f32 %v2371, %v2379
    %v2381 = vadd.f32 %v1651, %v2380
    %v2382 = vtanh.pop %v2381
    %v2383 = vsub.f32 1.0, %v2378
    %v2384 = vmul.f32 %v2383, %v2382
    %v2385 = vmul.f32 %v2378, %v2221
    %v2386 = vadd.f32 %v2384, %v2385
    %vm2387 = vcmp.eq.s32.totalorder %v1728, 3
    %v2388 = vsel %vm2387, %v2386, %v2223
    %2389 = vmatprep.subr.mxu0 %v1671
    %2390 = vmatpush1.msra.mxu0 %v1670
    %2391 = vmatprep.subr.mxu0 %v1674
    %2392 = vmatpush1.msra.mxu0 %v1673
    %2393 = vmatprep.subr.mxu0 %v1677
    %2394 = vmatpush1.msra.mxu0 %v1676
    %2395 = vmatprep.subr.mxu0 %v1680
    %2396 = vmatpush1.msra.mxu0 %v1679
    %2397 = vmatprep.subr.mxu0 %v1683
    %2398 = vmatpush1.msra.mxu0 %v1682
    %2399 = vmatprep.subr.mxu0 %v1686
    %2400 = vmatpush1.msra.mxu0 %v1685
    %2401 = vmatprep.subr.mxu0 %v1689
    %2402 = vmatpush1.msra.mxu0 %v1688
    %2403 = vmatprep.subr.mxu0 %v1692
    %2404 = vmatpush1.msra.mxu0 %v1691
    %2405 = vmatprep.subr.mxu0 %v1695
    %2406 = vmatpush1.msra.mxu0 %v1694
    %2407 = vmatprep.subr.mxu0 %v1698
    %2408 = vmatpush1.msra.mxu0 %v1697
    %2409 = vmatprep.subr.mxu0 %v1701
    %2410 = vmatpush1.msra.mxu0 %v1700
    %2411 = vmatprep.subr.mxu0 %v1704
    %2412 = vmatpush1.msra.mxu0 %v1703
    %2413 = vmatprep.subr.mxu0 %v1707
    %2414 = vmatpush1.msra.mxu0 %v1706
    %2415 = vmatprep.subr.mxu0 %v1710
    %2416 = vmatpush1.msra.mxu0 %v1709
    %2417 = vmatprep.subr.mxu0 %v1713
    %2418 = vmatpush1.msra.mxu0 %v1712
    %2419 = vmatprep.subr.mxu0 %v1716
    %2420 = vmatpush1.msra.mxu0 %v1715
    %2421 = vmatprep.subr.mxu0 0.0
    %2422 = vmatpush1.msra.mxu0 0.0
    %2423 = vmatprep.subr.mxu0 0.0
    %2424 = vmatpush1.msra.mxu0 0.0
    %2425 = vmatprep.subr.mxu0 0.0
    %2426 = vmatpush1.msra.mxu0 0.0
    %2427 = vmatprep.subr.mxu0 0.0
    %2428 = vmatpush1.msra.mxu0 0.0
    %2429 = vmatprep.subr.mxu0 0.0
    %2430 = vmatpush1.msra.mxu0 0.0
    %2431 = vmatprep.subr.mxu0 0.0
    %2432 = vmatpush1.msra.mxu0 0.0
    %2433 = vmatprep.subr.mxu0 0.0
    %2434 = vmatpush1.msra.mxu0 0.0
    %2435 = vmatprep.subr.mxu0 0.0
    %2436 = vmatpush1.msra.mxu0 0.0
    %2437 = vmatprep.subr.mxu0 0.0
    %2438 = vmatpush1.msra.mxu0 0.0
    %2439 = vmatprep.subr.mxu0 0.0
    %2440 = vmatpush1.msra.mxu0 0.0
    %2441 = vmatprep.subr.mxu0 0.0
    %2442 = vmatpush1.msra.mxu0 0.0
    %2443 = vmatprep.subr.mxu0 0.0
    %2444 = vmatpush1.msra.mxu0 0.0
    %2445 = vmatprep.subr.mxu0 0.0
    %2446 = vmatpush1.msra.mxu0 0.0
    %2447 = vmatprep.subr.mxu0 0.0
    %2448 = vmatpush1.msra.mxu0 0.0
    %2449 = vmatprep.subr.mxu0 0.0
    %2450 = vmatpush1.msra.mxu0 0.0
    %2451 = vmatprep.subr.mxu0 0.0
    %2452 = vmatpush1.msra.mxu0 0.0
    %2453 = vmatprep.mubr.f32.mxu0 0.0
    %2454 = vmatmul.mubr.f32.gmra.mrb[0].mxu0 %v2386
    %v2455 = vpop.f32.mrb[0].mxu0
    %v2456 = vadd.f32 0.0, %v2455
    %v2457 = vpop.f32.mrb[0].mxu0
    %v2458 = vadd.f32 0.0, %v2457
    %2459 = vdwg.mxu0
    %2460 = vmatprep.subr.mxu0 0.0
    %2461 = vmatpush1.msra.mxu0 %v1672
    %2462 = vmatprep.subr.mxu0 0.0
    %2463 = vmatpush1.msra.mxu0 %v1675
    %2464 = vmatprep.subr.mxu0 0.0
    %2465 = vmatpush1.msra.mxu0 %v1678
    %2466 = vmatprep.subr.mxu0 0.0
    %2467 = vmatpush1.msra.mxu0 %v1681
    %2468 = vmatprep.subr.mxu0 0.0
    %2469 = vmatpush1.msra.mxu0 %v1684
    %2470 = vmatprep.subr.mxu0 0.0
    %2471 = vmatpush1.msra.mxu0 %v1687
    %2472 = vmatprep.subr.mxu0 0.0
    %2473 = vmatpush1.msra.mxu0 %v1690
    %2474 = vmatprep.subr.mxu0 0.0
    %2475 = vmatpush1.msra.mxu0 %v1693
    %2476 = vmatprep.subr.mxu0 0.0
    %2477 = vmatpush1.msra.mxu0 %v1696
    %2478 = vmatprep.subr.mxu0 0.0
    %2479 = vmatpush1.msra.mxu0 %v1699
    %2480 = vmatprep.subr.mxu0 0.0
    %2481 = vmatpush1.msra.mxu0 %v1702
    %2482 = vmatprep.subr.mxu0 0.0
    %2483 = vmatpush1.msra.mxu0 %v1705
    %2484 = vmatprep.subr.mxu0 0.0
    %2485 = vmatpush1.msra.mxu0 %v1708
    %2486 = vmatprep.subr.mxu0 0.0
    %2487 = vmatpush1.msra.mxu0 %v1711
    %2488 = vmatprep.subr.mxu0 0.0
    %2489 = vmatpush1.msra.mxu0 %v1714
    %2490 = vmatprep.subr.mxu0 0.0
    %2491 = vmatpush1.msra.mxu0 %v1717
    %2492 = vmatprep.subr.mxu0 0.0
    %2493 = vmatpush1.msra.mxu0 0.0
    %2494 = vmatprep.subr.mxu0 0.0
    %2495 = vmatpush1.msra.mxu0 0.0
    %2496 = vmatprep.subr.mxu0 0.0
    %2497 = vmatpush1.msra.mxu0 0.0
    %2498 = vmatprep.subr.mxu0 0.0
    %2499 = vmatpush1.msra.mxu0 0.0
    %2500 = vmatprep.subr.mxu0 0.0
    %2501 = vmatpush1.msra.mxu0 0.0
    %2502 = vmatprep.subr.mxu0 0.0
    %2503 = vmatpush1.msra.mxu0 0.0
    %2504 = vmatprep.subr.mxu0 0.0
    %2505 = vmatpush1.msra.mxu0 0.0
    %2506 = vmatprep.subr.mxu0 0.0
    %2507 = vmatpush1.msra.mxu0 0.0
    %2508 = vmatprep.subr.mxu0 0.0
    %2509 = vmatpush1.msra.mxu0 0.0
    %2510 = vmatprep.subr.mxu0 0.0
    %2511 = vmatpush1.msra.mxu0 0.0
    %2512 = vmatprep.subr.mxu0 0.0
    %2513 = vmatpush1.msra.mxu0 0.0
    %2514 = vmatprep.subr.mxu0 0.0
    %2515 = vmatpush1.msra.mxu0 0.0
    %2516 = vmatprep.subr.mxu0 0.0
    %2517 = vmatpush1.msra.mxu0 0.0
    %2518 = vmatprep.subr.mxu0 0.0
    %2519 = vmatpush1.msra.mxu0 0.0
    %2520 = vmatprep.subr.mxu0 0.0
    %2521 = vmatpush1.msra.mxu0 0.0
    %2522 = vmatprep.subr.mxu0 0.0
    %2523 = vmatpush1.msra.mxu0 0.0
    %2524 = vmatprep.mubr.f32.mxu0 0.0
    %2525 = vmatmul.mubr.f32.gmra.mrb[0].mxu0 %v2386
    %v2526 = vpop.f32.mrb[0].mxu0
    %v2527 = vadd.f32 0.0, %v2526
    %v2528 = vpop.f32.mrb[0].mxu0
    %2529 = vdwg.mxu0
    %v2530 = vadd.f32 %v1457, %v2456
    %v2531 = vxor.u32 %v2530, 2147483648
    %v2532 = vmul.f32 %v2531, 1.442695
    %v2533 = vpow.pop %v2532
    %v2534 = vadd.f32 %v2533, 1.0
    %v2535 = vrcp.pop %v2534
    %v2536 = vmul.f32 1.0, %v2535
    %v2537 = vadd.f32 %v1459, %v2458
    %v2538 = vxor.u32 %v2537, 2147483648
    %v2539 = vmul.f32 %v2538, 1.442695
    %v2540 = vpow.pop %v2539
    %v2541 = vadd.f32 %v2540, 1.0
    %v2542 = vrcp.pop %v2541
    %v2543 = vmul.f32 1.0, %v2542
    %v2544 = vadd.f32 %v2527, %v1723
    %v2545 = vmul.f32 %v2536, %v2544
    %v2546 = vadd.f32 %v1656, %v2545
    %v2547 = vtanh.pop %v2546
    %v2548 = vsub.f32 1.0, %v2543
    %v2549 = vmul.f32 %v2548, %v2547
    %v2550 = vmul.f32 %v2543, %v2386
    %v2551 = vadd.f32 %v2549, %v2550
    %vm2552 = vcmp.eq.s32.totalorder %v1728, 4
    %v2553 = vsel %vm2552, %v2551, %v2388
    %2554 = vmatprep.subr.mxu0 %v1671
    %2555 = vmatpush1.msra.mxu0 %v1670
    %2556 = vmatprep.subr.mxu0 %v1674
    %2557 = vmatpush1.msra.mxu0 %v1673
    %2558 = vmatprep.subr.mxu0 %v1677
    %2559 = vmatpush1.msra.mxu0 %v1676
    %2560 = vmatprep.subr.mxu0 %v1680
    %2561 = vmatpush1.msra.mxu0 %v1679
    %2562 = vmatprep.subr.mxu0 %v1683
    %2563 = vmatpush1.msra.mxu0 %v1682
    %2564 = vmatprep.subr.mxu0 %v1686
    %2565 = vmatpush1.msra.mxu0 %v1685
    %2566 = vmatprep.subr.mxu0 %v1689
    %2567 = vmatpush1.msra.mxu0 %v1688
    %2568 = vmatprep.subr.mxu0 %v1692
    %2569 = vmatpush1.msra.mxu0 %v1691
    %2570 = vmatprep.subr.mxu0 %v1695
    %2571 = vmatpush1.msra.mxu0 %v1694
    %2572 = vmatprep.subr.mxu0 %v1698
    %2573 = vmatpush1.msra.mxu0 %v1697
    %2574 = vmatprep.subr.mxu0 %v1701
    %2575 = vmatpush1.msra.mxu0 %v1700
    %2576 = vmatprep.subr.mxu0 %v1704
    %2577 = vmatpush1.msra.mxu0 %v1703
    %2578 = vmatprep.subr.mxu0 %v1707
    %2579 = vmatpush1.msra.mxu0 %v1706
    %2580 = vmatprep.subr.mxu0 %v1710
    %2581 = vmatpush1.msra.mxu0 %v1709
    %2582 = vmatprep.subr.mxu0 %v1713
    %2583 = vmatpush1.msra.mxu0 %v1712
    %2584 = vmatprep.subr.mxu0 %v1716
    %2585 = vmatpush1.msra.mxu0 %v1715
    %2586 = vmatprep.subr.mxu0 0.0
    %2587 = vmatpush1.msra.mxu0 0.0
    %2588 = vmatprep.subr.mxu0 0.0
    %2589 = vmatpush1.msra.mxu0 0.0
    %2590 = vmatprep.subr.mxu0 0.0
    %2591 = vmatpush1.msra.mxu0 0.0
    %2592 = vmatprep.subr.mxu0 0.0
    %2593 = vmatpush1.msra.mxu0 0.0
    %2594 = vmatprep.subr.mxu0 0.0
    %2595 = vmatpush1.msra.mxu0 0.0
    %2596 = vmatprep.subr.mxu0 0.0
    %2597 = vmatpush1.msra.mxu0 0.0
    %2598 = vmatprep.subr.mxu0 0.0
    %2599 = vmatpush1.msra.mxu0 0.0
    %2600 = vmatprep.subr.mxu0 0.0
    %2601 = vmatpush1.msra.mxu0 0.0
    %2602 = vmatprep.subr.mxu0 0.0
    %2603 = vmatpush1.msra.mxu0 0.0
    %2604 = vmatprep.subr.mxu0 0.0
    %2605 = vmatpush1.msra.mxu0 0.0
    %2606 = vmatprep.subr.mxu0 0.0
    %2607 = vmatpush1.msra.mxu0 0.0
    %2608 = vmatprep.subr.mxu0 0.0
    %2609 = vmatpush1.msra.mxu0 0.0
    %2610 = vmatprep.subr.mxu0 0.0
    %2611 = vmatpush1.msra.mxu0 0.0
    %2612 = vmatprep.subr.mxu0 0.0
    %2613 = vmatpush1.msra.mxu0 0.0
    %2614 = vmatprep.subr.mxu0 0.0
    %2615 = vmatpush1.msra.mxu0 0.0
    %2616 = vmatprep.subr.mxu0 0.0
    %2617 = vmatpush1.msra.mxu0 0.0
    %2618 = vmatprep.mubr.f32.mxu0 0.0
    %2619 = vmatmul.mubr.f32.gmra.mrb[0].mxu0 %v2551
    %v2620 = vpop.f32.mrb[0].mxu0
    %v2621 = vadd.f32 0.0, %v2620
    %v2622 = vpop.f32.mrb[0].mxu0
    %v2623 = vadd.f32 0.0, %v2622
    %2624 = vdwg.mxu0
    %2625 = vmatprep.subr.mxu0 0.0
    %2626 = vmatpush1.msra.mxu0 %v1672
    %2627 = vmatprep.subr.mxu0 0.0
    %2628 = vmatpush1.msra.mxu0 %v1675
    %2629 = vmatprep.subr.mxu0 0.0
    %2630 = vmatpush1.msra.mxu0 %v1678
    %2631 = vmatprep.subr.mxu0 0.0
    %2632 = vmatpush1.msra.mxu0 %v1681
    %2633 = vmatprep.subr.mxu0 0.0
    %2634 = vmatpush1.msra.mxu0 %v1684
    %2635 = vmatprep.subr.mxu0 0.0
    %2636 = vmatpush1.msra.mxu0 %v1687
    %2637 = vmatprep.subr.mxu0 0.0
    %2638 = vmatpush1.msra.mxu0 %v1690
    %2639 = vmatprep.subr.mxu0 0.0
    %2640 = vmatpush1.msra.mxu0 %v1693
    %2641 = vmatprep.subr.mxu0 0.0
    %2642 = vmatpush1.msra.mxu0 %v1696
    %2643 = vmatprep.subr.mxu0 0.0
    %2644 = vmatpush1.msra.mxu0 %v1699
    %2645 = vmatprep.subr.mxu0 0.0
    %2646 = vmatpush1.msra.mxu0 %v1702
    %2647 = vmatprep.subr.mxu0 0.0
    %2648 = vmatpush1.msra.mxu0 %v1705
    %2649 = vmatprep.subr.mxu0 0.0
    %2650 = vmatpush1.msra.mxu0 %v1708
    %2651 = vmatprep.subr.mxu0 0.0
    %2652 = vmatpush1.msra.mxu0 %v1711
    %2653 = vmatprep.subr.mxu0 0.0
    %2654 = vmatpush1.msra.mxu0 %v1714
    %2655 = vmatprep.subr.mxu0 0.0
    %2656 = vmatpush1.msra.mxu0 %v1717
    %2657 = vmatprep.subr.mxu0 0.0
    %2658 = vmatpush1.msra.mxu0 0.0
    %2659 = vmatprep.subr.mxu0 0.0
    %2660 = vmatpush1.msra.mxu0 0.0
    %2661 = vmatprep.subr.mxu0 0.0
    %2662 = vmatpush1.msra.mxu0 0.0
    %2663 = vmatprep.subr.mxu0 0.0
    %2664 = vmatpush1.msra.mxu0 0.0
    %2665 = vmatprep.subr.mxu0 0.0
    %2666 = vmatpush1.msra.mxu0 0.0
    %2667 = vmatprep.subr.mxu0 0.0
    %2668 = vmatpush1.msra.mxu0 0.0
    %2669 = vmatprep.subr.mxu0 0.0
    %2670 = vmatpush1.msra.mxu0 0.0
    %2671 = vmatprep.subr.mxu0 0.0
    %2672 = vmatpush1.msra.mxu0 0.0
    %2673 = vmatprep.subr.mxu0 0.0
    %2674 = vmatpush1.msra.mxu0 0.0
    %2675 = vmatprep.subr.mxu0 0.0
    %2676 = vmatpush1.msra.mxu0 0.0
    %2677 = vmatprep.subr.mxu0 0.0
    %2678 = vmatpush1.msra.mxu0 0.0
    %2679 = vmatprep.subr.mxu0 0.0
    %2680 = vmatpush1.msra.mxu0 0.0
    %2681 = vmatprep.subr.mxu0 0.0
    %2682 = vmatpush1.msra.mxu0 0.0
    %2683 = vmatprep.subr.mxu0 0.0
    %2684 = vmatpush1.msra.mxu0 0.0
    %2685 = vmatprep.subr.mxu0 0.0
    %2686 = vmatpush1.msra.mxu0 0.0
    %2687 = vmatprep.subr.mxu0 0.0
    %2688 = vmatpush1.msra.mxu0 0.0
    %2689 = vmatprep.mubr.f32.mxu0 0.0
    %2690 = vmatmul.mubr.f32.gmra.mrb[0].mxu0 %v2551
    %v2691 = vpop.f32.mrb[0].mxu0
    %v2692 = vadd.f32 0.0, %v2691
    %v2693 = vpop.f32.mrb[0].mxu0
    %2694 = vdwg.mxu0
    %v2695 = vadd.f32 %v1461, %v2621
    %v2696 = vxor.u32 %v2695, 2147483648
    %v2697 = vmul.f32 %v2696, 1.442695
    %v2698 = vpow.pop %v2697
    %v2699 = vadd.f32 %v2698, 1.0
    %v2700 = vrcp.pop %v2699
    %v2701 = vmul.f32 1.0, %v2700
    %v2702 = vadd.f32 %v1463, %v2623
    %v2703 = vxor.u32 %v2702, 2147483648
    %v2704 = vmul.f32 %v2703, 1.442695
    %v2705 = vpow.pop %v2704
    %v2706 = vadd.f32 %v2705, 1.0
    %v2707 = vrcp.pop %v2706
    %v2708 = vmul.f32 1.0, %v2707
    %v2709 = vadd.f32 %v2692, %v1723
    %v2710 = vmul.f32 %v2701, %v2709
    %v2711 = vadd.f32 %v1659, %v2710
    %v2712 = vtanh.pop %v2711
    %v2713 = vsub.f32 1.0, %v2708
    %v2714 = vmul.f32 %v2713, %v2712
    %v2715 = vmul.f32 %v2708, %v2551
    %v2716 = vadd.f32 %v2714, %v2715
    %vm2717 = vcmp.eq.s32.totalorder %v1728, 5
    %v2718 = vsel %vm2717, %v2716, %v2553
    %2719 = vmatprep.subr.mxu0 %v1671
    %2720 = vmatpush1.msra.mxu0 %v1670
    %2721 = vmatprep.subr.mxu0 %v1674
    %2722 = vmatpush1.msra.mxu0 %v1673
    %2723 = vmatprep.subr.mxu0 %v1677
    %2724 = vmatpush1.msra.mxu0 %v1676
    %2725 = vmatprep.subr.mxu0 %v1680
    %2726 = vmatpush1.msra.mxu0 %v1679
    %2727 = vmatprep.subr.mxu0 %v1683
    %2728 = vmatpush1.msra.mxu0 %v1682
    %2729 = vmatprep.subr.mxu0 %v1686
    %2730 = vmatpush1.msra.mxu0 %v1685
    %2731 = vmatprep.subr.mxu0 %v1689
    %2732 = vmatpush1.msra.mxu0 %v1688
    %2733 = vmatprep.subr.mxu0 %v1692
    %2734 = vmatpush1.msra.mxu0 %v1691
    %2735 = vmatprep.subr.mxu0 %v1695
    %2736 = vmatpush1.msra.mxu0 %v1694
    %2737 = vmatprep.subr.mxu0 %v1698
    %2738 = vmatpush1.msra.mxu0 %v1697
    %2739 = vmatprep.subr.mxu0 %v1701
    %2740 = vmatpush1.msra.mxu0 %v1700
    %2741 = vmatprep.subr.mxu0 %v1704
    %2742 = vmatpush1.msra.mxu0 %v1703
    %2743 = vmatprep.subr.mxu0 %v1707
    %2744 = vmatpush1.msra.mxu0 %v1706
    %2745 = vmatprep.subr.mxu0 %v1710
    %2746 = vmatpush1.msra.mxu0 %v1709
    %2747 = vmatprep.subr.mxu0 %v1713
    %2748 = vmatpush1.msra.mxu0 %v1712
    %2749 = vmatprep.subr.mxu0 %v1716
    %2750 = vmatpush1.msra.mxu0 %v1715
    %2751 = vmatprep.subr.mxu0 0.0
    %2752 = vmatpush1.msra.mxu0 0.0
    %2753 = vmatprep.subr.mxu0 0.0
    %2754 = vmatpush1.msra.mxu0 0.0
    %2755 = vmatprep.subr.mxu0 0.0
    %2756 = vmatpush1.msra.mxu0 0.0
    %2757 = vmatprep.subr.mxu0 0.0
    %2758 = vmatpush1.msra.mxu0 0.0
    %2759 = vmatprep.subr.mxu0 0.0
    %2760 = vmatpush1.msra.mxu0 0.0
    %2761 = vmatprep.subr.mxu0 0.0
    %2762 = vmatpush1.msra.mxu0 0.0
    %2763 = vmatprep.subr.mxu0 0.0
    %2764 = vmatpush1.msra.mxu0 0.0
    %2765 = vmatprep.subr.mxu0 0.0
    %2766 = vmatpush1.msra.mxu0 0.0
    %2767 = vmatprep.subr.mxu0 0.0
    %2768 = vmatpush1.msra.mxu0 0.0
    %2769 = vmatprep.subr.mxu0 0.0
    %2770 = vmatpush1.msra.mxu0 0.0
    %2771 = vmatprep.subr.mxu0 0.0
    %2772 = vmatpush1.msra.mxu0 0.0
    %2773 = vmatprep.subr.mxu0 0.0
    %2774 = vmatpush1.msra.mxu0 0.0
    %2775 = vmatprep.subr.mxu0 0.0
    %2776 = vmatpush1.msra.mxu0 0.0
    %2777 = vmatprep.subr.mxu0 0.0
    %2778 = vmatpush1.msra.mxu0 0.0
    %2779 = vmatprep.subr.mxu0 0.0
    %2780 = vmatpush1.msra.mxu0 0.0
    %2781 = vmatprep.subr.mxu0 0.0
    %2782 = vmatpush1.msra.mxu0 0.0
    %2783 = vmatprep.mubr.f32.mxu0 0.0
    %2784 = vmatmul.mubr.f32.gmra.mrb[0].mxu0 %v2716
    %v2785 = vpop.f32.mrb[0].mxu0
    %v2786 = vadd.f32 0.0, %v2785
    %v2787 = vpop.f32.mrb[0].mxu0
    %v2788 = vadd.f32 0.0, %v2787
    %2789 = vdwg.mxu0
    %2790 = vmatprep.subr.mxu0 0.0
    %2791 = vmatpush1.msra.mxu0 %v1672
    %2792 = vmatprep.subr.mxu0 0.0
    %2793 = vmatpush1.msra.mxu0 %v1675
    %2794 = vmatprep.subr.mxu0 0.0
    %2795 = vmatpush1.msra.mxu0 %v1678
    %2796 = vmatprep.subr.mxu0 0.0
    %2797 = vmatpush1.msra.mxu0 %v1681
    %2798 = vmatprep.subr.mxu0 0.0
    %2799 = vmatpush1.msra.mxu0 %v1684
    %2800 = vmatprep.subr.mxu0 0.0
    %2801 = vmatpush1.msra.mxu0 %v1687
    %2802 = vmatprep.subr.mxu0 0.0
    %2803 = vmatpush1.msra.mxu0 %v1690
    %2804 = vmatprep.subr.mxu0 0.0
    %2805 = vmatpush1.msra.mxu0 %v1693
    %2806 = vmatprep.subr.mxu0 0.0
    %2807 = vmatpush1.msra.mxu0 %v1696
    %2808 = vmatprep.subr.mxu0 0.0
    %2809 = vmatpush1.msra.mxu0 %v1699
    %2810 = vmatprep.subr.mxu0 0.0
    %2811 = vmatpush1.msra.mxu0 %v1702
    %2812 = vmatprep.subr.mxu0 0.0
    %2813 = vmatpush1.msra.mxu0 %v1705
    %2814 = vmatprep.subr.mxu0 0.0
    %2815 = vmatpush1.msra.mxu0 %v1708
    %2816 = vmatprep.subr.mxu0 0.0
    %2817 = vmatpush1.msra.mxu0 %v1711
    %2818 = vmatprep.subr.mxu0 0.0
    %2819 = vmatpush1.msra.mxu0 %v1714
    %2820 = vmatprep.subr.mxu0 0.0
    %2821 = vmatpush1.msra.mxu0 %v1717
    %2822 = vmatprep.subr.mxu0 0.0
    %2823 = vmatpush1.msra.mxu0 0.0
    %2824 = vmatprep.subr.mxu0 0.0
    %2825 = vmatpush1.msra.mxu0 0.0
    %2826 = vmatprep.subr.mxu0 0.0
    %2827 = vmatpush1.msra.mxu0 0.0
    %2828 = vmatprep.subr.mxu0 0.0
    %2829 = vmatpush1.msra.mxu0 0.0
    %2830 = vmatprep.subr.mxu0 0.0
    %2831 = vmatpush1.msra.mxu0 0.0
    %2832 = vmatprep.subr.mxu0 0.0
    %2833 = vmatpush1.msra.mxu0 0.0
    %2834 = vmatprep.subr.mxu0 0.0
    %2835 = vmatpush1.msra.mxu0 0.0
    %2836 = vmatprep.subr.mxu0 0.0
    %2837 = vmatpush1.msra.mxu0 0.0
    %2838 = vmatprep.subr.mxu0 0.0
    %2839 = vmatpush1.msra.mxu0 0.0
    %2840 = vmatprep.subr.mxu0 0.0
    %2841 = vmatpush1.msra.mxu0 0.0
    %2842 = vmatprep.subr.mxu0 0.0
    %2843 = vmatpush1.msra.mxu0 0.0
    %2844 = vmatprep.subr.mxu0 0.0
    %2845 = vmatpush1.msra.mxu0 0.0
    %2846 = vmatprep.subr.mxu0 0.0
    %2847 = vmatpush1.msra.mxu0 0.0
    %2848 = vmatprep.subr.mxu0 0.0
    %2849 = vmatpush1.msra.mxu0 0.0
    %2850 = vmatprep.subr.mxu0 0.0
    %2851 = vmatpush1.msra.mxu0 0.0
    %2852 = vmatprep.subr.mxu0 0.0
    %2853 = vmatpush1.msra.mxu0 0.0
    %2854 = vmatprep.mubr.f32.mxu0 0.0
    %2855 = vmatmul.mubr.f32.gmra.mrb[0].mxu0 %v2716
    %v2856 = vpop.f32.mrb[0].mxu0
    %v2857 = vadd.f32 0.0, %v2856
    %v2858 = vpop.f32.mrb[0].mxu0
    %2859 = vdwg.mxu0
    %v2860 = vadd.f32 %v1467, %v2786
    %v2861 = vxor.u32 %v2860, 2147483648
    %v2862 = vmul.f32 %v2861, 1.442695
    %v2863 = vpow.pop %v2862
    %v2864 = vadd.f32 %v2863, 1.0
    %v2865 = vrcp.pop %v2864
    %v2866 = vmul.f32 1.0, %v2865
    %v2867 = vadd.f32 %v1469, %v2788
    %v2868 = vxor.u32 %v2867, 2147483648
    %v2869 = vmul.f32 %v2868, 1.442695
    %v2870 = vpow.pop %v2869
    %v2871 = vadd.f32 %v2870, 1.0
    %v2872 = vrcp.pop %v2871
    %v2873 = vmul.f32 1.0, %v2872
    %v2874 = vadd.f32 %v2857, %v1723
    %v2875 = vmul.f32 %v2866, %v2874
    %v2876 = vadd.f32 %v1664, %v2875
    %v2877 = vtanh.pop %v2876
    %v2878 = vsub.f32 1.0, %v2873
    %v2879 = vmul.f32 %v2878, %v2877
    %v2880 = vmul.f32 %v2873, %v2716
    %v2881 = vadd.f32 %v2879, %v2880
    %vm2882 = vcmp.eq.s32.totalorder %v1728, 6
    %v2883 = vsel %vm2882, %v2881, %v2718
    %2884 = vmatprep.subr.mxu0 %v1671
    %2885 = vmatpush1.msra.mxu0 %v1670
    %2886 = vmatprep.subr.mxu0 %v1674
    %2887 = vmatpush1.msra.mxu0 %v1673
    %2888 = vmatprep.subr.mxu0 %v1677
    %2889 = vmatpush1.msra.mxu0 %v1676
    %2890 = vmatprep.subr.mxu0 %v1680
    %2891 = vmatpush1.msra.mxu0 %v1679
    %2892 = vmatprep.subr.mxu0 %v1683
    %2893 = vmatpush1.msra.mxu0 %v1682
    %2894 = vmatprep.subr.mxu0 %v1686
    %2895 = vmatpush1.msra.mxu0 %v1685
    %2896 = vmatprep.subr.mxu0 %v1689
    %2897 = vmatpush1.msra.mxu0 %v1688
    %2898 = vmatprep.subr.mxu0 %v1692
    %2899 = vmatpush1.msra.mxu0 %v1691
    %2900 = vmatprep.subr.mxu0 %v1695
    %2901 = vmatpush1.msra.mxu0 %v1694
    %2902 = vmatprep.subr.mxu0 %v1698
    %2903 = vmatpush1.msra.mxu0 %v1697
    %2904 = vmatprep.subr.mxu0 %v1701
    %2905 = vmatpush1.msra.mxu0 %v1700
    %2906 = vmatprep.subr.mxu0 %v1704
    %2907 = vmatpush1.msra.mxu0 %v1703
    %2908 = vmatprep.subr.mxu0 %v1707
    %2909 = vmatpush1.msra.mxu0 %v1706
    %2910 = vmatprep.subr.mxu0 %v1710
    %2911 = vmatpush1.msra.mxu0 %v1709
    %2912 = vmatprep.subr.mxu0 %v1713
    %2913 = vmatpush1.msra.mxu0 %v1712
    %2914 = vmatprep.subr.mxu0 %v1716
    %2915 = vmatpush1.msra.mxu0 %v1715
    %2916 = vmatprep.subr.mxu0 0.0
    %2917 = vmatpush1.msra.mxu0 0.0
    %2918 = vmatprep.subr.mxu0 0.0
    %2919 = vmatpush1.msra.mxu0 0.0
    %2920 = vmatprep.subr.mxu0 0.0
    %2921 = vmatpush1.msra.mxu0 0.0
    %2922 = vmatprep.subr.mxu0 0.0
    %2923 = vmatpush1.msra.mxu0 0.0
    %2924 = vmatprep.subr.mxu0 0.0
    %2925 = vmatpush1.msra.mxu0 0.0
    %2926 = vmatprep.subr.mxu0 0.0
    %2927 = vmatpush1.msra.mxu0 0.0
    %2928 = vmatprep.subr.mxu0 0.0
    %2929 = vmatpush1.msra.mxu0 0.0
    %2930 = vmatprep.subr.mxu0 0.0
    %2931 = vmatpush1.msra.mxu0 0.0
    %2932 = vmatprep.subr.mxu0 0.0
    %2933 = vmatpush1.msra.mxu0 0.0
    %2934 = vmatprep.subr.mxu0 0.0
    %2935 = vmatpush1.msra.mxu0 0.0
    %2936 = vmatprep.subr.mxu0 0.0
    %2937 = vmatpush1.msra.mxu0 0.0
    %2938 = vmatprep.subr.mxu0 0.0
    %2939 = vmatpush1.msra.mxu0 0.0
    %2940 = vmatprep.subr.mxu0 0.0
    %2941 = vmatpush1.msra.mxu0 0.0
    %2942 = vmatprep.subr.mxu0 0.0
    %2943 = vmatpush1.msra.mxu0 0.0
    %2944 = vmatprep.subr.mxu0 0.0
    %2945 = vmatpush1.msra.mxu0 0.0
    %2946 = vmatprep.subr.mxu0 0.0
    %2947 = vmatpush1.msra.mxu0 0.0
    %2948 = vmatprep.mubr.f32.mxu0 0.0
    %2949 = vmatmul.mubr.f32.gmra.mrb[0].mxu0 %v2881
    %v2950 = vpop.f32.mrb[0].mxu0
    %v2951 = vadd.f32 0.0, %v2950
    %v2952 = vpop.f32.mrb[0].mxu0
    %v2953 = vadd.f32 0.0, %v2952
    %2954 = vdwg.mxu0
    %2955 = vmatprep.subr.mxu0 0.0
    %2956 = vmatpush1.msra.mxu0 %v1672
    %2957 = vmatprep.subr.mxu0 0.0
    %2958 = vmatpush1.msra.mxu0 %v1675
    %2959 = vmatprep.subr.mxu0 0.0
    %2960 = vmatpush1.msra.mxu0 %v1678
    %2961 = vmatprep.subr.mxu0 0.0
    %2962 = vmatpush1.msra.mxu0 %v1681
    %2963 = vmatprep.subr.mxu0 0.0
    %2964 = vmatpush1.msra.mxu0 %v1684
    %2965 = vmatprep.subr.mxu0 0.0
    %2966 = vmatpush1.msra.mxu0 %v1687
    %2967 = vmatprep.subr.mxu0 0.0
    %2968 = vmatpush1.msra.mxu0 %v1690
    %2969 = vmatprep.subr.mxu0 0.0
    %2970 = vmatpush1.msra.mxu0 %v1693
    %2971 = vmatprep.subr.mxu0 0.0
    %2972 = vmatpush1.msra.mxu0 %v1696
    %2973 = vmatprep.subr.mxu0 0.0
    %2974 = vmatpush1.msra.mxu0 %v1699
    %2975 = vmatprep.subr.mxu0 0.0
    %2976 = vmatpush1.msra.mxu0 %v1702
    %2977 = vmatprep.subr.mxu0 0.0
    %2978 = vmatpush1.msra.mxu0 %v1705
    %2979 = vmatprep.subr.mxu0 0.0
    %2980 = vmatpush1.msra.mxu0 %v1708
    %2981 = vmatprep.subr.mxu0 0.0
    %2982 = vmatpush1.msra.mxu0 %v1711
    %2983 = vmatprep.subr.mxu0 0.0
    %2984 = vmatpush1.msra.mxu0 %v1714
    %2985 = vmatprep.subr.mxu0 0.0
    %2986 = vmatpush1.msra.mxu0 %v1717
    %2987 = vmatprep.subr.mxu0 0.0
    %2988 = vmatpush1.msra.mxu0 0.0
    %2989 = vmatprep.subr.mxu0 0.0
    %2990 = vmatpush1.msra.mxu0 0.0
    %2991 = vmatprep.subr.mxu0 0.0
    %2992 = vmatpush1.msra.mxu0 0.0
    %2993 = vmatprep.subr.mxu0 0.0
    %2994 = vmatpush1.msra.mxu0 0.0
    %2995 = vmatprep.subr.mxu0 0.0
    %2996 = vmatpush1.msra.mxu0 0.0
    %2997 = vmatprep.subr.mxu0 0.0
    %2998 = vmatpush1.msra.mxu0 0.0
    %2999 = vmatprep.subr.mxu0 0.0
    %3000 = vmatpush1.msra.mxu0 0.0
    %3001 = vmatprep.subr.mxu0 0.0
    %3002 = vmatpush1.msra.mxu0 0.0
    %3003 = vmatprep.subr.mxu0 0.0
    %3004 = vmatpush1.msra.mxu0 0.0
    %3005 = vmatprep.subr.mxu0 0.0
    %3006 = vmatpush1.msra.mxu0 0.0
    %3007 = vmatprep.subr.mxu0 0.0
    %3008 = vmatpush1.msra.mxu0 0.0
    %3009 = vmatprep.subr.mxu0 0.0
    %3010 = vmatpush1.msra.mxu0 0.0
    %3011 = vmatprep.subr.mxu0 0.0
    %3012 = vmatpush1.msra.mxu0 0.0
    %3013 = vmatprep.subr.mxu0 0.0
    %3014 = vmatpush1.msra.mxu0 0.0
    %3015 = vmatprep.subr.mxu0 0.0
    %3016 = vmatpush1.msra.mxu0 0.0
    %3017 = vmatprep.subr.mxu0 0.0
    %3018 = vmatpush1.msra.mxu0 0.0
    %3019 = vmatprep.mubr.f32.mxu0 0.0
    %3020 = vmatmul.mubr.f32.gmra.mrb[0].mxu0 %v2881
    %v3021 = vpop.f32.mrb[0].mxu0
    %v3022 = vadd.f32 0.0, %v3021
    %v3023 = vpop.f32.mrb[0].mxu0
    %3024 = vdwg.mxu0
    %v3025 = vadd.f32 %v1471, %v2951
    %v3026 = vxor.u32 %v3025, 2147483648
    %v3027 = vmul.f32 %v3026, 1.442695
    %v3028 = vpow.pop %v3027
    %v3029 = vadd.f32 %v3028, 1.0
    %v3030 = vrcp.pop %v3029
    %v3031 = vmul.f32 1.0, %v3030
    %v3032 = vadd.f32 %v1473, %v2953
    %v3033 = vxor.u32 %v3032, 2147483648
    %v3034 = vmul.f32 %v3033, 1.442695
    %v3035 = vpow.pop %v3034
    %v3036 = vadd.f32 %v3035, 1.0
    %v3037 = vrcp.pop %v3036
    %v3038 = vmul.f32 1.0, %v3037
    %v3039 = vadd.f32 %v3022, %v1723
    %v3040 = vmul.f32 %v3031, %v3039
    %v3041 = vadd.f32 %v1667, %v3040
    %v3042 = vtanh.pop %v3041
    %v3043 = vsub.f32 1.0, %v3038
    %v3044 = vmul.f32 %v3043, %v3042
    %v3045 = vmul.f32 %v3038, %v2881
    %v3046 = vadd.f32 %v3044, %v3045
    %vm3047 = vcmp.eq.s32.totalorder %v1728, 7
    %v3048 = vsel %vm3047, %v3046, %v2883
    %v3049 = vld [vmem:[#allocation5] sm:$0xff]
    %v3050 = vld [vmem:[#allocation5 + $0x8] sm:$0xff]
    %v3051 = vld [vmem:[#allocation5 + $0x10] sm:$0xff]
    %v3052 = vld [vmem:[#allocation5 + $0x18] sm:$0xff]
    %v3053 = vld [vmem:[#allocation5 + $0x20] sm:$0xff]
    %v3054 = vld [vmem:[#allocation5 + $0x28] sm:$0xff]
    %v3055 = vld [vmem:[#allocation5 + $0x30] sm:$0xff]
    %v3056 = vld [vmem:[#allocation5 + $0x38] sm:$0xff]
    %v3057 = vld [vmem:[#allocation5 + $0x40] sm:$0xff]
    %v3058 = vld [vmem:[#allocation5 + $0x48] sm:$0xff]
    %v3059 = vld [vmem:[#allocation5 + $0x50] sm:$0xff]
    %v3060 = vld [vmem:[#allocation5 + $0x58] sm:$0xff]
    %v3061 = vld [vmem:[#allocation5 + $0x60] sm:$0xff]
    %v3062 = vld [vmem:[#allocation5 + $0x68] sm:$0xff]
    %v3063 = vld [vmem:[#allocation5 + $0x70] sm:$0xff]
    %v3064 = vld [vmem:[#allocation5 + $0x78] sm:$0xff]
    %v3065 = vld [vmem:[#allocation5 + $0x80] sm:$0xff]
    %v3066 = vld [vmem:[#allocation5 + $0x88] sm:$0xff]
    %v3067 = vld [vmem:[#allocation5 + $0x90] sm:$0xff]
    %v3068 = vld [vmem:[#allocation5 + $0x98] sm:$0xff]
    %v3069 = vld [vmem:[#allocation5 + $0xa0] sm:$0xff]
    %v3070 = vld [vmem:[#allocation5 + $0xa8] sm:$0xff]
    %v3071 = vld [vmem:[#allocation5 + $0xb0] sm:$0xff]
    %v3072 = vld [vmem:[#allocation5 + $0xb8] sm:$0xff]
    %v3073 = vld [vmem:[#allocation10] sm:$0xff]
    %v3074 = vld [vmem:[#allocation10 + $0x8] sm:$0xf]
    %v3075 = vld [vmem:[#allocation10 + $0xc] sm:$0xff]
    %v3076 = vld [vmem:[#allocation10 + $0x14] sm:$0xf]
    %v3077 = vld [vmem:[#allocation10 + $0x18] sm:$0xff]
    %v3078 = vld [vmem:[#allocation10 + $0x20] sm:$0xf]
    %v3079 = vld [vmem:[#allocation10 + $0x24] sm:$0xff]
    %v3080 = vld [vmem:[#allocation10 + $0x2c] sm:$0xf]
    %v3081 = vld [vmem:[#allocation10 + $0x30] sm:$0xff]
    %v3082 = vld [vmem:[#allocation10 + $0x38] sm:$0xf]
    %v3083 = vld [vmem:[#allocation10 + $0x3c] sm:$0xff]
    %v3084 = vld [vmem:[#allocation10 + $0x44] sm:$0xf]
    %v3085 = vld [vmem:[#allocation10 + $0x48] sm:$0xff]
    %v3086 = vld [vmem:[#allocation10 + $0x50] sm:$0xf]
    %v3087 = vld [vmem:[#allocation10 + $0x54] sm:$0xff]
    %v3088 = vld [vmem:[#allocation10 + $0x5c] sm:$0xf]
    %v3089 = vld [vmem:[#allocation10 + $0x60] sm:$0xff]
    %v3090 = vld [vmem:[#allocation10 + $0x68] sm:$0xf]
    %v3091 = vld [vmem:[#allocation10 + $0x6c] sm:$0xff]
    %v3092 = vld [vmem:[#allocation10 + $0x74] sm:$0xf]
    %v3093 = vld [vmem:[#allocation10 + $0x78] sm:$0xff]
    %v3094 = vld [vmem:[#allocation10 + $0x80] sm:$0xf]
    %v3095 = vld [vmem:[#allocation10 + $0x84] sm:$0xff]
    %v3096 = vld [vmem:[#allocation10 + $0x8c] sm:$0xf]
    %v3097 = vld [vmem:[#allocation10 + $0x90] sm:$0xff]
    %v3098 = vld [vmem:[#allocation10 + $0x98] sm:$0xf]
    %v3099 = vld [vmem:[#allocation10 + $0x9c] sm:$0xff]
    %v3100 = vld [vmem:[#allocation10 + $0xa4] sm:$0xf]
    %v3101 = vld [vmem:[#allocation10 + $0xa8] sm:$0xff]
    %v3102 = vld [vmem:[#allocation10 + $0xb0] sm:$0xf]
    %v3103 = vld [vmem:[#allocation10 + $0xb4] sm:$0xff]
    %v3104 = vld [vmem:[#allocation10 + $0xbc] sm:$0xf]
    %v3105 = vld [vmem:[#allocation10 + $0xc0] sm:$0xff]
    %v3106 = vld [vmem:[#allocation10 + $0xc8] sm:$0xf]
    %v3107 = vld [vmem:[#allocation10 + $0xcc] sm:$0xff]
    %v3108 = vld [vmem:[#allocation10 + $0xd4] sm:$0xf]
    %v3109 = vld [vmem:[#allocation10 + $0xd8] sm:$0xff]
    %v3110 = vld [vmem:[#allocation10 + $0xe0] sm:$0xf]
    %v3111 = vld [vmem:[#allocation10 + $0xe4] sm:$0xff]
    %v3112 = vld [vmem:[#allocation10 + $0xec] sm:$0xf]
    %v3113 = vld [vmem:[#allocation10 + $0xf0] sm:$0xff]
    %v3114 = vld [vmem:[#allocation10 + $0xf8] sm:$0xf]
    %v3115 = vld [vmem:[#allocation10 + $0xfc] sm:$0xff]
    %v3116 = vld [vmem:[#allocation10 + $0x104] sm:$0xf]
    %v3117 = vld [vmem:[#allocation10 + $0x108] sm:$0xff]
    %v3118 = vld [vmem:[#allocation10 + $0x110] sm:$0xf]
    %v3119 = vld [vmem:[#allocation10 + $0x114] sm:$0xff]
    %v3120 = vld [vmem:[#allocation10 + $0x11c] sm:$0xf]
    %v3121 = vld [vmem:[#allocation10 + $0x120] sm:$0xff]
    %v3122 = vld [vmem:[#allocation10 + $0x128] sm:$0xf]
    %v3123 = vld [vmem:[#allocation10 + $0x12c] sm:$0xff]
    %v3124 = vld [vmem:[#allocation10 + $0x134] sm:$0xf]
    %v3125 = vld [vmem:[#allocation10 + $0x138] sm:$0xff]
    %v3126 = vld [vmem:[#allocation10 + $0x140] sm:$0xf]
    %v3127 = vld [vmem:[#allocation10 + $0x144] sm:$0xff]
    %v3128 = vld [vmem:[#allocation10 + $0x14c] sm:$0xf]
    %v3129 = vld [vmem:[#allocation10 + $0x150] sm:$0xff]
    %v3130 = vld [vmem:[#allocation10 + $0x158] sm:$0xf]
    %v3131 = vld [vmem:[#allocation10 + $0x15c] sm:$0xff]
    %v3132 = vld [vmem:[#allocation10 + $0x164] sm:$0xf]
    %v3133 = vld [vmem:[#allocation10 + $0x168] sm:$0xff]
    %v3134 = vld [vmem:[#allocation10 + $0x170] sm:$0xf]
    %v3135 = vld [vmem:[#allocation10 + $0x174] sm:$0xff]
    %v3136 = vld [vmem:[#allocation10 + $0x17c] sm:$0xf]
    %v3137 = vld [vmem:[#allocation10 + $0x180] sm:$0xff]
    %v3138 = vld [vmem:[#allocation10 + $0x188] sm:$0xf]
    %v3139 = vld [vmem:[#allocation10 + $0x18c] sm:$0xff]
    %v3140 = vld [vmem:[#allocation10 + $0x194] sm:$0xf]
    %v3141 = vld [vmem:[#allocation10 + $0x198] sm:$0xff]
    %v3142 = vld [vmem:[#allocation10 + $0x1a0] sm:$0xf]
    %v3143 = vld [vmem:[#allocation10 + $0x1a4] sm:$0xff]
    %v3144 = vld [vmem:[#allocation10 + $0x1ac] sm:$0xf]
    %v3145 = vld [vmem:[#allocation10 + $0x1b0] sm:$0xff]
    %v3146 = vld [vmem:[#allocation10 + $0x1b8] sm:$0xf]
    %v3147 = vld [vmem:[#allocation10 + $0x1bc] sm:$0xff]
    %v3148 = vld [vmem:[#allocation10 + $0x1c4] sm:$0xf]
    %v3149 = vld [vmem:[#allocation10 + $0x1c8] sm:$0xff]
    %v3150 = vld [vmem:[#allocation10 + $0x1d0] sm:$0xf]
    %v3151 = vld [vmem:[#allocation10 + $0x1d4] sm:$0xff]
    %v3152 = vld [vmem:[#allocation10 + $0x1dc] sm:$0xf]
    %v3153 = vld [vmem:[#allocation10 + $0x1e0] sm:$0xff]
    %v3154 = vld [vmem:[#allocation10 + $0x1e8] sm:$0xf]
    %v3155 = vld [vmem:[#allocation10 + $0x1ec] sm:$0xff]
    %v3156 = vld [vmem:[#allocation10 + $0x1f4] sm:$0xf]
    %v3157 = vld [vmem:[#allocation10 + $0x1f8] sm:$0xff]
    %v3158 = vld [vmem:[#allocation10 + $0x200] sm:$0xf]
    %v3159 = vld [vmem:[#allocation10 + $0x204] sm:$0xff]
    %v3160 = vld [vmem:[#allocation10 + $0x20c] sm:$0xf]
    %v3161 = vld [vmem:[#allocation10 + $0x210] sm:$0xff]
    %v3162 = vld [vmem:[#allocation10 + $0x218] sm:$0xf]
    %v3163 = vld [vmem:[#allocation10 + $0x21c] sm:$0xff]
    %v3164 = vld [vmem:[#allocation10 + $0x224] sm:$0xf]
    %v3165 = vld [vmem:[#allocation10 + $0x228] sm:$0xff]
    %v3166 = vld [vmem:[#allocation10 + $0x230] sm:$0xf]
    %v3167 = vld [vmem:[#allocation10 + $0x234] sm:$0xff]
    %v3168 = vld [vmem:[#allocation10 + $0x23c] sm:$0xf]
    %v3169 = vld [vmem:[#allocation10 + $0x240] sm:$0xff]
    %v3170 = vld [vmem:[#allocation10 + $0x248] sm:$0xf]
    %v3171 = vld [vmem:[#allocation10 + $0x24c] sm:$0xff]
    %v3172 = vld [vmem:[#allocation10 + $0x254] sm:$0xf]
    %v3173 = vld [vmem:[#allocation10 + $0x258] sm:$0xff]
    %v3174 = vld [vmem:[#allocation10 + $0x260] sm:$0xf]
    %v3175 = vld [vmem:[#allocation10 + $0x264] sm:$0xff]
    %v3176 = vld [vmem:[#allocation10 + $0x26c] sm:$0xf]
    %v3177 = vld [vmem:[#allocation10 + $0x270] sm:$0xff]
    %v3178 = vld [vmem:[#allocation10 + $0x278] sm:$0xf]
    %v3179 = vld [vmem:[#allocation10 + $0x27c] sm:$0xff]
    %v3180 = vld [vmem:[#allocation10 + $0x284] sm:$0xf]
    %v3181 = vld [vmem:[#allocation10 + $0x288] sm:$0xff]
    %v3182 = vld [vmem:[#allocation10 + $0x290] sm:$0xf]
    %v3183 = vld [vmem:[#allocation10 + $0x294] sm:$0xff]
    %v3184 = vld [vmem:[#allocation10 + $0x29c] sm:$0xf]
    %v3185 = vld [vmem:[#allocation10 + $0x2a0] sm:$0xff]
    %v3186 = vld [vmem:[#allocation10 + $0x2a8] sm:$0xf]
    %v3187 = vld [vmem:[#allocation10 + $0x2ac] sm:$0xff]
    %v3188 = vld [vmem:[#allocation10 + $0x2b4] sm:$0xf]
    %v3189 = vld [vmem:[#allocation10 + $0x2b8] sm:$0xff]
    %v3190 = vld [vmem:[#allocation10 + $0x2c0] sm:$0xf]
    %v3191 = vld [vmem:[#allocation10 + $0x2c4] sm:$0xff]
    %v3192 = vld [vmem:[#allocation10 + $0x2cc] sm:$0xf]
    %v3193 = vld [vmem:[#allocation10 + $0x2d0] sm:$0xff]
    %v3194 = vld [vmem:[#allocation10 + $0x2d8] sm:$0xf]
    %v3195 = vld [vmem:[#allocation10 + $0x2dc] sm:$0xff]
    %v3196 = vld [vmem:[#allocation10 + $0x2e4] sm:$0xf]
    %v3197 = vld [vmem:[#allocation10 + $0x2e8] sm:$0xff]
    %v3198 = vld [vmem:[#allocation10 + $0x2f0] sm:$0xf]
    %v3199 = vld [vmem:[#allocation10 + $0x2f4] sm:$0xff]
    %v3200 = vld [vmem:[#allocation10 + $0x2fc] sm:$0xf]
    %v3201 = vld [vmem:[#allocation10 + $0x300] sm:$0xff]
    %v3202 = vld [vmem:[#allocation10 + $0x308] sm:$0xf]
    %v3203 = vld [vmem:[#allocation10 + $0x30c] sm:$0xff]
    %v3204 = vld [vmem:[#allocation10 + $0x314] sm:$0xf]
    %v3205 = vld [vmem:[#allocation10 + $0x318] sm:$0xff]
    %v3206 = vld [vmem:[#allocation10 + $0x320] sm:$0xf]
    %v3207 = vld [vmem:[#allocation10 + $0x324] sm:$0xff]
    %v3208 = vld [vmem:[#allocation10 + $0x32c] sm:$0xf]
    %v3209 = vld [vmem:[#allocation10 + $0x330] sm:$0xff]
    %v3210 = vld [vmem:[#allocation10 + $0x338] sm:$0xf]
    %v3211 = vld [vmem:[#allocation10 + $0x33c] sm:$0xff]
    %v3212 = vld [vmem:[#allocation10 + $0x344] sm:$0xf]
    %v3213 = vld [vmem:[#allocation10 + $0x348] sm:$0xff]
    %v3214 = vld [vmem:[#allocation10 + $0x350] sm:$0xf]
    %v3215 = vld [vmem:[#allocation10 + $0x354] sm:$0xff]
    %v3216 = vld [vmem:[#allocation10 + $0x35c] sm:$0xf]
    %v3217 = vld [vmem:[#allocation10 + $0x360] sm:$0xff]
    %v3218 = vld [vmem:[#allocation10 + $0x368] sm:$0xf]
    %v3219 = vld [vmem:[#allocation10 + $0x36c] sm:$0xff]
    %v3220 = vld [vmem:[#allocation10 + $0x374] sm:$0xf]
    %v3221 = vld [vmem:[#allocation10 + $0x378] sm:$0xff]
    %v3222 = vld [vmem:[#allocation10 + $0x380] sm:$0xf]
    %v3223 = vld [vmem:[#allocation10 + $0x384] sm:$0xff]
    %v3224 = vld [vmem:[#allocation10 + $0x38c] sm:$0xf]
    %v3225 = vld [vmem:[#allocation10 + $0x390] sm:$0xff]
    %v3226 = vld [vmem:[#allocation10 + $0x398] sm:$0xf]
    %v3227 = vld [vmem:[#allocation10 + $0x39c] sm:$0xff]
    %v3228 = vld [vmem:[#allocation10 + $0x3a4] sm:$0xf]
    %v3229 = vld [vmem:[#allocation10 + $0x3a8] sm:$0xff]
    %v3230 = vld [vmem:[#allocation10 + $0x3b0] sm:$0xf]
    %v3231 = vld [vmem:[#allocation10 + $0x3b4] sm:$0xff]
    %v3232 = vld [vmem:[#allocation10 + $0x3bc] sm:$0xf]
    %v3233 = vld [vmem:[#allocation10 + $0x3c0] sm:$0xff]
    %v3234 = vld [vmem:[#allocation10 + $0x3c8] sm:$0xf]
    %v3235 = vld [vmem:[#allocation10 + $0x3cc] sm:$0xff]
    %v3236 = vld [vmem:[#allocation10 + $0x3d4] sm:$0xf]
    %v3237 = vld [vmem:[#allocation10 + $0x3d8] sm:$0xff]
    %v3238 = vld [vmem:[#allocation10 + $0x3e0] sm:$0xf]
    %v3239 = vld [vmem:[#allocation10 + $0x3e4] sm:$0xff]
    %v3240 = vld [vmem:[#allocation10 + $0x3ec] sm:$0xf]
    %v3241 = vld [vmem:[#allocation10 + $0x3f0] sm:$0xff]
    %v3242 = vld [vmem:[#allocation10 + $0x3f8] sm:$0xf]
    %v3243 = vld [vmem:[#allocation10 + $0x3fc] sm:$0xff]
    %v3244 = vld [vmem:[#allocation10 + $0x404] sm:$0xf]
    %v3245 = vld [vmem:[#allocation10 + $0x408] sm:$0xff]
    %v3246 = vld [vmem:[#allocation10 + $0x410] sm:$0xf]
    %v3247 = vld [vmem:[#allocation10 + $0x414] sm:$0xff]
    %v3248 = vld [vmem:[#allocation10 + $0x41c] sm:$0xf]
    %v3249 = vld [vmem:[#allocation10 + $0x420] sm:$0xff]
    %v3250 = vld [vmem:[#allocation10 + $0x428] sm:$0xf]
    %v3251 = vld [vmem:[#allocation10 + $0x42c] sm:$0xff]
    %v3252 = vld [vmem:[#allocation10 + $0x434] sm:$0xf]
    %v3253 = vld [vmem:[#allocation10 + $0x438] sm:$0xff]
    %v3254 = vld [vmem:[#allocation10 + $0x440] sm:$0xf]
    %v3255 = vld [vmem:[#allocation10 + $0x444] sm:$0xff]
    %v3256 = vld [vmem:[#allocation10 + $0x44c] sm:$0xf]
    %v3257 = vld [vmem:[#allocation10 + $0x450] sm:$0xff]
    %v3258 = vld [vmem:[#allocation10 + $0x458] sm:$0xf]
    %v3259 = vld [vmem:[#allocation10 + $0x45c] sm:$0xff]
    %v3260 = vld [vmem:[#allocation10 + $0x464] sm:$0xf]
    %v3261 = vld [vmem:[#allocation10 + $0x468] sm:$0xff]
    %v3262 = vld [vmem:[#allocation10 + $0x470] sm:$0xf]
    %v3263 = vld [vmem:[#allocation10 + $0x474] sm:$0xff]
    %v3264 = vld [vmem:[#allocation10 + $0x47c] sm:$0xf]
    %v3265 = vld [vmem:[%s10] sm:$0x7]
    %v3267 = vlaneseq
    %v3268 = vshrl.u32 %v3267, 7
    %v3269 = vsub.s32 0, %v3268
    %v3270 = vrot.slane %v3265, %v3269
    %v3271 = vlaneseq
    %v3272 = vshrl.u32 %v3271, 7
    %v3273 = vsub.s32 1, %v3272
    %v3274 = vrot.slane %v3265, %v3273
    %v3275 = vlaneseq
    %v3276 = vshrl.u32 %v3275, 7
    %v3277 = vsub.s32 2, %v3276
    %v3278 = vrot.slane %v3265, %v3277
    %v3306 = vunpack.c.l.b16 %v3049
    %v3307 = vunpack.c.h.b16 %v3049
    %v3308 = vunpack.c.l.b16 %v3050
    %v3309 = vunpack.c.h.b16 %v3050
    %v3310 = vunpack.c.l.b16 %v3051
    %v3311 = vunpack.c.h.b16 %v3051
    %v3312 = vunpack.c.l.b16 %v3052
    %v3313 = vunpack.c.h.b16 %v3052
    %v3314 = vunpack.c.l.b16 %v3053
    %v3315 = vunpack.c.h.b16 %v3053
    %v3316 = vunpack.c.l.b16 %v3054
    %v3317 = vunpack.c.h.b16 %v3054
    %v3318 = vunpack.c.l.b16 %v3055
    %v3319 = vunpack.c.h.b16 %v3055
    %v3320 = vunpack.c.l.b16 %v3056
    %v3321 = vunpack.c.h.b16 %v3056
    %v3322 = vunpack.c.l.b16 %v3057
    %v3323 = vunpack.c.h.b16 %v3057
    %v3324 = vunpack.c.l.b16 %v3058
    %v3325 = vunpack.c.h.b16 %v3058
    %v3326 = vunpack.c.l.b16 %v3059
    %v3327 = vunpack.c.h.b16 %v3059
    %v3328 = vunpack.c.l.b16 %v3060
    %v3329 = vunpack.c.h.b16 %v3060
    %v3330 = vunpack.c.l.b16 %v3061
    %v3331 = vunpack.c.h.b16 %v3061
    %v3332 = vunpack.c.l.b16 %v3062
    %v3333 = vunpack.c.h.b16 %v3062
    %v3334 = vunpack.c.l.b16 %v3063
    %v3335 = vunpack.c.h.b16 %v3063
    %v3336 = vunpack.c.l.b16 %v3064
    %v3337 = vunpack.c.h.b16 %v3064
    %v3338 = vunpack.c.l.b16 %v3065
    %v3339 = vunpack.c.h.b16 %v3065
    %v3340 = vunpack.c.l.b16 %v3066
    %v3341 = vunpack.c.h.b16 %v3066
    %v3342 = vunpack.c.l.b16 %v3067
    %v3343 = vunpack.c.h.b16 %v3067
    %v3344 = vunpack.c.l.b16 %v3068
    %v3345 = vunpack.c.h.b16 %v3068
    %v3346 = vunpack.c.l.b16 %v3069
    %v3347 = vunpack.c.h.b16 %v3069
    %v3348 = vunpack.c.l.b16 %v3070
    %v3349 = vunpack.c.h.b16 %v3070
    %v3350 = vunpack.c.l.b16 %v3071
    %v3351 = vunpack.c.h.b16 %v3071
    %v3352 = vunpack.c.l.b16 %v3072
    %v3353 = vunpack.c.h.b16 %v3072
    %v3354 = vpack.c.b16 %v3312, %v3306
    %v3355 = vpack.c.b16 %v3313, %v3307
    %v3356 = vpack.c.b16 %v3314, %v3308
    %v3357 = vpack.c.b16 %v3315, %v3309
    %v3358 = vpack.c.b16 %v3316, %v3310
    %v3359 = vpack.c.b16 %v3317, %v3311
    %v3360 = vpack.c.b16 %v3324, %v3318
    %v3361 = vpack.c.b16 %v3325, %v3319
    %v3362 = vpack.c.b16 %v3326, %v3320
    %v3363 = vpack.c.b16 %v3327, %v3321
    %v3364 = vpack.c.b16 %v3328, %v3322
    %v3365 = vpack.c.b16 %v3329, %v3323
    %v3366 = vpack.c.b16 %v3336, %v3330
    %v3367 = vpack.c.b16 %v3337, %v3331
    %v3368 = vpack.c.b16 %v3338, %v3332
    %v3369 = vpack.c.b16 %v3339, %v3333
    %v3370 = vpack.c.b16 %v3340, %v3334
    %v3371 = vpack.c.b16 %v3341, %v3335
    %v3372 = vpack.c.b16 %v3348, %v3342
    %v3373 = vpack.c.b16 %v3349, %v3343
    %v3374 = vpack.c.b16 %v3350, %v3344
    %v3375 = vpack.c.b16 %v3351, %v3345
    %v3376 = vpack.c.b16 %v3352, %v3346
    %v3377 = vpack.c.b16 %v3353, %v3347
    %v3594 = vunpack.c.l.b16 %v3073
    %v3595 = vunpack.c.h.b16 %v3073
    %v3596 = vunpack.c.l.b16 %v3074
    %v3597 = vunpack.c.l.b16 %v3075
    %v3598 = vunpack.c.h.b16 %v3075
    %v3599 = vunpack.c.l.b16 %v3076
    %v3600 = vunpack.c.l.b16 %v3077
    %v3601 = vunpack.c.h.b16 %v3077
    %v3602 = vunpack.c.l.b16 %v3078
    %v3603 = vunpack.c.l.b16 %v3079
    %v3604 = vunpack.c.h.b16 %v3079
    %v3605 = vunpack.c.l.b16 %v3080
    %v3606 = vunpack.c.l.b16 %v3081
    %v3607 = vunpack.c.h.b16 %v3081
    %v3608 = vunpack.c.l.b16 %v3082
    %v3609 = vunpack.c.l.b16 %v3083
    %v3610 = vunpack.c.h.b16 %v3083
    %v3611 = vunpack.c.l.b16 %v3084
    %v3612 = vunpack.c.l.b16 %v3085
    %v3613 = vunpack.c.h.b16 %v3085
    %v3614 = vunpack.c.l.b16 %v3086
    %v3615 = vunpack.c.l.b16 %v3087
    %v3616 = vunpack.c.h.b16 %v3087
    %v3617 = vunpack.c.l.b16 %v3088
    %v3618 = vunpack.c.l.b16 %v3089
    %v3619 = vunpack.c.h.b16 %v3089
    %v3620 = vunpack.c.l.b16 %v3090
    %v3621 = vunpack.c.l.b16 %v3091
    %v3622 = vunpack.c.h.b16 %v3091
    %v3623 = vunpack.c.l.b16 %v3092
    %v3624 = vunpack.c.l.b16 %v3093
    %v3625 = vunpack.c.h.b16 %v3093
    %v3626 = vunpack.c.l.b16 %v3094
    %v3627 = vunpack.c.l.b16 %v3095
    %v3628 = vunpack.c.h.b16 %v3095
    %v3629 = vunpack.c.l.b16 %v3096
    %v3630 = vunpack.c.l.b16 %v3097
    %v3631 = vunpack.c.h.b16 %v3097
    %v3632 = vunpack.c.l.b16 %v3098
    %v3633 = vunpack.c.l.b16 %v3099
    %v3634 = vunpack.c.h.b16 %v3099
    %v3635 = vunpack.c.l.b16 %v3100
    %v3636 = vunpack.c.l.b16 %v3101
    %v3637 = vunpack.c.h.b16 %v3101
    %v3638 = vunpack.c.l.b16 %v3102
    %v3639 = vunpack.c.l.b16 %v3103
    %v3640 = vunpack.c.h.b16 %v3103
    %v3641 = vunpack.c.l.b16 %v3104
    %v3642 = vunpack.c.l.b16 %v3105
    %v3643 = vunpack.c.h.b16 %v3105
    %v3644 = vunpack.c.l.b16 %v3106
    %v3645 = vunpack.c.l.b16 %v3107
    %v3646 = vunpack.c.h.b16 %v3107
    %v3647 = vunpack.c.l.b16 %v3108
    %v3648 = vunpack.c.l.b16 %v3109
    %v3649 = vunpack.c.h.b16 %v3109
    %v3650 = vunpack.c.l.b16 %v3110
    %v3651 = vunpack.c.l.b16 %v3111
    %v3652 = vunpack.c.h.b16 %v3111
    %v3653 = vunpack.c.l.b16 %v3112
    %v3654 = vunpack.c.l.b16 %v3113
    %v3655 = vunpack.c.h.b16 %v3113
    %v3656 = vunpack.c.l.b16 %v3114
    %v3657 = vunpack.c.l.b16 %v3115
    %v3658 = vunpack.c.h.b16 %v3115
    %v3659 = vunpack.c.l.b16 %v3116
    %v3660 = vunpack.c.l.b16 %v3117
    %v3661 = vunpack.c.h.b16 %v3117
    %v3662 = vunpack.c.l.b16 %v3118
    %v3663 = vunpack.c.l.b16 %v3119
    %v3664 = vunpack.c.h.b16 %v3119
    %v3665 = vunpack.c.l.b16 %v3120
    %v3666 = vunpack.c.l.b16 %v3121
    %v3667 = vunpack.c.h.b16 %v3121
    %v3668 = vunpack.c.l.b16 %v3122
    %v3669 = vunpack.c.l.b16 %v3123
    %v3670 = vunpack.c.h.b16 %v3123
    %v3671 = vunpack.c.l.b16 %v3124
    %v3672 = vunpack.c.l.b16 %v3125
    %v3673 = vunpack.c.h.b16 %v3125
    %v3674 = vunpack.c.l.b16 %v3126
    %v3675 = vunpack.c.l.b16 %v3127
    %v3676 = vunpack.c.h.b16 %v3127
    %v3677 = vunpack.c.l.b16 %v3128
    %v3678 = vunpack.c.l.b16 %v3129
    %v3679 = vunpack.c.h.b16 %v3129
    %v3680 = vunpack.c.l.b16 %v3130
    %v3681 = vunpack.c.l.b16 %v3131
    %v3682 = vunpack.c.h.b16 %v3131
    %v3683 = vunpack.c.l.b16 %v3132
    %v3684 = vunpack.c.l.b16 %v3133
    %v3685 = vunpack.c.h.b16 %v3133
    %v3686 = vunpack.c.l.b16 %v3134
    %v3687 = vunpack.c.l.b16 %v3135
    %v3688 = vunpack.c.h.b16 %v3135
    %v3689 = vunpack.c.l.b16 %v3136
    %v3690 = vunpack.c.l.b16 %v3137
    %v3691 = vunpack.c.h.b16 %v3137
    %v3692 = vunpack.c.l.b16 %v3138
    %v3693 = vunpack.c.l.b16 %v3139
    %v3694 = vunpack.c.h.b16 %v3139
    %v3695 = vunpack.c.l.b16 %v3140
    %v3696 = vunpack.c.l.b16 %v3141
    %v3697 = vunpack.c.h.b16 %v3141
    %v3698 = vunpack.c.l.b16 %v3142
    %v3699 = vunpack.c.l.b16 %v3143
    %v3700 = vunpack.c.h.b16 %v3143
    %v3701 = vunpack.c.l.b16 %v3144
    %v3702 = vunpack.c.l.b16 %v3145
    %v3703 = vunpack.c.h.b16 %v3145
    %v3704 = vunpack.c.l.b16 %v3146
    %v3705 = vunpack.c.l.b16 %v3147
    %v3706 = vunpack.c.h.b16 %v3147
    %v3707 = vunpack.c.l.b16 %v3148
    %v3708 = vunpack.c.l.b16 %v3149
    %v3709 = vunpack.c.h.b16 %v3149
    %v3710 = vunpack.c.l.b16 %v3150
    %v3711 = vunpack.c.l.b16 %v3151
    %v3712 = vunpack.c.h.b16 %v3151
    %v3713 = vunpack.c.l.b16 %v3152
    %v3714 = vunpack.c.l.b16 %v3153
    %v3715 = vunpack.c.h.b16 %v3153
    %v3716 = vunpack.c.l.b16 %v3154
    %v3717 = vunpack.c.l.b16 %v3155
    %v3718 = vunpack.c.h.b16 %v3155
    %v3719 = vunpack.c.l.b16 %v3156
    %v3720 = vunpack.c.l.b16 %v3157
    %v3721 = vunpack.c.h.b16 %v3157
    %v3722 = vunpack.c.l.b16 %v3158
    %v3723 = vunpack.c.l.b16 %v3159
    %v3724 = vunpack.c.h.b16 %v3159
    %v3725 = vunpack.c.l.b16 %v3160
    %v3726 = vunpack.c.l.b16 %v3161
    %v3727 = vunpack.c.h.b16 %v3161
    %v3728 = vunpack.c.l.b16 %v3162
    %v3729 = vunpack.c.l.b16 %v3163
    %v3730 = vunpack.c.h.b16 %v3163
    %v3731 = vunpack.c.l.b16 %v3164
    %v3732 = vunpack.c.l.b16 %v3165
    %v3733 = vunpack.c.h.b16 %v3165
    %v3734 = vunpack.c.l.b16 %v3166
    %v3735 = vunpack.c.l.b16 %v3167
    %v3736 = vunpack.c.h.b16 %v3167
    %v3737 = vunpack.c.l.b16 %v3168
    %v3738 = vunpack.c.l.b16 %v3169
    %v3739 = vunpack.c.h.b16 %v3169
    %v3740 = vunpack.c.l.b16 %v3170
    %v3741 = vunpack.c.l.b16 %v3171
    %v3742 = vunpack.c.h.b16 %v3171
    %v3743 = vunpack.c.l.b16 %v3172
    %v3744 = vunpack.c.l.b16 %v3173
    %v3745 = vunpack.c.h.b16 %v3173
    %v3746 = vunpack.c.l.b16 %v3174
    %v3747 = vunpack.c.l.b16 %v3175
    %v3748 = vunpack.c.h.b16 %v3175
    %v3749 = vunpack.c.l.b16 %v3176
    %v3750 = vunpack.c.l.b16 %v3177
    %v3751 = vunpack.c.h.b16 %v3177
    %v3752 = vunpack.c.l.b16 %v3178
    %v3753 = vunpack.c.l.b16 %v3179
    %v3754 = vunpack.c.h.b16 %v3179
    %v3755 = vunpack.c.l.b16 %v3180
    %v3756 = vunpack.c.l.b16 %v3181
    %v3757 = vunpack.c.h.b16 %v3181
    %v3758 = vunpack.c.l.b16 %v3182
    %v3759 = vunpack.c.l.b16 %v3183
    %v3760 = vunpack.c.h.b16 %v3183
    %v3761 = vunpack.c.l.b16 %v3184
    %v3762 = vunpack.c.l.b16 %v3185
    %v3763 = vunpack.c.h.b16 %v3185
    %v3764 = vunpack.c.l.b16 %v3186
    %v3765 = vunpack.c.l.b16 %v3187
    %v3766 = vunpack.c.h.b16 %v3187
    %v3767 = vunpack.c.l.b16 %v3188
    %v3768 = vunpack.c.l.b16 %v3189
    %v3769 = vunpack.c.h.b16 %v3189
    %v3770 = vunpack.c.l.b16 %v3190
    %v3771 = vunpack.c.l.b16 %v3191
    %v3772 = vunpack.c.h.b16 %v3191
    %v3773 = vunpack.c.l.b16 %v3192
    %v3774 = vunpack.c.l.b16 %v3193
    %v3775 = vunpack.c.h.b16 %v3193
    %v3776 = vunpack.c.l.b16 %v3194
    %v3777 = vunpack.c.l.b16 %v3195
    %v3778 = vunpack.c.h.b16 %v3195
    %v3779 = vunpack.c.l.b16 %v3196
    %v3780 = vunpack.c.l.b16 %v3197
    %v3781 = vunpack.c.h.b16 %v3197
    %v3782 = vunpack.c.l.b16 %v3198
    %v3783 = vunpack.c.l.b16 %v3199
    %v3784 = vunpack.c.h.b16 %v3199
    %v3785 = vunpack.c.l.b16 %v3200
    %v3786 = vunpack.c.l.b16 %v3201
    %v3787 = vunpack.c.h.b16 %v3201
    %v3788 = vunpack.c.l.b16 %v3202
    %v3789 = vunpack.c.l.b16 %v3203
    %v3790 = vunpack.c.h.b16 %v3203
    %v3791 = vunpack.c.l.b16 %v3204
    %v3792 = vunpack.c.l.b16 %v3205
    %v3793 = vunpack.c.h.b16 %v3205
    %v3794 = vunpack.c.l.b16 %v3206
    %v3795 = vunpack.c.l.b16 %v3207
    %v3796 = vunpack.c.h.b16 %v3207
    %v3797 = vunpack.c.l.b16 %v3208
    %v3798 = vunpack.c.l.b16 %v3209
    %v3799 = vunpack.c.h.b16 %v3209
    %v3800 = vunpack.c.l.b16 %v3210
    %v3801 = vunpack.c.l.b16 %v3211
    %v3802 = vunpack.c.h.b16 %v3211
    %v3803 = vunpack.c.l.b16 %v3212
    %v3804 = vunpack.c.l.b16 %v3213
    %v3805 = vunpack.c.h.b16 %v3213
    %v3806 = vunpack.c.l.b16 %v3214
    %v3807 = vunpack.c.l.b16 %v3215
    %v3808 = vunpack.c.h.b16 %v3215
    %v3809 = vunpack.c.l.b16 %v3216
    %v3810 = vunpack.c.l.b16 %v3217
    %v3811 = vunpack.c.h.b16 %v3217
    %v3812 = vunpack.c.l.b16 %v3218
    %v3813 = vunpack.c.l.b16 %v3219
    %v3814 = vunpack.c.h.b16 %v3219
    %v3815 = vunpack.c.l.b16 %v3220
    %v3816 = vunpack.c.l.b16 %v3221
    %v3817 = vunpack.c.h.b16 %v3221
    %v3818 = vunpack.c.l.b16 %v3222
    %v3819 = vunpack.c.l.b16 %v3223
    %v3820 = vunpack.c.h.b16 %v3223
    %v3821 = vunpack.c.l.b16 %v3224
    %v3822 = vunpack.c.l.b16 %v3225
    %v3823 = vunpack.c.h.b16 %v3225
    %v3824 = vunpack.c.l.b16 %v3226
    %v3825 = vunpack.c.l.b16 %v3227
    %v3826 = vunpack.c.h.b16 %v3227
    %v3827 = vunpack.c.l.b16 %v3228
    %v3828 = vunpack.c.l.b16 %v3229
    %v3829 = vunpack.c.h.b16 %v3229
    %v3830 = vunpack.c.l.b16 %v3230
    %v3831 = vunpack.c.l.b16 %v3231
    %v3832 = vunpack.c.h.b16 %v3231
    %v3833 = vunpack.c.l.b16 %v3232
    %v3834 = vunpack.c.l.b16 %v3233
    %v3835 = vunpack.c.h.b16 %v3233
    %v3836 = vunpack.c.l.b16 %v3234
    %v3837 = vunpack.c.l.b16 %v3235
    %v3838 = vunpack.c.h.b16 %v3235
    %v3839 = vunpack.c.l.b16 %v3236
    %v3840 = vunpack.c.l.b16 %v3237
    %v3841 = vunpack.c.h.b16 %v3237
    %v3842 = vunpack.c.l.b16 %v3238
    %v3843 = vunpack.c.l.b16 %v3239
    %v3844 = vunpack.c.h.b16 %v3239
    %v3845 = vunpack.c.l.b16 %v3240
    %v3846 = vunpack.c.l.b16 %v3241
    %v3847 = vunpack.c.h.b16 %v3241
    %v3848 = vunpack.c.l.b16 %v3242
    %v3849 = vunpack.c.l.b16 %v3243
    %v3850 = vunpack.c.h.b16 %v3243
    %v3851 = vunpack.c.l.b16 %v3244
    %v3852 = vunpack.c.l.b16 %v3245
    %v3853 = vunpack.c.h.b16 %v3245
    %v3854 = vunpack.c.l.b16 %v3246
    %v3855 = vunpack.c.l.b16 %v3247
    %v3856 = vunpack.c.h.b16 %v3247
    %v3857 = vunpack.c.l.b16 %v3248
    %v3858 = vunpack.c.l.b16 %v3249
    %v3859 = vunpack.c.h.b16 %v3249
    %v3860 = vunpack.c.l.b16 %v3250
    %v3861 = vunpack.c.l.b16 %v3251
    %v3862 = vunpack.c.h.b16 %v3251
    %v3863 = vunpack.c.l.b16 %v3252
    %v3864 = vunpack.c.l.b16 %v3253
    %v3865 = vunpack.c.h.b16 %v3253
    %v3866 = vunpack.c.l.b16 %v3254
    %v3867 = vunpack.c.l.b16 %v3255
    %v3868 = vunpack.c.h.b16 %v3255
    %v3869 = vunpack.c.l.b16 %v3256
    %v3870 = vunpack.c.l.b16 %v3257
    %v3871 = vunpack.c.h.b16 %v3257
    %v3872 = vunpack.c.l.b16 %v3258
    %v3873 = vunpack.c.l.b16 %v3259
    %v3874 = vunpack.c.h.b16 %v3259
    %v3875 = vunpack.c.l.b16 %v3260
    %v3876 = vunpack.c.l.b16 %v3261
    %v3877 = vunpack.c.h.b16 %v3261
    %v3878 = vunpack.c.l.b16 %v3262
    %v3879 = vunpack.c.l.b16 %v3263
    %v3880 = vunpack.c.h.b16 %v3263
    %v3881 = vunpack.c.l.b16 %v3264
    %v3882 = vpack.c.b16 %v3597, %v3594
    %v3883 = vpack.c.b16 %v3598, %v3595
    %v3884 = vpack.c.b16 %v3599, %v3596
    %v3885 = vpack.c.b16 %v3603, %v3600
    %v3886 = vpack.c.b16 %v3604, %v3601
    %v3887 = vpack.c.b16 %v3605, %v3602
    %v3888 = vpack.c.b16 %v3609, %v3606
    %v3889 = vpack.c.b16 %v3610, %v3607
    %v3890 = vpack.c.b16 %v3611, %v3608
    %v3891 = vpack.c.b16 %v3615, %v3612
    %v3892 = vpack.c.b16 %v3616, %v3613
    %v3893 = vpack.c.b16 %v3617, %v3614
    %v3894 = vpack.c.b16 %v3621, %v3618
    %v3895 = vpack.c.b16 %v3622, %v3619
    %v3896 = vpack.c.b16 %v3623, %v3620
    %v3897 = vpack.c.b16 %v3627, %v3624
    %v3898 = vpack.c.b16 %v3628, %v3625
    %v3899 = vpack.c.b16 %v3629, %v3626
    %v3900 = vpack.c.b16 %v3633, %v3630
    %v3901 = vpack.c.b16 %v3634, %v3631
    %v3902 = vpack.c.b16 %v3635, %v3632
    %v3903 = vpack.c.b16 %v3639, %v3636
    %v3904 = vpack.c.b16 %v3640, %v3637
    %v3905 = vpack.c.b16 %v3641, %v3638
    %v3906 = vpack.c.b16 %v3645, %v3642
    %v3907 = vpack.c.b16 %v3646, %v3643
    %v3908 = vpack.c.b16 %v3647, %v3644
    %v3909 = vpack.c.b16 %v3651, %v3648
    %v3910 = vpack.c.b16 %v3652, %v3649
    %v3911 = vpack.c.b16 %v3653, %v3650
    %v3912 = vpack.c.b16 %v3657, %v3654
    %v3913 = vpack.c.b16 %v3658, %v3655
    %v3914 = vpack.c.b16 %v3659, %v3656
    %v3915 = vpack.c.b16 %v3663, %v3660
    %v3916 = vpack.c.b16 %v3664, %v3661
    %v3917 = vpack.c.b16 %v3665, %v3662
    %v3918 = vpack.c.b16 %v3669, %v3666
    %v3919 = vpack.c.b16 %v3670, %v3667
    %v3920 = vpack.c.b16 %v3671, %v3668
    %v3921 = vpack.c.b16 %v3675, %v3672
    %v3922 = vpack.c.b16 %v3676, %v3673
    %v3923 = vpack.c.b16 %v3677, %v3674
    %v3924 = vpack.c.b16 %v3681, %v3678
    %v3925 = vpack.c.b16 %v3682, %v3679
    %v3926 = vpack.c.b16 %v3683, %v3680
    %v3927 = vpack.c.b16 %v3687, %v3684
    %v3928 = vpack.c.b16 %v3688, %v3685
    %v3929 = vpack.c.b16 %v3689, %v3686
    %v3930 = vpack.c.b16 %v3693, %v3690
    %v3931 = vpack.c.b16 %v3694, %v3691
    %v3932 = vpack.c.b16 %v3695, %v3692
    %v3933 = vpack.c.b16 %v3699, %v3696
    %v3934 = vpack.c.b16 %v3700, %v3697
    %v3935 = vpack.c.b16 %v3701, %v3698
    %v3936 = vpack.c.b16 %v3705, %v3702
    %v3937 = vpack.c.b16 %v3706, %v3703
    %v3938 = vpack.c.b16 %v3707, %v3704
    %v3939 = vpack.c.b16 %v3711, %v3708
    %v3940 = vpack.c.b16 %v3712, %v3709
    %v3941 = vpack.c.b16 %v3713, %v3710
    %v3942 = vpack.c.b16 %v3717, %v3714
    %v3943 = vpack.c.b16 %v3718, %v3715
    %v3944 = vpack.c.b16 %v3719, %v3716
    %v3945 = vpack.c.b16 %v3723, %v3720
    %v3946 = vpack.c.b16 %v3724, %v3721
    %v3947 = vpack.c.b16 %v3725, %v3722
    %v3948 = vpack.c.b16 %v3729, %v3726
    %v3949 = vpack.c.b16 %v3730, %v3727
    %v3950 = vpack.c.b16 %v3731, %v3728
    %v3951 = vpack.c.b16 %v3735, %v3732
    %v3952 = vpack.c.b16 %v3736, %v3733
    %v3953 = vpack.c.b16 %v3737, %v3734
    %v3954 = vpack.c.b16 %v3741, %v3738
    %v3955 = vpack.c.b16 %v3742, %v3739
    %v3956 = vpack.c.b16 %v3743, %v3740
    %v3957 = vpack.c.b16 %v3747, %v3744
    %v3958 = vpack.c.b16 %v3748, %v3745
    %v3959 = vpack.c.b16 %v3749, %v3746
    %v3960 = vpack.c.b16 %v3753, %v3750
    %v3961 = vpack.c.b16 %v3754, %v3751
    %v3962 = vpack.c.b16 %v3755, %v3752
    %v3963 = vpack.c.b16 %v3759, %v3756
    %v3964 = vpack.c.b16 %v3760, %v3757
    %v3965 = vpack.c.b16 %v3761, %v3758
    %v3966 = vpack.c.b16 %v3765, %v3762
    %v3967 = vpack.c.b16 %v3766, %v3763
    %v3968 = vpack.c.b16 %v3767, %v3764
    %v3969 = vpack.c.b16 %v3771, %v3768
    %v3970 = vpack.c.b16 %v3772, %v3769
    %v3971 = vpack.c.b16 %v3773, %v3770
    %v3972 = vpack.c.b16 %v3777, %v3774
    %v3973 = vpack.c.b16 %v3778, %v3775
    %v3974 = vpack.c.b16 %v3779, %v3776
    %v3975 = vpack.c.b16 %v3783, %v3780
    %v3976 = vpack.c.b16 %v3784, %v3781
    %v3977 = vpack.c.b16 %v3785, %v3782
    %v3978 = vpack.c.b16 %v3789, %v3786
    %v3979 = vpack.c.b16 %v3790, %v3787
    %v3980 = vpack.c.b16 %v3791, %v3788
    %v3981 = vpack.c.b16 %v3795, %v3792
    %v3982 = vpack.c.b16 %v3796, %v3793
    %v3983 = vpack.c.b16 %v3797, %v3794
    %v3984 = vpack.c.b16 %v3801, %v3798
    %v3985 = vpack.c.b16 %v3802, %v3799
    %v3986 = vpack.c.b16 %v3803, %v3800
    %v3987 = vpack.c.b16 %v3807, %v3804
    %v3988 = vpack.c.b16 %v3808, %v3805
    %v3989 = vpack.c.b16 %v3809, %v3806
    %v3990 = vpack.c.b16 %v3813, %v3810
    %v3991 = vpack.c.b16 %v3814, %v3811
    %v3992 = vpack.c.b16 %v3815, %v3812
    %v3993 = vpack.c.b16 %v3819, %v3816
    %v3994 = vpack.c.b16 %v3820, %v3817
    %v3995 = vpack.c.b16 %v3821, %v3818
    %v3996 = vpack.c.b16 %v3825, %v3822
    %v3997 = vpack.c.b16 %v3826, %v3823
    %v3998 = vpack.c.b16 %v3827, %v3824
    %v3999 = vpack.c.b16 %v3831, %v3828
    %v4000 = vpack.c.b16 %v3832, %v3829
    %v4001 = vpack.c.b16 %v3833, %v3830
    %v4002 = vpack.c.b16 %v3837, %v3834
    %v4003 = vpack.c.b16 %v3838, %v3835
    %v4004 = vpack.c.b16 %v3839, %v3836
    %v4005 = vpack.c.b16 %v3843, %v3840
    %v4006 = vpack.c.b16 %v3844, %v3841
    %v4007 = vpack.c.b16 %v3845, %v3842
    %v4008 = vpack.c.b16 %v3849, %v3846
    %v4009 = vpack.c.b16 %v3850, %v3847
    %v4010 = vpack.c.b16 %v3851, %v3848
    %v4011 = vpack.c.b16 %v3855, %v3852
    %v4012 = vpack.c.b16 %v3856, %v3853
    %v4013 = vpack.c.b16 %v3857, %v3854
    %v4014 = vpack.c.b16 %v3861, %v3858
    %v4015 = vpack.c.b16 %v3862, %v3859
    %v4016 = vpack.c.b16 %v3863, %v3860
    %v4017 = vpack.c.b16 %v3867, %v3864
    %v4018 = vpack.c.b16 %v3868, %v3865
    %v4019 = vpack.c.b16 %v3869, %v3866
    %v4020 = vpack.c.b16 %v3873, %v3870
    %v4021 = vpack.c.b16 %v3874, %v3871
    %v4022 = vpack.c.b16 %v3875, %v3872
    %v4023 = vpack.c.b16 %v3879, %v3876
    %v4024 = vpack.c.b16 %v3880, %v3877
    %v4025 = vpack.c.b16 %v3881, %v3878
    %4170 = vmatprep.subr.bf16.mxu0 %v3883
    %4171 = vmatpush1.bf16.msra.mxu0 %v3882
    %4172 = vmatprep.subr.bf16.mxu0 %v3886
    %4173 = vmatpush1.bf16.msra.mxu0 %v3885
    %4174 = vmatprep.subr.bf16.mxu0 %v3889
    %4175 = vmatpush1.bf16.msra.mxu0 %v3888
    %4176 = vmatprep.subr.bf16.mxu0 %v3892
    %4177 = vmatpush1.bf16.msra.mxu0 %v3891
    %4178 = vmatprep.subr.bf16.mxu0 %v3895
    %4179 = vmatpush1.bf16.msra.mxu0 %v3894
    %4180 = vmatprep.subr.bf16.mxu0 %v3898
    %4181 = vmatpush1.bf16.msra.mxu0 %v3897
    %4182 = vmatprep.subr.bf16.mxu0 %v3901
    %4183 = vmatpush1.bf16.msra.mxu0 %v3900
    %4184 = vmatprep.subr.bf16.mxu0 %v3904
    %4185 = vmatpush1.bf16.msra.mxu0 %v3903
    %4186 = vmatprep.subr.bf16.mxu0 %v3907
    %4187 = vmatpush1.bf16.msra.mxu0 %v3906
    %4188 = vmatprep.subr.bf16.mxu0 %v3910
    %4189 = vmatpush1.bf16.msra.mxu0 %v3909
    %4190 = vmatprep.subr.bf16.mxu0 %v3913
    %4191 = vmatpush1.bf16.msra.mxu0 %v3912
    %4192 = vmatprep.subr.bf16.mxu0 %v3916
    %4193 = vmatpush1.bf16.msra.mxu0 %v3915
    %4194 = vmatprep.subr.bf16.mxu0 %v3919
    %4195 = vmatpush1.bf16.msra.mxu0 %v3918
    %4196 = vmatprep.subr.bf16.mxu0 %v3922
    %4197 = vmatpush1.bf16.msra.mxu0 %v3921
    %4198 = vmatprep.subr.bf16.mxu0 %v3925
    %4199 = vmatpush1.bf16.msra.mxu0 %v3924
    %4200 = vmatprep.subr.bf16.mxu0 %v3928
    %4201 = vmatpush1.bf16.msra.mxu0 %v3927
    %4202 = vmatprep.mubr.bf16.mxu0 %v3355
    %4203 = vmatmul.mubr.bf16.gmra.mrb[0].mxu0 %v3354
    %v4204 = vpop.f32.mrb[0].mxu0
    %v4205 = vadd.f32 %v3270, %v4204
    %v4206 = vpop.f32.mrb[0].mxu0
    %v4207 = vadd.f32 %v3274, %v4206
    %v4208 = vpop.f32.mrb[0].mxu0
    %v4209 = vadd.f32 %v3270, %v4208
    %v4210 = vpop.f32.mrb[0].mxu0
    %v4211 = vadd.f32 %v3274, %v4210
    %4212 = vmatprep.mubr.bf16.mxu0 %v3361
    %4213 = vmatmul.mubr.bf16.gmra.mrb[0].mxu0 %v3360
    %v4214 = vpop.f32.mrb[0].mxu0
    %v4215 = vadd.f32 %v3270, %v4214
    %v4216 = vpop.f32.mrb[0].mxu0
    %v4217 = vadd.f32 %v3274, %v4216
    %v4218 = vpop.f32.mrb[0].mxu0
    %v4219 = vadd.f32 %v3270, %v4218
    %v4220 = vpop.f32.mrb[0].mxu0
    %v4221 = vadd.f32 %v3274, %v4220
    %4222 = vmatprep.mubr.bf16.mxu0 %v3367
    %4223 = vmatmul.mubr.bf16.gmra.mrb[0].mxu0 %v3366
    %v4224 = vpop.f32.mrb[0].mxu0
    %v4225 = vadd.f32 %v3270, %v4224
    %v4226 = vpop.f32.mrb[0].mxu0
    %v4227 = vadd.f32 %v3274, %v4226
    %v4228 = vpop.f32.mrb[0].mxu0
    %v4229 = vadd.f32 %v3270, %v4228
    %v4230 = vpop.f32.mrb[0].mxu0
    %v4231 = vadd.f32 %v3274, %v4230
    %4232 = vmatprep.mubr.bf16.mxu0 %v3373
    %4233 = vmatmul.mubr.bf16.gmra.mrb[0].mxu0 %v3372
    %v4234 = vpop.f32.mrb[0].mxu0
    %v4235 = vadd.f32 %v3270, %v4234
    %v4236 = vpop.f32.mrb[0].mxu0
    %v4237 = vadd.f32 %v3274, %v4236
    %v4238 = vpop.f32.mrb[0].mxu0
    %v4239 = vadd.f32 %v3270, %v4238
    %v4240 = vpop.f32.mrb[0].mxu0
    %v4241 = vadd.f32 %v3274, %v4240
    %4242 = vdwg.mxu0
    %4243 = vmatprep.subr.bf16.mxu0 %v3931
    %4244 = vmatpush1.bf16.msra.mxu0 %v3930
    %4245 = vmatprep.subr.bf16.mxu0 %v3934
    %4246 = vmatpush1.bf16.msra.mxu0 %v3933
    %4247 = vmatprep.subr.bf16.mxu0 %v3937
    %4248 = vmatpush1.bf16.msra.mxu0 %v3936
    %4249 = vmatprep.subr.bf16.mxu0 %v3940
    %4250 = vmatpush1.bf16.msra.mxu0 %v3939
    %4251 = vmatprep.subr.bf16.mxu0 %v3943
    %4252 = vmatpush1.bf16.msra.mxu0 %v3942
    %4253 = vmatprep.subr.bf16.mxu0 %v3946
    %4254 = vmatpush1.bf16.msra.mxu0 %v3945
    %4255 = vmatprep.subr.bf16.mxu0 %v3949
    %4256 = vmatpush1.bf16.msra.mxu0 %v3948
    %4257 = vmatprep.subr.bf16.mxu0 %v3952
    %4258 = vmatpush1.bf16.msra.mxu0 %v3951
    %4259 = vmatprep.subr.bf16.mxu0 %v3955
    %4260 = vmatpush1.bf16.msra.mxu0 %v3954
    %4261 = vmatprep.subr.bf16.mxu0 %v3958
    %4262 = vmatpush1.bf16.msra.mxu0 %v3957
    %4263 = vmatprep.subr.bf16.mxu0 %v3961
    %4264 = vmatpush1.bf16.msra.mxu0 %v3960
    %4265 = vmatprep.subr.bf16.mxu0 %v3964
    %4266 = vmatpush1.bf16.msra.mxu0 %v3963
    %4267 = vmatprep.subr.bf16.mxu0 %v3967
    %4268 = vmatpush1.bf16.msra.mxu0 %v3966
    %4269 = vmatprep.subr.bf16.mxu0 %v3970
    %4270 = vmatpush1.bf16.msra.mxu0 %v3969
    %4271 = vmatprep.subr.bf16.mxu0 %v3973
    %4272 = vmatpush1.bf16.msra.mxu0 %v3972
    %4273 = vmatprep.subr.bf16.mxu0 %v3976
    %4274 = vmatpush1.bf16.msra.mxu0 %v3975
    %4275 = vmatprep.mubr.bf16.mxu0 %v3357
    %4276 = vmatmul.mubr.bf16.gmra.mrb[0].mxu0 %v3356
    %v4277 = vpop.f32.mrb[0].mxu0
    %v4278 = vadd.f32 %v4205, %v4277
    %v4279 = vpop.f32.mrb[0].mxu0
    %v4280 = vadd.f32 %v4207, %v4279
    %v4281 = vpop.f32.mrb[0].mxu0
    %v4282 = vadd.f32 %v4209, %v4281
    %v4283 = vpop.f32.mrb[0].mxu0
    %v4284 = vadd.f32 %v4211, %v4283
    %4285 = vmatprep.mubr.bf16.mxu0 %v3363
    %4286 = vmatmul.mubr.bf16.gmra.mrb[0].mxu0 %v3362
    %v4287 = vpop.f32.mrb[0].mxu0
    %v4288 = vadd.f32 %v4215, %v4287
    %v4289 = vpop.f32.mrb[0].mxu0
    %v4290 = vadd.f32 %v4217, %v4289
    %v4291 = vpop.f32.mrb[0].mxu0
    %v4292 = vadd.f32 %v4219, %v4291
    %v4293 = vpop.f32.mrb[0].mxu0
    %v4294 = vadd.f32 %v4221, %v4293
    %4295 = vmatprep.mubr.bf16.mxu0 %v3369
    %4296 = vmatmul.mubr.bf16.gmra.mrb[0].mxu0 %v3368
    %v4297 = vpop.f32.mrb[0].mxu0
    %v4298 = vadd.f32 %v4225, %v4297
    %v4299 = vpop.f32.mrb[0].mxu0
    %v4300 = vadd.f32 %v4227, %v4299
    %v4301 = vpop.f32.mrb[0].mxu0
    %v4302 = vadd.f32 %v4229, %v4301
    %v4303 = vpop.f32.mrb[0].mxu0
    %v4304 = vadd.f32 %v4231, %v4303
    %4305 = vmatprep.mubr.bf16.mxu0 %v3375
    %4306 = vmatmul.mubr.bf16.gmra.mrb[0].mxu0 %v3374
    %v4307 = vpop.f32.mrb[0].mxu0
    %v4308 = vadd.f32 %v4235, %v4307
    %v4309 = vpop.f32.mrb[0].mxu0
    %v4310 = vadd.f32 %v4237, %v4309
    %v4311 = vpop.f32.mrb[0].mxu0
    %v4312 = vadd.f32 %v4239, %v4311
    %v4313 = vpop.f32.mrb[0].mxu0
    %v4314 = vadd.f32 %v4241, %v4313
    %4315 = vdwg.mxu0
    %4316 = vmatprep.subr.bf16.mxu0 %v3979
    %4317 = vmatpush1.bf16.msra.mxu0 %v3978
    %4318 = vmatprep.subr.bf16.mxu0 %v3982
    %4319 = vmatpush1.bf16.msra.mxu0 %v3981
    %4320 = vmatprep.subr.bf16.mxu0 %v3985
    %4321 = vmatpush1.bf16.msra.mxu0 %v3984
    %4322 = vmatprep.subr.bf16.mxu0 %v3988
    %4323 = vmatpush1.bf16.msra.mxu0 %v3987
    %4324 = vmatprep.subr.bf16.mxu0 %v3991
    %4325 = vmatpush1.bf16.msra.mxu0 %v3990
    %4326 = vmatprep.subr.bf16.mxu0 %v3994
    %4327 = vmatpush1.bf16.msra.mxu0 %v3993
    %4328 = vmatprep.subr.bf16.mxu0 %v3997
    %4329 = vmatpush1.bf16.msra.mxu0 %v3996
    %4330 = vmatprep.subr.bf16.mxu0 %v4000
    %4331 = vmatpush1.bf16.msra.mxu0 %v3999
    %4332 = vmatprep.subr.bf16.mxu0 %v4003
    %4333 = vmatpush1.bf16.msra.mxu0 %v4002
    %4334 = vmatprep.subr.bf16.mxu0 %v4006
    %4335 = vmatpush1.bf16.msra.mxu0 %v4005
    %4336 = vmatprep.subr.bf16.mxu0 %v4009
    %4337 = vmatpush1.bf16.msra.mxu0 %v4008
    %4338 = vmatprep.subr.bf16.mxu0 %v4012
    %4339 = vmatpush1.bf16.msra.mxu0 %v4011
    %4340 = vmatprep.subr.bf16.mxu0 %v4015
    %4341 = vmatpush1.bf16.msra.mxu0 %v4014
    %4342 = vmatprep.subr.bf16.mxu0 %v4018
    %4343 = vmatpush1.bf16.msra.mxu0 %v4017
    %4344 = vmatprep.subr.bf16.mxu0 %v4021
    %4345 = vmatpush1.bf16.msra.mxu0 %v4020
    %4346 = vmatprep.subr.bf16.mxu0 %v4024
    %4347 = vmatpush1.bf16.msra.mxu0 %v4023
    %4348 = vmatprep.mubr.bf16.mxu0 %v3359
    %4349 = vmatmul.mubr.bf16.gmra.mrb[0].mxu0 %v3358
    %v4350 = vpop.f32.mrb[0].mxu0
    %v4351 = vadd.f32 %v4278, %v4350
    %v4352 = vpop.f32.mrb[0].mxu0
    %v4353 = vadd.f32 %v4280, %v4352
    %v4354 = vpop.f32.mrb[0].mxu0
    %v4355 = vadd.f32 %v4282, %v4354
    %v4356 = vpop.f32.mrb[0].mxu0
    %v4357 = vadd.f32 %v4284, %v4356
    %4358 = vmatprep.mubr.bf16.mxu0 %v3365
    %4359 = vmatmul.mubr.bf16.gmra.mrb[0].mxu0 %v3364
    %v4360 = vpop.f32.mrb[0].mxu0
    %v4361 = vadd.f32 %v4288, %v4360
    %v4362 = vpop.f32.mrb[0].mxu0
    %v4363 = vadd.f32 %v4290, %v4362
    %v4364 = vpop.f32.mrb[0].mxu0
    %v4365 = vadd.f32 %v4292, %v4364
    %v4366 = vpop.f32.mrb[0].mxu0
    %v4367 = vadd.f32 %v4294, %v4366
    %4368 = vmatprep.mubr.bf16.mxu0 %v3371
    %4369 = vmatmul.mubr.bf16.gmra.mrb[0].mxu0 %v3370
    %v4370 = vpop.f32.mrb[0].mxu0
    %v4371 = vadd.f32 %v4298, %v4370
    %v4372 = vpop.f32.mrb[0].mxu0
    %v4373 = vadd.f32 %v4300, %v4372
    %v4374 = vpop.f32.mrb[0].mxu0
    %v4375 = vadd.f32 %v4302, %v4374
    %v4376 = vpop.f32.mrb[0].mxu0
    %v4377 = vadd.f32 %v4304, %v4376
    %4378 = vmatprep.mubr.bf16.mxu0 %v3377
    %4379 = vmatmul.mubr.bf16.gmra.mrb[0].mxu0 %v3376
    %v4380 = vpop.f32.mrb[0].mxu0
    %v4381 = vadd.f32 %v4308, %v4380
    %v4382 = vpop.f32.mrb[0].mxu0
    %v4383 = vadd.f32 %v4310, %v4382
    %v4384 = vpop.f32.mrb[0].mxu0
    %v4385 = vadd.f32 %v4312, %v4384
    %v4386 = vpop.f32.mrb[0].mxu0
    %v4387 = vadd.f32 %v4314, %v4386
    %4388 = vdwg.mxu0
    %4389 = vmatprep.subr.bf16.mxu0 0
    %4390 = vmatpush1.bf16.msra.mxu0 %v3884
    %4391 = vmatprep.subr.bf16.mxu0 0
    %4392 = vmatpush1.bf16.msra.mxu0 %v3887
    %4393 = vmatprep.subr.bf16.mxu0 0
    %4394 = vmatpush1.bf16.msra.mxu0 %v3890
    %4395 = vmatprep.subr.bf16.mxu0 0
    %4396 = vmatpush1.bf16.msra.mxu0 %v3893
    %4397 = vmatprep.subr.bf16.mxu0 0
    %4398 = vmatpush1.bf16.msra.mxu0 %v3896
    %4399 = vmatprep.subr.bf16.mxu0 0
    %4400 = vmatpush1.bf16.msra.mxu0 %v3899
    %4401 = vmatprep.subr.bf16.mxu0 0
    %4402 = vmatpush1.bf16.msra.mxu0 %v3902
    %4403 = vmatprep.subr.bf16.mxu0 0
    %4404 = vmatpush1.bf16.msra.mxu0 %v3905
    %4405 = vmatprep.subr.bf16.mxu0 0
    %4406 = vmatpush1.bf16.msra.mxu0 %v3908
    %4407 = vmatprep.subr.bf16.mxu0 0
    %4408 = vmatpush1.bf16.msra.mxu0 %v3911
    %4409 = vmatprep.subr.bf16.mxu0 0
    %4410 = vmatpush1.bf16.msra.mxu0 %v3914
    %4411 = vmatprep.subr.bf16.mxu0 0
    %4412 = vmatpush1.bf16.msra.mxu0 %v3917
    %4413 = vmatprep.subr.bf16.mxu0 0
    %4414 = vmatpush1.bf16.msra.mxu0 %v3920
    %4415 = vmatprep.subr.bf16.mxu0 0
    %4416 = vmatpush1.bf16.msra.mxu0 %v3923
    %4417 = vmatprep.subr.bf16.mxu0 0
    %4418 = vmatpush1.bf16.msra.mxu0 %v3926
    %4419 = vmatprep.subr.bf16.mxu0 0
    %4420 = vmatpush1.bf16.msra.mxu0 %v3929
    %4421 = vmatprep.mubr.bf16.mxu0 %v3355
    %4422 = vmatmul.mubr.bf16.gmra.mrb[0].mxu0 %v3354
    %v4423 = vpop.f32.mrb[0].mxu0
    %v4424 = vadd.f32 %v3278, %v4423
    %v4425 = vpop.f32.mrb[0].mxu0
    %v4426 = vpop.f32.mrb[0].mxu0
    %v4427 = vadd.f32 %v3278, %v4426
    %v4428 = vpop.f32.mrb[0].mxu0
    %4429 = vmatprep.mubr.bf16.mxu0 %v3361
    %4430 = vmatmul.mubr.bf16.gmra.mrb[0].mxu0 %v3360
    %v4431 = vpop.f32.mrb[0].mxu0
    %v4432 = vadd.f32 %v3278, %v4431
    %v4433 = vpop.f32.mrb[0].mxu0
    %v4434 = vpop.f32.mrb[0].mxu0
    %v4435 = vadd.f32 %v3278, %v4434
    %v4436 = vpop.f32.mrb[0].mxu0
    %4437 = vmatprep.mubr.bf16.mxu0 %v3367
    %4438 = vmatmul.mubr.bf16.gmra.mrb[0].mxu0 %v3366
    %v4439 = vpop.f32.mrb[0].mxu0
    %v4440 = vadd.f32 %v3278, %v4439
    %v4441 = vpop.f32.mrb[0].mxu0
    %v4442 = vpop.f32.mrb[0].mxu0
    %v4443 = vadd.f32 %v3278, %v4442
    %v4444 = vpop.f32.mrb[0].mxu0
    %4445 = vmatprep.mubr.bf16.mxu0 %v3373
    %4446 = vmatmul.mubr.bf16.gmra.mrb[0].mxu0 %v3372
    %v4447 = vpop.f32.mrb[0].mxu0
    %v4448 = vadd.f32 %v3278, %v4447
    %v4449 = vpop.f32.mrb[0].mxu0
    %v4450 = vpop.f32.mrb[0].mxu0
    %v4451 = vadd.f32 %v3278, %v4450
    %v4452 = vpop.f32.mrb[0].mxu0
    %4453 = vdwg.mxu0
    %4454 = vmatprep.subr.bf16.mxu0 0
    %4455 = vmatpush1.bf16.msra.mxu0 %v3932
    %4456 = vmatprep.subr.bf16.mxu0 0
    %4457 = vmatpush1.bf16.msra.mxu0 %v3935
    %4458 = vmatprep.subr.bf16.mxu0 0
    %4459 = vmatpush1.bf16.msra.mxu0 %v3938
    %4460 = vmatprep.subr.bf16.mxu0 0
    %4461 = vmatpush1.bf16.msra.mxu0 %v3941
    %4462 = vmatprep.subr.bf16.mxu0 0
    %4463 = vmatpush1.bf16.msra.mxu0 %v3944
    %4464 = vmatprep.subr.bf16.mxu0 0
    %4465 = vmatpush1.bf16.msra.mxu0 %v3947
    %4466 = vmatprep.subr.bf16.mxu0 0
    %4467 = vmatpush1.bf16.msra.mxu0 %v3950
    %4468 = vmatprep.subr.bf16.mxu0 0
    %4469 = vmatpush1.bf16.msra.mxu0 %v3953
    %4470 = vmatprep.subr.bf16.mxu0 0
    %4471 = vmatpush1.bf16.msra.mxu0 %v3956
    %4472 = vmatprep.subr.bf16.mxu0 0
    %4473 = vmatpush1.bf16.msra.mxu0 %v3959
    %4474 = vmatprep.subr.bf16.mxu0 0
    %4475 = vmatpush1.bf16.msra.mxu0 %v3962
    %4476 = vmatprep.subr.bf16.mxu0 0
    %4477 = vmatpush1.bf16.msra.mxu0 %v3965
    %4478 = vmatprep.subr.bf16.mxu0 0
    %4479 = vmatpush1.bf16.msra.mxu0 %v3968
    %4480 = vmatprep.subr.bf16.mxu0 0
    %4481 = vmatpush1.bf16.msra.mxu0 %v3971
    %4482 = vmatprep.subr.bf16.mxu0 0
    %4483 = vmatpush1.bf16.msra.mxu0 %v3974
    %4484 = vmatprep.subr.bf16.mxu0 0
    %4485 = vmatpush1.bf16.msra.mxu0 %v3977
    %4486 = vmatprep.mubr.bf16.mxu0 %v3357
    %4487 = vmatmul.mubr.bf16.gmra.mrb[0].mxu0 %v3356
    %v4488 = vpop.f32.mrb[0].mxu0
    %v4489 = vadd.f32 %v4424, %v4488
    %v4490 = vpop.f32.mrb[0].mxu0
    %v4491 = vpop.f32.mrb[0].mxu0
    %v4492 = vadd.f32 %v4427, %v4491
    %v4493 = vpop.f32.mrb[0].mxu0
    %4494 = vmatprep.mubr.bf16.mxu0 %v3363
    %4495 = vmatmul.mubr.bf16.gmra.mrb[0].mxu0 %v3362
    %v4496 = vpop.f32.mrb[0].mxu0
    %v4497 = vadd.f32 %v4432, %v4496
    %v4498 = vpop.f32.mrb[0].mxu0
    %v4499 = vpop.f32.mrb[0].mxu0
    %v4500 = vadd.f32 %v4435, %v4499
    %v4501 = vpop.f32.mrb[0].mxu0
    %4502 = vmatprep.mubr.bf16.mxu0 %v3369
    %4503 = vmatmul.mubr.bf16.gmra.mrb[0].mxu0 %v3368
    %v4504 = vpop.f32.mrb[0].mxu0
    %v4505 = vadd.f32 %v4440, %v4504
    %v4506 = vpop.f32.mrb[0].mxu0
    %v4507 = vpop.f32.mrb[0].mxu0
    %v4508 = vadd.f32 %v4443, %v4507
    %v4509 = vpop.f32.mrb[0].mxu0
    %4510 = vmatprep.mubr.bf16.mxu0 %v3375
    %4511 = vmatmul.mubr.bf16.gmra.mrb[0].mxu0 %v3374
    %v4512 = vpop.f32.mrb[0].mxu0
    %v4513 = vadd.f32 %v4448, %v4512
    %v4514 = vpop.f32.mrb[0].mxu0
    %v4515 = vpop.f32.mrb[0].mxu0
    %v4516 = vadd.f32 %v4451, %v4515
    %v4517 = vpop.f32.mrb[0].mxu0
    %4518 = vdwg.mxu0
    %4519 = vmatprep.subr.bf16.mxu0 0
    %4520 = vmatpush1.bf16.msra.mxu0 %v3980
    %4521 = vmatprep.subr.bf16.mxu0 0
    %4522 = vmatpush1.bf16.msra.mxu0 %v3983
    %4523 = vmatprep.subr.bf16.mxu0 0
    %4524 = vmatpush1.bf16.msra.mxu0 %v3986
    %4525 = vmatprep.subr.bf16.mxu0 0
    %4526 = vmatpush1.bf16.msra.mxu0 %v3989
    %4527 = vmatprep.subr.bf16.mxu0 0
    %4528 = vmatpush1.bf16.msra.mxu0 %v3992
    %4529 = vmatprep.subr.bf16.mxu0 0
    %4530 = vmatpush1.bf16.msra.mxu0 %v3995
    %4531 = vmatprep.subr.bf16.mxu0 0
    %4532 = vmatpush1.bf16.msra.mxu0 %v3998
    %4533 = vmatprep.subr.bf16.mxu0 0
    %4534 = vmatpush1.bf16.msra.mxu0 %v4001
    %4535 = vmatprep.subr.bf16.mxu0 0
    %4536 = vmatpush1.bf16.msra.mxu0 %v4004
    %4537 = vmatprep.subr.bf16.mxu0 0
    %4538 = vmatpush1.bf16.msra.mxu0 %v4007
    %4539 = vmatprep.subr.bf16.mxu0 0
    %4540 = vmatpush1.bf16.msra.mxu0 %v4010
    %4541 = vmatprep.subr.bf16.mxu0 0
    %4542 = vmatpush1.bf16.msra.mxu0 %v4013
    %4543 = vmatprep.subr.bf16.mxu0 0
    %4544 = vmatpush1.bf16.msra.mxu0 %v4016
    %4545 = vmatprep.subr.bf16.mxu0 0
    %4546 = vmatpush1.bf16.msra.mxu0 %v4019
    %4547 = vmatprep.subr.bf16.mxu0 0
    %4548 = vmatpush1.bf16.msra.mxu0 %v4022
    %4549 = vmatprep.subr.bf16.mxu0 0
    %4550 = vmatpush1.bf16.msra.mxu0 %v4025
    %4551 = vmatprep.mubr.bf16.mxu0 %v3359
    %4552 = vmatmul.mubr.bf16.gmra.mrb[0].mxu0 %v3358
    %v4553 = vpop.f32.mrb[0].mxu0
    %v4554 = vadd.f32 %v4489, %v4553
    %v4555 = vpop.f32.mrb[0].mxu0
    %v4556 = vpop.f32.mrb[0].mxu0
    %v4557 = vadd.f32 %v4492, %v4556
    %v4558 = vpop.f32.mrb[0].mxu0
    %4559 = vmatprep.mubr.bf16.mxu0 %v3365
    %4560 = vmatmul.mubr.bf16.gmra.mrb[0].mxu0 %v3364
    %v4561 = vpop.f32.mrb[0].mxu0
    %v4562 = vadd.f32 %v4497, %v4561
    %v4563 = vpop.f32.mrb[0].mxu0
    %v4564 = vpop.f32.mrb[0].mxu0
    %v4565 = vadd.f32 %v4500, %v4564
    %v4566 = vpop.f32.mrb[0].mxu0
    %4567 = vmatprep.mubr.bf16.mxu0 %v3371
    %4568 = vmatmul.mubr.bf16.gmra.mrb[0].mxu0 %v3370
    %v4569 = vpop.f32.mrb[0].mxu0
    %v4570 = vadd.f32 %v4505, %v4569
    %v4571 = vpop.f32.mrb[0].mxu0
    %v4572 = vpop.f32.mrb[0].mxu0
    %v4573 = vadd.f32 %v4508, %v4572
    %v4574 = vpop.f32.mrb[0].mxu0
    %4575 = vmatprep.mubr.bf16.mxu0 %v3377
    %4576 = vmatmul.mubr.bf16.gmra.mrb[0].mxu0 %v3376
    %v4577 = vpop.f32.mrb[0].mxu0
    %v4578 = vadd.f32 %v4513, %v4577
    %v4579 = vpop.f32.mrb[0].mxu0
    %v4580 = vpop.f32.mrb[0].mxu0
    %v4581 = vadd.f32 %v4516, %v4580
    %v4582 = vpop.f32.mrb[0].mxu0
    %4583 = vdwg.mxu0
    %v4584 = vld [vmem:[#allocation11] sm:$0xff]
    %v4585 = vld [vmem:[#allocation11 + $0x8] sm:$0xff]
    %v4586 = vld [vmem:[#allocation11 + $0x10] sm:$0xff]
    %v4587 = vld [vmem:[#allocation11 + $0x18] sm:$0xff]
    %v4588 = vld [vmem:[#allocation11 + $0x20] sm:$0xff]
    %v4589 = vld [vmem:[#allocation11 + $0x28] sm:$0xff]
    %v4590 = vld [vmem:[#allocation11 + $0x30] sm:$0xff]
    %v4591 = vld [vmem:[#allocation11 + $0x38] sm:$0xff]
    %v4592 = vld [vmem:[#allocation11 + $0x40] sm:$0xff]
    %v4593 = vld [vmem:[#allocation11 + $0x48] sm:$0xff]
    %v4594 = vld [vmem:[#allocation11 + $0x50] sm:$0xff]
    %v4595 = vld [vmem:[#allocation11 + $0x58] sm:$0xff]
    %v4596 = vld [vmem:[#allocation11 + $0x60] sm:$0xff]
    %v4597 = vld [vmem:[#allocation11 + $0x68] sm:$0xff]
    %v4598 = vld [vmem:[#allocation11 + $0x70] sm:$0xff]
    %v4599 = vld [vmem:[#allocation11 + $0x78] sm:$0xff]
    %v4600 = vld [vmem:[#allocation11 + $0x80] sm:$0xff]
    %v4601 = vld [vmem:[#allocation11 + $0x88] sm:$0xff]
    %v4602 = vld [vmem:[#allocation11 + $0x90] sm:$0xff]
    %v4603 = vld [vmem:[#allocation11 + $0x98] sm:$0xff]
    %v4604 = vld [vmem:[#allocation11 + $0xa0] sm:$0xff]
    %v4605 = vld [vmem:[#allocation11 + $0xa8] sm:$0xff]
    %v4606 = vld [vmem:[#allocation11 + $0xb0] sm:$0xff]
    %v4607 = vld [vmem:[#allocation11 + $0xb8] sm:$0xff]
    %v4608 = vld [vmem:[#allocation11 + $0xc0] sm:$0xff]
    %v4609 = vld [vmem:[#allocation11 + $0xc8] sm:$0xff]
    %v4610 = vld [vmem:[#allocation11 + $0xd0] sm:$0xff]
    %v4611 = vld [vmem:[#allocation11 + $0xd8] sm:$0xff]
    %v4612 = vld [vmem:[#allocation11 + $0xe0] sm:$0xff]
    %v4613 = vld [vmem:[#allocation11 + $0xe8] sm:$0xff]
    %v4614 = vld [vmem:[#allocation11 + $0xf0] sm:$0xff]
    %v4615 = vld [vmem:[#allocation11 + $0xf8] sm:$0xff]
    %v4616 = vld [vmem:[#allocation11 + $0x100] sm:$0xff]
    %v4617 = vld [vmem:[#allocation11 + $0x108] sm:$0xff]
    %v4618 = vld [vmem:[#allocation11 + $0x110] sm:$0xff]
    %v4619 = vld [vmem:[#allocation11 + $0x118] sm:$0xff]
    %v4620 = vld [vmem:[#allocation11 + $0x120] sm:$0xff]
    %v4621 = vld [vmem:[#allocation11 + $0x128] sm:$0xff]
    %v4622 = vld [vmem:[#allocation11 + $0x130] sm:$0xff]
    %v4623 = vld [vmem:[#allocation11 + $0x138] sm:$0xff]
    %v4624 = vld [vmem:[#allocation11 + $0x140] sm:$0xff]
    %v4625 = vld [vmem:[#allocation11 + $0x148] sm:$0xff]
    %v4626 = vld [vmem:[#allocation11 + $0x150] sm:$0xff]
    %v4627 = vld [vmem:[#allocation11 + $0x158] sm:$0xff]
    %v4628 = vld [vmem:[#allocation11 + $0x160] sm:$0xff]
    %v4629 = vld [vmem:[#allocation11 + $0x168] sm:$0xff]
    %v4630 = vld [vmem:[#allocation11 + $0x170] sm:$0xff]
    %v4631 = vld [vmem:[#allocation11 + $0x178] sm:$0xff]
    %v4632 = vld [vmem:[%s11] sm:$0x1]
    %v4634 = vlaneseq
    %v4635 = vshrl.u32 %v4634, 7
    %v4636 = vsub.s32 0, %v4635
    %v4637 = vrot.slane %v4632, %v4636
    %v4639 = vld [vmem:[%s3] sm:$0xff]
    %4640 = vset.pattern.permute.xlu0 0
    %4641 = vperm.xlu0 %4640, %v4639
    %v4642 = vpop.permute.xlu0 %4641
    %4643 = vmatprep.subr.mxu0 %v4585
    %4644 = vmatpush1.msra.mxu0 %v4584
    %4645 = vmatprep.subr.mxu0 %v4588
    %4646 = vmatpush1.msra.mxu0 %v4587
    %4647 = vmatprep.subr.mxu0 %v4591
    %4648 = vmatpush1.msra.mxu0 %v4590
    %4649 = vmatprep.subr.mxu0 %v4594
    %4650 = vmatpush1.msra.mxu0 %v4593
    %4651 = vmatprep.subr.mxu0 %v4597
    %4652 = vmatpush1.msra.mxu0 %v4596
    %4653 = vmatprep.subr.mxu0 %v4600
    %4654 = vmatpush1.msra.mxu0 %v4599
    %4655 = vmatprep.subr.mxu0 %v4603
    %4656 = vmatpush1.msra.mxu0 %v4602
    %4657 = vmatprep.subr.mxu0 %v4606
    %4658 = vmatpush1.msra.mxu0 %v4605
    %4659 = vmatprep.subr.mxu0 %v4609
    %4660 = vmatpush1.msra.mxu0 %v4608
    %4661 = vmatprep.subr.mxu0 %v4612
    %4662 = vmatpush1.msra.mxu0 %v4611
    %4663 = vmatprep.subr.mxu0 %v4615
    %4664 = vmatpush1.msra.mxu0 %v4614
    %4665 = vmatprep.subr.mxu0 %v4618
    %4666 = vmatpush1.msra.mxu0 %v4617
    %4667 = vmatprep.subr.mxu0 %v4621
    %4668 = vmatpush1.msra.mxu0 %v4620
    %4669 = vmatprep.subr.mxu0 %v4624
    %4670 = vmatpush1.msra.mxu0 %v4623
    %4671 = vmatprep.subr.mxu0 %v4627
    %4672 = vmatpush1.msra.mxu0 %v4626
    %4673 = vmatprep.subr.mxu0 %v4630
    %4674 = vmatpush1.msra.mxu0 %v4629
    %4675 = vmatprep.subr.mxu0 0.0
    %4676 = vmatpush1.msra.mxu0 0.0
    %4677 = vmatprep.subr.mxu0 0.0
    %4678 = vmatpush1.msra.mxu0 0.0
    %4679 = vmatprep.subr.mxu0 0.0
    %4680 = vmatpush1.msra.mxu0 0.0
    %4681 = vmatprep.subr.mxu0 0.0
    %4682 = vmatpush1.msra.mxu0 0.0
    %4683 = vmatprep.subr.mxu0 0.0
    %4684 = vmatpush1.msra.mxu0 0.0
    %4685 = vmatprep.subr.mxu0 0.0
    %4686 = vmatpush1.msra.mxu0 0.0
    %4687 = vmatprep.subr.mxu0 0.0
    %4688 = vmatpush1.msra.mxu0 0.0
    %4689 = vmatprep.subr.mxu0 0.0
    %4690 = vmatpush1.msra.mxu0 0.0
    %4691 = vmatprep.subr.mxu0 0.0
    %4692 = vmatpush1.msra.mxu0 0.0
    %4693 = vmatprep.subr.mxu0 0.0
    %4694 = vmatpush1.msra.mxu0 0.0
    %4695 = vmatprep.subr.mxu0 0.0
    %4696 = vmatpush1.msra.mxu0 0.0
    %4697 = vmatprep.subr.mxu0 0.0
    %4698 = vmatpush1.msra.mxu0 0.0
    %4699 = vmatprep.subr.mxu0 0.0
    %4700 = vmatpush1.msra.mxu0 0.0
    %4701 = vmatprep.subr.mxu0 0.0
    %4702 = vmatpush1.msra.mxu0 0.0
    %4703 = vmatprep.subr.mxu0 0.0
    %4704 = vmatpush1.msra.mxu0 0.0
    %4705 = vmatprep.subr.mxu0 0.0
    %4706 = vmatpush1.msra.mxu0 0.0
    %4707 = vmatprep.mubr.f32.mxu0 0.0
    %4708 = vmatmul.mubr.f32.gmra.mrb[0].mxu0 0.0
    %v4709 = vpop.f32.mrb[0].mxu0
    %v4710 = vadd.f32 0.0, %v4709
    %v4711 = vpop.f32.mrb[0].mxu0
    %v4712 = vadd.f32 0.0, %v4711
    %4713 = vdwg.mxu0
    %4714 = vmatprep.subr.mxu0 0.0
    %4715 = vmatpush1.msra.mxu0 %v4586
    %4716 = vmatprep.subr.mxu0 0.0
    %4717 = vmatpush1.msra.mxu0 %v4589
    %4718 = vmatprep.subr.mxu0 0.0
    %4719 = vmatpush1.msra.mxu0 %v4592
    %4720 = vmatprep.subr.mxu0 0.0
    %4721 = vmatpush1.msra.mxu0 %v4595
    %4722 = vmatprep.subr.mxu0 0.0
    %4723 = vmatpush1.msra.mxu0 %v4598
    %4724 = vmatprep.subr.mxu0 0.0
    %4725 = vmatpush1.msra.mxu0 %v4601
    %4726 = vmatprep.subr.mxu0 0.0
    %4727 = vmatpush1.msra.mxu0 %v4604
    %4728 = vmatprep.subr.mxu0 0.0
    %4729 = vmatpush1.msra.mxu0 %v4607
    %4730 = vmatprep.subr.mxu0 0.0
    %4731 = vmatpush1.msra.mxu0 %v4610
    %4732 = vmatprep.subr.mxu0 0.0
    %4733 = vmatpush1.msra.mxu0 %v4613
    %4734 = vmatprep.subr.mxu0 0.0
    %4735 = vmatpush1.msra.mxu0 %v4616
    %4736 = vmatprep.subr.mxu0 0.0
    %4737 = vmatpush1.msra.mxu0 %v4619
    %4738 = vmatprep.subr.mxu0 0.0
    %4739 = vmatpush1.msra.mxu0 %v4622
    %4740 = vmatprep.subr.mxu0 0.0
    %4741 = vmatpush1.msra.mxu0 %v4625
    %4742 = vmatprep.subr.mxu0 0.0
    %4743 = vmatpush1.msra.mxu0 %v4628
    %4744 = vmatprep.subr.mxu0 0.0
    %4745 = vmatpush1.msra.mxu0 %v4631
    %4746 = vmatprep.subr.mxu0 0.0
    %4747 = vmatpush1.msra.mxu0 0.0
    %4748 = vmatprep.subr.mxu0 0.0
    %4749 = vmatpush1.msra.mxu0 0.0
    %4750 = vmatprep.subr.mxu0 0.0
    %4751 = vmatpush1.msra.mxu0 0.0
    %4752 = vmatprep.subr.mxu0 0.0
    %4753 = vmatpush1.msra.mxu0 0.0
    %4754 = vmatprep.subr.mxu0 0.0
    %4755 = vmatpush1.msra.mxu0 0.0
    %4756 = vmatprep.subr.mxu0 0.0
    %4757 = vmatpush1.msra.mxu0 0.0
    %4758 = vmatprep.subr.mxu0 0.0
    %4759 = vmatpush1.msra.mxu0 0.0
    %4760 = vmatprep.subr.mxu0 0.0
    %4761 = vmatpush1.msra.mxu0 0.0
    %4762 = vmatprep.subr.mxu0 0.0
    %4763 = vmatpush1.msra.mxu0 0.0
    %4764 = vmatprep.subr.mxu0 0.0
    %4765 = vmatpush1.msra.mxu0 0.0
    %4766 = vmatprep.subr.mxu0 0.0
    %4767 = vmatpush1.msra.mxu0 0.0
    %4768 = vmatprep.subr.mxu0 0.0
    %4769 = vmatpush1.msra.mxu0 0.0
    %4770 = vmatprep.subr.mxu0 0.0
    %4771 = vmatpush1.msra.mxu0 0.0
    %4772 = vmatprep.subr.mxu0 0.0
    %4773 = vmatpush1.msra.mxu0 0.0
    %4774 = vmatprep.subr.mxu0 0.0
    %4775 = vmatpush1.msra.mxu0 0.0
    %4776 = vmatprep.subr.mxu0 0.0
    %4777 = vmatpush1.msra.mxu0 0.0
    %4778 = vmatprep.mubr.f32.mxu0 0.0
    %4779 = vmatmul.mubr.f32.gmra.mrb[0].mxu0 0.0
    %v4780 = vpop.f32.mrb[0].mxu0
    %v4781 = vadd.f32 0.0, %v4780
    %v4782 = vpop.f32.mrb[0].mxu0
    %4783 = vdwg.mxu0
    %v4784 = vadd.f32 %v4351, %v4710
    %v4785 = vxor.u32 %v4784, 2147483648
    %v4786 = vmul.f32 %v4785, 1.442695
    %v4787 = vpow.pop %v4786
    %v4788 = vadd.f32 %v4787, 1.0
    %v4789 = vrcp.pop %v4788
    %v4790 = vmul.f32 1.0, %v4789
    %v4791 = vadd.f32 %v4353, %v4712
    %v4792 = vxor.u32 %v4791, 2147483648
    %v4793 = vmul.f32 %v4792, 1.442695
    %v4794 = vpow.pop %v4793
    %v4795 = vadd.f32 %v4794, 1.0
    %v4796 = vrcp.pop %v4795
    %v4797 = vmul.f32 1.0, %v4796
    %v4798 = vadd.f32 %v4781, %v4637
    %v4799 = vmul.f32 %v4790, %v4798
    %v4800 = vadd.f32 %v4554, %v4799
    %v4801 = vtanh.pop %v4800
    %v4802 = vsub.f32 1.0, %v4797
    %v4803 = vmul.f32 %v4802, %v4801
    %v4804 = vmul.f32 %v4797, 0.0
    %v4805 = vadd.f32 %v4803, %v4804
    %vm4806 = vcmp.eq.s32.totalorder %v4642, 0
    %v4807 = vsel %vm4806, %v4805, 0.0
    %4808 = vmatprep.subr.mxu0 %v4585
    %4809 = vmatpush1.msra.mxu0 %v4584
    %4810 = vmatprep.subr.mxu0 %v4588
    %4811 = vmatpush1.msra.mxu0 %v4587
    %4812 = vmatprep.subr.mxu0 %v4591
    %4813 = vmatpush1.msra.mxu0 %v4590
    %4814 = vmatprep.subr.mxu0 %v4594
    %4815 = vmatpush1.msra.mxu0 %v4593
    %4816 = vmatprep.subr.mxu0 %v4597
    %4817 = vmatpush1.msra.mxu0 %v4596
    %4818 = vmatprep.subr.mxu0 %v4600
    %4819 = vmatpush1.msra.mxu0 %v4599
    %4820 = vmatprep.subr.mxu0 %v4603
    %4821 = vmatpush1.msra.mxu0 %v4602
    %4822 = vmatprep.subr.mxu0 %v4606
    %4823 = vmatpush1.msra.mxu0 %v4605
    %4824 = vmatprep.subr.mxu0 %v4609
    %4825 = vmatpush1.msra.mxu0 %v4608
    %4826 = vmatprep.subr.mxu0 %v4612
    %4827 = vmatpush1.msra.mxu0 %v4611
    %4828 = vmatprep.subr.mxu0 %v4615
    %4829 = vmatpush1.msra.mxu0 %v4614
    %4830 = vmatprep.subr.mxu0 %v4618
    %4831 = vmatpush1.msra.mxu0 %v4617
    %4832 = vmatprep.subr.mxu0 %v4621
    %4833 = vmatpush1.msra.mxu0 %v4620
    %4834 = vmatprep.subr.mxu0 %v4624
    %4835 = vmatpush1.msra.mxu0 %v4623
    %4836 = vmatprep.subr.mxu0 %v4627
    %4837 = vmatpush1.msra.mxu0 %v4626
    %4838 = vmatprep.subr.mxu0 %v4630
    %4839 = vmatpush1.msra.mxu0 %v4629
    %4840 = vmatprep.subr.mxu0 0.0
    %4841 = vmatpush1.msra.mxu0 0.0
    %4842 = vmatprep.subr.mxu0 0.0
    %4843 = vmatpush1.msra.mxu0 0.0
    %4844 = vmatprep.subr.mxu0 0.0
    %4845 = vmatpush1.msra.mxu0 0.0
    %4846 = vmatprep.subr.mxu0 0.0
    %4847 = vmatpush1.msra.mxu0 0.0
    %4848 = vmatprep.subr.mxu0 0.0
    %4849 = vmatpush1.msra.mxu0 0.0
    %4850 = vmatprep.subr.mxu0 0.0
    %4851 = vmatpush1.msra.mxu0 0.0
    %4852 = vmatprep.subr.mxu0 0.0
    %4853 = vmatpush1.msra.mxu0 0.0
    %4854 = vmatprep.subr.mxu0 0.0
    %4855 = vmatpush1.msra.mxu0 0.0
    %4856 = vmatprep.subr.mxu0 0.0
    %4857 = vmatpush1.msra.mxu0 0.0
    %4858 = vmatprep.subr.mxu0 0.0
    %4859 = vmatpush1.msra.mxu0 0.0
    %4860 = vmatprep.subr.mxu0 0.0
    %4861 = vmatpush1.msra.mxu0 0.0
    %4862 = vmatprep.subr.mxu0 0.0
    %4863 = vmatpush1.msra.mxu0 0.0
    %4864 = vmatprep.subr.mxu0 0.0
    %4865 = vmatpush1.msra.mxu0 0.0
    %4866 = vmatprep.subr.mxu0 0.0
    %4867 = vmatpush1.msra.mxu0 0.0
    %4868 = vmatprep.subr.mxu0 0.0
    %4869 = vmatpush1.msra.mxu0 0.0
    %4870 = vmatprep.subr.mxu0 0.0
    %4871 = vmatpush1.msra.mxu0 0.0
    %4872 = vmatprep.mubr.f32.mxu0 0.0
    %4873 = vmatmul.mubr.f32.gmra.mrb[0].mxu0 %v4805
    %v4874 = vpop.f32.mrb[0].mxu0
    %v4875 = vadd.f32 0.0, %v4874
    %v4876 = vpop.f32.mrb[0].mxu0
    %v4877 = vadd.f32 0.0, %v4876
    %4878 = vdwg.mxu0
    %4879 = vmatprep.subr.mxu0 0.0
    %4880 = vmatpush1.msra.mxu0 %v4586
    %4881 = vmatprep.subr.mxu0 0.0
    %4882 = vmatpush1.msra.mxu0 %v4589
    %4883 = vmatprep.subr.mxu0 0.0
    %4884 = vmatpush1.msra.mxu0 %v4592
    %4885 = vmatprep.subr.mxu0 0.0
    %4886 = vmatpush1.msra.mxu0 %v4595
    %4887 = vmatprep.subr.mxu0 0.0
    %4888 = vmatpush1.msra.mxu0 %v4598
    %4889 = vmatprep.subr.mxu0 0.0
    %4890 = vmatpush1.msra.mxu0 %v4601
    %4891 = vmatprep.subr.mxu0 0.0
    %4892 = vmatpush1.msra.mxu0 %v4604
    %4893 = vmatprep.subr.mxu0 0.0
    %4894 = vmatpush1.msra.mxu0 %v4607
    %4895 = vmatprep.subr.mxu0 0.0
    %4896 = vmatpush1.msra.mxu0 %v4610
    %4897 = vmatprep.subr.mxu0 0.0
    %4898 = vmatpush1.msra.mxu0 %v4613
    %4899 = vmatprep.subr.mxu0 0.0
    %4900 = vmatpush1.msra.mxu0 %v4616
    %4901 = vmatprep.subr.mxu0 0.0
    %4902 = vmatpush1.msra.mxu0 %v4619
    %4903 = vmatprep.subr.mxu0 0.0
    %4904 = vmatpush1.msra.mxu0 %v4622
    %4905 = vmatprep.subr.mxu0 0.0
    %4906 = vmatpush1.msra.mxu0 %v4625
    %4907 = vmatprep.subr.mxu0 0.0
    %4908 = vmatpush1.msra.mxu0 %v4628
    %4909 = vmatprep.subr.mxu0 0.0
    %4910 = vmatpush1.msra.mxu0 %v4631
    %4911 = vmatprep.subr.mxu0 0.0
    %4912 = vmatpush1.msra.mxu0 0.0
    %4913 = vmatprep.subr.mxu0 0.0
    %4914 = vmatpush1.msra.mxu0 0.0
    %4915 = vmatprep.subr.mxu0 0.0
    %4916 = vmatpush1.msra.mxu0 0.0
    %4917 = vmatprep.subr.mxu0 0.0
    %4918 = vmatpush1.msra.mxu0 0.0
    %4919 = vmatprep.subr.mxu0 0.0
    %4920 = vmatpush1.msra.mxu0 0.0
    %4921 = vmatprep.subr.mxu0 0.0
    %4922 = vmatpush1.msra.mxu0 0.0
    %4923 = vmatprep.subr.mxu0 0.0
    %4924 = vmatpush1.msra.mxu0 0.0
    %4925 = vmatprep.subr.mxu0 0.0
    %4926 = vmatpush1.msra.mxu0 0.0
    %4927 = vmatprep.subr.mxu0 0.0
    %4928 = vmatpush1.msra.mxu0 0.0
    %4929 = vmatprep.subr.mxu0 0.0
    %4930 = vmatpush1.msra.mxu0 0.0
    %4931 = vmatprep.subr.mxu0 0.0
    %4932 = vmatpush1.msra.mxu0 0.0
    %4933 = vmatprep.subr.mxu0 0.0
    %4934 = vmatpush1.msra.mxu0 0.0
    %4935 = vmatprep.subr.mxu0 0.0
    %4936 = vmatpush1.msra.mxu0 0.0
    %4937 = vmatprep.subr.mxu0 0.0
    %4938 = vmatpush1.msra.mxu0 0.0
    %4939 = vmatprep.subr.mxu0 0.0
    %4940 = vmatpush1.msra.mxu0 0.0
    %4941 = vmatprep.subr.mxu0 0.0
    %4942 = vmatpush1.msra.mxu0 0.0
    %4943 = vmatprep.mubr.f32.mxu0 0.0
    %4944 = vmatmul.mubr.f32.gmra.mrb[0].mxu0 %v4805
    %v4945 = vpop.f32.mrb[0].mxu0
    %v4946 = vadd.f32 0.0, %v4945
    %v4947 = vpop.f32.mrb[0].mxu0
    %4948 = vdwg.mxu0
    %v4949 = vadd.f32 %v4355, %v4875
    %v4950 = vxor.u32 %v4949, 2147483648
    %v4951 = vmul.f32 %v4950, 1.442695
    %v4952 = vpow.pop %v4951
    %v4953 = vadd.f32 %v4952, 1.0
    %v4954 = vrcp.pop %v4953
    %v4955 = vmul.f32 1.0, %v4954
    %v4956 = vadd.f32 %v4357, %v4877
    %v4957 = vxor.u32 %v4956, 2147483648
    %v4958 = vmul.f32 %v4957, 1.442695
    %v4959 = vpow.pop %v4958
    %v4960 = vadd.f32 %v4959, 1.0
    %v4961 = vrcp.pop %v4960
    %v4962 = vmul.f32 1.0, %v4961
    %v4963 = vadd.f32 %v4946, %v4637
    %v4964 = vmul.f32 %v4955, %v4963
    %v4965 = vadd.f32 %v4557, %v4964
    %v4966 = vtanh.pop %v4965
    %v4967 = vsub.f32 1.0, %v4962
    %v4968 = vmul.f32 %v4967, %v4966
    %v4969 = vmul.f32 %v4962, %v4805
    %v4970 = vadd.f32 %v4968, %v4969
    %vm4971 = vcmp.eq.s32.totalorder %v4642, 1
    %v4972 = vsel %vm4971, %v4970, %v4807
    %4973 = vmatprep.subr.mxu0 %v4585
    %4974 = vmatpush1.msra.mxu0 %v4584
    %4975 = vmatprep.subr.mxu0 %v4588
    %4976 = vmatpush1.msra.mxu0 %v4587
    %4977 = vmatprep.subr.mxu0 %v4591
    %4978 = vmatpush1.msra.mxu0 %v4590
    %4979 = vmatprep.subr.mxu0 %v4594
    %4980 = vmatpush1.msra.mxu0 %v4593
    %4981 = vmatprep.subr.mxu0 %v4597
    %4982 = vmatpush1.msra.mxu0 %v4596
    %4983 = vmatprep.subr.mxu0 %v4600
    %4984 = vmatpush1.msra.mxu0 %v4599
    %4985 = vmatprep.subr.mxu0 %v4603
    %4986 = vmatpush1.msra.mxu0 %v4602
    %4987 = vmatprep.subr.mxu0 %v4606
    %4988 = vmatpush1.msra.mxu0 %v4605
    %4989 = vmatprep.subr.mxu0 %v4609
    %4990 = vmatpush1.msra.mxu0 %v4608
    %4991 = vmatprep.subr.mxu0 %v4612
    %4992 = vmatpush1.msra.mxu0 %v4611
    %4993 = vmatprep.subr.mxu0 %v4615
    %4994 = vmatpush1.msra.mxu0 %v4614
    %4995 = vmatprep.subr.mxu0 %v4618
    %4996 = vmatpush1.msra.mxu0 %v4617
    %4997 = vmatprep.subr.mxu0 %v4621
    %4998 = vmatpush1.msra.mxu0 %v4620
    %4999 = vmatprep.subr.mxu0 %v4624
    %5000 = vmatpush1.msra.mxu0 %v4623
    %5001 = vmatprep.subr.mxu0 %v4627
    %5002 = vmatpush1.msra.mxu0 %v4626
    %5003 = vmatprep.subr.mxu0 %v4630
    %5004 = vmatpush1.msra.mxu0 %v4629
    %5005 = vmatprep.subr.mxu0 0.0
    %5006 = vmatpush1.msra.mxu0 0.0
    %5007 = vmatprep.subr.mxu0 0.0
    %5008 = vmatpush1.msra.mxu0 0.0
    %5009 = vmatprep.subr.mxu0 0.0
    %5010 = vmatpush1.msra.mxu0 0.0
    %5011 = vmatprep.subr.mxu0 0.0
    %5012 = vmatpush1.msra.mxu0 0.0
    %5013 = vmatprep.subr.mxu0 0.0
    %5014 = vmatpush1.msra.mxu0 0.0
    %5015 = vmatprep.subr.mxu0 0.0
    %5016 = vmatpush1.msra.mxu0 0.0
    %5017 = vmatprep.subr.mxu0 0.0
    %5018 = vmatpush1.msra.mxu0 0.0
    %5019 = vmatprep.subr.mxu0 0.0
    %5020 = vmatpush1.msra.mxu0 0.0
    %5021 = vmatprep.subr.mxu0 0.0
    %5022 = vmatpush1.msra.mxu0 0.0
    %5023 = vmatprep.subr.mxu0 0.0
    %5024 = vmatpush1.msra.mxu0 0.0
    %5025 = vmatprep.subr.mxu0 0.0
    %5026 = vmatpush1.msra.mxu0 0.0
    %5027 = vmatprep.subr.mxu0 0.0
    %5028 = vmatpush1.msra.mxu0 0.0
    %5029 = vmatprep.subr.mxu0 0.0
    %5030 = vmatpush1.msra.mxu0 0.0
    %5031 = vmatprep.subr.mxu0 0.0
    %5032 = vmatpush1.msra.mxu0 0.0
    %5033 = vmatprep.subr.mxu0 0.0
    %5034 = vmatpush1.msra.mxu0 0.0
    %5035 = vmatprep.subr.mxu0 0.0
    %5036 = vmatpush1.msra.mxu0 0.0
    %5037 = vmatprep.mubr.f32.mxu0 0.0
    %5038 = vmatmul.mubr.f32.gmra.mrb[0].mxu0 %v4970
    %v5039 = vpop.f32.mrb[0].mxu0
    %v5040 = vadd.f32 0.0, %v5039
    %v5041 = vpop.f32.mrb[0].mxu0
    %v5042 = vadd.f32 0.0, %v5041
    %5043 = vdwg.mxu0
    %5044 = vmatprep.subr.mxu0 0.0
    %5045 = vmatpush1.msra.mxu0 %v4586
    %5046 = vmatprep.subr.mxu0 0.0
    %5047 = vmatpush1.msra.mxu0 %v4589
    %5048 = vmatprep.subr.mxu0 0.0
    %5049 = vmatpush1.msra.mxu0 %v4592
    %5050 = vmatprep.subr.mxu0 0.0
    %5051 = vmatpush1.msra.mxu0 %v4595
    %5052 = vmatprep.subr.mxu0 0.0
    %5053 = vmatpush1.msra.mxu0 %v4598
    %5054 = vmatprep.subr.mxu0 0.0
    %5055 = vmatpush1.msra.mxu0 %v4601
    %5056 = vmatprep.subr.mxu0 0.0
    %5057 = vmatpush1.msra.mxu0 %v4604
    %5058 = vmatprep.subr.mxu0 0.0
    %5059 = vmatpush1.msra.mxu0 %v4607
    %5060 = vmatprep.subr.mxu0 0.0
    %5061 = vmatpush1.msra.mxu0 %v4610
    %5062 = vmatprep.subr.mxu0 0.0
    %5063 = vmatpush1.msra.mxu0 %v4613
    %5064 = vmatprep.subr.mxu0 0.0
    %5065 = vmatpush1.msra.mxu0 %v4616
    %5066 = vmatprep.subr.mxu0 0.0
    %5067 = vmatpush1.msra.mxu0 %v4619
    %5068 = vmatprep.subr.mxu0 0.0
    %5069 = vmatpush1.msra.mxu0 %v4622
    %5070 = vmatprep.subr.mxu0 0.0
    %5071 = vmatpush1.msra.mxu0 %v4625
    %5072 = vmatprep.subr.mxu0 0.0
    %5073 = vmatpush1.msra.mxu0 %v4628
    %5074 = vmatprep.subr.mxu0 0.0
    %5075 = vmatpush1.msra.mxu0 %v4631
    %5076 = vmatprep.subr.mxu0 0.0
    %5077 = vmatpush1.msra.mxu0 0.0
    %5078 = vmatprep.subr.mxu0 0.0
    %5079 = vmatpush1.msra.mxu0 0.0
    %5080 = vmatprep.subr.mxu0 0.0
    %5081 = vmatpush1.msra.mxu0 0.0
    %5082 = vmatprep.subr.mxu0 0.0
    %5083 = vmatpush1.msra.mxu0 0.0
    %5084 = vmatprep.subr.mxu0 0.0
    %5085 = vmatpush1.msra.mxu0 0.0
    %5086 = vmatprep.subr.mxu0 0.0
    %5087 = vmatpush1.msra.mxu0 0.0
    %5088 = vmatprep.subr.mxu0 0.0
    %5089 = vmatpush1.msra.mxu0 0.0
    %5090 = vmatprep.subr.mxu0 0.0
    %5091 = vmatpush1.msra.mxu0 0.0
    %5092 = vmatprep.subr.mxu0 0.0
    %5093 = vmatpush1.msra.mxu0 0.0
    %5094 = vmatprep.subr.mxu0 0.0
    %5095 = vmatpush1.msra.mxu0 0.0
    %5096 = vmatprep.subr.mxu0 0.0
    %5097 = vmatpush1.msra.mxu0 0.0
    %5098 = vmatprep.subr.mxu0 0.0
    %5099 = vmatpush1.msra.mxu0 0.0
    %5100 = vmatprep.subr.mxu0 0.0
    %5101 = vmatpush1.msra.mxu0 0.0
    %5102 = vmatprep.subr.mxu0 0.0
    %5103 = vmatpush1.msra.mxu0 0.0
    %5104 = vmatprep.subr.mxu0 0.0
    %5105 = vmatpush1.msra.mxu0 0.0
    %5106 = vmatprep.subr.mxu0 0.0
    %5107 = vmatpush1.msra.mxu0 0.0
    %5108 = vmatprep.mubr.f32.mxu0 0.0
    %5109 = vmatmul.mubr.f32.gmra.mrb[0].mxu0 %v4970
    %v5110 = vpop.f32.mrb[0].mxu0
    %v5111 = vadd.f32 0.0, %v5110
    %v5112 = vpop.f32.mrb[0].mxu0
    %5113 = vdwg.mxu0
    %v5114 = vadd.f32 %v4361, %v5040
    %v5115 = vxor.u32 %v5114, 2147483648
    %v5116 = vmul.f32 %v5115, 1.442695
    %v5117 = vpow.pop %v5116
    %v5118 = vadd.f32 %v5117, 1.0
    %v5119 = vrcp.pop %v5118
    %v5120 = vmul.f32 1.0, %v5119
    %v5121 = vadd.f32 %v4363, %v5042
    %v5122 = vxor.u32 %v5121, 2147483648
    %v5123 = vmul.f32 %v5122, 1.442695
    %v5124 = vpow.pop %v5123
    %v5125 = vadd.f32 %v5124, 1.0
    %v5126 = vrcp.pop %v5125
    %v5127 = vmul.f32 1.0, %v5126
    %v5128 = vadd.f32 %v5111, %v4637
    %v5129 = vmul.f32 %v5120, %v5128
    %v5130 = vadd.f32 %v4562, %v5129
    %v5131 = vtanh.pop %v5130
    %v5132 = vsub.f32 1.0, %v5127
    %v5133 = vmul.f32 %v5132, %v5131
    %v5134 = vmul.f32 %v5127, %v4970
    %v5135 = vadd.f32 %v5133, %v5134
    %vm5136 = vcmp.eq.s32.totalorder %v4642, 2
    %v5137 = vsel %vm5136, %v5135, %v4972
    %5138 = vmatprep.subr.mxu0 %v4585
    %5139 = vmatpush1.msra.mxu0 %v4584
    %5140 = vmatprep.subr.mxu0 %v4588
    %5141 = vmatpush1.msra.mxu0 %v4587
    %5142 = vmatprep.subr.mxu0 %v4591
    %5143 = vmatpush1.msra.mxu0 %v4590
    %5144 = vmatprep.subr.mxu0 %v4594
    %5145 = vmatpush1.msra.mxu0 %v4593
    %5146 = vmatprep.subr.mxu0 %v4597
    %5147 = vmatpush1.msra.mxu0 %v4596
    %5148 = vmatprep.subr.mxu0 %v4600
    %5149 = vmatpush1.msra.mxu0 %v4599
    %5150 = vmatprep.subr.mxu0 %v4603
    %5151 = vmatpush1.msra.mxu0 %v4602
    %5152 = vmatprep.subr.mxu0 %v4606
    %5153 = vmatpush1.msra.mxu0 %v4605
    %5154 = vmatprep.subr.mxu0 %v4609
    %5155 = vmatpush1.msra.mxu0 %v4608
    %5156 = vmatprep.subr.mxu0 %v4612
    %5157 = vmatpush1.msra.mxu0 %v4611
    %5158 = vmatprep.subr.mxu0 %v4615
    %5159 = vmatpush1.msra.mxu0 %v4614
    %5160 = vmatprep.subr.mxu0 %v4618
    %5161 = vmatpush1.msra.mxu0 %v4617
    %5162 = vmatprep.subr.mxu0 %v4621
    %5163 = vmatpush1.msra.mxu0 %v4620
    %5164 = vmatprep.subr.mxu0 %v4624
    %5165 = vmatpush1.msra.mxu0 %v4623
    %5166 = vmatprep.subr.mxu0 %v4627
    %5167 = vmatpush1.msra.mxu0 %v4626
    %5168 = vmatprep.subr.mxu0 %v4630
    %5169 = vmatpush1.msra.mxu0 %v4629
    %5170 = vmatprep.subr.mxu0 0.0
    %5171 = vmatpush1.msra.mxu0 0.0
    %5172 = vmatprep.subr.mxu0 0.0
    %5173 = vmatpush1.msra.mxu0 0.0
    %5174 = vmatprep.subr.mxu0 0.0
    %5175 = vmatpush1.msra.mxu0 0.0
    %5176 = vmatprep.subr.mxu0 0.0
    %5177 = vmatpush1.msra.mxu0 0.0
    %5178 = vmatprep.subr.mxu0 0.0
    %5179 = vmatpush1.msra.mxu0 0.0
    %5180 = vmatprep.subr.mxu0 0.0
    %5181 = vmatpush1.msra.mxu0 0.0
    %5182 = vmatprep.subr.mxu0 0.0
    %5183 = vmatpush1.msra.mxu0 0.0
    %5184 = vmatprep.subr.mxu0 0.0
    %5185 = vmatpush1.msra.mxu0 0.0
    %5186 = vmatprep.subr.mxu0 0.0
    %5187 = vmatpush1.msra.mxu0 0.0
    %5188 = vmatprep.subr.mxu0 0.0
    %5189 = vmatpush1.msra.mxu0 0.0
    %5190 = vmatprep.subr.mxu0 0.0
    %5191 = vmatpush1.msra.mxu0 0.0
    %5192 = vmatprep.subr.mxu0 0.0
    %5193 = vmatpush1.msra.mxu0 0.0
    %5194 = vmatprep.subr.mxu0 0.0
    %5195 = vmatpush1.msra.mxu0 0.0
    %5196 = vmatprep.subr.mxu0 0.0
    %5197 = vmatpush1.msra.mxu0 0.0
    %5198 = vmatprep.subr.mxu0 0.0
    %5199 = vmatpush1.msra.mxu0 0.0
    %5200 = vmatprep.subr.mxu0 0.0
    %5201 = vmatpush1.msra.mxu0 0.0
    %5202 = vmatprep.mubr.f32.mxu0 0.0
    %5203 = vmatmul.mubr.f32.gmra.mrb[0].mxu0 %v5135
    %v5204 = vpop.f32.mrb[0].mxu0
    %v5205 = vadd.f32 0.0, %v5204
    %v5206 = vpop.f32.mrb[0].mxu0
    %v5207 = vadd.f32 0.0, %v5206
    %5208 = vdwg.mxu0
    %5209 = vmatprep.subr.mxu0 0.0
    %5210 = vmatpush1.msra.mxu0 %v4586
    %5211 = vmatprep.subr.mxu0 0.0
    %5212 = vmatpush1.msra.mxu0 %v4589
    %5213 = vmatprep.subr.mxu0 0.0
    %5214 = vmatpush1.msra.mxu0 %v4592
    %5215 = vmatprep.subr.mxu0 0.0
    %5216 = vmatpush1.msra.mxu0 %v4595
    %5217 = vmatprep.subr.mxu0 0.0
    %5218 = vmatpush1.msra.mxu0 %v4598
    %5219 = vmatprep.subr.mxu0 0.0
    %5220 = vmatpush1.msra.mxu0 %v4601
    %5221 = vmatprep.subr.mxu0 0.0
    %5222 = vmatpush1.msra.mxu0 %v4604
    %5223 = vmatprep.subr.mxu0 0.0
    %5224 = vmatpush1.msra.mxu0 %v4607
    %5225 = vmatprep.subr.mxu0 0.0
    %5226 = vmatpush1.msra.mxu0 %v4610
    %5227 = vmatprep.subr.mxu0 0.0
    %5228 = vmatpush1.msra.mxu0 %v4613
    %5229 = vmatprep.subr.mxu0 0.0
    %5230 = vmatpush1.msra.mxu0 %v4616
    %5231 = vmatprep.subr.mxu0 0.0
    %5232 = vmatpush1.msra.mxu0 %v4619
    %5233 = vmatprep.subr.mxu0 0.0
    %5234 = vmatpush1.msra.mxu0 %v4622
    %5235 = vmatprep.subr.mxu0 0.0
    %5236 = vmatpush1.msra.mxu0 %v4625
    %5237 = vmatprep.subr.mxu0 0.0
    %5238 = vmatpush1.msra.mxu0 %v4628
    %5239 = vmatprep.subr.mxu0 0.0
    %5240 = vmatpush1.msra.mxu0 %v4631
    %5241 = vmatprep.subr.mxu0 0.0
    %5242 = vmatpush1.msra.mxu0 0.0
    %5243 = vmatprep.subr.mxu0 0.0
    %5244 = vmatpush1.msra.mxu0 0.0
    %5245 = vmatprep.subr.mxu0 0.0
    %5246 = vmatpush1.msra.mxu0 0.0
    %5247 = vmatprep.subr.mxu0 0.0
    %5248 = vmatpush1.msra.mxu0 0.0
    %5249 = vmatprep.subr.mxu0 0.0
    %5250 = vmatpush1.msra.mxu0 0.0
    %5251 = vmatprep.subr.mxu0 0.0
    %5252 = vmatpush1.msra.mxu0 0.0
    %5253 = vmatprep.subr.mxu0 0.0
    %5254 = vmatpush1.msra.mxu0 0.0
    %5255 = vmatprep.subr.mxu0 0.0
    %5256 = vmatpush1.msra.mxu0 0.0
    %5257 = vmatprep.subr.mxu0 0.0
    %5258 = vmatpush1.msra.mxu0 0.0
    %5259 = vmatprep.subr.mxu0 0.0
    %5260 = vmatpush1.msra.mxu0 0.0
    %5261 = vmatprep.subr.mxu0 0.0
    %5262 = vmatpush1.msra.mxu0 0.0
    %5263 = vmatprep.subr.mxu0 0.0
    %5264 = vmatpush1.msra.mxu0 0.0
    %5265 = vmatprep.subr.mxu0 0.0
    %5266 = vmatpush1.msra.mxu0 0.0
    %5267 = vmatprep.subr.mxu0 0.0
    %5268 = vmatpush1.msra.mxu0 0.0
    %5269 = vmatprep.subr.mxu0 0.0
    %5270 = vmatpush1.msra.mxu0 0.0
    %5271 = vmatprep.subr.mxu0 0.0
    %5272 = vmatpush1.msra.mxu0 0.0
    %5273 = vmatprep.mubr.f32.mxu0 0.0
    %5274 = vmatmul.mubr.f32.gmra.mrb[0].mxu0 %v5135
    %v5275 = vpop.f32.mrb[0].mxu0
    %v5276 = vadd.f32 0.0, %v5275
    %v5277 = vpop.f32.mrb[0].mxu0
    %5278 = vdwg.mxu0
    %v5279 = vadd.f32 %v4365, %v5205
    %v5280 = vxor.u32 %v5279, 2147483648
    %v5281 = vmul.f32 %v5280, 1.442695
    %v5282 = vpow.pop %v5281
    %v5283 = vadd.f32 %v5282, 1.0
    %v5284 = vrcp.pop %v5283
    %v5285 = vmul.f32 1.0, %v5284
    %v5286 = vadd.f32 %v4367, %v5207
    %v5287 = vxor.u32 %v5286, 2147483648
    %v5288 = vmul.f32 %v5287, 1.442695
    %v5289 = vpow.pop %v5288
    %v5290 = vadd.f32 %v5289, 1.0
    %v5291 = vrcp.pop %v5290
    %v5292 = vmul.f32 1.0, %v5291
    %v5293 = vadd.f32 %v5276, %v4637
    %v5294 = vmul.f32 %v5285, %v5293
    %v5295 = vadd.f32 %v4565, %v5294
    %v5296 = vtanh.pop %v5295
    %v5297 = vsub.f32 1.0, %v5292
    %v5298 = vmul.f32 %v5297, %v5296
    %v5299 = vmul.f32 %v5292, %v5135
    %v5300 = vadd.f32 %v5298, %v5299
    %vm5301 = vcmp.eq.s32.totalorder %v4642, 3
    %v5302 = vsel %vm5301, %v5300, %v5137
    %5303 = vmatprep.subr.mxu0 %v4585
    %5304 = vmatpush1.msra.mxu0 %v4584
    %5305 = vmatprep.subr.mxu0 %v4588
    %5306 = vmatpush1.msra.mxu0 %v4587
    %5307 = vmatprep.subr.mxu0 %v4591
    %5308 = vmatpush1.msra.mxu0 %v4590
    %5309 = vmatprep.subr.mxu0 %v4594
    %5310 = vmatpush1.msra.mxu0 %v4593
    %5311 = vmatprep.subr.mxu0 %v4597
    %5312 = vmatpush1.msra.mxu0 %v4596
    %5313 = vmatprep.subr.mxu0 %v4600
    %5314 = vmatpush1.msra.mxu0 %v4599
    %5315 = vmatprep.subr.mxu0 %v4603
    %5316 = vmatpush1.msra.mxu0 %v4602
    %5317 = vmatprep.subr.mxu0 %v4606
    %5318 = vmatpush1.msra.mxu0 %v4605
    %5319 = vmatprep.subr.mxu0 %v4609
    %5320 = vmatpush1.msra.mxu0 %v4608
    %5321 = vmatprep.subr.mxu0 %v4612
    %5322 = vmatpush1.msra.mxu0 %v4611
    %5323 = vmatprep.subr.mxu0 %v4615
    %5324 = vmatpush1.msra.mxu0 %v4614
    %5325 = vmatprep.subr.mxu0 %v4618
    %5326 = vmatpush1.msra.mxu0 %v4617
    %5327 = vmatprep.subr.mxu0 %v4621
    %5328 = vmatpush1.msra.mxu0 %v4620
    %5329 = vmatprep.subr.mxu0 %v4624
    %5330 = vmatpush1.msra.mxu0 %v4623
    %5331 = vmatprep.subr.mxu0 %v4627
    %5332 = vmatpush1.msra.mxu0 %v4626
    %5333 = vmatprep.subr.mxu0 %v4630
    %5334 = vmatpush1.msra.mxu0 %v4629
    %5335 = vmatprep.subr.mxu0 0.0
    %5336 = vmatpush1.msra.mxu0 0.0
    %5337 = vmatprep.subr.mxu0 0.0
    %5338 = vmatpush1.msra.mxu0 0.0
    %5339 = vmatprep.subr.mxu0 0.0
    %5340 = vmatpush1.msra.mxu0 0.0
    %5341 = vmatprep.subr.mxu0 0.0
    %5342 = vmatpush1.msra.mxu0 0.0
    %5343 = vmatprep.subr.mxu0 0.0
    %5344 = vmatpush1.msra.mxu0 0.0
    %5345 = vmatprep.subr.mxu0 0.0
    %5346 = vmatpush1.msra.mxu0 0.0
    %5347 = vmatprep.subr.mxu0 0.0
    %5348 = vmatpush1.msra.mxu0 0.0
    %5349 = vmatprep.subr.mxu0 0.0
    %5350 = vmatpush1.msra.mxu0 0.0
    %5351 = vmatprep.subr.mxu0 0.0
    %5352 = vmatpush1.msra.mxu0 0.0
    %5353 = vmatprep.subr.mxu0 0.0
    %5354 = vmatpush1.msra.mxu0 0.0
    %5355 = vmatprep.subr.mxu0 0.0
    %5356 = vmatpush1.msra.mxu0 0.0
    %5357 = vmatprep.subr.mxu0 0.0
    %5358 = vmatpush1.msra.mxu0 0.0
    %5359 = vmatprep.subr.mxu0 0.0
    %5360 = vmatpush1.msra.mxu0 0.0
    %5361 = vmatprep.subr.mxu0 0.0
    %5362 = vmatpush1.msra.mxu0 0.0
    %5363 = vmatprep.subr.mxu0 0.0
    %5364 = vmatpush1.msra.mxu0 0.0
    %5365 = vmatprep.subr.mxu0 0.0
    %5366 = vmatpush1.msra.mxu0 0.0
    %5367 = vmatprep.mubr.f32.mxu0 0.0
    %5368 = vmatmul.mubr.f32.gmra.mrb[0].mxu0 %v5300
    %v5369 = vpop.f32.mrb[0].mxu0
    %v5370 = vadd.f32 0.0, %v5369
    %v5371 = vpop.f32.mrb[0].mxu0
    %v5372 = vadd.f32 0.0, %v5371
    %5373 = vdwg.mxu0
    %5374 = vmatprep.subr.mxu0 0.0
    %5375 = vmatpush1.msra.mxu0 %v4586
    %5376 = vmatprep.subr.mxu0 0.0
    %5377 = vmatpush1.msra.mxu0 %v4589
    %5378 = vmatprep.subr.mxu0 0.0
    %5379 = vmatpush1.msra.mxu0 %v4592
    %5380 = vmatprep.subr.mxu0 0.0
    %5381 = vmatpush1.msra.mxu0 %v4595
    %5382 = vmatprep.subr.mxu0 0.0
    %5383 = vmatpush1.msra.mxu0 %v4598
    %5384 = vmatprep.subr.mxu0 0.0
    %5385 = vmatpush1.msra.mxu0 %v4601
    %5386 = vmatprep.subr.mxu0 0.0
    %5387 = vmatpush1.msra.mxu0 %v4604
    %5388 = vmatprep.subr.mxu0 0.0
    %5389 = vmatpush1.msra.mxu0 %v4607
    %5390 = vmatprep.subr.mxu0 0.0
    %5391 = vmatpush1.msra.mxu0 %v4610
    %5392 = vmatprep.subr.mxu0 0.0
    %5393 = vmatpush1.msra.mxu0 %v4613
    %5394 = vmatprep.subr.mxu0 0.0
    %5395 = vmatpush1.msra.mxu0 %v4616
    %5396 = vmatprep.subr.mxu0 0.0
    %5397 = vmatpush1.msra.mxu0 %v4619
    %5398 = vmatprep.subr.mxu0 0.0
    %5399 = vmatpush1.msra.mxu0 %v4622
    %5400 = vmatprep.subr.mxu0 0.0
    %5401 = vmatpush1.msra.mxu0 %v4625
    %5402 = vmatprep.subr.mxu0 0.0
    %5403 = vmatpush1.msra.mxu0 %v4628
    %5404 = vmatprep.subr.mxu0 0.0
    %5405 = vmatpush1.msra.mxu0 %v4631
    %5406 = vmatprep.subr.mxu0 0.0
    %5407 = vmatpush1.msra.mxu0 0.0
    %5408 = vmatprep.subr.mxu0 0.0
    %5409 = vmatpush1.msra.mxu0 0.0
    %5410 = vmatprep.subr.mxu0 0.0
    %5411 = vmatpush1.msra.mxu0 0.0
    %5412 = vmatprep.subr.mxu0 0.0
    %5413 = vmatpush1.msra.mxu0 0.0
    %5414 = vmatprep.subr.mxu0 0.0
    %5415 = vmatpush1.msra.mxu0 0.0
    %5416 = vmatprep.subr.mxu0 0.0
    %5417 = vmatpush1.msra.mxu0 0.0
    %5418 = vmatprep.subr.mxu0 0.0
    %5419 = vmatpush1.msra.mxu0 0.0
    %5420 = vmatprep.subr.mxu0 0.0
    %5421 = vmatpush1.msra.mxu0 0.0
    %5422 = vmatprep.subr.mxu0 0.0
    %5423 = vmatpush1.msra.mxu0 0.0
    %5424 = vmatprep.subr.mxu0 0.0
    %5425 = vmatpush1.msra.mxu0 0.0
    %5426 = vmatprep.subr.mxu0 0.0
    %5427 = vmatpush1.msra.mxu0 0.0
    %5428 = vmatprep.subr.mxu0 0.0
    %5429 = vmatpush1.msra.mxu0 0.0
    %5430 = vmatprep.subr.mxu0 0.0
    %5431 = vmatpush1.msra.mxu0 0.0
    %5432 = vmatprep.subr.mxu0 0.0
    %5433 = vmatpush1.msra.mxu0 0.0
    %5434 = vmatprep.subr.mxu0 0.0
    %5435 = vmatpush1.msra.mxu0 0.0
    %5436 = vmatprep.subr.mxu0 0.0
    %5437 = vmatpush1.msra.mxu0 0.0
    %5438 = vmatprep.mubr.f32.mxu0 0.0
    %5439 = vmatmul.mubr.f32.gmra.mrb[0].mxu0 %v5300
    %v5440 = vpop.f32.mrb[0].mxu0
    %v5441 = vadd.f32 0.0, %v5440
    %v5442 = vpop.f32.mrb[0].mxu0
    %5443 = vdwg.mxu0
    %v5444 = vadd.f32 %v4371, %v5370
    %v5445 = vxor.u32 %v5444, 2147483648
    %v5446 = vmul.f32 %v5445, 1.442695
    %v5447 = vpow.pop %v5446
    %v5448 = vadd.f32 %v5447, 1.0
    %v5449 = vrcp.pop %v5448
    %v5450 = vmul.f32 1.0, %v5449
    %v5451 = vadd.f32 %v4373, %v5372
    %v5452 = vxor.u32 %v5451, 2147483648
    %v5453 = vmul.f32 %v5452, 1.442695
    %v5454 = vpow.pop %v5453
    %v5455 = vadd.f32 %v5454, 1.0
    %v5456 = vrcp.pop %v5455
    %v5457 = vmul.f32 1.0, %v5456
    %v5458 = vadd.f32 %v5441, %v4637
    %v5459 = vmul.f32 %v5450, %v5458
    %v5460 = vadd.f32 %v4570, %v5459
    %v5461 = vtanh.pop %v5460
    %v5462 = vsub.f32 1.0, %v5457
    %v5463 = vmul.f32 %v5462, %v5461
    %v5464 = vmul.f32 %v5457, %v5300
    %v5465 = vadd.f32 %v5463, %v5464
    %vm5466 = vcmp.eq.s32.totalorder %v4642, 4
    %v5467 = vsel %vm5466, %v5465, %v5302
    %5468 = vmatprep.subr.mxu0 %v4585
    %5469 = vmatpush1.msra.mxu0 %v4584
    %5470 = vmatprep.subr.mxu0 %v4588
    %5471 = vmatpush1.msra.mxu0 %v4587
    %5472 = vmatprep.subr.mxu0 %v4591
    %5473 = vmatpush1.msra.mxu0 %v4590
    %5474 = vmatprep.subr.mxu0 %v4594
    %5475 = vmatpush1.msra.mxu0 %v4593
    %5476 = vmatprep.subr.mxu0 %v4597
    %5477 = vmatpush1.msra.mxu0 %v4596
    %5478 = vmatprep.subr.mxu0 %v4600
    %5479 = vmatpush1.msra.mxu0 %v4599
    %5480 = vmatprep.subr.mxu0 %v4603
    %5481 = vmatpush1.msra.mxu0 %v4602
    %5482 = vmatprep.subr.mxu0 %v4606
    %5483 = vmatpush1.msra.mxu0 %v4605
    %5484 = vmatprep.subr.mxu0 %v4609
    %5485 = vmatpush1.msra.mxu0 %v4608
    %5486 = vmatprep.subr.mxu0 %v4612
    %5487 = vmatpush1.msra.mxu0 %v4611
    %5488 = vmatprep.subr.mxu0 %v4615
    %5489 = vmatpush1.msra.mxu0 %v4614
    %5490 = vmatprep.subr.mxu0 %v4618
    %5491 = vmatpush1.msra.mxu0 %v4617
    %5492 = vmatprep.subr.mxu0 %v4621
    %5493 = vmatpush1.msra.mxu0 %v4620
    %5494 = vmatprep.subr.mxu0 %v4624
    %5495 = vmatpush1.msra.mxu0 %v4623
    %5496 = vmatprep.subr.mxu0 %v4627
    %5497 = vmatpush1.msra.mxu0 %v4626
    %5498 = vmatprep.subr.mxu0 %v4630
    %5499 = vmatpush1.msra.mxu0 %v4629
    %5500 = vmatprep.subr.mxu0 0.0
    %5501 = vmatpush1.msra.mxu0 0.0
    %5502 = vmatprep.subr.mxu0 0.0
    %5503 = vmatpush1.msra.mxu0 0.0
    %5504 = vmatprep.subr.mxu0 0.0
    %5505 = vmatpush1.msra.mxu0 0.0
    %5506 = vmatprep.subr.mxu0 0.0
    %5507 = vmatpush1.msra.mxu0 0.0
    %5508 = vmatprep.subr.mxu0 0.0
    %5509 = vmatpush1.msra.mxu0 0.0
    %5510 = vmatprep.subr.mxu0 0.0
    %5511 = vmatpush1.msra.mxu0 0.0
    %5512 = vmatprep.subr.mxu0 0.0
    %5513 = vmatpush1.msra.mxu0 0.0
    %5514 = vmatprep.subr.mxu0 0.0
    %5515 = vmatpush1.msra.mxu0 0.0
    %5516 = vmatprep.subr.mxu0 0.0
    %5517 = vmatpush1.msra.mxu0 0.0
    %5518 = vmatprep.subr.mxu0 0.0
    %5519 = vmatpush1.msra.mxu0 0.0
    %5520 = vmatprep.subr.mxu0 0.0
    %5521 = vmatpush1.msra.mxu0 0.0
    %5522 = vmatprep.subr.mxu0 0.0
    %5523 = vmatpush1.msra.mxu0 0.0
    %5524 = vmatprep.subr.mxu0 0.0
    %5525 = vmatpush1.msra.mxu0 0.0
    %5526 = vmatprep.subr.mxu0 0.0
    %5527 = vmatpush1.msra.mxu0 0.0
    %5528 = vmatprep.subr.mxu0 0.0
    %5529 = vmatpush1.msra.mxu0 0.0
    %5530 = vmatprep.subr.mxu0 0.0
    %5531 = vmatpush1.msra.mxu0 0.0
    %5532 = vmatprep.mubr.f32.mxu0 0.0
    %5533 = vmatmul.mubr.f32.gmra.mrb[0].mxu0 %v5465
    %v5534 = vpop.f32.mrb[0].mxu0
    %v5535 = vadd.f32 0.0, %v5534
    %v5536 = vpop.f32.mrb[0].mxu0
    %v5537 = vadd.f32 0.0, %v5536
    %5538 = vdwg.mxu0
    %5539 = vmatprep.subr.mxu0 0.0
    %5540 = vmatpush1.msra.mxu0 %v4586
    %5541 = vmatprep.subr.mxu0 0.0
    %5542 = vmatpush1.msra.mxu0 %v4589
    %5543 = vmatprep.subr.mxu0 0.0
    %5544 = vmatpush1.msra.mxu0 %v4592
    %5545 = vmatprep.subr.mxu0 0.0
    %5546 = vmatpush1.msra.mxu0 %v4595
    %5547 = vmatprep.subr.mxu0 0.0
    %5548 = vmatpush1.msra.mxu0 %v4598
    %5549 = vmatprep.subr.mxu0 0.0
    %5550 = vmatpush1.msra.mxu0 %v4601
    %5551 = vmatprep.subr.mxu0 0.0
    %5552 = vmatpush1.msra.mxu0 %v4604
    %5553 = vmatprep.subr.mxu0 0.0
    %5554 = vmatpush1.msra.mxu0 %v4607
    %5555 = vmatprep.subr.mxu0 0.0
    %5556 = vmatpush1.msra.mxu0 %v4610
    %5557 = vmatprep.subr.mxu0 0.0
    %5558 = vmatpush1.msra.mxu0 %v4613
    %5559 = vmatprep.subr.mxu0 0.0
    %5560 = vmatpush1.msra.mxu0 %v4616
    %5561 = vmatprep.subr.mxu0 0.0
    %5562 = vmatpush1.msra.mxu0 %v4619
    %5563 = vmatprep.subr.mxu0 0.0
    %5564 = vmatpush1.msra.mxu0 %v4622
    %5565 = vmatprep.subr.mxu0 0.0
    %5566 = vmatpush1.msra.mxu0 %v4625
    %5567 = vmatprep.subr.mxu0 0.0
    %5568 = vmatpush1.msra.mxu0 %v4628
    %5569 = vmatprep.subr.mxu0 0.0
    %5570 = vmatpush1.msra.mxu0 %v4631
    %5571 = vmatprep.subr.mxu0 0.0
    %5572 = vmatpush1.msra.mxu0 0.0
    %5573 = vmatprep.subr.mxu0 0.0
    %5574 = vmatpush1.msra.mxu0 0.0
    %5575 = vmatprep.subr.mxu0 0.0
    %5576 = vmatpush1.msra.mxu0 0.0
    %5577 = vmatprep.subr.mxu0 0.0
    %5578 = vmatpush1.msra.mxu0 0.0
    %5579 = vmatprep.subr.mxu0 0.0
    %5580 = vmatpush1.msra.mxu0 0.0
    %5581 = vmatprep.subr.mxu0 0.0
    %5582 = vmatpush1.msra.mxu0 0.0
    %5583 = vmatprep.subr.mxu0 0.0
    %5584 = vmatpush1.msra.mxu0 0.0
    %5585 = vmatprep.subr.mxu0 0.0
    %5586 = vmatpush1.msra.mxu0 0.0
    %5587 = vmatprep.subr.mxu0 0.0
    %5588 = vmatpush1.msra.mxu0 0.0
    %5589 = vmatprep.subr.mxu0 0.0
    %5590 = vmatpush1.msra.mxu0 0.0
    %5591 = vmatprep.subr.mxu0 0.0
    %5592 = vmatpush1.msra.mxu0 0.0
    %5593 = vmatprep.subr.mxu0 0.0
    %5594 = vmatpush1.msra.mxu0 0.0
    %5595 = vmatprep.subr.mxu0 0.0
    %5596 = vmatpush1.msra.mxu0 0.0
    %5597 = vmatprep.subr.mxu0 0.0
    %5598 = vmatpush1.msra.mxu0 0.0
    %5599 = vmatprep.subr.mxu0 0.0
    %5600 = vmatpush1.msra.mxu0 0.0
    %5601 = vmatprep.subr.mxu0 0.0
    %5602 = vmatpush1.msra.mxu0 0.0
    %5603 = vmatprep.mubr.f32.mxu0 0.0
    %5604 = vmatmul.mubr.f32.gmra.mrb[0].mxu0 %v5465
    %v5605 = vpop.f32.mrb[0].mxu0
    %v5606 = vadd.f32 0.0, %v5605
    %v5607 = vpop.f32.mrb[0].mxu0
    %5608 = vdwg.mxu0
    %v5609 = vadd.f32 %v4375, %v5535
    %v5610 = vxor.u32 %v5609, 2147483648
    %v5611 = vmul.f32 %v5610, 1.442695
    %v5612 = vpow.pop %v5611
    %v5613 = vadd.f32 %v5612, 1.0
    %v5614 = vrcp.pop %v5613
    %v5615 = vmul.f32 1.0, %v5614
    %v5616 = vadd.f32 %v4377, %v5537
    %v5617 = vxor.u32 %v5616, 2147483648
    %v5618 = vmul.f32 %v5617, 1.442695
    %v5619 = vpow.pop %v5618
    %v5620 = vadd.f32 %v5619, 1.0
    %v5621 = vrcp.pop %v5620
    %v5622 = vmul.f32 1.0, %v5621
    %v5623 = vadd.f32 %v5606, %v4637
    %v5624 = vmul.f32 %v5615, %v5623
    %v5625 = vadd.f32 %v4573, %v5624
    %v5626 = vtanh.pop %v5625
    %v5627 = vsub.f32 1.0, %v5622
    %v5628 = vmul.f32 %v5627, %v5626
    %v5629 = vmul.f32 %v5622, %v5465
    %v5630 = vadd.f32 %v5628, %v5629
    %vm5631 = vcmp.eq.s32.totalorder %v4642, 5
    %v5632 = vsel %vm5631, %v5630, %v5467
    %5633 = vmatprep.subr.mxu0 %v4585
    %5634 = vmatpush1.msra.mxu0 %v4584
    %5635 = vmatprep.subr.mxu0 %v4588
    %5636 = vmatpush1.msra.mxu0 %v4587
    %5637 = vmatprep.subr.mxu0 %v4591
    %5638 = vmatpush1.msra.mxu0 %v4590
    %5639 = vmatprep.subr.mxu0 %v4594
    %5640 = vmatpush1.msra.mxu0 %v4593
    %5641 = vmatprep.subr.mxu0 %v4597
    %5642 = vmatpush1.msra.mxu0 %v4596
    %5643 = vmatprep.subr.mxu0 %v4600
    %5644 = vmatpush1.msra.mxu0 %v4599
    %5645 = vmatprep.subr.mxu0 %v4603
    %5646 = vmatpush1.msra.mxu0 %v4602
    %5647 = vmatprep.subr.mxu0 %v4606
    %5648 = vmatpush1.msra.mxu0 %v4605
    %5649 = vmatprep.subr.mxu0 %v4609
    %5650 = vmatpush1.msra.mxu0 %v4608
    %5651 = vmatprep.subr.mxu0 %v4612
    %5652 = vmatpush1.msra.mxu0 %v4611
    %5653 = vmatprep.subr.mxu0 %v4615
    %5654 = vmatpush1.msra.mxu0 %v4614
    %5655 = vmatprep.subr.mxu0 %v4618
    %5656 = vmatpush1.msra.mxu0 %v4617
    %5657 = vmatprep.subr.mxu0 %v4621
    %5658 = vmatpush1.msra.mxu0 %v4620
    %5659 = vmatprep.subr.mxu0 %v4624
    %5660 = vmatpush1.msra.mxu0 %v4623
    %5661 = vmatprep.subr.mxu0 %v4627
    %5662 = vmatpush1.msra.mxu0 %v4626
    %5663 = vmatprep.subr.mxu0 %v4630
    %5664 = vmatpush1.msra.mxu0 %v4629
    %5665 = vmatprep.subr.mxu0 0.0
    %5666 = vmatpush1.msra.mxu0 0.0
    %5667 = vmatprep.subr.mxu0 0.0
    %5668 = vmatpush1.msra.mxu0 0.0
    %5669 = vmatprep.subr.mxu0 0.0
    %5670 = vmatpush1.msra.mxu0 0.0
    %5671 = vmatprep.subr.mxu0 0.0
    %5672 = vmatpush1.msra.mxu0 0.0
    %5673 = vmatprep.subr.mxu0 0.0
    %5674 = vmatpush1.msra.mxu0 0.0
    %5675 = vmatprep.subr.mxu0 0.0
    %5676 = vmatpush1.msra.mxu0 0.0
    %5677 = vmatprep.subr.mxu0 0.0
    %5678 = vmatpush1.msra.mxu0 0.0
    %5679 = vmatprep.subr.mxu0 0.0
    %5680 = vmatpush1.msra.mxu0 0.0
    %5681 = vmatprep.subr.mxu0 0.0
    %5682 = vmatpush1.msra.mxu0 0.0
    %5683 = vmatprep.subr.mxu0 0.0
    %5684 = vmatpush1.msra.mxu0 0.0
    %5685 = vmatprep.subr.mxu0 0.0
    %5686 = vmatpush1.msra.mxu0 0.0
    %5687 = vmatprep.subr.mxu0 0.0
    %5688 = vmatpush1.msra.mxu0 0.0
    %5689 = vmatprep.subr.mxu0 0.0
    %5690 = vmatpush1.msra.mxu0 0.0
    %5691 = vmatprep.subr.mxu0 0.0
    %5692 = vmatpush1.msra.mxu0 0.0
    %5693 = vmatprep.subr.mxu0 0.0
    %5694 = vmatpush1.msra.mxu0 0.0
    %5695 = vmatprep.subr.mxu0 0.0
    %5696 = vmatpush1.msra.mxu0 0.0
    %5697 = vmatprep.mubr.f32.mxu0 0.0
    %5698 = vmatmul.mubr.f32.gmra.mrb[0].mxu0 %v5630
    %v5699 = vpop.f32.mrb[0].mxu0
    %v5700 = vadd.f32 0.0, %v5699
    %v5701 = vpop.f32.mrb[0].mxu0
    %v5702 = vadd.f32 0.0, %v5701
    %5703 = vdwg.mxu0
    %5704 = vmatprep.subr.mxu0 0.0
    %5705 = vmatpush1.msra.mxu0 %v4586
    %5706 = vmatprep.subr.mxu0 0.0
    %5707 = vmatpush1.msra.mxu0 %v4589
    %5708 = vmatprep.subr.mxu0 0.0
    %5709 = vmatpush1.msra.mxu0 %v4592
    %5710 = vmatprep.subr.mxu0 0.0
    %5711 = vmatpush1.msra.mxu0 %v4595
    %5712 = vmatprep.subr.mxu0 0.0
    %5713 = vmatpush1.msra.mxu0 %v4598
    %5714 = vmatprep.subr.mxu0 0.0
    %5715 = vmatpush1.msra.mxu0 %v4601
    %5716 = vmatprep.subr.mxu0 0.0
    %5717 = vmatpush1.msra.mxu0 %v4604
    %5718 = vmatprep.subr.mxu0 0.0
    %5719 = vmatpush1.msra.mxu0 %v4607
    %5720 = vmatprep.subr.mxu0 0.0
    %5721 = vmatpush1.msra.mxu0 %v4610
    %5722 = vmatprep.subr.mxu0 0.0
    %5723 = vmatpush1.msra.mxu0 %v4613
    %5724 = vmatprep.subr.mxu0 0.0
    %5725 = vmatpush1.msra.mxu0 %v4616
    %5726 = vmatprep.subr.mxu0 0.0
    %5727 = vmatpush1.msra.mxu0 %v4619
    %5728 = vmatprep.subr.mxu0 0.0
    %5729 = vmatpush1.msra.mxu0 %v4622
    %5730 = vmatprep.subr.mxu0 0.0
    %5731 = vmatpush1.msra.mxu0 %v4625
    %5732 = vmatprep.subr.mxu0 0.0
    %5733 = vmatpush1.msra.mxu0 %v4628
    %5734 = vmatprep.subr.mxu0 0.0
    %5735 = vmatpush1.msra.mxu0 %v4631
    %5736 = vmatprep.subr.mxu0 0.0
    %5737 = vmatpush1.msra.mxu0 0.0
    %5738 = vmatprep.subr.mxu0 0.0
    %5739 = vmatpush1.msra.mxu0 0.0
    %5740 = vmatprep.subr.mxu0 0.0
    %5741 = vmatpush1.msra.mxu0 0.0
    %5742 = vmatprep.subr.mxu0 0.0
    %5743 = vmatpush1.msra.mxu0 0.0
    %5744 = vmatprep.subr.mxu0 0.0
    %5745 = vmatpush1.msra.mxu0 0.0
    %5746 = vmatprep.subr.mxu0 0.0
    %5747 = vmatpush1.msra.mxu0 0.0
    %5748 = vmatprep.subr.mxu0 0.0
    %5749 = vmatpush1.msra.mxu0 0.0
    %5750 = vmatprep.subr.mxu0 0.0
    %5751 = vmatpush1.msra.mxu0 0.0
    %5752 = vmatprep.subr.mxu0 0.0
    %5753 = vmatpush1.msra.mxu0 0.0
    %5754 = vmatprep.subr.mxu0 0.0
    %5755 = vmatpush1.msra.mxu0 0.0
    %5756 = vmatprep.subr.mxu0 0.0
    %5757 = vmatpush1.msra.mxu0 0.0
    %5758 = vmatprep.subr.mxu0 0.0
    %5759 = vmatpush1.msra.mxu0 0.0
    %5760 = vmatprep.subr.mxu0 0.0
    %5761 = vmatpush1.msra.mxu0 0.0
    %5762 = vmatprep.subr.mxu0 0.0
    %5763 = vmatpush1.msra.mxu0 0.0
    %5764 = vmatprep.subr.mxu0 0.0
    %5765 = vmatpush1.msra.mxu0 0.0
    %5766 = vmatprep.subr.mxu0 0.0
    %5767 = vmatpush1.msra.mxu0 0.0
    %5768 = vmatprep.mubr.f32.mxu0 0.0
    %5769 = vmatmul.mubr.f32.gmra.mrb[0].mxu0 %v5630
    %v5770 = vpop.f32.mrb[0].mxu0
    %v5771 = vadd.f32 0.0, %v5770
    %v5772 = vpop.f32.mrb[0].mxu0
    %5773 = vdwg.mxu0
    %v5774 = vadd.f32 %v4381, %v5700
    %v5775 = vxor.u32 %v5774, 2147483648
    %v5776 = vmul.f32 %v5775, 1.442695
    %v5777 = vpow.pop %v5776
    %v5778 = vadd.f32 %v5777, 1.0
    %v5779 = vrcp.pop %v5778
    %v5780 = vmul.f32 1.0, %v5779
    %v5781 = vadd.f32 %v4383, %v5702
    %v5782 = vxor.u32 %v5781, 2147483648
    %v5783 = vmul.f32 %v5782, 1.442695
    %v5784 = vpow.pop %v5783
    %v5785 = vadd.f32 %v5784, 1.0
    %v5786 = vrcp.pop %v5785
    %v5787 = vmul.f32 1.0, %v5786
    %v5788 = vadd.f32 %v5771, %v4637
    %v5789 = vmul.f32 %v5780, %v5788
    %v5790 = vadd.f32 %v4578, %v5789
    %v5791 = vtanh.pop %v5790
    %v5792 = vsub.f32 1.0, %v5787
    %v5793 = vmul.f32 %v5792, %v5791
    %v5794 = vmul.f32 %v5787, %v5630
    %v5795 = vadd.f32 %v5793, %v5794
    %vm5796 = vcmp.eq.s32.totalorder %v4642, 6
    %v5797 = vsel %vm5796, %v5795, %v5632
    %5798 = vmatprep.subr.mxu0 %v4585
    %5799 = vmatpush1.msra.mxu0 %v4584
    %5800 = vmatprep.subr.mxu0 %v4588
    %5801 = vmatpush1.msra.mxu0 %v4587
    %5802 = vmatprep.subr.mxu0 %v4591
    %5803 = vmatpush1.msra.mxu0 %v4590
    %5804 = vmatprep.subr.mxu0 %v4594
    %5805 = vmatpush1.msra.mxu0 %v4593
    %5806 = vmatprep.subr.mxu0 %v4597
    %5807 = vmatpush1.msra.mxu0 %v4596
    %5808 = vmatprep.subr.mxu0 %v4600
    %5809 = vmatpush1.msra.mxu0 %v4599
    %5810 = vmatprep.subr.mxu0 %v4603
    %5811 = vmatpush1.msra.mxu0 %v4602
    %5812 = vmatprep.subr.mxu0 %v4606
    %5813 = vmatpush1.msra.mxu0 %v4605
    %5814 = vmatprep.subr.mxu0 %v4609
    %5815 = vmatpush1.msra.mxu0 %v4608
    %5816 = vmatprep.subr.mxu0 %v4612
    %5817 = vmatpush1.msra.mxu0 %v4611
    %5818 = vmatprep.subr.mxu0 %v4615
    %5819 = vmatpush1.msra.mxu0 %v4614
    %5820 = vmatprep.subr.mxu0 %v4618
    %5821 = vmatpush1.msra.mxu0 %v4617
    %5822 = vmatprep.subr.mxu0 %v4621
    %5823 = vmatpush1.msra.mxu0 %v4620
    %5824 = vmatprep.subr.mxu0 %v4624
    %5825 = vmatpush1.msra.mxu0 %v4623
    %5826 = vmatprep.subr.mxu0 %v4627
    %5827 = vmatpush1.msra.mxu0 %v4626
    %5828 = vmatprep.subr.mxu0 %v4630
    %5829 = vmatpush1.msra.mxu0 %v4629
    %5830 = vmatprep.subr.mxu0 0.0
    %5831 = vmatpush1.msra.mxu0 0.0
    %5832 = vmatprep.subr.mxu0 0.0
    %5833 = vmatpush1.msra.mxu0 0.0
    %5834 = vmatprep.subr.mxu0 0.0
    %5835 = vmatpush1.msra.mxu0 0.0
    %5836 = vmatprep.subr.mxu0 0.0
    %5837 = vmatpush1.msra.mxu0 0.0
    %5838 = vmatprep.subr.mxu0 0.0
    %5839 = vmatpush1.msra.mxu0 0.0
    %5840 = vmatprep.subr.mxu0 0.0
    %5841 = vmatpush1.msra.mxu0 0.0
    %5842 = vmatprep.subr.mxu0 0.0
    %5843 = vmatpush1.msra.mxu0 0.0
    %5844 = vmatprep.subr.mxu0 0.0
    %5845 = vmatpush1.msra.mxu0 0.0
    %5846 = vmatprep.subr.mxu0 0.0
    %5847 = vmatpush1.msra.mxu0 0.0
    %5848 = vmatprep.subr.mxu0 0.0
    %5849 = vmatpush1.msra.mxu0 0.0
    %5850 = vmatprep.subr.mxu0 0.0
    %5851 = vmatpush1.msra.mxu0 0.0
    %5852 = vmatprep.subr.mxu0 0.0
    %5853 = vmatpush1.msra.mxu0 0.0
    %5854 = vmatprep.subr.mxu0 0.0
    %5855 = vmatpush1.msra.mxu0 0.0
    %5856 = vmatprep.subr.mxu0 0.0
    %5857 = vmatpush1.msra.mxu0 0.0
    %5858 = vmatprep.subr.mxu0 0.0
    %5859 = vmatpush1.msra.mxu0 0.0
    %5860 = vmatprep.subr.mxu0 0.0
    %5861 = vmatpush1.msra.mxu0 0.0
    %5862 = vmatprep.mubr.f32.mxu0 0.0
    %5863 = vmatmul.mubr.f32.gmra.mrb[0].mxu0 %v5795
    %v5864 = vpop.f32.mrb[0].mxu0
    %v5865 = vadd.f32 0.0, %v5864
    %v5866 = vpop.f32.mrb[0].mxu0
    %v5867 = vadd.f32 0.0, %v5866
    %5868 = vdwg.mxu0
    %5869 = vmatprep.subr.mxu0 0.0
    %5870 = vmatpush1.msra.mxu0 %v4586
    %5871 = vmatprep.subr.mxu0 0.0
    %5872 = vmatpush1.msra.mxu0 %v4589
    %5873 = vmatprep.subr.mxu0 0.0
    %5874 = vmatpush1.msra.mxu0 %v4592
    %5875 = vmatprep.subr.mxu0 0.0
    %5876 = vmatpush1.msra.mxu0 %v4595
    %5877 = vmatprep.subr.mxu0 0.0
    %5878 = vmatpush1.msra.mxu0 %v4598
    %5879 = vmatprep.subr.mxu0 0.0
    %5880 = vmatpush1.msra.mxu0 %v4601
    %5881 = vmatprep.subr.mxu0 0.0
    %5882 = vmatpush1.msra.mxu0 %v4604
    %5883 = vmatprep.subr.mxu0 0.0
    %5884 = vmatpush1.msra.mxu0 %v4607
    %5885 = vmatprep.subr.mxu0 0.0
    %5886 = vmatpush1.msra.mxu0 %v4610
    %5887 = vmatprep.subr.mxu0 0.0
    %5888 = vmatpush1.msra.mxu0 %v4613
    %5889 = vmatprep.subr.mxu0 0.0
    %5890 = vmatpush1.msra.mxu0 %v4616
    %5891 = vmatprep.subr.mxu0 0.0
    %5892 = vmatpush1.msra.mxu0 %v4619
    %5893 = vmatprep.subr.mxu0 0.0
    %5894 = vmatpush1.msra.mxu0 %v4622
    %5895 = vmatprep.subr.mxu0 0.0
    %5896 = vmatpush1.msra.mxu0 %v4625
    %5897 = vmatprep.subr.mxu0 0.0
    %5898 = vmatpush1.msra.mxu0 %v4628
    %5899 = vmatprep.subr.mxu0 0.0
    %5900 = vmatpush1.msra.mxu0 %v4631
    %5901 = vmatprep.subr.mxu0 0.0
    %5902 = vmatpush1.msra.mxu0 0.0
    %5903 = vmatprep.subr.mxu0 0.0
    %5904 = vmatpush1.msra.mxu0 0.0
    %5905 = vmatprep.subr.mxu0 0.0
    %5906 = vmatpush1.msra.mxu0 0.0
    %5907 = vmatprep.subr.mxu0 0.0
    %5908 = vmatpush1.msra.mxu0 0.0
    %5909 = vmatprep.subr.mxu0 0.0
    %5910 = vmatpush1.msra.mxu0 0.0
    %5911 = vmatprep.subr.mxu0 0.0
    %5912 = vmatpush1.msra.mxu0 0.0
    %5913 = vmatprep.subr.mxu0 0.0
    %5914 = vmatpush1.msra.mxu0 0.0
    %5915 = vmatprep.subr.mxu0 0.0
    %5916 = vmatpush1.msra.mxu0 0.0
    %5917 = vmatprep.subr.mxu0 0.0
    %5918 = vmatpush1.msra.mxu0 0.0
    %5919 = vmatprep.subr.mxu0 0.0
    %5920 = vmatpush1.msra.mxu0 0.0
    %5921 = vmatprep.subr.mxu0 0.0
    %5922 = vmatpush1.msra.mxu0 0.0
    %5923 = vmatprep.subr.mxu0 0.0
    %5924 = vmatpush1.msra.mxu0 0.0
    %5925 = vmatprep.subr.mxu0 0.0
    %5926 = vmatpush1.msra.mxu0 0.0
    %5927 = vmatprep.subr.mxu0 0.0
    %5928 = vmatpush1.msra.mxu0 0.0
    %5929 = vmatprep.subr.mxu0 0.0
    %5930 = vmatpush1.msra.mxu0 0.0
    %5931 = vmatprep.subr.mxu0 0.0
    %5932 = vmatpush1.msra.mxu0 0.0
    %5933 = vmatprep.mubr.f32.mxu0 0.0
    %5934 = vmatmul.mubr.f32.gmra.mrb[0].mxu0 %v5795
    %v5935 = vpop.f32.mrb[0].mxu0
    %v5936 = vadd.f32 0.0, %v5935
    %v5937 = vpop.f32.mrb[0].mxu0
    %5938 = vdwg.mxu0
    %v5939 = vadd.f32 %v4385, %v5865
    %v5940 = vxor.u32 %v5939, 2147483648
    %v5941 = vmul.f32 %v5940, 1.442695
    %v5942 = vpow.pop %v5941
    %v5943 = vadd.f32 %v5942, 1.0
    %v5944 = vrcp.pop %v5943
    %v5945 = vmul.f32 1.0, %v5944
    %v5946 = vadd.f32 %v4387, %v5867
    %v5947 = vxor.u32 %v5946, 2147483648
    %v5948 = vmul.f32 %v5947, 1.442695
    %v5949 = vpow.pop %v5948
    %v5950 = vadd.f32 %v5949, 1.0
    %v5951 = vrcp.pop %v5950
    %v5952 = vmul.f32 1.0, %v5951
    %v5953 = vadd.f32 %v5936, %v4637
    %v5954 = vmul.f32 %v5945, %v5953
    %v5955 = vadd.f32 %v4581, %v5954
    %v5956 = vtanh.pop %v5955
    %v5957 = vsub.f32 1.0, %v5952
    %v5958 = vmul.f32 %v5957, %v5956
    %v5959 = vmul.f32 %v5952, %v5795
    %v5960 = vadd.f32 %v5958, %v5959
    %vm5961 = vcmp.eq.s32.totalorder %v4642, 7
    %v5962 = vsel %vm5961, %v5960, %v5797
    %v5963 = vld [vmem:[%s12] sm:$0x1]
    %v5965 = vlaneseq
    %v5966 = vshrl.u32 %v5965, 7
    %v5967 = vsub.s32 0, %v5966
    %v5968 = vrot.slane %v5963, %v5967
    %v5970 = vmul.f32 %v3048, %v5968
    %5971 = vadd.xlane.f32.xlu0 %v5970
    %v5972 = vpop.xlane.xlu0 %5971
    %v5973 = vld [vmem:[%s13] sm:$0x1]
    %v5975 = vlaneseq
    %v5976 = vshrl.u32 %v5975, 7
    %v5977 = vsub.s32 0, %v5976
    %v5978 = vrot.slane %v5973, %v5977
    %v5980 = vmul.f32 %v5962, %v5978
    %5981 = vadd.xlane.f32.xlu0 %v5980
    %v5982 = vpop.xlane.xlu0 %5981
    %v5983 = vadd.f32 %v5972, %v5982
    %v5984 = vld [vmem:[#allocation2] sm:$0x1]
    %v5986 = vlaneseq
    %v5987 = vshrl.u32 %v5986, 7
    %v5988 = vsub.s32 0, %v5987
    %v5989 = vrot.slane %v5984, %v5988
    %v5991 = vadd.f32 %v5983, %v5989
    %v5992 = vxor.u32 %v5991, 2147483648
    %v5993 = vmul.f32 %v5992, 1.442695
    %v5994 = vpow.pop %v5993
    %v5995 = vadd.f32 %v5994, 1.0
    %v5996 = vrcp.pop %v5995
    %v5997 = vmul.f32 1.0, %v5996
    %vm5998 = vcmask 7168
    %5999 = vst.msk [vmem:[%s15] sm:$0xff] %vm5998, %v5997
    // Predicated region
    $region86: #{tpu_custom_call.1} parent=1 // pred_check
      _
    $region87: #{tpu_custom_call.1} parent=1 // pred_check_branch
      %6001 = sbr.rel (0) target = $region89
    $region88: #{tpu_custom_call.1} parent=1 // pred_region
      _
    $region89: #{tpu_custom_call.1} parent=1 // pred_fallthru
      _
    // Predicated region
    $region90: #{tpu_custom_call.1} parent=1 // pred_check
      _
    $region91: #{tpu_custom_call.1} parent=1 // pred_check_branch
      %6003 = sbr.rel (0) target = $region93
    $region92: #{tpu_custom_call.1} parent=1 // pred_region
      _
    $region93: #{tpu_custom_call.1} parent=1 // pred_fallthru
      _
    %6004 = vsyncpa [#allocation4], 1
    %6005 = vsyncpa [#allocation6], 1
    %6006 = vsyncpa [#allocation9], 1
    %6007 = vsyncpa [#allocation12], 1

</llo_original>
